<compile_context>
chip_gen: v5e
topology: v5e:2x2
jax: 0.10.0
libtpu: 0.0.40
codegen_flags: <defaults>
</compile_context>

<pallas_src>
import jax
import jax.numpy as jnp
from jax import lax
from jax.experimental import pallas as pl
from jax.experimental.pallas import tpu as pltpu

LRELU_SLOPE = 0.2
IN_EPS = 1e-5

# (kernel, dilation, padding) for relu3, atrous, atrous2, atrous3, clean
_TAIL_LAYERS = ((3, 1, 1), (3, 2, 2), (3, 4, 4), (3, 8, 8), (3, 1, 1))
_LSGAN = (4, 1, 1)   # kernel, dilation, padding (stride 1, no bias/norm/act)


def _lrelu(y):
    return jnp.where(y >= 0, y, LRELU_SLOPE * y)


def _inst_norm_lrelu(y):
    # InstanceNorm2d (no affine, biased var, eps=1e-5) over all spatial
    # positions (rows of y) per channel, followed by LeakyReLU(0.2).
    mean = jnp.mean(y, axis=0, keepdims=True)
    var = jnp.mean(jnp.square(y - mean), axis=0, keepdims=True)
    return _lrelu((y - mean) * lax.rsqrt(var + IN_EPS))


# ----------------------------- Pallas kernels ------------------------------ #

def _matmul_bias_lrelu_kernel(p_ref, w_ref, b_ref, o_ref):
    # p_ref: (M, K) bf16, w_ref: (K, C) bf16, b_ref: (1, C) f32, o_ref: (M, C) f32
    y = jnp.dot(p_ref[...], w_ref[...], preferred_element_type=jnp.float32)
    o_ref[...] = _lrelu(y + b_ref[...])


def _matmul_in_lrelu_kernel(p_ref, w_ref, o_ref):
    # conv (no bias) + InstanceNorm2d + LeakyReLU(0.2), one sample per grid step
    # p_ref: (1, HW, K) bf16, w_ref: (K, C) bf16, o_ref: (1, HW, C) f32
    y = jnp.dot(p_ref[0], w_ref[...], preferred_element_type=jnp.float32)
    o_ref[0] = _inst_norm_lrelu(y)


def _make_tail_kernel(H, W, C):
    """Fused relu3 + atrous1/2/3 + residual + clean + lsgan, one sample/grid step.

    Activations are kept as (H*W, C) f32 matrices.  Each conv layer:
      1. zero-fills a reused padded VMEM scratch and drops the activation rows
         into its centre (static ref stores),
      2. assembles the full im2col patch matrix in a second VMEM scratch from
         statically-indexed slices (lane-axis concats only, no reshapes),
      3. runs ONE bf16 MXU matmul with f32 accumulation.
    """

    def tail_kernel(x_ref, w3_ref, wa1_ref, wa2_ref, wa3_ref, wc_ref, wl_ref,
                    o_ref, pad_ref, patch_ref):

        def conv(act, w_ref, k, d, p):
            # act: (H*W, C) f32 activation matrix for this sample.
            pad_ref[...] = jnp.zeros(pad_ref.shape, jnp.float32)
            for h in range(H):
                pad_ref[p + h, p:p + W, :] = act[h * W:(h + 1) * W, :]
            hout = H + 2 * p - d * (k - 1)
            wout = W + 2 * p - d * (k - 1)
            kk = k * k * C
            for ho in range(hout):
                taps = [pad_ref[ho + i * d, j * d:j * d + wout, :]
                        for i in range(k) for j in range(k)]
                patch_ref[ho * wout:(ho + 1) * wout, 0:kk] = \
                    jnp.concatenate(taps, axis=-1)
            lhs = patch_ref[0:hout * wout, 0:kk].astype(jnp.bfloat16)
            return jnp.dot(lhs, w_ref[...], preferred_element_type=jnp.float32)

        act = x_ref[0]                                         # (H*W, C) f32

        (k0, d0, p0), (k1, d1, p1), (k2, d2, p2), (k3, d3, p3), (k4, d4, p4) = \
            _TAIL_LAYERS
        relu3 = _inst_norm_lrelu(conv(act, w3_ref, k0, d0, p0))
        r = _inst_norm_lrelu(conv(relu3, wa1_ref, k1, d1, p1))
        r = _inst_norm_lrelu(conv(r, wa2_ref, k2, d2, p2))
        r = _inst_norm_lrelu(conv(r, wa3_ref, k3, d3, p3))
        r = relu3 + r                                          # residual (fused)
        r = _inst_norm_lrelu(conv(r, wc_ref, k4, d4, p4))

        kL, dL, pL = _LSGAN                                    # no norm/act/bias
        o_ref[0] = conv(r, wl_ref, kL, dL, pL)                 # (Hl*Wl, 1)

    return tail_kernel


# ------------------------------- glue (JAX) -------------------------------- #

def _im2col(x_nhwc, kh, kw, stride, pad, dil):
    """Conv patches (wrapper side, used only for the strided head layers)."""
    N, H, W, C = x_nhwc.shape
    xp = jnp.pad(x_nhwc, ((0, 0), (pad, pad), (pad, pad), (0, 0)))
    Hout = (H + 2 * pad - dil * (kh - 1) - 1) // stride + 1
    Wout = (W + 2 * pad - dil * (kw - 1) - 1) // stride + 1
    cols = []
    for i in range(kh):
        for j in range(kw):
            sl = xp[:, i * dil: i * dil + stride * Hout: stride,
                       j * dil: j * dil + stride * Wout: stride, :]
            cols.append(sl)
    patches = jnp.stack(cols, axis=3)                 # (N, Hout, Wout, kh*kw, C)
    patches = patches.reshape(N, Hout * Wout, kh * kw * C).astype(jnp.bfloat16)
    return patches, Hout, Wout


def prepare_params(params):
    """Hoisted once outside jit: OIHW weights -> (KH*KW*Cin, Cout) bf16 matrices."""
    def mat(w):
        co, ci, kh, kw = w.shape
        return jnp.transpose(w, (2, 3, 1, 0)).reshape(kh * kw * ci, co).astype(jnp.bfloat16)
    prep = {name: mat(w) for name, w in params.items() if name.endswith("_w")}
    prep["l_b"] = params["l_b"].reshape(1, -1).astype(jnp.float32)
    return prep


def _conv_in_lrelu_call(patches, w_mat):
    N, HW, K = patches.shape
    Cout = w_mat.shape[1]
    return pl.pallas_call(
        _matmul_in_lrelu_kernel,
        out_shape=jax.ShapeDtypeStruct((N, HW, Cout), jnp.float32),
        grid=(N,),
        in_specs=[pl.BlockSpec((1, HW, K), lambda n: (n, 0, 0)),
                  pl.BlockSpec((K, Cout), lambda n: (0, 0))],
        out_specs=pl.BlockSpec((1, HW, Cout), lambda n: (n, 0, 0)),
        compiler_params=pltpu.CompilerParams(dimension_semantics=("parallel",)),
    )(patches, w_mat)


# ------------------------------ forward pass ------------------------------- #

def discriminator_forward(img_A, img_B, prep):
    N = img_A.shape[0]
    x = jnp.transpose(jnp.concatenate([img_A, img_B], axis=1), (0, 2, 3, 1))  # NHWC

    # layer `l`: conv k4 s2 p1 + bias + LeakyReLU (no norm -> batch folded into M)
    patches, Ho, Wo = _im2col(x, 4, 4, 2, 1, 1)
    HW, K = patches.shape[1], patches.shape[2]
    c1 = prep["l_w"].shape[1]
    y = pl.pallas_call(
        _matmul_bias_lrelu_kernel,
        out_shape=jax.ShapeDtypeStruct((N * HW, c1), jnp.float32),
    )(patches.reshape(N * HW, K), prep["l_w"], prep["l_b"])
    x = y.reshape(N, Ho, Wo, c1)

    # relu1 / relu2: conv k4 s2 p1 + InstanceNorm + LeakyReLU (per-sample grid)
    patches, Ho, Wo = _im2col(x, 4, 4, 2, 1, 1)
    y = _conv_in_lrelu_call(patches, prep["relu1_w"])
    x = y.reshape(N, Ho, Wo, y.shape[-1])

    patches, Ht, Wt = _im2col(x, 4, 4, 2, 1, 1)
    relu2 = _conv_in_lrelu_call(patches, prep["relu2_w"])        # (N, Ht*Wt, 64)
    Ct = relu2.shape[-1]

    # fused dilated tail (relu3 .. lsgan), one VMEM-resident kernel per sample
    tail_kernel = _make_tail_kernel(Ht, Wt, Ct)
    ws = [prep["relu3_w"], prep["at1_w"], prep["at2_w"],
          prep["at3_w"], prep["clean_w"], prep["lsgan_w"]]
    kL, dL, pL = _LSGAN
    Hl = Ht + 2 * pL - dL * (kL - 1)
    Wl = Wt + 2 * pL - dL * (kL - 1)
    max_pad = max(p for _, _, p in _TAIL_LAYERS + (_LSGAN,))
    max_kk = max(k * k for k, _, _ in _TAIL_LAYERS + (_LSGAN,))
    out = pl.pallas_call(
        tail_kernel,
        out_shape=jax.ShapeDtypeStruct((N, Hl * Wl, 1), jnp.float32),
        grid=(N,),
        in_specs=[pl.BlockSpec((1, Ht * Wt, Ct), lambda n: (n, 0, 0))]
                 + [pl.BlockSpec(w.shape, lambda n: (0, 0)) for w in ws],
        out_specs=pl.BlockSpec((1, Hl * Wl, 1), lambda n: (n, 0, 0)),
        scratch_shapes=[
            pltpu.VMEM((Ht + 2 * max_pad, Wt + 2 * max_pad, Ct), jnp.float32),
            pltpu.VMEM((Ht * Wt, max_kk * Ct), jnp.float32),
        ],
        compiler_params=pltpu.CompilerParams(dimension_semantics=("parallel",)),
    )(relu2, *ws)
    out = out.reshape(N, Hl, Wl, 1)
    return jnp.transpose(out, (0, 3, 1, 2))                      # NCHW (N,1,Hl,Wl)


# ----------------------------- parameter init ------------------------------ #

def init_params(key, input_nc=3, ndf=8):
    shapes = {
        "l_w": (ndf * 2, input_nc * 2, 4, 4),
        "l_b": (ndf * 2,),
        "relu1_w": (ndf * 4, ndf * 2, 4, 4),
        "relu2_w": (ndf * 8, ndf * 4, 4, 4),
        "relu3_w": (ndf * 8, ndf * 8, 3, 3),
        "at1_w": (ndf * 8, ndf * 8, 3, 3),
        "at2_w": (ndf * 8, ndf * 8, 3, 3),
        "at3_w": (ndf * 8, ndf * 8, 3, 3),
        "clean_w": (ndf * 8, ndf * 8, 3, 3),
        "lsgan_w": (1, ndf * 8, 4, 4),
    }
    params = {}
    keys = jax.random.split(key, len(shapes))
    for (name, shp), k in zip(sorted(shapes.items()), keys):
        params[name] = (0.05 * jax.random.normal(k, shp)).astype(jnp.float32)
    return params


# ----------------------- pure-JAX reference (check) ------------------------ #

def reference_forward(img_A, img_B, params, operand_dtype=jnp.float32):
    def conv(x, w_oihw, stride, pad, dil, bias=None):
        w = jnp.transpose(w_oihw, (2, 3, 1, 0))
        y = lax.conv_general_dilated(
            x.astype(operand_dtype), w.astype(operand_dtype),
            window_strides=(stride, stride), padding=[(pad, pad), (pad, pad)],
            rhs_dilation=(dil, dil), dimension_numbers=("NHWC", "HWIO", "NHWC"),
            preferred_element_type=jnp.float32, precision=lax.Precision.HIGHEST)
        if bias is not None:
            y = y + bias
        return y

    def inorm(y):
        mean = jnp.mean(y, axis=(1, 2), keepdims=True)
        var = jnp.mean(jnp.square(y - mean), axis=(1, 2), keepdims=True)
        return (y - mean) * lax.rsqrt(var + IN_EPS)

    x = jnp.transpose(jnp.concatenate([img_A, img_B], axis=1), (0, 2, 3, 1))
    x = _lrelu(conv(x, params["l_w"], 2, 1, 1, params["l_b"]))
    x = _lrelu(inorm(conv(x, params["relu1_w"], 2, 1, 1)))
    x = _lrelu(inorm(conv(x, params["relu2_w"], 2, 1, 1)))
    relu3 = _lrelu(inorm(conv(x, params["relu3_w"], 1, 1, 1)))
    r = _lrelu(inorm(conv(relu3, params["at1_w"], 1, 2, 2)))
    r = _lrelu(inorm(conv(r, params["at2_w"], 1, 4, 4)))
    r = _lrelu(inorm(conv(r, params["at3_w"], 1, 8, 8)))
    r = relu3 + r
    r = _lrelu(inorm(conv(r, params["clean_w"], 1, 1, 1)))
    out = conv(r, params["lsgan_w"], 1, 1, 1)
    return jnp.transpose(out, (0, 3, 1, 2))


# ---------------------------------- main ----------------------------------- #

if __name__ == "__main__":
    key = jax.random.PRNGKey(0)
    kA, kB, kp = jax.random.split(key, 3)
    # small shapes: batch=2, input_nc=3, spatial=32, ndf=8
    img_A = jax.random.normal(kA, (2, 3, 32, 32), dtype=jnp.float32)
    img_B = jax.random.normal(kB, (2, 3, 32, 32), dtype=jnp.float32)
    params = init_params(kp, input_nc=3, ndf=8)
    prep = prepare_params(params)          # weight prep hoisted out of the forward

    fwd = jax.jit(discriminator_forward)
    out = jax.block_until_ready(fwd(img_A, img_B, prep))

    ref_f32 = reference_forward(img_A, img_B, params, operand_dtype=jnp.float32)
    ref_bf16 = reference_forward(img_A, img_B, params, operand_dtype=jnp.bfloat16)
    assert out.shape == ref_f32.shape, (out.shape, ref_f32.shape)

    if not bool(jnp.all(jnp.isfinite(out))):
        raise SystemExit("KERNEL_MISMATCH: non-finite output")
    # tight check vs a reference using the same bf16 operand precision ...
    err_bf16 = float(jnp.max(jnp.abs(out - ref_bf16)))
    # ... plus a scale-aware bound on the total bf16-operand precision impact vs f32
    scale = float(jnp.max(jnp.abs(ref_f32)))
    err_f32 = float(jnp.max(jnp.abs(out - ref_f32)))
    if err_bf16 > 3e-2 or err_f32 > 0.1 * max(1.0, scale):
        raise SystemExit(
            f"KERNEL_MISMATCH err_bf16={err_bf16} err_f32={err_f32} scale={scale}")
    print("KERNEL_OK")
</pallas_src>

<mosaic_0001>
module attributes {stable_mosaic.version = 11 : i64} {
  func.func @_matmul_bias_lrelu_kernel(%arg0: memref<512x96xbf16, #tpu.memory_space<vmem>>, %arg1: memref<96x16xbf16, #tpu.memory_space<vmem>>, %arg2: memref<1x16xf32, #tpu.memory_space<vmem>>, %arg3: memref<512x16xf32, #tpu.memory_space<vmem>>) attributes {dimension_semantics = [], scalar_prefetch = 0 : i64, scratch_operands = 0 : i64, tpu.core_type = #tpu.core_type<tc>} {
    %c0 = arith.constant 0 : index
    %c0_0 = arith.constant 0 : index
    %0 = vector.load %arg0[%c0, %c0_0] : memref<512x96xbf16, #tpu.memory_space<vmem>>, vector<512x96xbf16>
    %c0_1 = arith.constant 0 : index
    %c0_2 = arith.constant 0 : index
    %1 = vector.load %arg1[%c0_1, %c0_2] : memref<96x16xbf16, #tpu.memory_space<vmem>>, vector<96x16xbf16>
    %cst = arith.constant dense<0.000000e+00> : vector<512x16xf32>
    %2 = tpu.matmul %0, %1, %cst {dimension_numbers = #tpu.dot_dimension_numbers<[1], [0], [0], [1], [0, 0, 1, 1], [], []>} : vector<512x96xbf16>, vector<96x16xbf16>, vector<512x16xf32> -> vector<512x16xf32>
    %c0_3 = arith.constant 0 : index
    %c0_4 = arith.constant 0 : index
    %3 = vector.load %arg2[%c0_3, %c0_4] : memref<1x16xf32, #tpu.memory_space<vmem>>, vector<1x16xf32>
    %4 = vector.broadcast %3 : vector<1x16xf32> to vector<512x16xf32>
    %5 = arith.addf %2, %4 : vector<512x16xf32>
    %cst_5 = arith.constant 0.000000e+00 : f32
    %6 = vector.broadcast %cst_5 : f32 to vector<512x16xf32>
    %7 = arith.cmpf oge, %5, %6 : vector<512x16xf32>
    %cst_6 = arith.constant 2.000000e-01 : f32
    %8 = vector.broadcast %cst_6 : f32 to vector<512x16xf32>
    %9 = arith.mulf %8, %5 : vector<512x16xf32>
    %10 = arith.select %7, %5, %9 : vector<512x16xi1>, vector<512x16xf32>
    %c0_7 = arith.constant 0 : index
    %c0_8 = arith.constant 0 : index
    %11 = vector.load %arg3[%c0_7, %c0_8] : memref<512x16xf32, #tpu.memory_space<vmem>>, vector<512x16xf32>
    tpu.vector_store %arg3[%c0_7, %c0_8], %10 {strides = array<i32>} : memref<512x16xf32, #tpu.memory_space<vmem>>, vector<512x16xf32>,
    return
  }
}

module attributes {stable_mosaic.version = 11 : i64} {
  func.func @_matmul_in_lrelu_kernel(%arg0: i32, %arg1: memref<1x64x256xbf16, #tpu.memory_space<vmem>>, %arg2: memref<256x32xbf16, #tpu.memory_space<vmem>>, %arg3: memref<1x64x32xf32, #tpu.memory_space<vmem>>) attributes {dimension_semantics = [#tpu.dimension_semantics<parallel>], iteration_bounds = array<i64: 2>, scalar_prefetch = 0 : i64, scratch_operands = 0 : i64, tpu.core_type = #tpu.core_type<tc>, window_params = [{transform_indices = @transform_0, window_bounds = array<i64: 1, 64, 256>}, {pipeline_mode = #tpu.pipeline_mode<synchronous>, transform_indices = @transform_1, window_bounds = array<i64: 256, 32>}, {transform_indices = @transform_2, window_bounds = array<i64: 1, 64, 32>}]} {
    %c0 = arith.constant 0 : index
    %c0_0 = arith.constant 0 : index
    %c0_1 = arith.constant 0 : index
    %0 = vector.load %arg1[%c0, %c0_0, %c0_1] : memref<1x64x256xbf16, #tpu.memory_space<vmem>>, vector<1x64x256xbf16>
    %1 = vector.shape_cast %0 : vector<1x64x256xbf16> to vector<64x256xbf16>
    %c0_2 = arith.constant 0 : index
    %c0_3 = arith.constant 0 : index
    %2 = vector.load %arg2[%c0_2, %c0_3] : memref<256x32xbf16, #tpu.memory_space<vmem>>, vector<256x32xbf16>
    %cst = arith.constant dense<0.000000e+00> : vector<64x32xf32>
    %3 = tpu.matmul %1, %2, %cst {dimension_numbers = #tpu.dot_dimension_numbers<[1], [0], [0], [1], [0, 0, 1, 1], [], []>} : vector<64x256xbf16>, vector<256x32xbf16>, vector<64x32xf32> -> vector<64x32xf32>
    %cst_4 = arith.constant dense<0.000000e+00> : vector<32xf32>
    %4 = vector.multi_reduction <add>, %3, %cst_4 [0] : vector<64x32xf32> to vector<32xf32>
    %5 = vector.shape_cast %4 : vector<32xf32> to vector<1x32xf32>
    %cst_5 = arith.constant 6.400000e+01 : f32
    %6 = vector.broadcast %cst_5 : f32 to vector<1x32xf32>
    %7 = arith.divf %5, %6 : vector<1x32xf32>
    %8 = vector.broadcast %7 : vector<1x32xf32> to vector<64x32xf32>
    %9 = arith.subf %3, %8 : vector<64x32xf32>
    %10 = arith.mulf %9, %9 : vector<64x32xf32>
    %cst_6 = arith.constant dense<0.000000e+00> : vector<32xf32>
    %11 = vector.multi_reduction <add>, %10, %cst_6 [0] : vector<64x32xf32> to vector<32xf32>
    %12 = vector.shape_cast %11 : vector<32xf32> to vector<1x32xf32>
    %cst_7 = arith.constant 6.400000e+01 : f32
    %13 = vector.broadcast %cst_7 : f32 to vector<1x32xf32>
    %14 = arith.divf %12, %13 : vector<1x32xf32>
    %15 = vector.broadcast %7 : vector<1x32xf32> to vector<64x32xf32>
    %16 = arith.subf %3, %15 : vector<64x32xf32>
    %cst_8 = arith.constant 9.99999974E-6 : f32
    %17 = vector.broadcast %cst_8 : f32 to vector<1x32xf32>
    %18 = arith.addf %14, %17 : vector<1x32xf32>
    %19 = math.rsqrt %18 : vector<1x32xf32>
    %20 = vector.broadcast %19 : vector<1x32xf32> to vector<64x32xf32>
    %21 = arith.mulf %16, %20 : vector<64x32xf32>
    %cst_9 = arith.constant 0.000000e+00 : f32
    %22 = vector.broadcast %cst_9 : f32 to vector<64x32xf32>
    %23 = arith.cmpf oge, %21, %22 : vector<64x32xf32>
    %cst_10 = arith.constant 2.000000e-01 : f32
    %24 = vector.broadcast %cst_10 : f32 to vector<64x32xf32>
    %25 = arith.mulf %24, %21 : vector<64x32xf32>
    %26 = arith.select %23, %21, %25 : vector<64x32xi1>, vector<64x32xf32>
    %c0_11 = arith.constant 0 : index
    %c0_12 = arith.constant 0 : index
    %c0_13 = arith.constant 0 : index
    %27 = vector.load %arg3[%c0_11, %c0_12, %c0_13] : memref<1x64x32xf32, #tpu.memory_space<vmem>>, vector<1x64x32xf32>
    %28 = vector.shape_cast %27 : vector<1x64x32xf32> to vector<64x32xf32>
    %29 = vector.shape_cast %26 : vector<64x32xf32> to vector<1x64x32xf32>
    tpu.vector_store %arg3[%c0_11, %c0_12, %c0_13], %29 {strides = array<i32>} : memref<1x64x32xf32, #tpu.memory_space<vmem>>, vector<1x64x32xf32>,
    return
  }
  func.func @transform_0(%arg0: i32) -> (i32, i32, i32) {
    %c0_i32 = arith.constant 0 : i32
    %c0_i32_0 = arith.constant 0 : i32
    %c0_i32_1 = arith.constant 0 : i32
    return %arg0, %c0_i32, %c0_i32_0 : i32, i32, i32
  }
  func.func @transform_1(%arg0: i32) -> (i32, i32) {
    %c0_i32 = arith.constant 0 : i32
    %c0_i32_0 = arith.constant 0 : i32
    %c0_i32_1 = arith.constant 0 : i32
    return %c0_i32, %c0_i32_0 : i32, i32
  }
  func.func @transform_2(%arg0: i32) -> (i32, i32, i32) {
    %c0_i32 = arith.constant 0 : i32
    %c0_i32_0 = arith.constant 0 : i32
    %c0_i32_1 = arith.constant 0 : i32
    return %arg0, %c0_i32, %c0_i32_0 : i32, i32, i32
  }
}

module attributes {stable_mosaic.version = 11 : i64} {
  func.func @_matmul_in_lrelu_kernel(%arg0: i32, %arg1: memref<1x16x512xbf16, #tpu.memory_space<vmem>>, %arg2: memref<512x64xbf16, #tpu.memory_space<vmem>>, %arg3: memref<1x16x64xf32, #tpu.memory_space<vmem>>) attributes {dimension_semantics = [#tpu.dimension_semantics<parallel>], iteration_bounds = array<i64: 2>, scalar_prefetch = 0 : i64, scratch_operands = 0 : i64, tpu.core_type = #tpu.core_type<tc>, window_params = [{transform_indices = @transform_0, window_bounds = array<i64: 1, 16, 512>}, {pipeline_mode = #tpu.pipeline_mode<synchronous>, transform_indices = @transform_1, window_bounds = array<i64: 512, 64>}, {transform_indices = @transform_2, window_bounds = array<i64: 1, 16, 64>}]} {
    %c0 = arith.constant 0 : index
    %c0_0 = arith.constant 0 : index
    %c0_1 = arith.constant 0 : index
    %0 = vector.load %arg1[%c0, %c0_0, %c0_1] : memref<1x16x512xbf16, #tpu.memory_space<vmem>>, vector<1x16x512xbf16>
    %1 = vector.shape_cast %0 : vector<1x16x512xbf16> to vector<16x512xbf16>
    %c0_2 = arith.constant 0 : index
    %c0_3 = arith.constant 0 : index
    %2 = vector.load %arg2[%c0_2, %c0_3] : memref<512x64xbf16, #tpu.memory_space<vmem>>, vector<512x64xbf16>
    %cst = arith.constant dense<0.000000e+00> : vector<16x64xf32>
    %3 = tpu.matmul %1, %2, %cst {dimension_numbers = #tpu.dot_dimension_numbers<[1], [0], [0], [1], [0, 0, 1, 1], [], []>} : vector<16x512xbf16>, vector<512x64xbf16>, vector<16x64xf32> -> vector<16x64xf32>
    %cst_4 = arith.constant dense<0.000000e+00> : vector<64xf32>
    %4 = vector.multi_reduction <add>, %3, %cst_4 [0] : vector<16x64xf32> to vector<64xf32>
    %5 = vector.shape_cast %4 : vector<64xf32> to vector<1x64xf32>
    %cst_5 = arith.constant 1.600000e+01 : f32
    %6 = vector.broadcast %cst_5 : f32 to vector<1x64xf32>
    %7 = arith.divf %5, %6 : vector<1x64xf32>
    %8 = vector.broadcast %7 : vector<1x64xf32> to vector<16x64xf32>
    %9 = arith.subf %3, %8 : vector<16x64xf32>
    %10 = arith.mulf %9, %9 : vector<16x64xf32>
    %cst_6 = arith.constant dense<0.000000e+00> : vector<64xf32>
    %11 = vector.multi_reduction <add>, %10, %cst_6 [0] : vector<16x64xf32> to vector<64xf32>
    %12 = vector.shape_cast %11 : vector<64xf32> to vector<1x64xf32>
    %cst_7 = arith.constant 1.600000e+01 : f32
    %13 = vector.broadcast %cst_7 : f32 to vector<1x64xf32>
    %14 = arith.divf %12, %13 : vector<1x64xf32>
    %15 = vector.broadcast %7 : vector<1x64xf32> to vector<16x64xf32>
    %16 = arith.subf %3, %15 : vector<16x64xf32>
    %cst_8 = arith.constant 9.99999974E-6 : f32
    %17 = vector.broadcast %cst_8 : f32 to vector<1x64xf32>
    %18 = arith.addf %14, %17 : vector<1x64xf32>
    %19 = math.rsqrt %18 : vector<1x64xf32>
    %20 = vector.broadcast %19 : vector<1x64xf32> to vector<16x64xf32>
    %21 = arith.mulf %16, %20 : vector<16x64xf32>
    %cst_9 = arith.constant 0.000000e+00 : f32
    %22 = vector.broadcast %cst_9 : f32 to vector<16x64xf32>
    %23 = arith.cmpf oge, %21, %22 : vector<16x64xf32>
    %cst_10 = arith.constant 2.000000e-01 : f32
    %24 = vector.broadcast %cst_10 : f32 to vector<16x64xf32>
    %25 = arith.mulf %24, %21 : vector<16x64xf32>
    %26 = arith.select %23, %21, %25 : vector<16x64xi1>, vector<16x64xf32>
    %c0_11 = arith.constant 0 : index
    %c0_12 = arith.constant 0 : index
    %c0_13 = arith.constant 0 : index
    %27 = vector.load %arg3[%c0_11, %c0_12, %c0_13] : memref<1x16x64xf32, #tpu.memory_space<vmem>>, vector<1x16x64xf32>
    %28 = vector.shape_cast %27 : vector<1x16x64xf32> to vector<16x64xf32>
    %29 = vector.shape_cast %26 : vector<16x64xf32> to vector<1x16x64xf32>
    tpu.vector_store %arg3[%c0_11, %c0_12, %c0_13], %29 {strides = array<i32>} : memref<1x16x64xf32, #tpu.memory_space<vmem>>, vector<1x16x64xf32>,
    return
  }
  func.func @transform_0(%arg0: i32) -> (i32, i32, i32) {
    %c0_i32 = arith.constant 0 : i32
    %c0_i32_0 = arith.constant 0 : i32
    %c0_i32_1 = arith.constant 0 : i32
    return %arg0, %c0_i32, %c0_i32_0 : i32, i32, i32
  }
  func.func @transform_1(%arg0: i32) -> (i32, i32) {
    %c0_i32 = arith.constant 0 : i32
    %c0_i32_0 = arith.constant 0 : i32
    %c0_i32_1 = arith.constant 0 : i32
    return %c0_i32, %c0_i32_0 : i32, i32
  }
  func.func @transform_2(%arg0: i32) -> (i32, i32, i32) {
    %c0_i32 = arith.constant 0 : i32
    %c0_i32_0 = arith.constant 0 : i32
    %c0_i32_1 = arith.constant 0 : i32
    return %arg0, %c0_i32, %c0_i32_0 : i32, i32, i32
  }
}

module attributes {stable_mosaic.version = 11 : i64} {
  func.func @tail_kernel(%arg0: i32, %arg1: memref<1x16x64xf32, #tpu.memory_space<vmem>>, %arg2: memref<576x64xbf16, #tpu.memory_space<vmem>>, %arg3: memref<576x64xbf16, #tpu.memory_space<vmem>>, %arg4: memref<576x64xbf16, #tpu.memory_space<vmem>>, %arg5: memref<576x64xbf16, #tpu.memory_space<vmem>>, %arg6: memref<576x64xbf16, #tpu.memory_space<vmem>>, %arg7: memref<1024x1xbf16, #tpu.memory_space<vmem>>, %arg8: memref<1x9x1xf32, #tpu.memory_space<vmem>>, %arg9: memref<20x20x64xf32, #tpu.memory_space<vmem>>, %arg10: memref<16x1024xf32, #tpu.memory_space<vmem>>) attributes {dimension_semantics = [#tpu.dimension_semantics<parallel>], iteration_bounds = array<i64: 2>, scalar_prefetch = 0 : i64, scratch_operands = 2 : i64, tpu.core_type = #tpu.core_type<tc>, window_params = [{transform_indices = @transform_0, window_bounds = array<i64: 1, 16, 64>}, {pipeline_mode = #tpu.pipeline_mode<synchronous>, transform_indices = @transform_1, window_bounds = array<i64: 576, 64>}, {pipeline_mode = #tpu.pipeline_mode<synchronous>, transform_indices = @transform_2, window_bounds = array<i64: 576, 64>}, {pipeline_mode = #tpu.pipeline_mode<synchronous>, transform_indices = @transform_3, window_bounds = array<i64: 576, 64>}, {pipeline_mode = #tpu.pipeline_mode<synchronous>, transform_indices = @transform_4, window_bounds = array<i64: 576, 64>}, {pipeline_mode = #tpu.pipeline_mode<synchronous>, transform_indices = @transform_5, window_bounds = array<i64: 576, 64>}, {pipeline_mode = #tpu.pipeline_mode<synchronous>, transform_indices = @transform_6, window_bounds = array<i64: 1024, 1>}, {transform_indices = @transform_7, window_bounds = array<i64: 1, 9, 1>}]} {
    %c0 = arith.constant 0 : index
    %c0_0 = arith.constant 0 : index
    %c0_1 = arith.constant 0 : index
    %0 = vector.load %arg1[%c0, %c0_0, %c0_1] : memref<1x16x64xf32, #tpu.memory_space<vmem>>, vector<1x16x64xf32>
    %1 = vector.shape_cast %0 : vector<1x16x64xf32> to vector<16x64xf32>
    %cst = arith.constant 0.000000e+00 : f32
    %2 = vector.broadcast %cst : f32 to vector<20x20x64xf32>
    %c0_2 = arith.constant 0 : index
    %c0_3 = arith.constant 0 : index
    %c0_4 = arith.constant 0 : index
    %3 = vector.load %arg9[%c0_2, %c0_3, %c0_4] : memref<20x20x64xf32, #tpu.memory_space<vmem>>, vector<20x20x64xf32>
    tpu.vector_store %arg9[%c0_2, %c0_3, %c0_4], %2 {strides = array<i32>} : memref<20x20x64xf32, #tpu.memory_space<vmem>>, vector<20x20x64xf32>,
    %4 = vector.extract_strided_slice %1 {offsets = [0, 0], sizes = [4, 64], strides = [1, 1]} : vector<16x64xf32> to vector<4x64xf32>
    %c1 = arith.constant 1 : index
    %c1_5 = arith.constant 1 : index
    %c0_6 = arith.constant 0 : index
    %5 = vector.load %arg9[%c1, %c1_5, %c0_6] : memref<20x20x64xf32, #tpu.memory_space<vmem>>, vector<1x4x64xf32>
    %6 = vector.shape_cast %5 : vector<1x4x64xf32> to vector<4x64xf32>
    %7 = vector.shape_cast %4 : vector<4x64xf32> to vector<1x4x64xf32>
    tpu.vector_store %arg9[%c1, %c1_5, %c0_6], %7 {strides = array<i32>} : memref<20x20x64xf32, #tpu.memory_space<vmem>>, vector<1x4x64xf32>,
    %8 = vector.extract_strided_slice %1 {offsets = [4, 0], sizes = [4, 64], strides = [1, 1]} : vector<16x64xf32> to vector<4x64xf32>
    %c2 = arith.constant 2 : index
    %c1_7 = arith.constant 1 : index
    %c0_8 = arith.constant 0 : index
    %9 = vector.load %arg9[%c2, %c1_7, %c0_8] : memref<20x20x64xf32, #tpu.memory_space<vmem>>, vector<1x4x64xf32>
    %10 = vector.shape_cast %9 : vector<1x4x64xf32> to vector<4x64xf32>
    %11 = vector.shape_cast %8 : vector<4x64xf32> to vector<1x4x64xf32>
    tpu.vector_store %arg9[%c2, %c1_7, %c0_8], %11 {strides = array<i32>} : memref<20x20x64xf32, #tpu.memory_space<vmem>>, vector<1x4x64xf32>,
    %12 = vector.extract_strided_slice %1 {offsets = [8, 0], sizes = [4, 64], strides = [1, 1]} : vector<16x64xf32> to vector<4x64xf32>
    %c3 = arith.constant 3 : index
    %c1_9 = arith.constant 1 : index
    %c0_10 = arith.constant 0 : index
    %13 = vector.load %arg9[%c3, %c1_9, %c0_10] : memref<20x20x64xf32, #tpu.memory_space<vmem>>, vector<1x4x64xf32>
    %14 = vector.shape_cast %13 : vector<1x4x64xf32> to vector<4x64xf32>
    %15 = vector.shape_cast %12 : vector<4x64xf32> to vector<1x4x64xf32>
    tpu.vector_store %arg9[%c3, %c1_9, %c0_10], %15 {strides = array<i32>} : memref<20x20x64xf32, #tpu.memory_space<vmem>>, vector<1x4x64xf32>,
    %16 = vector.extract_strided_slice %1 {offsets = [12, 0], sizes = [4, 64], strides = [1, 1]} : vector<16x64xf32> to vector<4x64xf32>
    %c4 = arith.constant 4 : index
    %c1_11 = arith.constant 1 : index
    %c0_12 = arith.constant 0 : index
    %17 = vector.load %arg9[%c4, %c1_11, %c0_12] : memref<20x20x64xf32, #tpu.memory_space<vmem>>, vector<1x4x64xf32>
    %18 = vector.shape_cast %17 : vector<1x4x64xf32> to vector<4x64xf32>
    %19 = vector.shape_cast %16 : vector<4x64xf32> to vector<1x4x64xf32>
    tpu.vector_store %arg9[%c4, %c1_11, %c0_12], %19 {strides = array<i32>} : memref<20x20x64xf32, #tpu.memory_space<vmem>>, vector<1x4x64xf32>,
    %c0_13 = arith.constant 0 : index
    %c0_14 = arith.constant 0 : index
    %c0_15 = arith.constant 0 : index
    %20 = vector.load %arg9[%c0_13, %c0_14, %c0_15] : memref<20x20x64xf32, #tpu.memory_space<vmem>>, vector<1x4x64xf32>
    %21 = vector.shape_cast %20 : vector<1x4x64xf32> to vector<4x64xf32>
    %c0_16 = arith.constant 0 : index
    %c1_17 = arith.constant 1 : index
    %c0_18 = arith.constant 0 : index
    %22 = vector.load %arg9[%c0_16, %c1_17, %c0_18] : memref<20x20x64xf32, #tpu.memory_space<vmem>>, vector<1x4x64xf32>
    %23 = vector.shape_cast %22 : vector<1x4x64xf32> to vector<4x64xf32>
    %c0_19 = arith.constant 0 : index
    %c2_20 = arith.constant 2 : index
    %c0_21 = arith.constant 0 : index
    %24 = vector.load %arg9[%c0_19, %c2_20, %c0_21] : memref<20x20x64xf32, #tpu.memory_space<vmem>>, vector<1x4x64xf32>
    %25 = vector.shape_cast %24 : vector<1x4x64xf32> to vector<4x64xf32>
    %c1_22 = arith.constant 1 : index
    %c0_23 = arith.constant 0 : index
    %c0_24 = arith.constant 0 : index
    %26 = vector.load %arg9[%c1_22, %c0_23, %c0_24] : memref<20x20x64xf32, #tpu.memory_space<vmem>>, vector<1x4x64xf32>
    %27 = vector.shape_cast %26 : vector<1x4x64xf32> to vector<4x64xf32>
    %c1_25 = arith.constant 1 : index
    %c1_26 = arith.constant 1 : index
    %c0_27 = arith.constant 0 : index
    %28 = vector.load %arg9[%c1_25, %c1_26, %c0_27] : memref<20x20x64xf32, #tpu.memory_space<vmem>>, vector<1x4x64xf32>
    %29 = vector.shape_cast %28 : vector<1x4x64xf32> to vector<4x64xf32>
    %c1_28 = arith.constant 1 : index
    %c2_29 = arith.constant 2 : index
    %c0_30 = arith.constant 0 : index
    %30 = vector.load %arg9[%c1_28, %c2_29, %c0_30] : memref<20x20x64xf32, #tpu.memory_space<vmem>>, vector<1x4x64xf32>
    %31 = vector.shape_cast %30 : vector<1x4x64xf32> to vector<4x64xf32>
    %c2_31 = arith.constant 2 : index
    %c0_32 = arith.constant 0 : index
    %c0_33 = arith.constant 0 : index
    %32 = vector.load %arg9[%c2_31, %c0_32, %c0_33] : memref<20x20x64xf32, #tpu.memory_space<vmem>>, vector<1x4x64xf32>
    %33 = vector.shape_cast %32 : vector<1x4x64xf32> to vector<4x64xf32>
    %c2_34 = arith.constant 2 : index
    %c1_35 = arith.constant 1 : index
    %c0_36 = arith.constant 0 : index
    %34 = vector.load %arg9[%c2_34, %c1_35, %c0_36] : memref<20x20x64xf32, #tpu.memory_space<vmem>>, vector<1x4x64xf32>
    %35 = vector.shape_cast %34 : vector<1x4x64xf32> to vector<4x64xf32>
    %c2_37 = arith.constant 2 : index
    %c2_38 = arith.constant 2 : index
    %c0_39 = arith.constant 0 : index
    %36 = vector.load %arg9[%c2_37, %c2_38, %c0_39] : memref<20x20x64xf32, #tpu.memory_space<vmem>>, vector<1x4x64xf32>
    %37 = vector.shape_cast %36 : vector<1x4x64xf32> to vector<4x64xf32>
    %38 = tpu.concatenate %21, %23, %25, %27, %29, %31, %33, %35, %37 in 1 : vector<4x64xf32>, vector<4x64xf32>, vector<4x64xf32>, vector<4x64xf32>, vector<4x64xf32>, vector<4x64xf32>, vector<4x64xf32>, vector<4x64xf32>, vector<4x64xf32> -> vector<4x576xf32>
    %c0_40 = arith.constant 0 : index
    %c0_41 = arith.constant 0 : index
    %39 = vector.load %arg10[%c0_40, %c0_41] : memref<16x1024xf32, #tpu.memory_space<vmem>>, vector<4x576xf32>
    tpu.vector_store %arg10[%c0_40, %c0_41], %38 {strides = array<i32>} : memref<16x1024xf32, #tpu.memory_space<vmem>>, vector<4x576xf32>,
    %c1_42 = arith.constant 1 : index
    %c0_43 = arith.constant 0 : index
    %c0_44 = arith.constant 0 : index
    %40 = vector.load %arg9[%c1_42, %c0_43, %c0_44] : memref<20x20x64xf32, #tpu.memory_space<vmem>>, vector<1x4x64xf32>
    %41 = vector.shape_cast %40 : vector<1x4x64xf32> to vector<4x64xf32>
    %c1_45 = arith.constant 1 : index
    %c1_46 = arith.constant 1 : index
    %c0_47 = arith.constant 0 : index
    %42 = vector.load %arg9[%c1_45, %c1_46, %c0_47] : memref<20x20x64xf32, #tpu.memory_space<vmem>>, vector<1x4x64xf32>
    %43 = vector.shape_cast %42 : vector<1x4x64xf32> to vector<4x64xf32>
    %c1_48 = arith.constant 1 : index
    %c2_49 = arith.constant 2 : index
    %c0_50 = arith.constant 0 : index
    %44 = vector.load %arg9[%c1_48, %c2_49, %c0_50] : memref<20x20x64xf32, #tpu.memory_space<vmem>>, vector<1x4x64xf32>
    %45 = vector.shape_cast %44 : vector<1x4x64xf32> to vector<4x64xf32>
    %c2_51 = arith.constant 2 : index
    %c0_52 = arith.constant 0 : index
    %c0_53 = arith.constant 0 : index
    %46 = vector.load %arg9[%c2_51, %c0_52, %c0_53] : memref<20x20x64xf32, #tpu.memory_space<vmem>>, vector<1x4x64xf32>
    %47 = vector.shape_cast %46 : vector<1x4x64xf32> to vector<4x64xf32>
    %c2_54 = arith.constant 2 : index
    %c1_55 = arith.constant 1 : index
    %c0_56 = arith.constant 0 : index
    %48 = vector.load %arg9[%c2_54, %c1_55, %c0_56] : memref<20x20x64xf32, #tpu.memory_space<vmem>>, vector<1x4x64xf32>
    %49 = vector.shape_cast %48 : vector<1x4x64xf32> to vector<4x64xf32>
    %c2_57 = arith.constant 2 : index
    %c2_58 = arith.constant 2 : index
    %c0_59 = arith.constant 0 : index
    %50 = vector.load %arg9[%c2_57, %c2_58, %c0_59] : memref<20x20x64xf32, #tpu.memory_space<vmem>>, vector<1x4x64xf32>
    %51 = vector.shape_cast %50 : vector<1x4x64xf32> to vector<4x64xf32>
    %c3_60 = arith.constant 3 : index
    %c0_61 = arith.constant 0 : index
    %c0_62 = arith.constant 0 : index
    %52 = vector.load %arg9[%c3_60, %c0_61, %c0_62] : memref<20x20x64xf32, #tpu.memory_space<vmem>>, vector<1x4x64xf32>
    %53 = vector.shape_cast %52 : vector<1x4x64xf32> to vector<4x64xf32>
    %c3_63 = arith.constant 3 : index
    %c1_64 = arith.constant 1 : index
    %c0_65 = arith.constant 0 : index
    %54 = vector.load %arg9[%c3_63, %c1_64, %c0_65] : memref<20x20x64xf32, #tpu.memory_space<vmem>>, vector<1x4x64xf32>
    %55 = vector.shape_cast %54 : vector<1x4x64xf32> to vector<4x64xf32>
    %c3_66 = arith.constant 3 : index
    %c2_67 = arith.constant 2 : index
    %c0_68 = arith.constant 0 : index
    %56 = vector.load %arg9[%c3_66, %c2_67, %c0_68] : memref<20x20x64xf32, #tpu.memory_space<vmem>>, vector<1x4x64xf32>
    %57 = vector.shape_cast %56 : vector<1x4x64xf32> to vector<4x64xf32>
    %58 = tpu.concatenate %41, %43, %45, %47, %49, %51, %53, %55, %57 in 1 : vector<4x64xf32>, vector<4x64xf32>, vector<4x64xf32>, vector<4x64xf32>, vector<4x64xf32>, vector<4x64xf32>, vector<4x64xf32>, vector<4x64xf32>, vector<4x64xf32> -> vector<4x576xf32>
    %c4_69 = arith.constant 4 : index
    %c0_70 = arith.constant 0 : index
    %59 = vector.load %arg10[%c4_69, %c0_70] : memref<16x1024xf32, #tpu.memory_space<vmem>>, vector<4x576xf32>
    tpu.vector_store %arg10[%c4_69, %c0_70], %58 {strides = array<i32>} : memref<16x1024xf32, #tpu.memory_space<vmem>>, vector<4x576xf32>,
    %c2_71 = arith.constant 2 : index
    %c0_72 = arith.constant 0 : index
    %c0_73 = arith.constant 0 : index
    %60 = vector.load %arg9[%c2_71, %c0_72, %c0_73] : memref<20x20x64xf32, #tpu.memory_space<vmem>>, vector<1x4x64xf32>
    %61 = vector.shape_cast %60 : vector<1x4x64xf32> to vector<4x64xf32>
    %c2_74 = arith.constant 2 : index
    %c1_75 = arith.constant 1 : index
    %c0_76 = arith.constant 0 : index
    %62 = vector.load %arg9[%c2_74, %c1_75, %c0_76] : memref<20x20x64xf32, #tpu.memory_space<vmem>>, vector<1x4x64xf32>
    %63 = vector.shape_cast %62 : vector<1x4x64xf32> to vector<4x64xf32>
    %c2_77 = arith.constant 2 : index
    %c2_78 = arith.constant 2 : index
    %c0_79 = arith.constant 0 : index
    %64 = vector.load %arg9[%c2_77, %c2_78, %c0_79] : memref<20x20x64xf32, #tpu.memory_space<vmem>>, vector<1x4x64xf32>
    %65 = vector.shape_cast %64 : vector<1x4x64xf32> to vector<4x64xf32>
    %c3_80 = arith.constant 3 : index
    %c0_81 = arith.constant 0 : index
    %c0_82 = arith.constant 0 : index
    %66 = vector.load %arg9[%c3_80, %c0_81, %c0_82] : memref<20x20x64xf32, #tpu.memory_space<vmem>>, vector<1x4x64xf32>
    %67 = vector.shape_cast %66 : vector<1x4x64xf32> to vector<4x64xf32>
    %c3_83 = arith.constant 3 : index
    %c1_84 = arith.constant 1 : index
    %c0_85 = arith.constant 0 : index
    %68 = vector.load %arg9[%c3_83, %c1_84, %c0_85] : memref<20x20x64xf32, #tpu.memory_space<vmem>>, vector<1x4x64xf32>
    %69 = vector.shape_cast %68 : vector<1x4x64xf32> to vector<4x64xf32>
    %c3_86 = arith.constant 3 : index
    %c2_87 = arith.constant 2 : index
    %c0_88 = arith.constant 0 : index
    %70 = vector.load %arg9[%c3_86, %c2_87, %c0_88] : memref<20x20x64xf32, #tpu.memory_space<vmem>>, vector<1x4x64xf32>
    %71 = vector.shape_cast %70 : vector<1x4x64xf32> to vector<4x64xf32>
    %c4_89 = arith.constant 4 : index
    %c0_90 = arith.constant 0 : index
    %c0_91 = arith.constant 0 : index
    %72 = vector.load %arg9[%c4_89, %c0_90, %c0_91] : memref<20x20x64xf32, #tpu.memory_space<vmem>>, vector<1x4x64xf32>
    %73 = vector.shape_cast %72 : vector<1x4x64xf32> to vector<4x64xf32>
    %c4_92 = arith.constant 4 : index
    %c1_93 = arith.constant 1 : index
    %c0_94 = arith.constant 0 : index
    %74 = vector.load %arg9[%c4_92, %c1_93, %c0_94] : memref<20x20x64xf32, #tpu.memory_space<vmem>>, vector<1x4x64xf32>
    %75 = vector.shape_cast %74 : vector<1x4x64xf32> to vector<4x64xf32>
    %c4_95 = arith.constant 4 : index
    %c2_96 = arith.constant 2 : index
    %c0_97 = arith.constant 0 : index
    %76 = vector.load %arg9[%c4_95, %c2_96, %c0_97] : memref<20x20x64xf32, #tpu.memory_space<vmem>>, vector<1x4x64xf32>
    %77 = vector.shape_cast %76 : vector<1x4x64xf32> to vector<4x64xf32>
    %78 = tpu.concatenate %61, %63, %65, %67, %69, %71, %73, %75, %77 in 1 : vector<4x64xf32>, vector<4x64xf32>, vector<4x64xf32>, vector<4x64xf32>, vector<4x64xf32>, vector<4x64xf32>, vector<4x64xf32>, vector<4x64xf32>, vector<4x64xf32> -> vector<4x576xf32>
    %c8 = arith.constant 8 : index
    %c0_98 = arith.constant 0 : index
    %79 = vector.load %arg10[%c8, %c0_98] : memref<16x1024xf32, #tpu.memory_space<vmem>>, vector<4x576xf32>
    tpu.vector_store %arg10[%c8, %c0_98], %78 {strides = array<i32>} : memref<16x1024xf32, #tpu.memory_space<vmem>>, vector<4x576xf32>,
    %c3_99 = arith.constant 3 : index
    %c0_100 = arith.constant 0 : index
    %c0_101 = arith.constant 0 : index
    %80 = vector.load %arg9[%c3_99, %c0_100, %c0_101] : memref<20x20x64xf32, #tpu.memory_space<vmem>>, vector<1x4x64xf32>
    %81 = vector.shape_cast %80 : vector<1x4x64xf32> to vector<4x64xf32>
    %c3_102 = arith.constant 3 : index
    %c1_103 = arith.constant 1 : index
    %c0_104 = arith.constant 0 : index
    %82 = vector.load %arg9[%c3_102, %c1_103, %c0_104] : memref<20x20x64xf32, #tpu.memory_space<vmem>>, vector<1x4x64xf32>
    %83 = vector.shape_cast %82 : vector<1x4x64xf32> to vector<4x64xf32>
    %c3_105 = arith.constant 3 : index
    %c2_106 = arith.constant 2 : index
    %c0_107 = arith.constant 0 : index
    %84 = vector.load %arg9[%c3_105, %c2_106, %c0_107] : memref<20x20x64xf32, #tpu.memory_space<vmem>>, vector<1x4x64xf32>
    %85 = vector.shape_cast %84 : vector<1x4x64xf32> to vector<4x64xf32>
    %c4_108 = arith.constant 4 : index
    %c0_109 = arith.constant 0 : index
    %c0_110 = arith.constant 0 : index
    %86 = vector.load %arg9[%c4_108, %c0_109, %c0_110] : memref<20x20x64xf32, #tpu.memory_space<vmem>>, vector<1x4x64xf32>
    %87 = vector.shape_cast %86 : vector<1x4x64xf32> to vector<4x64xf32>
    %c4_111 = arith.constant 4 : index
    %c1_112 = arith.constant 1 : index
    %c0_113 = arith.constant 0 : index
    %88 = vector.load %arg9[%c4_111, %c1_112, %c0_113] : memref<20x20x64xf32, #tpu.memory_space<vmem>>, vector<1x4x64xf32>
    %89 = vector.shape_cast %88 : vector<1x4x64xf32> to vector<4x64xf32>
    %c4_114 = arith.constant 4 : index
    %c2_115 = arith.constant 2 : index
    %c0_116 = arith.constant 0 : index
    %90 = vector.load %arg9[%c4_114, %c2_115, %c0_116] : memref<20x20x64xf32, #tpu.memory_space<vmem>>, vector<1x4x64xf32>
    %91 = vector.shape_cast %90 : vector<1x4x64xf32> to vector<4x64xf32>
    %c5 = arith.constant 5 : index
    %c0_117 = arith.constant 0 : index
    %c0_118 = arith.constant 0 : index
    %92 = vector.load %arg9[%c5, %c0_117, %c0_118] : memref<20x20x64xf32, #tpu.memory_space<vmem>>, vector<1x4x64xf32>
    %93 = vector.shape_cast %92 : vector<1x4x64xf32> to vector<4x64xf32>
    %c5_119 = arith.constant 5 : index
    %c1_120 = arith.constant 1 : index
    %c0_121 = arith.constant 0 : index
    %94 = vector.load %arg9[%c5_119, %c1_120, %c0_121] : memref<20x20x64xf32, #tpu.memory_space<vmem>>, vector<1x4x64xf32>
    %95 = vector.shape_cast %94 : vector<1x4x64xf32> to vector<4x64xf32>
    %c5_122 = arith.constant 5 : index
    %c2_123 = arith.constant 2 : index
    %c0_124 = arith.constant 0 : index
    %96 = vector.load %arg9[%c5_122, %c2_123, %c0_124] : memref<20x20x64xf32, #tpu.memory_space<vmem>>, vector<1x4x64xf32>
    %97 = vector.shape_cast %96 : vector<1x4x64xf32> to vector<4x64xf32>
    %98 = tpu.concatenate %81, %83, %85, %87, %89, %91, %93, %95, %97 in 1 : vector<4x64xf32>, vector<4x64xf32>, vector<4x64xf32>, vector<4x64xf32>, vector<4x64xf32>, vector<4x64xf32>, vector<4x64xf32>, vector<4x64xf32>, vector<4x64xf32> -> vector<4x576xf32>
    %c12 = arith.constant 12 : index
    %c0_125 = arith.constant 0 : index
    %99 = vector.load %arg10[%c12, %c0_125] : memref<16x1024xf32, #tpu.memory_space<vmem>>, vector<4x576xf32>
    tpu.vector_store %arg10[%c12, %c0_125], %98 {strides = array<i32>} : memref<16x1024xf32, #tpu.memory_space<vmem>>, vector<4x576xf32>,
    %c0_126 = arith.constant 0 : index
    %c0_127 = arith.constant 0 : index
    %100 = vector.load %arg10[%c0_126, %c0_127] : memref<16x1024xf32, #tpu.memory_space<vmem>>, vector<16x576xf32>
    %101 = arith.truncf %100 : vector<16x576xf32> to vector<16x576xbf16>
    %c0_128 = arith.constant 0 : index
    %c0_129 = arith.constant 0 : index
    %102 = vector.load %arg2[%c0_128, %c0_129] : memref<576x64xbf16, #tpu.memory_space<vmem>>, vector<576x64xbf16>
    %cst_130 = arith.constant dense<0.000000e+00> : vector<16x64xf32>
    %103 = tpu.matmul %101, %102, %cst_130 {dimension_numbers = #tpu.dot_dimension_numbers<[1], [0], [0], [1], [0, 0, 1, 1], [], []>} : vector<16x576xbf16>, vector<576x64xbf16>, vector<16x64xf32> -> vector<16x64xf32>
    %cst_131 = arith.constant dense<0.000000e+00> : vector<64xf32>
    %104 = vector.multi_reduction <add>, %103, %cst_131 [0] : vector<16x64xf32> to vector<64xf32>
    %105 = vector.shape_cast %104 : vector<64xf32> to vector<1x64xf32>
    %cst_132 = arith.constant 1.600000e+01 : f32
    %106 = vector.broadcast %cst_132 : f32 to vector<1x64xf32>
    %107 = arith.divf %105, %106 : vector<1x64xf32>
    %108 = vector.broadcast %107 : vector<1x64xf32> to vector<16x64xf32>
    %109 = arith.subf %103, %108 : vector<16x64xf32>
    %110 = arith.mulf %109, %109 : vector<16x64xf32>
    %cst_133 = arith.constant dense<0.000000e+00> : vector<64xf32>
    %111 = vector.multi_reduction <add>, %110, %cst_133 [0] : vector<16x64xf32> to vector<64xf32>
    %112 = vector.shape_cast %111 : vector<64xf32> to vector<1x64xf32>
    %cst_134 = arith.constant 1.600000e+01 : f32
    %113 = vector.broadcast %cst_134 : f32 to vector<1x64xf32>
    %114 = arith.divf %112, %113 : vector<1x64xf32>
    %115 = vector.broadcast %107 : vector<1x64xf32> to vector<16x64xf32>
    %116 = arith.subf %103, %115 : vector<16x64xf32>
    %cst_135 = arith.constant 9.99999974E-6 : f32
    %117 = vector.broadcast %cst_135 : f32 to vector<1x64xf32>
    %118 = arith.addf %114, %117 : vector<1x64xf32>
    %119 = math.rsqrt %118 : vector<1x64xf32>
    %120 = vector.broadcast %119 : vector<1x64xf32> to vector<16x64xf32>
    %121 = arith.mulf %116, %120 : vector<16x64xf32>
    %cst_136 = arith.constant 0.000000e+00 : f32
    %122 = vector.broadcast %cst_136 : f32 to vector<16x64xf32>
    %123 = arith.cmpf oge, %121, %122 : vector<16x64xf32>
    %cst_137 = arith.constant 2.000000e-01 : f32
    %124 = vector.broadcast %cst_137 : f32 to vector<16x64xf32>
    %125 = arith.mulf %124, %121 : vector<16x64xf32>
    %126 = arith.select %123, %121, %125 : vector<16x64xi1>, vector<16x64xf32>
    %cst_138 = arith.constant 0.000000e+00 : f32
    %127 = vector.broadcast %cst_138 : f32 to vector<20x20x64xf32>
    %c0_139 = arith.constant 0 : index
    %c0_140 = arith.constant 0 : index
    %c0_141 = arith.constant 0 : index
    %128 = vector.load %arg9[%c0_139, %c0_140, %c0_141] : memref<20x20x64xf32, #tpu.memory_space<vmem>>, vector<20x20x64xf32>
    tpu.vector_store %arg9[%c0_139, %c0_140, %c0_141], %127 {strides = array<i32>} : memref<20x20x64xf32, #tpu.memory_space<vmem>>, vector<20x20x64xf32>,
    %129 = vector.extract_strided_slice %126 {offsets = [0, 0], sizes = [4, 64], strides = [1, 1]} : vector<16x64xf32> to vector<4x64xf32>
    %c2_142 = arith.constant 2 : index
    %c2_143 = arith.constant 2 : index
    %c0_144 = arith.constant 0 : index
    %130 = vector.load %arg9[%c2_142, %c2_143, %c0_144] : memref<20x20x64xf32, #tpu.memory_space<vmem>>, vector<1x4x64xf32>
    %131 = vector.shape_cast %130 : vector<1x4x64xf32> to vector<4x64xf32>
    %132 = vector.shape_cast %129 : vector<4x64xf32> to vector<1x4x64xf32>
    tpu.vector_store %arg9[%c2_142, %c2_143, %c0_144], %132 {strides = array<i32>} : memref<20x20x64xf32, #tpu.memory_space<vmem>>, vector<1x4x64xf32>,
    %133 = vector.extract_strided_slice %126 {offsets = [4, 0], sizes = [4, 64], strides = [1, 1]} : vector<16x64xf32> to vector<4x64xf32>
    %c3_145 = arith.constant 3 : index
    %c2_146 = arith.constant 2 : index
    %c0_147 = arith.constant 0 : index
    %134 = vector.load %arg9[%c3_145, %c2_146, %c0_147] : memref<20x20x64xf32, #tpu.memory_space<vmem>>, vector<1x4x64xf32>
    %135 = vector.shape_cast %134 : vector<1x4x64xf32> to vector<4x64xf32>
    %136 = vector.shape_cast %133 : vector<4x64xf32> to vector<1x4x64xf32>
    tpu.vector_store %arg9[%c3_145, %c2_146, %c0_147], %136 {strides = array<i32>} : memref<20x20x64xf32, #tpu.memory_space<vmem>>, vector<1x4x64xf32>,
    %137 = vector.extract_strided_slice %126 {offsets = [8, 0], sizes = [4, 64], strides = [1, 1]} : vector<16x64xf32> to vector<4x64xf32>
    %c4_148 = arith.constant 4 : index
    %c2_149 = arith.constant 2 : index
    %c0_150 = arith.constant 0 : index
    %138 = vector.load %arg9[%c4_148, %c2_149, %c0_150] : memref<20x20x64xf32, #tpu.memory_space<vmem>>, vector<1x4x64xf32>
    %139 = vector.shape_cast %138 : vector<1x4x64xf32> to vector<4x64xf32>
    %140 = vector.shape_cast %137 : vector<4x64xf32> to vector<1x4x64xf32>
    tpu.vector_store %arg9[%c4_148, %c2_149, %c0_150], %140 {strides = array<i32>} : memref<20x20x64xf32, #tpu.memory_space<vmem>>, vector<1x4x64xf32>,
    %141 = vector.extract_strided_slice %126 {offsets = [12, 0], sizes = [4, 64], strides = [1, 1]} : vector<16x64xf32> to vector<4x64xf32>
    %c5_151 = arith.constant 5 : index
    %c2_152 = arith.constant 2 : index
    %c0_153 = arith.constant 0 : index
    %142 = vector.load %arg9[%c5_151, %c2_152, %c0_153] : memref<20x20x64xf32, #tpu.memory_space<vmem>>, vector<1x4x64xf32>
    %143 = vector.shape_cast %142 : vector<1x4x64xf32> to vector<4x64xf32>
    %144 = vector.shape_cast %141 : vector<4x64xf32> to vector<1x4x64xf32>
    tpu.vector_store %arg9[%c5_151, %c2_152, %c0_153], %144 {strides = array<i32>} : memref<20x20x64xf32, #tpu.memory_space<vmem>>, vector<1x4x64xf32>,
    %c0_154 = arith.constant 0 : index
    %c0_155 = arith.constant 0 : index
    %c0_156 = arith.constant 0 : index
    %145 = vector.load %arg9[%c0_154, %c0_155, %c0_156] : memref<20x20x64xf32, #tpu.memory_space<vmem>>, vector<1x4x64xf32>
    %146 = vector.shape_cast %145 : vector<1x4x64xf32> to vector<4x64xf32>
    %c0_157 = arith.constant 0 : index
    %c2_158 = arith.constant 2 : index
    %c0_159 = arith.constant 0 : index
    %147 = vector.load %arg9[%c0_157, %c2_158, %c0_159] : memref<20x20x64xf32, #tpu.memory_space<vmem>>, vector<1x4x64xf32>
    %148 = vector.shape_cast %147 : vector<1x4x64xf32> to vector<4x64xf32>
    %c0_160 = arith.constant 0 : index
    %c4_161 = arith.constant 4 : index
    %c0_162 = arith.constant 0 : index
    %149 = vector.load %arg9[%c0_160, %c4_161, %c0_162] : memref<20x20x64xf32, #tpu.memory_space<vmem>>, vector<1x4x64xf32>
    %150 = vector.shape_cast %149 : vector<1x4x64xf32> to vector<4x64xf32>
    %c2_163 = arith.constant 2 : index
    %c0_164 = arith.constant 0 : index
    %c0_165 = arith.constant 0 : index
    %151 = vector.load %arg9[%c2_163, %c0_164, %c0_165] : memref<20x20x64xf32, #tpu.memory_space<vmem>>, vector<1x4x64xf32>
    %152 = vector.shape_cast %151 : vector<1x4x64xf32> to vector<4x64xf32>
    %c2_166 = arith.constant 2 : index
    %c2_167 = arith.constant 2 : index
    %c0_168 = arith.constant 0 : index
    %153 = vector.load %arg9[%c2_166, %c2_167, %c0_168] : memref<20x20x64xf32, #tpu.memory_space<vmem>>, vector<1x4x64xf32>
    %154 = vector.shape_cast %153 : vector<1x4x64xf32> to vector<4x64xf32>
    %c2_169 = arith.constant 2 : index
    %c4_170 = arith.constant 4 : index
    %c0_171 = arith.constant 0 : index
    %155 = vector.load %arg9[%c2_169, %c4_170, %c0_171] : memref<20x20x64xf32, #tpu.memory_space<vmem>>, vector<1x4x64xf32>
    %156 = vector.shape_cast %155 : vector<1x4x64xf32> to vector<4x64xf32>
    %c4_172 = arith.constant 4 : index
    %c0_173 = arith.constant 0 : index
    %c0_174 = arith.constant 0 : index
    %157 = vector.load %arg9[%c4_172, %c0_173, %c0_174] : memref<20x20x64xf32, #tpu.memory_space<vmem>>, vector<1x4x64xf32>
    %158 = vector.shape_cast %157 : vector<1x4x64xf32> to vector<4x64xf32>
    %c4_175 = arith.constant 4 : index
    %c2_176 = arith.constant 2 : index
    %c0_177 = arith.constant 0 : index
    %159 = vector.load %arg9[%c4_175, %c2_176, %c0_177] : memref<20x20x64xf32, #tpu.memory_space<vmem>>, vector<1x4x64xf32>
    %160 = vector.shape_cast %159 : vector<1x4x64xf32> to vector<4x64xf32>
    %c4_178 = arith.constant 4 : index
    %c4_179 = arith.constant 4 : index
    %c0_180 = arith.constant 0 : index
    %161 = vector.load %arg9[%c4_178, %c4_179, %c0_180] : memref<20x20x64xf32, #tpu.memory_space<vmem>>, vector<1x4x64xf32>
    %162 = vector.shape_cast %161 : vector<1x4x64xf32> to vector<4x64xf32>
    %163 = tpu.concatenate %146, %148, %150, %152, %154, %156, %158, %160, %162 in 1 : vector<4x64xf32>, vector<4x64xf32>, vector<4x64xf32>, vector<4x64xf32>, vector<4x64xf32>, vector<4x64xf32>, vector<4x64xf32>, vector<4x64xf32>, vector<4x64xf32> -> vector<4x576xf32>
    %c0_181 = arith.constant 0 : index
    %c0_182 = arith.constant 0 : index
    %164 = vector.load %arg10[%c0_181, %c0_182] : memref<16x1024xf32, #tpu.memory_space<vmem>>, vector<4x576xf32>
    tpu.vector_store %arg10[%c0_181, %c0_182], %163 {strides = array<i32>} : memref<16x1024xf32, #tpu.memory_space<vmem>>, vector<4x576xf32>,
    %c1_183 = arith.constant 1 : index
    %c0_184 = arith.constant 0 : index
    %c0_185 = arith.constant 0 : index
    %165 = vector.load %arg9[%c1_183, %c0_184, %c0_185] : memref<20x20x64xf32, #tpu.memory_space<vmem>>, vector<1x4x64xf32>
    %166 = vector.shape_cast %165 : vector<1x4x64xf32> to vector<4x64xf32>
    %c1_186 = arith.constant 1 : index
    %c2_187 = arith.constant 2 : index
    %c0_188 = arith.constant 0 : index
    %167 = vector.load %arg9[%c1_186, %c2_187, %c0_188] : memref<20x20x64xf32, #tpu.memory_space<vmem>>, vector<1x4x64xf32>
    %168 = vector.shape_cast %167 : vector<1x4x64xf32> to vector<4x64xf32>
    %c1_189 = arith.constant 1 : index
    %c4_190 = arith.constant 4 : index
    %c0_191 = arith.constant 0 : index
    %169 = vector.load %arg9[%c1_189, %c4_190, %c0_191] : memref<20x20x64xf32, #tpu.memory_space<vmem>>, vector<1x4x64xf32>
    %170 = vector.shape_cast %169 : vector<1x4x64xf32> to vector<4x64xf32>
    %c3_192 = arith.constant 3 : index
    %c0_193 = arith.constant 0 : index
    %c0_194 = arith.constant 0 : index
    %171 = vector.load %arg9[%c3_192, %c0_193, %c0_194] : memref<20x20x64xf32, #tpu.memory_space<vmem>>, vector<1x4x64xf32>
    %172 = vector.shape_cast %171 : vector<1x4x64xf32> to vector<4x64xf32>
    %c3_195 = arith.constant 3 : index
    %c2_196 = arith.constant 2 : index
    %c0_197 = arith.constant 0 : index
    %173 = vector.load %arg9[%c3_195, %c2_196, %c0_197] : memref<20x20x64xf32, #tpu.memory_space<vmem>>, vector<1x4x64xf32>
    %174 = vector.shape_cast %173 : vector<1x4x64xf32> to vector<4x64xf32>
    %c3_198 = arith.constant 3 : index
    %c4_199 = arith.constant 4 : index
    %c0_200 = arith.constant 0 : index
    %175 = vector.load %arg9[%c3_198, %c4_199, %c0_200] : memref<20x20x64xf32, #tpu.memory_space<vmem>>, vector<1x4x64xf32>
    %176 = vector.shape_cast %175 : vector<1x4x64xf32> to vector<4x64xf32>
    %c5_201 = arith.constant 5 : index
    %c0_202 = arith.constant 0 : index
    %c0_203 = arith.constant 0 : index
    %177 = vector.load %arg9[%c5_201, %c0_202, %c0_203] : memref<20x20x64xf32, #tpu.memory_space<vmem>>, vector<1x4x64xf32>
    %178 = vector.shape_cast %177 : vector<1x4x64xf32> to vector<4x64xf32>
    %c5_204 = arith.constant 5 : index
    %c2_205 = arith.constant 2 : index
    %c0_206 = arith.constant 0 : index
    %179 = vector.load %arg9[%c5_204, %c2_205, %c0_206] : memref<20x20x64xf32, #tpu.memory_space<vmem>>, vector<1x4x64xf32>
    %180 = vector.shape_cast %179 : vector<1x4x64xf32> to vector<4x64xf32>
    %c5_207 = arith.constant 5 : index
    %c4_208 = arith.constant 4 : index
    %c0_209 = arith.constant 0 : index
    %181 = vector.load %arg9[%c5_207, %c4_208, %c0_209] : memref<20x20x64xf32, #tpu.memory_space<vmem>>, vector<1x4x64xf32>
    %182 = vector.shape_cast %181 : vector<1x4x64xf32> to vector<4x64xf32>
    %183 = tpu.concatenate %166, %168, %170, %172, %174, %176, %178, %180, %182 in 1 : vector<4x64xf32>, vector<4x64xf32>, vector<4x64xf32>, vector<4x64xf32>, vector<4x64xf32>, vector<4x64xf32>, vector<4x64xf32>, vector<4x64xf32>, vector<4x64xf32> -> vector<4x576xf32>
    %c4_210 = arith.constant 4 : index
    %c0_211 = arith.constant 0 : index
    %184 = vector.load %arg10[%c4_210, %c0_211] : memref<16x1024xf32, #tpu.memory_space<vmem>>, vector<4x576xf32>
    tpu.vector_store %arg10[%c4_210, %c0_211], %183 {strides = array<i32>} : memref<16x1024xf32, #tpu.memory_space<vmem>>, vector<4x576xf32>,
    %c2_212 = arith.constant 2 : index
    %c0_213 = arith.constant 0 : index
    %c0_214 = arith.constant 0 : index
    %185 = vector.load %arg9[%c2_212, %c0_213, %c0_214] : memref<20x20x64xf32, #tpu.memory_space<vmem>>, vector<1x4x64xf32>
    %186 = vector.shape_cast %185 : vector<1x4x64xf32> to vector<4x64xf32>
    %c2_215 = arith.constant 2 : index
    %c2_216 = arith.constant 2 : index
    %c0_217 = arith.constant 0 : index
    %187 = vector.load %arg9[%c2_215, %c2_216, %c0_217] : memref<20x20x64xf32, #tpu.memory_space<vmem>>, vector<1x4x64xf32>
    %188 = vector.shape_cast %187 : vector<1x4x64xf32> to vector<4x64xf32>
    %c2_218 = arith.constant 2 : index
    %c4_219 = arith.constant 4 : index
    %c0_220 = arith.constant 0 : index
    %189 = vector.load %arg9[%c2_218, %c4_219, %c0_220] : memref<20x20x64xf32, #tpu.memory_space<vmem>>, vector<1x4x64xf32>
    %190 = vector.shape_cast %189 : vector<1x4x64xf32> to vector<4x64xf32>
    %c4_221 = arith.constant 4 : index
    %c0_222 = arith.constant 0 : index
    %c0_223 = arith.constant 0 : index
    %191 = vector.load %arg9[%c4_221, %c0_222, %c0_223] : memref<20x20x64xf32, #tpu.memory_space<vmem>>, vector<1x4x64xf32>
    %192 = vector.shape_cast %191 : vector<1x4x64xf32> to vector<4x64xf32>
    %c4_224 = arith.constant 4 : index
    %c2_225 = arith.constant 2 : index
    %c0_226 = arith.constant 0 : index
    %193 = vector.load %arg9[%c4_224, %c2_225, %c0_226] : memref<20x20x64xf32, #tpu.memory_space<vmem>>, vector<1x4x64xf32>
    %194 = vector.shape_cast %193 : vector<1x4x64xf32> to vector<4x64xf32>
    %c4_227 = arith.constant 4 : index
    %c4_228 = arith.constant 4 : index
    %c0_229 = arith.constant 0 : index
    %195 = vector.load %arg9[%c4_227, %c4_228, %c0_229] : memref<20x20x64xf32, #tpu.memory_space<vmem>>, vector<1x4x64xf32>
    %196 = vector.shape_cast %195 : vector<1x4x64xf32> to vector<4x64xf32>
    %c6 = arith.constant 6 : index
    %c0_230 = arith.constant 0 : index
    %c0_231 = arith.constant 0 : index
    %197 = vector.load %arg9[%c6, %c0_230, %c0_231] : memref<20x20x64xf32, #tpu.memory_space<vmem>>, vector<1x4x64xf32>
    %198 = vector.shape_cast %197 : vector<1x4x64xf32> to vector<4x64xf32>
    %c6_232 = arith.constant 6 : index
    %c2_233 = arith.constant 2 : index
    %c0_234 = arith.constant 0 : index
    %199 = vector.load %arg9[%c6_232, %c2_233, %c0_234] : memref<20x20x64xf32, #tpu.memory_space<vmem>>, vector<1x4x64xf32>
    %200 = vector.shape_cast %199 : vector<1x4x64xf32> to vector<4x64xf32>
    %c6_235 = arith.constant 6 : index
    %c4_236 = arith.constant 4 : index
    %c0_237 = arith.constant 0 : index
    %201 = vector.load %arg9[%c6_235, %c4_236, %c0_237] : memref<20x20x64xf32, #tpu.memory_space<vmem>>, vector<1x4x64xf32>
    %202 = vector.shape_cast %201 : vector<1x4x64xf32> to vector<4x64xf32>
    %203 = tpu.concatenate %186, %188, %190, %192, %194, %196, %198, %200, %202 in 1 : vector<4x64xf32>, vector<4x64xf32>, vector<4x64xf32>, vector<4x64xf32>, vector<4x64xf32>, vector<4x64xf32>, vector<4x64xf32>, vector<4x64xf32>, vector<4x64xf32> -> vector<4x576xf32>
    %c8_238 = arith.constant 8 : index
    %c0_239 = arith.constant 0 : index
    %204 = vector.load %arg10[%c8_238, %c0_239] : memref<16x1024xf32, #tpu.memory_space<vmem>>, vector<4x576xf32>
    tpu.vector_store %arg10[%c8_238, %c0_239], %203 {strides = array<i32>} : memref<16x1024xf32, #tpu.memory_space<vmem>>, vector<4x576xf32>,
    %c3_240 = arith.constant 3 : index
    %c0_241 = arith.constant 0 : index
    %c0_242 = arith.constant 0 : index
    %205 = vector.load %arg9[%c3_240, %c0_241, %c0_242] : memref<20x20x64xf32, #tpu.memory_space<vmem>>, vector<1x4x64xf32>
    %206 = vector.shape_cast %205 : vector<1x4x64xf32> to vector<4x64xf32>
    %c3_243 = arith.constant 3 : index
    %c2_244 = arith.constant 2 : index
    %c0_245 = arith.constant 0 : index
    %207 = vector.load %arg9[%c3_243, %c2_244, %c0_245] : memref<20x20x64xf32, #tpu.memory_space<vmem>>, vector<1x4x64xf32>
    %208 = vector.shape_cast %207 : vector<1x4x64xf32> to vector<4x64xf32>
    %c3_246 = arith.constant 3 : index
    %c4_247 = arith.constant 4 : index
    %c0_248 = arith.constant 0 : index
    %209 = vector.load %arg9[%c3_246, %c4_247, %c0_248] : memref<20x20x64xf32, #tpu.memory_space<vmem>>, vector<1x4x64xf32>
    %210 = vector.shape_cast %209 : vector<1x4x64xf32> to vector<4x64xf32>
    %c5_249 = arith.constant 5 : index
    %c0_250 = arith.constant 0 : index
    %c0_251 = arith.constant 0 : index
    %211 = vector.load %arg9[%c5_249, %c0_250, %c0_251] : memref<20x20x64xf32, #tpu.memory_space<vmem>>, vector<1x4x64xf32>
    %212 = vector.shape_cast %211 : vector<1x4x64xf32> to vector<4x64xf32>
    %c5_252 = arith.constant 5 : index
    %c2_253 = arith.constant 2 : index
    %c0_254 = arith.constant 0 : index
    %213 = vector.load %arg9[%c5_252, %c2_253, %c0_254] : memref<20x20x64xf32, #tpu.memory_space<vmem>>, vector<1x4x64xf32>
    %214 = vector.shape_cast %213 : vector<1x4x64xf32> to vector<4x64xf32>
    %c5_255 = arith.constant 5 : index
    %c4_256 = arith.constant 4 : index
    %c0_257 = arith.constant 0 : index
    %215 = vector.load %arg9[%c5_255, %c4_256, %c0_257] : memref<20x20x64xf32, #tpu.memory_space<vmem>>, vector<1x4x64xf32>
    %216 = vector.shape_cast %215 : vector<1x4x64xf32> to vector<4x64xf32>
    %c7 = arith.constant 7 : index
    %c0_258 = arith.constant 0 : index
    %c0_259 = arith.constant 0 : index
    %217 = vector.load %arg9[%c7, %c0_258, %c0_259] : memref<20x20x64xf32, #tpu.memory_space<vmem>>, vector<1x4x64xf32>
    %218 = vector.shape_cast %217 : vector<1x4x64xf32> to vector<4x64xf32>
    %c7_260 = arith.constant 7 : index
    %c2_261 = arith.constant 2 : index
    %c0_262 = arith.constant 0 : index
    %219 = vector.load %arg9[%c7_260, %c2_261, %c0_262] : memref<20x20x64xf32, #tpu.memory_space<vmem>>, vector<1x4x64xf32>
    %220 = vector.shape_cast %219 : vector<1x4x64xf32> to vector<4x64xf32>
    %c7_263 = arith.constant 7 : index
    %c4_264 = arith.constant 4 : index
    %c0_265 = arith.constant 0 : index
    %221 = vector.load %arg9[%c7_263, %c4_264, %c0_265] : memref<20x20x64xf32, #tpu.memory_space<vmem>>, vector<1x4x64xf32>
    %222 = vector.shape_cast %221 : vector<1x4x64xf32> to vector<4x64xf32>
    %223 = tpu.concatenate %206, %208, %210, %212, %214, %216, %218, %220, %222 in 1 : vector<4x64xf32>, vector<4x64xf32>, vector<4x64xf32>, vector<4x64xf32>, vector<4x64xf32>, vector<4x64xf32>, vector<4x64xf32>, vector<4x64xf32>, vector<4x64xf32> -> vector<4x576xf32>
    %c12_266 = arith.constant 12 : index
    %c0_267 = arith.constant 0 : index
    %224 = vector.load %arg10[%c12_266, %c0_267] : memref<16x1024xf32, #tpu.memory_space<vmem>>, vector<4x576xf32>
    tpu.vector_store %arg10[%c12_266, %c0_267], %223 {strides = array<i32>} : memref<16x1024xf32, #tpu.memory_space<vmem>>, vector<4x576xf32>,
    %c0_268 = arith.constant 0 : index
    %c0_269 = arith.constant 0 : index
    %225 = vector.load %arg10[%c0_268, %c0_269] : memref<16x1024xf32, #tpu.memory_space<vmem>>, vector<16x576xf32>
    %226 = arith.truncf %225 : vector<16x576xf32> to vector<16x576xbf16>
    %c0_270 = arith.constant 0 : index
    %c0_271 = arith.constant 0 : index
    %227 = vector.load %arg3[%c0_270, %c0_271] : memref<576x64xbf16, #tpu.memory_space<vmem>>, vector<576x64xbf16>
    %cst_272 = arith.constant dense<0.000000e+00> : vector<16x64xf32>
    %228 = tpu.matmul %226, %227, %cst_272 {dimension_numbers = #tpu.dot_dimension_numbers<[1], [0], [0], [1], [0, 0, 1, 1], [], []>} : vector<16x576xbf16>, vector<576x64xbf16>, vector<16x64xf32> -> vector<16x64xf32>
    %cst_273 = arith.constant dense<0.000000e+00> : vector<64xf32>
    %229 = vector.multi_reduction <add>, %228, %cst_273 [0] : vector<16x64xf32> to vector<64xf32>
    %230 = vector.shape_cast %229 : vector<64xf32> to vector<1x64xf32>
    %cst_274 = arith.constant 1.600000e+01 : f32
    %231 = vector.broadcast %cst_274 : f32 to vector<1x64xf32>
    %232 = arith.divf %230, %231 : vector<1x64xf32>
    %233 = vector.broadcast %232 : vector<1x64xf32> to vector<16x64xf32>
    %234 = arith.subf %228, %233 : vector<16x64xf32>
    %235 = arith.mulf %234, %234 : vector<16x64xf32>
    %cst_275 = arith.constant dense<0.000000e+00> : vector<64xf32>
    %236 = vector.multi_reduction <add>, %235, %cst_275 [0] : vector<16x64xf32> to vector<64xf32>
    %237 = vector.shape_cast %236 : vector<64xf32> to vector<1x64xf32>
    %cst_276 = arith.constant 1.600000e+01 : f32
    %238 = vector.broadcast %cst_276 : f32 to vector<1x64xf32>
    %239 = arith.divf %237, %238 : vector<1x64xf32>
    %240 = vector.broadcast %232 : vector<1x64xf32> to vector<16x64xf32>
    %241 = arith.subf %228, %240 : vector<16x64xf32>
    %cst_277 = arith.constant 9.99999974E-6 : f32
    %242 = vector.broadcast %cst_277 : f32 to vector<1x64xf32>
    %243 = arith.addf %239, %242 : vector<1x64xf32>
    %244 = math.rsqrt %243 : vector<1x64xf32>
    %245 = vector.broadcast %244 : vector<1x64xf32> to vector<16x64xf32>
    %246 = arith.mulf %241, %245 : vector<16x64xf32>
    %cst_278 = arith.constant 0.000000e+00 : f32
    %247 = vector.broadcast %cst_278 : f32 to vector<16x64xf32>
    %248 = arith.cmpf oge, %246, %247 : vector<16x64xf32>
    %cst_279 = arith.constant 2.000000e-01 : f32
    %249 = vector.broadcast %cst_279 : f32 to vector<16x64xf32>
    %250 = arith.mulf %249, %246 : vector<16x64xf32>
    %251 = arith.select %248, %246, %250 : vector<16x64xi1>, vector<16x64xf32>
    %cst_280 = arith.constant 0.000000e+00 : f32
    %252 = vector.broadcast %cst_280 : f32 to vector<20x20x64xf32>
    %c0_281 = arith.constant 0 : index
    %c0_282 = arith.constant 0 : index
    %c0_283 = arith.constant 0 : index
    %253 = vector.load %arg9[%c0_281, %c0_282, %c0_283] : memref<20x20x64xf32, #tpu.memory_space<vmem>>, vector<20x20x64xf32>
    tpu.vector_store %arg9[%c0_281, %c0_282, %c0_283], %252 {strides = array<i32>} : memref<20x20x64xf32, #tpu.memory_space<vmem>>, vector<20x20x64xf32>,
    %254 = vector.extract_strided_slice %251 {offsets = [0, 0], sizes = [4, 64], strides = [1, 1]} : vector<16x64xf32> to vector<4x64xf32>
    %c4_284 = arith.constant 4 : index
    %c4_285 = arith.constant 4 : index
    %c0_286 = arith.constant 0 : index
    %255 = vector.load %arg9[%c4_284, %c4_285, %c0_286] : memref<20x20x64xf32, #tpu.memory_space<vmem>>, vector<1x4x64xf32>
    %256 = vector.shape_cast %255 : vector<1x4x64xf32> to vector<4x64xf32>
    %257 = vector.shape_cast %254 : vector<4x64xf32> to vector<1x4x64xf32>
    tpu.vector_store %arg9[%c4_284, %c4_285, %c0_286], %257 {strides = array<i32>} : memref<20x20x64xf32, #tpu.memory_space<vmem>>, vector<1x4x64xf32>,
    %258 = vector.extract_strided_slice %251 {offsets = [4, 0], sizes = [4, 64], strides = [1, 1]} : vector<16x64xf32> to vector<4x64xf32>
    %c5_287 = arith.constant 5 : index
    %c4_288 = arith.constant 4 : index
    %c0_289 = arith.constant 0 : index
    %259 = vector.load %arg9[%c5_287, %c4_288, %c0_289] : memref<20x20x64xf32, #tpu.memory_space<vmem>>, vector<1x4x64xf32>
    %260 = vector.shape_cast %259 : vector<1x4x64xf32> to vector<4x64xf32>
    %261 = vector.shape_cast %258 : vector<4x64xf32> to vector<1x4x64xf32>
    tpu.vector_store %arg9[%c5_287, %c4_288, %c0_289], %261 {strides = array<i32>} : memref<20x20x64xf32, #tpu.memory_space<vmem>>, vector<1x4x64xf32>,
    %262 = vector.extract_strided_slice %251 {offsets = [8, 0], sizes = [4, 64], strides = [1, 1]} : vector<16x64xf32> to vector<4x64xf32>
    %c6_290 = arith.constant 6 : index
    %c4_291 = arith.constant 4 : index
    %c0_292 = arith.constant 0 : index
    %263 = vector.load %arg9[%c6_290, %c4_291, %c0_292] : memref<20x20x64xf32, #tpu.memory_space<vmem>>, vector<1x4x64xf32>
    %264 = vector.shape_cast %263 : vector<1x4x64xf32> to vector<4x64xf32>
    %265 = vector.shape_cast %262 : vector<4x64xf32> to vector<1x4x64xf32>
    tpu.vector_store %arg9[%c6_290, %c4_291, %c0_292], %265 {strides = array<i32>} : memref<20x20x64xf32, #tpu.memory_space<vmem>>, vector<1x4x64xf32>,
    %266 = vector.extract_strided_slice %251 {offsets = [12, 0], sizes = [4, 64], strides = [1, 1]} : vector<16x64xf32> to vector<4x64xf32>
    %c7_293 = arith.constant 7 : index
    %c4_294 = arith.constant 4 : index
    %c0_295 = arith.constant 0 : index
    %267 = vector.load %arg9[%c7_293, %c4_294, %c0_295] : memref<20x20x64xf32, #tpu.memory_space<vmem>>, vector<1x4x64xf32>
    %268 = vector.shape_cast %267 : vector<1x4x64xf32> to vector<4x64xf32>
    %269 = vector.shape_cast %266 : vector<4x64xf32> to vector<1x4x64xf32>
    tpu.vector_store %arg9[%c7_293, %c4_294, %c0_295], %269 {strides = array<i32>} : memref<20x20x64xf32, #tpu.memory_space<vmem>>, vector<1x4x64xf32>,
    %c0_296 = arith.constant 0 : index
    %c0_297 = arith.constant 0 : index
    %c0_298 = arith.constant 0 : index
    %270 = vector.load %arg9[%c0_296, %c0_297, %c0_298] : memref<20x20x64xf32, #tpu.memory_space<vmem>>, vector<1x4x64xf32>
    %271 = vector.shape_cast %270 : vector<1x4x64xf32> to vector<4x64xf32>
    %c0_299 = arith.constant 0 : index
    %c4_300 = arith.constant 4 : index
    %c0_301 = arith.constant 0 : index
    %272 = vector.load %arg9[%c0_299, %c4_300, %c0_301] : memref<20x20x64xf32, #tpu.memory_space<vmem>>, vector<1x4x64xf32>
    %273 = vector.shape_cast %272 : vector<1x4x64xf32> to vector<4x64xf32>
    %c0_302 = arith.constant 0 : index
    %c8_303 = arith.constant 8 : index
    %c0_304 = arith.constant 0 : index
    %274 = vector.load %arg9[%c0_302, %c8_303, %c0_304] : memref<20x20x64xf32, #tpu.memory_space<vmem>>, vector<1x4x64xf32>
    %275 = vector.shape_cast %274 : vector<1x4x64xf32> to vector<4x64xf32>
    %c4_305 = arith.constant 4 : index
    %c0_306 = arith.constant 0 : index
    %c0_307 = arith.constant 0 : index
    %276 = vector.load %arg9[%c4_305, %c0_306, %c0_307] : memref<20x20x64xf32, #tpu.memory_space<vmem>>, vector<1x4x64xf32>
    %277 = vector.shape_cast %276 : vector<1x4x64xf32> to vector<4x64xf32>
    %c4_308 = arith.constant 4 : index
    %c4_309 = arith.constant 4 : index
    %c0_310 = arith.constant 0 : index
    %278 = vector.load %arg9[%c4_308, %c4_309, %c0_310] : memref<20x20x64xf32, #tpu.memory_space<vmem>>, vector<1x4x64xf32>
    %279 = vector.shape_cast %278 : vector<1x4x64xf32> to vector<4x64xf32>
    %c4_311 = arith.constant 4 : index
    %c8_312 = arith.constant 8 : index
    %c0_313 = arith.constant 0 : index
    %280 = vector.load %arg9[%c4_311, %c8_312, %c0_313] : memref<20x20x64xf32, #tpu.memory_space<vmem>>, vector<1x4x64xf32>
    %281 = vector.shape_cast %280 : vector<1x4x64xf32> to vector<4x64xf32>
    %c8_314 = arith.constant 8 : index
    %c0_315 = arith.constant 0 : index
    %c0_316 = arith.constant 0 : index
    %282 = vector.load %arg9[%c8_314, %c0_315, %c0_316] : memref<20x20x64xf32, #tpu.memory_space<vmem>>, vector<1x4x64xf32>
    %283 = vector.shape_cast %282 : vector<1x4x64xf32> to vector<4x64xf32>
    %c8_317 = arith.constant 8 : index
    %c4_318 = arith.constant 4 : index
    %c0_319 = arith.constant 0 : index
    %284 = vector.load %arg9[%c8_317, %c4_318, %c0_319] : memref<20x20x64xf32, #tpu.memory_space<vmem>>, vector<1x4x64xf32>
    %285 = vector.shape_cast %284 : vector<1x4x64xf32> to vector<4x64xf32>
    %c8_320 = arith.constant 8 : index
    %c8_321 = arith.constant 8 : index
    %c0_322 = arith.constant 0 : index
    %286 = vector.load %arg9[%c8_320, %c8_321, %c0_322] : memref<20x20x64xf32, #tpu.memory_space<vmem>>, vector<1x4x64xf32>
    %287 = vector.shape_cast %286 : vector<1x4x64xf32> to vector<4x64xf32>
    %288 = tpu.concatenate %271, %273, %275, %277, %279, %281, %283, %285, %287 in 1 : vector<4x64xf32>, vector<4x64xf32>, vector<4x64xf32>, vector<4x64xf32>, vector<4x64xf32>, vector<4x64xf32>, vector<4x64xf32>, vector<4x64xf32>, vector<4x64xf32> -> vector<4x576xf32>
    %c0_323 = arith.constant 0 : index
    %c0_324 = arith.constant 0 : index
    %289 = vector.load %arg10[%c0_323, %c0_324] : memref<16x1024xf32, #tpu.memory_space<vmem>>, vector<4x576xf32>
    tpu.vector_store %arg10[%c0_323, %c0_324], %288 {strides = array<i32>} : memref<16x1024xf32, #tpu.memory_space<vmem>>, vector<4x576xf32>,
    %c1_325 = arith.constant 1 : index
    %c0_326 = arith.constant 0 : index
    %c0_327 = arith.constant 0 : index
    %290 = vector.load %arg9[%c1_325, %c0_326, %c0_327] : memref<20x20x64xf32, #tpu.memory_space<vmem>>, vector<1x4x64xf32>
    %291 = vector.shape_cast %290 : vector<1x4x64xf32> to vector<4x64xf32>
    %c1_328 = arith.constant 1 : index
    %c4_329 = arith.constant 4 : index
    %c0_330 = arith.constant 0 : index
    %292 = vector.load %arg9[%c1_328, %c4_329, %c0_330] : memref<20x20x64xf32, #tpu.memory_space<vmem>>, vector<1x4x64xf32>
    %293 = vector.shape_cast %292 : vector<1x4x64xf32> to vector<4x64xf32>
    %c1_331 = arith.constant 1 : index
    %c8_332 = arith.constant 8 : index
    %c0_333 = arith.constant 0 : index
    %294 = vector.load %arg9[%c1_331, %c8_332, %c0_333] : memref<20x20x64xf32, #tpu.memory_space<vmem>>, vector<1x4x64xf32>
    %295 = vector.shape_cast %294 : vector<1x4x64xf32> to vector<4x64xf32>
    %c5_334 = arith.constant 5 : index
    %c0_335 = arith.constant 0 : index
    %c0_336 = arith.constant 0 : index
    %296 = vector.load %arg9[%c5_334, %c0_335, %c0_336] : memref<20x20x64xf32, #tpu.memory_space<vmem>>, vector<1x4x64xf32>
    %297 = vector.shape_cast %296 : vector<1x4x64xf32> to vector<4x64xf32>
    %c5_337 = arith.constant 5 : index
    %c4_338 = arith.constant 4 : index
    %c0_339 = arith.constant 0 : index
    %298 = vector.load %arg9[%c5_337, %c4_338, %c0_339] : memref<20x20x64xf32, #tpu.memory_space<vmem>>, vector<1x4x64xf32>
    %299 = vector.shape_cast %298 : vector<1x4x64xf32> to vector<4x64xf32>
    %c5_340 = arith.constant 5 : index
    %c8_341 = arith.constant 8 : index
    %c0_342 = arith.constant 0 : index
    %300 = vector.load %arg9[%c5_340, %c8_341, %c0_342] : memref<20x20x64xf32, #tpu.memory_space<vmem>>, vector<1x4x64xf32>
    %301 = vector.shape_cast %300 : vector<1x4x64xf32> to vector<4x64xf32>
    %c9 = arith.constant 9 : index
    %c0_343 = arith.constant 0 : index
    %c0_344 = arith.constant 0 : index
    %302 = vector.load %arg9[%c9, %c0_343, %c0_344] : memref<20x20x64xf32, #tpu.memory_space<vmem>>, vector<1x4x64xf32>
    %303 = vector.shape_cast %302 : vector<1x4x64xf32> to vector<4x64xf32>
    %c9_345 = arith.constant 9 : index
    %c4_346 = arith.constant 4 : index
    %c0_347 = arith.constant 0 : index
    %304 = vector.load %arg9[%c9_345, %c4_346, %c0_347] : memref<20x20x64xf32, #tpu.memory_space<vmem>>, vector<1x4x64xf32>
    %305 = vector.shape_cast %304 : vector<1x4x64xf32> to vector<4x64xf32>
    %c9_348 = arith.constant 9 : index
    %c8_349 = arith.constant 8 : index
    %c0_350 = arith.constant 0 : index
    %306 = vector.load %arg9[%c9_348, %c8_349, %c0_350] : memref<20x20x64xf32, #tpu.memory_space<vmem>>, vector<1x4x64xf32>
    %307 = vector.shape_cast %306 : vector<1x4x64xf32> to vector<4x64xf32>
    %308 = tpu.concatenate %291, %293, %295, %297, %299, %301, %303, %305, %307 in 1 : vector<4x64xf32>, vector<4x64xf32>, vector<4x64xf32>, vector<4x64xf32>, vector<4x64xf32>, vector<4x64xf32>, vector<4x64xf32>, vector<4x64xf32>, vector<4x64xf32> -> vector<4x576xf32>
    %c4_351 = arith.constant 4 : index
    %c0_352 = arith.constant 0 : index
    %309 = vector.load %arg10[%c4_351, %c0_352] : memref<16x1024xf32, #tpu.memory_space<vmem>>, vector<4x576xf32>
    tpu.vector_store %arg10[%c4_351, %c0_352], %308 {strides = array<i32>} : memref<16x1024xf32, #tpu.memory_space<vmem>>, vector<4x576xf32>,
    %c2_353 = arith.constant 2 : index
    %c0_354 = arith.constant 0 : index
    %c0_355 = arith.constant 0 : index
    %310 = vector.load %arg9[%c2_353, %c0_354, %c0_355] : memref<20x20x64xf32, #tpu.memory_space<vmem>>, vector<1x4x64xf32>
    %311 = vector.shape_cast %310 : vector<1x4x64xf32> to vector<4x64xf32>
    %c2_356 = arith.constant 2 : index
    %c4_357 = arith.constant 4 : index
    %c0_358 = arith.constant 0 : index
    %312 = vector.load %arg9[%c2_356, %c4_357, %c0_358] : memref<20x20x64xf32, #tpu.memory_space<vmem>>, vector<1x4x64xf32>
    %313 = vector.shape_cast %312 : vector<1x4x64xf32> to vector<4x64xf32>
    %c2_359 = arith.constant 2 : index
    %c8_360 = arith.constant 8 : index
    %c0_361 = arith.constant 0 : index
    %314 = vector.load %arg9[%c2_359, %c8_360, %c0_361] : memref<20x20x64xf32, #tpu.memory_space<vmem>>, vector<1x4x64xf32>
    %315 = vector.shape_cast %314 : vector<1x4x64xf32> to vector<4x64xf32>
    %c6_362 = arith.constant 6 : index
    %c0_363 = arith.constant 0 : index
    %c0_364 = arith.constant 0 : index
    %316 = vector.load %arg9[%c6_362, %c0_363, %c0_364] : memref<20x20x64xf32, #tpu.memory_space<vmem>>, vector<1x4x64xf32>
    %317 = vector.shape_cast %316 : vector<1x4x64xf32> to vector<4x64xf32>
    %c6_365 = arith.constant 6 : index
    %c4_366 = arith.constant 4 : index
    %c0_367 = arith.constant 0 : index
    %318 = vector.load %arg9[%c6_365, %c4_366, %c0_367] : memref<20x20x64xf32, #tpu.memory_space<vmem>>, vector<1x4x64xf32>
    %319 = vector.shape_cast %318 : vector<1x4x64xf32> to vector<4x64xf32>
    %c6_368 = arith.constant 6 : index
    %c8_369 = arith.constant 8 : index
    %c0_370 = arith.constant 0 : index
    %320 = vector.load %arg9[%c6_368, %c8_369, %c0_370] : memref<20x20x64xf32, #tpu.memory_space<vmem>>, vector<1x4x64xf32>
    %321 = vector.shape_cast %320 : vector<1x4x64xf32> to vector<4x64xf32>
    %c10 = arith.constant 10 : index
    %c0_371 = arith.constant 0 : index
    %c0_372 = arith.constant 0 : index
    %322 = vector.load %arg9[%c10, %c0_371, %c0_372] : memref<20x20x64xf32, #tpu.memory_space<vmem>>, vector<1x4x64xf32>
    %323 = vector.shape_cast %322 : vector<1x4x64xf32> to vector<4x64xf32>
    %c10_373 = arith.constant 10 : index
    %c4_374 = arith.constant 4 : index
    %c0_375 = arith.constant 0 : index
    %324 = vector.load %arg9[%c10_373, %c4_374, %c0_375] : memref<20x20x64xf32, #tpu.memory_space<vmem>>, vector<1x4x64xf32>
    %325 = vector.shape_cast %324 : vector<1x4x64xf32> to vector<4x64xf32>
    %c10_376 = arith.constant 10 : index
    %c8_377 = arith.constant 8 : index
    %c0_378 = arith.constant 0 : index
    %326 = vector.load %arg9[%c10_376, %c8_377, %c0_378] : memref<20x20x64xf32, #tpu.memory_space<vmem>>, vector<1x4x64xf32>
    %327 = vector.shape_cast %326 : vector<1x4x64xf32> to vector<4x64xf32>
    %328 = tpu.concatenate %311, %313, %315, %317, %319, %321, %323, %325, %327 in 1 : vector<4x64xf32>, vector<4x64xf32>, vector<4x64xf32>, vector<4x64xf32>, vector<4x64xf32>, vector<4x64xf32>, vector<4x64xf32>, vector<4x64xf32>, vector<4x64xf32> -> vector<4x576xf32>
    %c8_379 = arith.constant 8 : index
    %c0_380 = arith.constant 0 : index
    %329 = vector.load %arg10[%c8_379, %c0_380] : memref<16x1024xf32, #tpu.memory_space<vmem>>, vector<4x576xf32>
    tpu.vector_store %arg10[%c8_379, %c0_380], %328 {strides = array<i32>} : memref<16x1024xf32, #tpu.memory_space<vmem>>, vector<4x576xf32>,
    %c3_381 = arith.constant 3 : index
    %c0_382 = arith.constant 0 : index
    %c0_383 = arith.constant 0 : index
    %330 = vector.load %arg9[%c3_381, %c0_382, %c0_383] : memref<20x20x64xf32, #tpu.memory_space<vmem>>, vector<1x4x64xf32>
    %331 = vector.shape_cast %330 : vector<1x4x64xf32> to vector<4x64xf32>
    %c3_384 = arith.constant 3 : index
    %c4_385 = arith.constant 4 : index
    %c0_386 = arith.constant 0 : index
    %332 = vector.load %arg9[%c3_384, %c4_385, %c0_386] : memref<20x20x64xf32, #tpu.memory_space<vmem>>, vector<1x4x64xf32>
    %333 = vector.shape_cast %332 : vector<1x4x64xf32> to vector<4x64xf32>
    %c3_387 = arith.constant 3 : index
    %c8_388 = arith.constant 8 : index
    %c0_389 = arith.constant 0 : index
    %334 = vector.load %arg9[%c3_387, %c8_388, %c0_389] : memref<20x20x64xf32, #tpu.memory_space<vmem>>, vector<1x4x64xf32>
    %335 = vector.shape_cast %334 : vector<1x4x64xf32> to vector<4x64xf32>
    %c7_390 = arith.constant 7 : index
    %c0_391 = arith.constant 0 : index
    %c0_392 = arith.constant 0 : index
    %336 = vector.load %arg9[%c7_390, %c0_391, %c0_392] : memref<20x20x64xf32, #tpu.memory_space<vmem>>, vector<1x4x64xf32>
    %337 = vector.shape_cast %336 : vector<1x4x64xf32> to vector<4x64xf32>
    %c7_393 = arith.constant 7 : index
    %c4_394 = arith.constant 4 : index
    %c0_395 = arith.constant 0 : index
    %338 = vector.load %arg9[%c7_393, %c4_394, %c0_395] : memref<20x20x64xf32, #tpu.memory_space<vmem>>, vector<1x4x64xf32>
    %339 = vector.shape_cast %338 : vector<1x4x64xf32> to vector<4x64xf32>
    %c7_396 = arith.constant 7 : index
    %c8_397 = arith.constant 8 : index
    %c0_398 = arith.constant 0 : index
    %340 = vector.load %arg9[%c7_396, %c8_397, %c0_398] : memref<20x20x64xf32, #tpu.memory_space<vmem>>, vector<1x4x64xf32>
    %341 = vector.shape_cast %340 : vector<1x4x64xf32> to vector<4x64xf32>
    %c11 = arith.constant 11 : index
    %c0_399 = arith.constant 0 : index
    %c0_400 = arith.constant 0 : index
    %342 = vector.load %arg9[%c11, %c0_399, %c0_400] : memref<20x20x64xf32, #tpu.memory_space<vmem>>, vector<1x4x64xf32>
    %343 = vector.shape_cast %342 : vector<1x4x64xf32> to vector<4x64xf32>
    %c11_401 = arith.constant 11 : index
    %c4_402 = arith.constant 4 : index
    %c0_403 = arith.constant 0 : index
    %344 = vector.load %arg9[%c11_401, %c4_402, %c0_403] : memref<20x20x64xf32, #tpu.memory_space<vmem>>, vector<1x4x64xf32>
    %345 = vector.shape_cast %344 : vector<1x4x64xf32> to vector<4x64xf32>
    %c11_404 = arith.constant 11 : index
    %c8_405 = arith.constant 8 : index
    %c0_406 = arith.constant 0 : index
    %346 = vector.load %arg9[%c11_404, %c8_405, %c0_406] : memref<20x20x64xf32, #tpu.memory_space<vmem>>, vector<1x4x64xf32>
    %347 = vector.shape_cast %346 : vector<1x4x64xf32> to vector<4x64xf32>
    %348 = tpu.concatenate %331, %333, %335, %337, %339, %341, %343, %345, %347 in 1 : vector<4x64xf32>, vector<4x64xf32>, vector<4x64xf32>, vector<4x64xf32>, vector<4x64xf32>, vector<4x64xf32>, vector<4x64xf32>, vector<4x64xf32>, vector<4x64xf32> -> vector<4x576xf32>
    %c12_407 = arith.constant 12 : index
    %c0_408 = arith.constant 0 : index
    %349 = vector.load %arg10[%c12_407, %c0_408] : memref<16x1024xf32, #tpu.memory_space<vmem>>, vector<4x576xf32>
    tpu.vector_store %arg10[%c12_407, %c0_408], %348 {strides = array<i32>} : memref<16x1024xf32, #tpu.memory_space<vmem>>, vector<4x576xf32>,
    %c0_409 = arith.constant 0 : index
    %c0_410 = arith.constant 0 : index
    %350 = vector.load %arg10[%c0_409, %c0_410] : memref<16x1024xf32, #tpu.memory_space<vmem>>, vector<16x576xf32>
    %351 = arith.truncf %350 : vector<16x576xf32> to vector<16x576xbf16>
    %c0_411 = arith.constant 0 : index
    %c0_412 = arith.constant 0 : index
    %352 = vector.load %arg4[%c0_411, %c0_412] : memref<576x64xbf16, #tpu.memory_space<vmem>>, vector<576x64xbf16>
    %cst_413 = arith.constant dense<0.000000e+00> : vector<16x64xf32>
    %353 = tpu.matmul %351, %352, %cst_413 {dimension_numbers = #tpu.dot_dimension_numbers<[1], [0], [0], [1], [0, 0, 1, 1], [], []>} : vector<16x576xbf16>, vector<576x64xbf16>, vector<16x64xf32> -> vector<16x64xf32>
    %cst_414 = arith.constant dense<0.000000e+00> : vector<64xf32>
    %354 = vector.multi_reduction <add>, %353, %cst_414 [0] : vector<16x64xf32> to vector<64xf32>
    %355 = vector.shape_cast %354 : vector<64xf32> to vector<1x64xf32>
    %cst_415 = arith.constant 1.600000e+01 : f32
    %356 = vector.broadcast %cst_415 : f32 to vector<1x64xf32>
    %357 = arith.divf %355, %356 : vector<1x64xf32>
    %358 = vector.broadcast %357 : vector<1x64xf32> to vector<16x64xf32>
    %359 = arith.subf %353, %358 : vector<16x64xf32>
    %360 = arith.mulf %359, %359 : vector<16x64xf32>
    %cst_416 = arith.constant dense<0.000000e+00> : vector<64xf32>
    %361 = vector.multi_reduction <add>, %360, %cst_416 [0] : vector<16x64xf32> to vector<64xf32>
    %362 = vector.shape_cast %361 : vector<64xf32> to vector<1x64xf32>
    %cst_417 = arith.constant 1.600000e+01 : f32
    %363 = vector.broadcast %cst_417 : f32 to vector<1x64xf32>
    %364 = arith.divf %362, %363 : vector<1x64xf32>
    %365 = vector.broadcast %357 : vector<1x64xf32> to vector<16x64xf32>
    %366 = arith.subf %353, %365 : vector<16x64xf32>
    %cst_418 = arith.constant 9.99999974E-6 : f32
    %367 = vector.broadcast %cst_418 : f32 to vector<1x64xf32>
    %368 = arith.addf %364, %367 : vector<1x64xf32>
    %369 = math.rsqrt %368 : vector<1x64xf32>
    %370 = vector.broadcast %369 : vector<1x64xf32> to vector<16x64xf32>
    %371 = arith.mulf %366, %370 : vector<16x64xf32>
    %cst_419 = arith.constant 0.000000e+00 : f32
    %372 = vector.broadcast %cst_419 : f32 to vector<16x64xf32>
    %373 = arith.cmpf oge, %371, %372 : vector<16x64xf32>
    %cst_420 = arith.constant 2.000000e-01 : f32
    %374 = vector.broadcast %cst_420 : f32 to vector<16x64xf32>
    %375 = arith.mulf %374, %371 : vector<16x64xf32>
    %376 = arith.select %373, %371, %375 : vector<16x64xi1>, vector<16x64xf32>
    %cst_421 = arith.constant 0.000000e+00 : f32
    %377 = vector.broadcast %cst_421 : f32 to vector<20x20x64xf32>
    %c0_422 = arith.constant 0 : index
    %c0_423 = arith.constant 0 : index
    %c0_424 = arith.constant 0 : index
    %378 = vector.load %arg9[%c0_422, %c0_423, %c0_424] : memref<20x20x64xf32, #tpu.memory_space<vmem>>, vector<20x20x64xf32>
    tpu.vector_store %arg9[%c0_422, %c0_423, %c0_424], %377 {strides = array<i32>} : memref<20x20x64xf32, #tpu.memory_space<vmem>>, vector<20x20x64xf32>,
    %379 = vector.extract_strided_slice %376 {offsets = [0, 0], sizes = [4, 64], strides = [1, 1]} : vector<16x64xf32> to vector<4x64xf32>
    %c8_425 = arith.constant 8 : index
    %c8_426 = arith.constant 8 : index
    %c0_427 = arith.constant 0 : index
    %380 = vector.load %arg9[%c8_425, %c8_426, %c0_427] : memref<20x20x64xf32, #tpu.memory_space<vmem>>, vector<1x4x64xf32>
    %381 = vector.shape_cast %380 : vector<1x4x64xf32> to vector<4x64xf32>
    %382 = vector.shape_cast %379 : vector<4x64xf32> to vector<1x4x64xf32>
    tpu.vector_store %arg9[%c8_425, %c8_426, %c0_427], %382 {strides = array<i32>} : memref<20x20x64xf32, #tpu.memory_space<vmem>>, vector<1x4x64xf32>,
    %383 = vector.extract_strided_slice %376 {offsets = [4, 0], sizes = [4, 64], strides = [1, 1]} : vector<16x64xf32> to vector<4x64xf32>
    %c9_428 = arith.constant 9 : index
    %c8_429 = arith.constant 8 : index
    %c0_430 = arith.constant 0 : index
    %384 = vector.load %arg9[%c9_428, %c8_429, %c0_430] : memref<20x20x64xf32, #tpu.memory_space<vmem>>, vector<1x4x64xf32>
    %385 = vector.shape_cast %384 : vector<1x4x64xf32> to vector<4x64xf32>
    %386 = vector.shape_cast %383 : vector<4x64xf32> to vector<1x4x64xf32>
    tpu.vector_store %arg9[%c9_428, %c8_429, %c0_430], %386 {strides = array<i32>} : memref<20x20x64xf32, #tpu.memory_space<vmem>>, vector<1x4x64xf32>,
    %387 = vector.extract_strided_slice %376 {offsets = [8, 0], sizes = [4, 64], strides = [1, 1]} : vector<16x64xf32> to vector<4x64xf32>
    %c10_431 = arith.constant 10 : index
    %c8_432 = arith.constant 8 : index
    %c0_433 = arith.constant 0 : index
    %388 = vector.load %arg9[%c10_431, %c8_432, %c0_433] : memref<20x20x64xf32, #tpu.memory_space<vmem>>, vector<1x4x64xf32>
    %389 = vector.shape_cast %388 : vector<1x4x64xf32> to vector<4x64xf32>
    %390 = vector.shape_cast %387 : vector<4x64xf32> to vector<1x4x64xf32>
    tpu.vector_store %arg9[%c10_431, %c8_432, %c0_433], %390 {strides = array<i32>} : memref<20x20x64xf32, #tpu.memory_space<vmem>>, vector<1x4x64xf32>,
    %391 = vector.extract_strided_slice %376 {offsets = [12, 0], sizes = [4, 64], strides = [1, 1]} : vector<16x64xf32> to vector<4x64xf32>
    %c11_434 = arith.constant 11 : index
    %c8_435 = arith.constant 8 : index
    %c0_436 = arith.constant 0 : index
    %392 = vector.load %arg9[%c11_434, %c8_435, %c0_436] : memref<20x20x64xf32, #tpu.memory_space<vmem>>, vector<1x4x64xf32>
    %393 = vector.shape_cast %392 : vector<1x4x64xf32> to vector<4x64xf32>
    %394 = vector.shape_cast %391 : vector<4x64xf32> to vector<1x4x64xf32>
    tpu.vector_store %arg9[%c11_434, %c8_435, %c0_436], %394 {strides = array<i32>} : memref<20x20x64xf32, #tpu.memory_space<vmem>>, vector<1x4x64xf32>,
    %c0_437 = arith.constant 0 : index
    %c0_438 = arith.constant 0 : index
    %c0_439 = arith.constant 0 : index
    %395 = vector.load %arg9[%c0_437, %c0_438, %c0_439] : memref<20x20x64xf32, #tpu.memory_space<vmem>>, vector<1x4x64xf32>
    %396 = vector.shape_cast %395 : vector<1x4x64xf32> to vector<4x64xf32>
    %c0_440 = arith.constant 0 : index
    %c8_441 = arith.constant 8 : index
    %c0_442 = arith.constant 0 : index
    %397 = vector.load %arg9[%c0_440, %c8_441, %c0_442] : memref<20x20x64xf32, #tpu.memory_space<vmem>>, vector<1x4x64xf32>
    %398 = vector.shape_cast %397 : vector<1x4x64xf32> to vector<4x64xf32>
    %c0_443 = arith.constant 0 : index
    %c16 = arith.constant 16 : index
    %c0_444 = arith.constant 0 : index
    %399 = vector.load %arg9[%c0_443, %c16, %c0_444] : memref<20x20x64xf32, #tpu.memory_space<vmem>>, vector<1x4x64xf32>
    %400 = vector.shape_cast %399 : vector<1x4x64xf32> to vector<4x64xf32>
    %c8_445 = arith.constant 8 : index
    %c0_446 = arith.constant 0 : index
    %c0_447 = arith.constant 0 : index
    %401 = vector.load %arg9[%c8_445, %c0_446, %c0_447] : memref<20x20x64xf32, #tpu.memory_space<vmem>>, vector<1x4x64xf32>
    %402 = vector.shape_cast %401 : vector<1x4x64xf32> to vector<4x64xf32>
    %c8_448 = arith.constant 8 : index
    %c8_449 = arith.constant 8 : index
    %c0_450 = arith.constant 0 : index
    %403 = vector.load %arg9[%c8_448, %c8_449, %c0_450] : memref<20x20x64xf32, #tpu.memory_space<vmem>>, vector<1x4x64xf32>
    %404 = vector.shape_cast %403 : vector<1x4x64xf32> to vector<4x64xf32>
    %c8_451 = arith.constant 8 : index
    %c16_452 = arith.constant 16 : index
    %c0_453 = arith.constant 0 : index
    %405 = vector.load %arg9[%c8_451, %c16_452, %c0_453] : memref<20x20x64xf32, #tpu.memory_space<vmem>>, vector<1x4x64xf32>
    %406 = vector.shape_cast %405 : vector<1x4x64xf32> to vector<4x64xf32>
    %c16_454 = arith.constant 16 : index
    %c0_455 = arith.constant 0 : index
    %c0_456 = arith.constant 0 : index
    %407 = vector.load %arg9[%c16_454, %c0_455, %c0_456] : memref<20x20x64xf32, #tpu.memory_space<vmem>>, vector<1x4x64xf32>
    %408 = vector.shape_cast %407 : vector<1x4x64xf32> to vector<4x64xf32>
    %c16_457 = arith.constant 16 : index
    %c8_458 = arith.constant 8 : index
    %c0_459 = arith.constant 0 : index
    %409 = vector.load %arg9[%c16_457, %c8_458, %c0_459] : memref<20x20x64xf32, #tpu.memory_space<vmem>>, vector<1x4x64xf32>
    %410 = vector.shape_cast %409 : vector<1x4x64xf32> to vector<4x64xf32>
    %c16_460 = arith.constant 16 : index
    %c16_461 = arith.constant 16 : index
    %c0_462 = arith.constant 0 : index
    %411 = vector.load %arg9[%c16_460, %c16_461, %c0_462] : memref<20x20x64xf32, #tpu.memory_space<vmem>>, vector<1x4x64xf32>
    %412 = vector.shape_cast %411 : vector<1x4x64xf32> to vector<4x64xf32>
    %413 = tpu.concatenate %396, %398, %400, %402, %404, %406, %408, %410, %412 in 1 : vector<4x64xf32>, vector<4x64xf32>, vector<4x64xf32>, vector<4x64xf32>, vector<4x64xf32>, vector<4x64xf32>, vector<4x64xf32>, vector<4x64xf32>, vector<4x64xf32> -> vector<4x576xf32>
    %c0_463 = arith.constant 0 : index
    %c0_464 = arith.constant 0 : index
    %414 = vector.load %arg10[%c0_463, %c0_464] : memref<16x1024xf32, #tpu.memory_space<vmem>>, vector<4x576xf32>
    tpu.vector_store %arg10[%c0_463, %c0_464], %413 {strides = array<i32>} : memref<16x1024xf32, #tpu.memory_space<vmem>>, vector<4x576xf32>,
    %c1_465 = arith.constant 1 : index
    %c0_466 = arith.constant 0 : index
    %c0_467 = arith.constant 0 : index
    %415 = vector.load %arg9[%c1_465, %c0_466, %c0_467] : memref<20x20x64xf32, #tpu.memory_space<vmem>>, vector<1x4x64xf32>
    %416 = vector.shape_cast %415 : vector<1x4x64xf32> to vector<4x64xf32>
    %c1_468 = arith.constant 1 : index
    %c8_469 = arith.constant 8 : index
    %c0_470 = arith.constant 0 : index
    %417 = vector.load %arg9[%c1_468, %c8_469, %c0_470] : memref<20x20x64xf32, #tpu.memory_space<vmem>>, vector<1x4x64xf32>
    %418 = vector.shape_cast %417 : vector<1x4x64xf32> to vector<4x64xf32>
    %c1_471 = arith.constant 1 : index
    %c16_472 = arith.constant 16 : index
    %c0_473 = arith.constant 0 : index
    %419 = vector.load %arg9[%c1_471, %c16_472, %c0_473] : memref<20x20x64xf32, #tpu.memory_space<vmem>>, vector<1x4x64xf32>
    %420 = vector.shape_cast %419 : vector<1x4x64xf32> to vector<4x64xf32>
    %c9_474 = arith.constant 9 : index
    %c0_475 = arith.constant 0 : index
    %c0_476 = arith.constant 0 : index
    %421 = vector.load %arg9[%c9_474, %c0_475, %c0_476] : memref<20x20x64xf32, #tpu.memory_space<vmem>>, vector<1x4x64xf32>
    %422 = vector.shape_cast %421 : vector<1x4x64xf32> to vector<4x64xf32>
    %c9_477 = arith.constant 9 : index
    %c8_478 = arith.constant 8 : index
    %c0_479 = arith.constant 0 : index
    %423 = vector.load %arg9[%c9_477, %c8_478, %c0_479] : memref<20x20x64xf32, #tpu.memory_space<vmem>>, vector<1x4x64xf32>
    %424 = vector.shape_cast %423 : vector<1x4x64xf32> to vector<4x64xf32>
    %c9_480 = arith.constant 9 : index
    %c16_481 = arith.constant 16 : index
    %c0_482 = arith.constant 0 : index
    %425 = vector.load %arg9[%c9_480, %c16_481, %c0_482] : memref<20x20x64xf32, #tpu.memory_space<vmem>>, vector<1x4x64xf32>
    %426 = vector.shape_cast %425 : vector<1x4x64xf32> to vector<4x64xf32>
    %c17 = arith.constant 17 : index
    %c0_483 = arith.constant 0 : index
    %c0_484 = arith.constant 0 : index
    %427 = vector.load %arg9[%c17, %c0_483, %c0_484] : memref<20x20x64xf32, #tpu.memory_space<vmem>>, vector<1x4x64xf32>
    %428 = vector.shape_cast %427 : vector<1x4x64xf32> to vector<4x64xf32>
    %c17_485 = arith.constant 17 : index
    %c8_486 = arith.constant 8 : index
    %c0_487 = arith.constant 0 : index
    %429 = vector.load %arg9[%c17_485, %c8_486, %c0_487] : memref<20x20x64xf32, #tpu.memory_space<vmem>>, vector<1x4x64xf32>
    %430 = vector.shape_cast %429 : vector<1x4x64xf32> to vector<4x64xf32>
    %c17_488 = arith.constant 17 : index
    %c16_489 = arith.constant 16 : index
    %c0_490 = arith.constant 0 : index
    %431 = vector.load %arg9[%c17_488, %c16_489, %c0_490] : memref<20x20x64xf32, #tpu.memory_space<vmem>>, vector<1x4x64xf32>
    %432 = vector.shape_cast %431 : vector<1x4x64xf32> to vector<4x64xf32>
    %433 = tpu.concatenate %416, %418, %420, %422, %424, %426, %428, %430, %432 in 1 : vector<4x64xf32>, vector<4x64xf32>, vector<4x64xf32>, vector<4x64xf32>, vector<4x64xf32>, vector<4x64xf32>, vector<4x64xf32>, vector<4x64xf32>, vector<4x64xf32> -> vector<4x576xf32>
    %c4_491 = arith.constant 4 : index
    %c0_492 = arith.constant 0 : index
    %434 = vector.load %arg10[%c4_491, %c0_492] : memref<16x1024xf32, #tpu.memory_space<vmem>>, vector<4x576xf32>
    tpu.vector_store %arg10[%c4_491, %c0_492], %433 {strides = array<i32>} : memref<16x1024xf32, #tpu.memory_space<vmem>>, vector<4x576xf32>,
    %c2_493 = arith.constant 2 : index
    %c0_494 = arith.constant 0 : index
    %c0_495 = arith.constant 0 : index
    %435 = vector.load %arg9[%c2_493, %c0_494, %c0_495] : memref<20x20x64xf32, #tpu.memory_space<vmem>>, vector<1x4x64xf32>
    %436 = vector.shape_cast %435 : vector<1x4x64xf32> to vector<4x64xf32>
    %c2_496 = arith.constant 2 : index
    %c8_497 = arith.constant 8 : index
    %c0_498 = arith.constant 0 : index
    %437 = vector.load %arg9[%c2_496, %c8_497, %c0_498] : memref<20x20x64xf32, #tpu.memory_space<vmem>>, vector<1x4x64xf32>
    %438 = vector.shape_cast %437 : vector<1x4x64xf32> to vector<4x64xf32>
    %c2_499 = arith.constant 2 : index
    %c16_500 = arith.constant 16 : index
    %c0_501 = arith.constant 0 : index
    %439 = vector.load %arg9[%c2_499, %c16_500, %c0_501] : memref<20x20x64xf32, #tpu.memory_space<vmem>>, vector<1x4x64xf32>
    %440 = vector.shape_cast %439 : vector<1x4x64xf32> to vector<4x64xf32>
    %c10_502 = arith.constant 10 : index
    %c0_503 = arith.constant 0 : index
    %c0_504 = arith.constant 0 : index
    %441 = vector.load %arg9[%c10_502, %c0_503, %c0_504] : memref<20x20x64xf32, #tpu.memory_space<vmem>>, vector<1x4x64xf32>
    %442 = vector.shape_cast %441 : vector<1x4x64xf32> to vector<4x64xf32>
    %c10_505 = arith.constant 10 : index
    %c8_506 = arith.constant 8 : index
    %c0_507 = arith.constant 0 : index
    %443 = vector.load %arg9[%c10_505, %c8_506, %c0_507] : memref<20x20x64xf32, #tpu.memory_space<vmem>>, vector<1x4x64xf32>
    %444 = vector.shape_cast %443 : vector<1x4x64xf32> to vector<4x64xf32>
    %c10_508 = arith.constant 10 : index
    %c16_509 = arith.constant 16 : index
    %c0_510 = arith.constant 0 : index
    %445 = vector.load %arg9[%c10_508, %c16_509, %c0_510] : memref<20x20x64xf32, #tpu.memory_space<vmem>>, vector<1x4x64xf32>
    %446 = vector.shape_cast %445 : vector<1x4x64xf32> to vector<4x64xf32>
    %c18 = arith.constant 18 : index
    %c0_511 = arith.constant 0 : index
    %c0_512 = arith.constant 0 : index
    %447 = vector.load %arg9[%c18, %c0_511, %c0_512] : memref<20x20x64xf32, #tpu.memory_space<vmem>>, vector<1x4x64xf32>
    %448 = vector.shape_cast %447 : vector<1x4x64xf32> to vector<4x64xf32>
    %c18_513 = arith.constant 18 : index
    %c8_514 = arith.constant 8 : index
    %c0_515 = arith.constant 0 : index
    %449 = vector.load %arg9[%c18_513, %c8_514, %c0_515] : memref<20x20x64xf32, #tpu.memory_space<vmem>>, vector<1x4x64xf32>
    %450 = vector.shape_cast %449 : vector<1x4x64xf32> to vector<4x64xf32>
    %c18_516 = arith.constant 18 : index
    %c16_517 = arith.constant 16 : index
    %c0_518 = arith.constant 0 : index
    %451 = vector.load %arg9[%c18_516, %c16_517, %c0_518] : memref<20x20x64xf32, #tpu.memory_space<vmem>>, vector<1x4x64xf32>
    %452 = vector.shape_cast %451 : vector<1x4x64xf32> to vector<4x64xf32>
    %453 = tpu.concatenate %436, %438, %440, %442, %444, %446, %448, %450, %452 in 1 : vector<4x64xf32>, vector<4x64xf32>, vector<4x64xf32>, vector<4x64xf32>, vector<4x64xf32>, vector<4x64xf32>, vector<4x64xf32>, vector<4x64xf32>, vector<4x64xf32> -> vector<4x576xf32>
    %c8_519 = arith.constant 8 : index
    %c0_520 = arith.constant 0 : index
    %454 = vector.load %arg10[%c8_519, %c0_520] : memref<16x1024xf32, #tpu.memory_space<vmem>>, vector<4x576xf32>
    tpu.vector_store %arg10[%c8_519, %c0_520], %453 {strides = array<i32>} : memref<16x1024xf32, #tpu.memory_space<vmem>>, vector<4x576xf32>,
    %c3_521 = arith.constant 3 : index
    %c0_522 = arith.constant 0 : index
    %c0_523 = arith.constant 0 : index
    %455 = vector.load %arg9[%c3_521, %c0_522, %c0_523] : memref<20x20x64xf32, #tpu.memory_space<vmem>>, vector<1x4x64xf32>
    %456 = vector.shape_cast %455 : vector<1x4x64xf32> to vector<4x64xf32>
    %c3_524 = arith.constant 3 : index
    %c8_525 = arith.constant 8 : index
    %c0_526 = arith.constant 0 : index
    %457 = vector.load %arg9[%c3_524, %c8_525, %c0_526] : memref<20x20x64xf32, #tpu.memory_space<vmem>>, vector<1x4x64xf32>
    %458 = vector.shape_cast %457 : vector<1x4x64xf32> to vector<4x64xf32>
    %c3_527 = arith.constant 3 : index
    %c16_528 = arith.constant 16 : index
    %c0_529 = arith.constant 0 : index
    %459 = vector.load %arg9[%c3_527, %c16_528, %c0_529] : memref<20x20x64xf32, #tpu.memory_space<vmem>>, vector<1x4x64xf32>
    %460 = vector.shape_cast %459 : vector<1x4x64xf32> to vector<4x64xf32>
    %c11_530 = arith.constant 11 : index
    %c0_531 = arith.constant 0 : index
    %c0_532 = arith.constant 0 : index
    %461 = vector.load %arg9[%c11_530, %c0_531, %c0_532] : memref<20x20x64xf32, #tpu.memory_space<vmem>>, vector<1x4x64xf32>
    %462 = vector.shape_cast %461 : vector<1x4x64xf32> to vector<4x64xf32>
    %c11_533 = arith.constant 11 : index
    %c8_534 = arith.constant 8 : index
    %c0_535 = arith.constant 0 : index
    %463 = vector.load %arg9[%c11_533, %c8_534, %c0_535] : memref<20x20x64xf32, #tpu.memory_space<vmem>>, vector<1x4x64xf32>
    %464 = vector.shape_cast %463 : vector<1x4x64xf32> to vector<4x64xf32>
    %c11_536 = arith.constant 11 : index
    %c16_537 = arith.constant 16 : index
    %c0_538 = arith.constant 0 : index
    %465 = vector.load %arg9[%c11_536, %c16_537, %c0_538] : memref<20x20x64xf32, #tpu.memory_space<vmem>>, vector<1x4x64xf32>
    %466 = vector.shape_cast %465 : vector<1x4x64xf32> to vector<4x64xf32>
    %c19 = arith.constant 19 : index
    %c0_539 = arith.constant 0 : index
    %c0_540 = arith.constant 0 : index
    %467 = vector.load %arg9[%c19, %c0_539, %c0_540] : memref<20x20x64xf32, #tpu.memory_space<vmem>>, vector<1x4x64xf32>
    %468 = vector.shape_cast %467 : vector<1x4x64xf32> to vector<4x64xf32>
    %c19_541 = arith.constant 19 : index
    %c8_542 = arith.constant 8 : index
    %c0_543 = arith.constant 0 : index
    %469 = vector.load %arg9[%c19_541, %c8_542, %c0_543] : memref<20x20x64xf32, #tpu.memory_space<vmem>>, vector<1x4x64xf32>
    %470 = vector.shape_cast %469 : vector<1x4x64xf32> to vector<4x64xf32>
    %c19_544 = arith.constant 19 : index
    %c16_545 = arith.constant 16 : index
    %c0_546 = arith.constant 0 : index
    %471 = vector.load %arg9[%c19_544, %c16_545, %c0_546] : memref<20x20x64xf32, #tpu.memory_space<vmem>>, vector<1x4x64xf32>
    %472 = vector.shape_cast %471 : vector<1x4x64xf32> to vector<4x64xf32>
    %473 = tpu.concatenate %456, %458, %460, %462, %464, %466, %468, %470, %472 in 1 : vector<4x64xf32>, vector<4x64xf32>, vector<4x64xf32>, vector<4x64xf32>, vector<4x64xf32>, vector<4x64xf32>, vector<4x64xf32>, vector<4x64xf32>, vector<4x64xf32> -> vector<4x576xf32>
    %c12_547 = arith.constant 12 : index
    %c0_548 = arith.constant 0 : index
    %474 = vector.load %arg10[%c12_547, %c0_548] : memref<16x1024xf32, #tpu.memory_space<vmem>>, vector<4x576xf32>
    tpu.vector_store %arg10[%c12_547, %c0_548], %473 {strides = array<i32>} : memref<16x1024xf32, #tpu.memory_space<vmem>>, vector<4x576xf32>,
    %c0_549 = arith.constant 0 : index
    %c0_550 = arith.constant 0 : index
    %475 = vector.load %arg10[%c0_549, %c0_550] : memref<16x1024xf32, #tpu.memory_space<vmem>>, vector<16x576xf32>
    %476 = arith.truncf %475 : vector<16x576xf32> to vector<16x576xbf16>
    %c0_551 = arith.constant 0 : index
    %c0_552 = arith.constant 0 : index
    %477 = vector.load %arg5[%c0_551, %c0_552] : memref<576x64xbf16, #tpu.memory_space<vmem>>, vector<576x64xbf16>
    %cst_553 = arith.constant dense<0.000000e+00> : vector<16x64xf32>
    %478 = tpu.matmul %476, %477, %cst_553 {dimension_numbers = #tpu.dot_dimension_numbers<[1], [0], [0], [1], [0, 0, 1, 1], [], []>} : vector<16x576xbf16>, vector<576x64xbf16>, vector<16x64xf32> -> vector<16x64xf32>
    %cst_554 = arith.constant dense<0.000000e+00> : vector<64xf32>
    %479 = vector.multi_reduction <add>, %478, %cst_554 [0] : vector<16x64xf32> to vector<64xf32>
    %480 = vector.shape_cast %479 : vector<64xf32> to vector<1x64xf32>
    %cst_555 = arith.constant 1.600000e+01 : f32
    %481 = vector.broadcast %cst_555 : f32 to vector<1x64xf32>
    %482 = arith.divf %480, %481 : vector<1x64xf32>
    %483 = vector.broadcast %482 : vector<1x64xf32> to vector<16x64xf32>
    %484 = arith.subf %478, %483 : vector<16x64xf32>
    %485 = arith.mulf %484, %484 : vector<16x64xf32>
    %cst_556 = arith.constant dense<0.000000e+00> : vector<64xf32>
    %486 = vector.multi_reduction <add>, %485, %cst_556 [0] : vector<16x64xf32> to vector<64xf32>
    %487 = vector.shape_cast %486 : vector<64xf32> to vector<1x64xf32>
    %cst_557 = arith.constant 1.600000e+01 : f32
    %488 = vector.broadcast %cst_557 : f32 to vector<1x64xf32>
    %489 = arith.divf %487, %488 : vector<1x64xf32>
    %490 = vector.broadcast %482 : vector<1x64xf32> to vector<16x64xf32>
    %491 = arith.subf %478, %490 : vector<16x64xf32>
    %cst_558 = arith.constant 9.99999974E-6 : f32
    %492 = vector.broadcast %cst_558 : f32 to vector<1x64xf32>
    %493 = arith.addf %489, %492 : vector<1x64xf32>
    %494 = math.rsqrt %493 : vector<1x64xf32>
    %495 = vector.broadcast %494 : vector<1x64xf32> to vector<16x64xf32>
    %496 = arith.mulf %491, %495 : vector<16x64xf32>
    %cst_559 = arith.constant 0.000000e+00 : f32
    %497 = vector.broadcast %cst_559 : f32 to vector<16x64xf32>
    %498 = arith.cmpf oge, %496, %497 : vector<16x64xf32>
    %cst_560 = arith.constant 2.000000e-01 : f32
    %499 = vector.broadcast %cst_560 : f32 to vector<16x64xf32>
    %500 = arith.mulf %499, %496 : vector<16x64xf32>
    %501 = arith.select %498, %496, %500 : vector<16x64xi1>, vector<16x64xf32>
    %502 = arith.addf %126, %501 : vector<16x64xf32>
    %cst_561 = arith.constant 0.000000e+00 : f32
    %503 = vector.broadcast %cst_561 : f32 to vector<20x20x64xf32>
    %c0_562 = arith.constant 0 : index
    %c0_563 = arith.constant 0 : index
    %c0_564 = arith.constant 0 : index
    %504 = vector.load %arg9[%c0_562, %c0_563, %c0_564] : memref<20x20x64xf32, #tpu.memory_space<vmem>>, vector<20x20x64xf32>
    tpu.vector_store %arg9[%c0_562, %c0_563, %c0_564], %503 {strides = array<i32>} : memref<20x20x64xf32, #tpu.memory_space<vmem>>, vector<20x20x64xf32>,
    %505 = vector.extract_strided_slice %502 {offsets = [0, 0], sizes = [4, 64], strides = [1, 1]} : vector<16x64xf32> to vector<4x64xf32>
    %c1_565 = arith.constant 1 : index
    %c1_566 = arith.constant 1 : index
    %c0_567 = arith.constant 0 : index
    %506 = vector.load %arg9[%c1_565, %c1_566, %c0_567] : memref<20x20x64xf32, #tpu.memory_space<vmem>>, vector<1x4x64xf32>
    %507 = vector.shape_cast %506 : vector<1x4x64xf32> to vector<4x64xf32>
    %508 = vector.shape_cast %505 : vector<4x64xf32> to vector<1x4x64xf32>
    tpu.vector_store %arg9[%c1_565, %c1_566, %c0_567], %508 {strides = array<i32>} : memref<20x20x64xf32, #tpu.memory_space<vmem>>, vector<1x4x64xf32>,
    %509 = vector.extract_strided_slice %502 {offsets = [4, 0], sizes = [4, 64], strides = [1, 1]} : vector<16x64xf32> to vector<4x64xf32>
    %c2_568 = arith.constant 2 : index
    %c1_569 = arith.constant 1 : index
    %c0_570 = arith.constant 0 : index
    %510 = vector.load %arg9[%c2_568, %c1_569, %c0_570] : memref<20x20x64xf32, #tpu.memory_space<vmem>>, vector<1x4x64xf32>
    %511 = vector.shape_cast %510 : vector<1x4x64xf32> to vector<4x64xf32>
    %512 = vector.shape_cast %509 : vector<4x64xf32> to vector<1x4x64xf32>
    tpu.vector_store %arg9[%c2_568, %c1_569, %c0_570], %512 {strides = array<i32>} : memref<20x20x64xf32, #tpu.memory_space<vmem>>, vector<1x4x64xf32>,
    %513 = vector.extract_strided_slice %502 {offsets = [8, 0], sizes = [4, 64], strides = [1, 1]} : vector<16x64xf32> to vector<4x64xf32>
    %c3_571 = arith.constant 3 : index
    %c1_572 = arith.constant 1 : index
    %c0_573 = arith.constant 0 : index
    %514 = vector.load %arg9[%c3_571, %c1_572, %c0_573] : memref<20x20x64xf32, #tpu.memory_space<vmem>>, vector<1x4x64xf32>
    %515 = vector.shape_cast %514 : vector<1x4x64xf32> to vector<4x64xf32>
    %516 = vector.shape_cast %513 : vector<4x64xf32> to vector<1x4x64xf32>
    tpu.vector_store %arg9[%c3_571, %c1_572, %c0_573], %516 {strides = array<i32>} : memref<20x20x64xf32, #tpu.memory_space<vmem>>, vector<1x4x64xf32>,
    %517 = vector.extract_strided_slice %502 {offsets = [12, 0], sizes = [4, 64], strides = [1, 1]} : vector<16x64xf32> to vector<4x64xf32>
    %c4_574 = arith.constant 4 : index
    %c1_575 = arith.constant 1 : index
    %c0_576 = arith.constant 0 : index
    %518 = vector.load %arg9[%c4_574, %c1_575, %c0_576] : memref<20x20x64xf32, #tpu.memory_space<vmem>>, vector<1x4x64xf32>
    %519 = vector.shape_cast %518 : vector<1x4x64xf32> to vector<4x64xf32>
    %520 = vector.shape_cast %517 : vector<4x64xf32> to vector<1x4x64xf32>
    tpu.vector_store %arg9[%c4_574, %c1_575, %c0_576], %520 {strides = array<i32>} : memref<20x20x64xf32, #tpu.memory_space<vmem>>, vector<1x4x64xf32>,
    %c0_577 = arith.constant 0 : index
    %c0_578 = arith.constant 0 : index
    %c0_579 = arith.constant 0 : index
    %521 = vector.load %arg9[%c0_577, %c0_578, %c0_579] : memref<20x20x64xf32, #tpu.memory_space<vmem>>, vector<1x4x64xf32>
    %522 = vector.shape_cast %521 : vector<1x4x64xf32> to vector<4x64xf32>
    %c0_580 = arith.constant 0 : index
    %c1_581 = arith.constant 1 : index
    %c0_582 = arith.constant 0 : index
    %523 = vector.load %arg9[%c0_580, %c1_581, %c0_582] : memref<20x20x64xf32, #tpu.memory_space<vmem>>, vector<1x4x64xf32>
    %524 = vector.shape_cast %523 : vector<1x4x64xf32> to vector<4x64xf32>
    %c0_583 = arith.constant 0 : index
    %c2_584 = arith.constant 2 : index
    %c0_585 = arith.constant 0 : index
    %525 = vector.load %arg9[%c0_583, %c2_584, %c0_585] : memref<20x20x64xf32, #tpu.memory_space<vmem>>, vector<1x4x64xf32>
    %526 = vector.shape_cast %525 : vector<1x4x64xf32> to vector<4x64xf32>
    %c1_586 = arith.constant 1 : index
    %c0_587 = arith.constant 0 : index
    %c0_588 = arith.constant 0 : index
    %527 = vector.load %arg9[%c1_586, %c0_587, %c0_588] : memref<20x20x64xf32, #tpu.memory_space<vmem>>, vector<1x4x64xf32>
    %528 = vector.shape_cast %527 : vector<1x4x64xf32> to vector<4x64xf32>
    %c1_589 = arith.constant 1 : index
    %c1_590 = arith.constant 1 : index
    %c0_591 = arith.constant 0 : index
    %529 = vector.load %arg9[%c1_589, %c1_590, %c0_591] : memref<20x20x64xf32, #tpu.memory_space<vmem>>, vector<1x4x64xf32>
    %530 = vector.shape_cast %529 : vector<1x4x64xf32> to vector<4x64xf32>
    %c1_592 = arith.constant 1 : index
    %c2_593 = arith.constant 2 : index
    %c0_594 = arith.constant 0 : index
    %531 = vector.load %arg9[%c1_592, %c2_593, %c0_594] : memref<20x20x64xf32, #tpu.memory_space<vmem>>, vector<1x4x64xf32>
    %532 = vector.shape_cast %531 : vector<1x4x64xf32> to vector<4x64xf32>
    %c2_595 = arith.constant 2 : index
    %c0_596 = arith.constant 0 : index
    %c0_597 = arith.constant 0 : index
    %533 = vector.load %arg9[%c2_595, %c0_596, %c0_597] : memref<20x20x64xf32, #tpu.memory_space<vmem>>, vector<1x4x64xf32>
    %534 = vector.shape_cast %533 : vector<1x4x64xf32> to vector<4x64xf32>
    %c2_598 = arith.constant 2 : index
    %c1_599 = arith.constant 1 : index
    %c0_600 = arith.constant 0 : index
    %535 = vector.load %arg9[%c2_598, %c1_599, %c0_600] : memref<20x20x64xf32, #tpu.memory_space<vmem>>, vector<1x4x64xf32>
    %536 = vector.shape_cast %535 : vector<1x4x64xf32> to vector<4x64xf32>
    %c2_601 = arith.constant 2 : index
    %c2_602 = arith.constant 2 : index
    %c0_603 = arith.constant 0 : index
    %537 = vector.load %arg9[%c2_601, %c2_602, %c0_603] : memref<20x20x64xf32, #tpu.memory_space<vmem>>, vector<1x4x64xf32>
    %538 = vector.shape_cast %537 : vector<1x4x64xf32> to vector<4x64xf32>
    %539 = tpu.concatenate %522, %524, %526, %528, %530, %532, %534, %536, %538 in 1 : vector<4x64xf32>, vector<4x64xf32>, vector<4x64xf32>, vector<4x64xf32>, vector<4x64xf32>, vector<4x64xf32>, vector<4x64xf32>, vector<4x64xf32>, vector<4x64xf32> -> vector<4x576xf32>
    %c0_604 = arith.constant 0 : index
    %c0_605 = arith.constant 0 : index
    %540 = vector.load %arg10[%c0_604, %c0_605] : memref<16x1024xf32, #tpu.memory_space<vmem>>, vector<4x576xf32>
    tpu.vector_store %arg10[%c0_604, %c0_605], %539 {strides = array<i32>} : memref<16x1024xf32, #tpu.memory_space<vmem>>, vector<4x576xf32>,
    %c1_606 = arith.constant 1 : index
    %c0_607 = arith.constant 0 : index
    %c0_608 = arith.constant 0 : index
    %541 = vector.load %arg9[%c1_606, %c0_607, %c0_608] : memref<20x20x64xf32, #tpu.memory_space<vmem>>, vector<1x4x64xf32>
    %542 = vector.shape_cast %541 : vector<1x4x64xf32> to vector<4x64xf32>
    %c1_609 = arith.constant 1 : index
    %c1_610 = arith.constant 1 : index
    %c0_611 = arith.constant 0 : index
    %543 = vector.load %arg9[%c1_609, %c1_610, %c0_611] : memref<20x20x64xf32, #tpu.memory_space<vmem>>, vector<1x4x64xf32>
    %544 = vector.shape_cast %543 : vector<1x4x64xf32> to vector<4x64xf32>
    %c1_612 = arith.constant 1 : index
    %c2_613 = arith.constant 2 : index
    %c0_614 = arith.constant 0 : index
    %545 = vector.load %arg9[%c1_612, %c2_613, %c0_614] : memref<20x20x64xf32, #tpu.memory_space<vmem>>, vector<1x4x64xf32>
    %546 = vector.shape_cast %545 : vector<1x4x64xf32> to vector<4x64xf32>
    %c2_615 = arith.constant 2 : index
    %c0_616 = arith.constant 0 : index
    %c0_617 = arith.constant 0 : index
    %547 = vector.load %arg9[%c2_615, %c0_616, %c0_617] : memref<20x20x64xf32, #tpu.memory_space<vmem>>, vector<1x4x64xf32>
    %548 = vector.shape_cast %547 : vector<1x4x64xf32> to vector<4x64xf32>
    %c2_618 = arith.constant 2 : index
    %c1_619 = arith.constant 1 : index
    %c0_620 = arith.constant 0 : index
    %549 = vector.load %arg9[%c2_618, %c1_619, %c0_620] : memref<20x20x64xf32, #tpu.memory_space<vmem>>, vector<1x4x64xf32>
    %550 = vector.shape_cast %549 : vector<1x4x64xf32> to vector<4x64xf32>
    %c2_621 = arith.constant 2 : index
    %c2_622 = arith.constant 2 : index
    %c0_623 = arith.constant 0 : index
    %551 = vector.load %arg9[%c2_621, %c2_622, %c0_623] : memref<20x20x64xf32, #tpu.memory_space<vmem>>, vector<1x4x64xf32>
    %552 = vector.shape_cast %551 : vector<1x4x64xf32> to vector<4x64xf32>
    %c3_624 = arith.constant 3 : index
    %c0_625 = arith.constant 0 : index
    %c0_626 = arith.constant 0 : index
    %553 = vector.load %arg9[%c3_624, %c0_625, %c0_626] : memref<20x20x64xf32, #tpu.memory_space<vmem>>, vector<1x4x64xf32>
    %554 = vector.shape_cast %553 : vector<1x4x64xf32> to vector<4x64xf32>
    %c3_627 = arith.constant 3 : index
    %c1_628 = arith.constant 1 : index
    %c0_629 = arith.constant 0 : index
    %555 = vector.load %arg9[%c3_627, %c1_628, %c0_629] : memref<20x20x64xf32, #tpu.memory_space<vmem>>, vector<1x4x64xf32>
    %556 = vector.shape_cast %555 : vector<1x4x64xf32> to vector<4x64xf32>
    %c3_630 = arith.constant 3 : index
    %c2_631 = arith.constant 2 : index
    %c0_632 = arith.constant 0 : index
    %557 = vector.load %arg9[%c3_630, %c2_631, %c0_632] : memref<20x20x64xf32, #tpu.memory_space<vmem>>, vector<1x4x64xf32>
    %558 = vector.shape_cast %557 : vector<1x4x64xf32> to vector<4x64xf32>
    %559 = tpu.concatenate %542, %544, %546, %548, %550, %552, %554, %556, %558 in 1 : vector<4x64xf32>, vector<4x64xf32>, vector<4x64xf32>, vector<4x64xf32>, vector<4x64xf32>, vector<4x64xf32>, vector<4x64xf32>, vector<4x64xf32>, vector<4x64xf32> -> vector<4x576xf32>
    %c4_633 = arith.constant 4 : index
    %c0_634 = arith.constant 0 : index
    %560 = vector.load %arg10[%c4_633, %c0_634] : memref<16x1024xf32, #tpu.memory_space<vmem>>, vector<4x576xf32>
    tpu.vector_store %arg10[%c4_633, %c0_634], %559 {strides = array<i32>} : memref<16x1024xf32, #tpu.memory_space<vmem>>, vector<4x576xf32>,
    %c2_635 = arith.constant 2 : index
    %c0_636 = arith.constant 0 : index
    %c0_637 = arith.constant 0 : index
    %561 = vector.load %arg9[%c2_635, %c0_636, %c0_637] : memref<20x20x64xf32, #tpu.memory_space<vmem>>, vector<1x4x64xf32>
    %562 = vector.shape_cast %561 : vector<1x4x64xf32> to vector<4x64xf32>
    %c2_638 = arith.constant 2 : index
    %c1_639 = arith.constant 1 : index
    %c0_640 = arith.constant 0 : index
    %563 = vector.load %arg9[%c2_638, %c1_639, %c0_640] : memref<20x20x64xf32, #tpu.memory_space<vmem>>, vector<1x4x64xf32>
    %564 = vector.shape_cast %563 : vector<1x4x64xf32> to vector<4x64xf32>
    %c2_641 = arith.constant 2 : index
    %c2_642 = arith.constant 2 : index
    %c0_643 = arith.constant 0 : index
    %565 = vector.load %arg9[%c2_641, %c2_642, %c0_643] : memref<20x20x64xf32, #tpu.memory_space<vmem>>, vector<1x4x64xf32>
    %566 = vector.shape_cast %565 : vector<1x4x64xf32> to vector<4x64xf32>
    %c3_644 = arith.constant 3 : index
    %c0_645 = arith.constant 0 : index
    %c0_646 = arith.constant 0 : index
    %567 = vector.load %arg9[%c3_644, %c0_645, %c0_646] : memref<20x20x64xf32, #tpu.memory_space<vmem>>, vector<1x4x64xf32>
    %568 = vector.shape_cast %567 : vector<1x4x64xf32> to vector<4x64xf32>
    %c3_647 = arith.constant 3 : index
    %c1_648 = arith.constant 1 : index
    %c0_649 = arith.constant 0 : index
    %569 = vector.load %arg9[%c3_647, %c1_648, %c0_649] : memref<20x20x64xf32, #tpu.memory_space<vmem>>, vector<1x4x64xf32>
    %570 = vector.shape_cast %569 : vector<1x4x64xf32> to vector<4x64xf32>
    %c3_650 = arith.constant 3 : index
    %c2_651 = arith.constant 2 : index
    %c0_652 = arith.constant 0 : index
    %571 = vector.load %arg9[%c3_650, %c2_651, %c0_652] : memref<20x20x64xf32, #tpu.memory_space<vmem>>, vector<1x4x64xf32>
    %572 = vector.shape_cast %571 : vector<1x4x64xf32> to vector<4x64xf32>
    %c4_653 = arith.constant 4 : index
    %c0_654 = arith.constant 0 : index
    %c0_655 = arith.constant 0 : index
    %573 = vector.load %arg9[%c4_653, %c0_654, %c0_655] : memref<20x20x64xf32, #tpu.memory_space<vmem>>, vector<1x4x64xf32>
    %574 = vector.shape_cast %573 : vector<1x4x64xf32> to vector<4x64xf32>
    %c4_656 = arith.constant 4 : index
    %c1_657 = arith.constant 1 : index
    %c0_658 = arith.constant 0 : index
    %575 = vector.load %arg9[%c4_656, %c1_657, %c0_658] : memref<20x20x64xf32, #tpu.memory_space<vmem>>, vector<1x4x64xf32>
    %576 = vector.shape_cast %575 : vector<1x4x64xf32> to vector<4x64xf32>
    %c4_659 = arith.constant 4 : index
    %c2_660 = arith.constant 2 : index
    %c0_661 = arith.constant 0 : index
    %577 = vector.load %arg9[%c4_659, %c2_660, %c0_661] : memref<20x20x64xf32, #tpu.memory_space<vmem>>, vector<1x4x64xf32>
    %578 = vector.shape_cast %577 : vector<1x4x64xf32> to vector<4x64xf32>
    %579 = tpu.concatenate %562, %564, %566, %568, %570, %572, %574, %576, %578 in 1 : vector<4x64xf32>, vector<4x64xf32>, vector<4x64xf32>, vector<4x64xf32>, vector<4x64xf32>, vector<4x64xf32>, vector<4x64xf32>, vector<4x64xf32>, vector<4x64xf32> -> vector<4x576xf32>
    %c8_662 = arith.constant 8 : index
    %c0_663 = arith.constant 0 : index
    %580 = vector.load %arg10[%c8_662, %c0_663] : memref<16x1024xf32, #tpu.memory_space<vmem>>, vector<4x576xf32>
    tpu.vector_store %arg10[%c8_662, %c0_663], %579 {strides = array<i32>} : memref<16x1024xf32, #tpu.memory_space<vmem>>, vector<4x576xf32>,
    %c3_664 = arith.constant 3 : index
    %c0_665 = arith.constant 0 : index
    %c0_666 = arith.constant 0 : index
    %581 = vector.load %arg9[%c3_664, %c0_665, %c0_666] : memref<20x20x64xf32, #tpu.memory_space<vmem>>, vector<1x4x64xf32>
    %582 = vector.shape_cast %581 : vector<1x4x64xf32> to vector<4x64xf32>
    %c3_667 = arith.constant 3 : index
    %c1_668 = arith.constant 1 : index
    %c0_669 = arith.constant 0 : index
    %583 = vector.load %arg9[%c3_667, %c1_668, %c0_669] : memref<20x20x64xf32, #tpu.memory_space<vmem>>, vector<1x4x64xf32>
    %584 = vector.shape_cast %583 : vector<1x4x64xf32> to vector<4x64xf32>
    %c3_670 = arith.constant 3 : index
    %c2_671 = arith.constant 2 : index
    %c0_672 = arith.constant 0 : index
    %585 = vector.load %arg9[%c3_670, %c2_671, %c0_672] : memref<20x20x64xf32, #tpu.memory_space<vmem>>, vector<1x4x64xf32>
    %586 = vector.shape_cast %585 : vector<1x4x64xf32> to vector<4x64xf32>
    %c4_673 = arith.constant 4 : index
    %c0_674 = arith.constant 0 : index
    %c0_675 = arith.constant 0 : index
    %587 = vector.load %arg9[%c4_673, %c0_674, %c0_675] : memref<20x20x64xf32, #tpu.memory_space<vmem>>, vector<1x4x64xf32>
    %588 = vector.shape_cast %587 : vector<1x4x64xf32> to vector<4x64xf32>
    %c4_676 = arith.constant 4 : index
    %c1_677 = arith.constant 1 : index
    %c0_678 = arith.constant 0 : index
    %589 = vector.load %arg9[%c4_676, %c1_677, %c0_678] : memref<20x20x64xf32, #tpu.memory_space<vmem>>, vector<1x4x64xf32>
    %590 = vector.shape_cast %589 : vector<1x4x64xf32> to vector<4x64xf32>
    %c4_679 = arith.constant 4 : index
    %c2_680 = arith.constant 2 : index
    %c0_681 = arith.constant 0 : index
    %591 = vector.load %arg9[%c4_679, %c2_680, %c0_681] : memref<20x20x64xf32, #tpu.memory_space<vmem>>, vector<1x4x64xf32>
    %592 = vector.shape_cast %591 : vector<1x4x64xf32> to vector<4x64xf32>
    %c5_682 = arith.constant 5 : index
    %c0_683 = arith.constant 0 : index
    %c0_684 = arith.constant 0 : index
    %593 = vector.load %arg9[%c5_682, %c0_683, %c0_684] : memref<20x20x64xf32, #tpu.memory_space<vmem>>, vector<1x4x64xf32>
    %594 = vector.shape_cast %593 : vector<1x4x64xf32> to vector<4x64xf32>
    %c5_685 = arith.constant 5 : index
    %c1_686 = arith.constant 1 : index
    %c0_687 = arith.constant 0 : index
    %595 = vector.load %arg9[%c5_685, %c1_686, %c0_687] : memref<20x20x64xf32, #tpu.memory_space<vmem>>, vector<1x4x64xf32>
    %596 = vector.shape_cast %595 : vector<1x4x64xf32> to vector<4x64xf32>
    %c5_688 = arith.constant 5 : index
    %c2_689 = arith.constant 2 : index
    %c0_690 = arith.constant 0 : index
    %597 = vector.load %arg9[%c5_688, %c2_689, %c0_690] : memref<20x20x64xf32, #tpu.memory_space<vmem>>, vector<1x4x64xf32>
    %598 = vector.shape_cast %597 : vector<1x4x64xf32> to vector<4x64xf32>
    %599 = tpu.concatenate %582, %584, %586, %588, %590, %592, %594, %596, %598 in 1 : vector<4x64xf32>, vector<4x64xf32>, vector<4x64xf32>, vector<4x64xf32>, vector<4x64xf32>, vector<4x64xf32>, vector<4x64xf32>, vector<4x64xf32>, vector<4x64xf32> -> vector<4x576xf32>
    %c12_691 = arith.constant 12 : index
    %c0_692 = arith.constant 0 : index
    %600 = vector.load %arg10[%c12_691, %c0_692] : memref<16x1024xf32, #tpu.memory_space<vmem>>, vector<4x576xf32>
    tpu.vector_store %arg10[%c12_691, %c0_692], %599 {strides = array<i32>} : memref<16x1024xf32, #tpu.memory_space<vmem>>, vector<4x576xf32>,
    %c0_693 = arith.constant 0 : index
    %c0_694 = arith.constant 0 : index
    %601 = vector.load %arg10[%c0_693, %c0_694] : memref<16x1024xf32, #tpu.memory_space<vmem>>, vector<16x576xf32>
    %602 = arith.truncf %601 : vector<16x576xf32> to vector<16x576xbf16>
    %c0_695 = arith.constant 0 : index
    %c0_696 = arith.constant 0 : index
    %603 = vector.load %arg6[%c0_695, %c0_696] : memref<576x64xbf16, #tpu.memory_space<vmem>>, vector<576x64xbf16>
    %cst_697 = arith.constant dense<0.000000e+00> : vector<16x64xf32>
    %604 = tpu.matmul %602, %603, %cst_697 {dimension_numbers = #tpu.dot_dimension_numbers<[1], [0], [0], [1], [0, 0, 1, 1], [], []>} : vector<16x576xbf16>, vector<576x64xbf16>, vector<16x64xf32> -> vector<16x64xf32>
    %cst_698 = arith.constant dense<0.000000e+00> : vector<64xf32>
    %605 = vector.multi_reduction <add>, %604, %cst_698 [0] : vector<16x64xf32> to vector<64xf32>
    %606 = vector.shape_cast %605 : vector<64xf32> to vector<1x64xf32>
    %cst_699 = arith.constant 1.600000e+01 : f32
    %607 = vector.broadcast %cst_699 : f32 to vector<1x64xf32>
    %608 = arith.divf %606, %607 : vector<1x64xf32>
    %609 = vector.broadcast %608 : vector<1x64xf32> to vector<16x64xf32>
    %610 = arith.subf %604, %609 : vector<16x64xf32>
    %611 = arith.mulf %610, %610 : vector<16x64xf32>
    %cst_700 = arith.constant dense<0.000000e+00> : vector<64xf32>
    %612 = vector.multi_reduction <add>, %611, %cst_700 [0] : vector<16x64xf32> to vector<64xf32>
    %613 = vector.shape_cast %612 : vector<64xf32> to vector<1x64xf32>
    %cst_701 = arith.constant 1.600000e+01 : f32
    %614 = vector.broadcast %cst_701 : f32 to vector<1x64xf32>
    %615 = arith.divf %613, %614 : vector<1x64xf32>
    %616 = vector.broadcast %608 : vector<1x64xf32> to vector<16x64xf32>
    %617 = arith.subf %604, %616 : vector<16x64xf32>
    %cst_702 = arith.constant 9.99999974E-6 : f32
    %618 = vector.broadcast %cst_702 : f32 to vector<1x64xf32>
    %619 = arith.addf %615, %618 : vector<1x64xf32>
    %620 = math.rsqrt %619 : vector<1x64xf32>
    %621 = vector.broadcast %620 : vector<1x64xf32> to vector<16x64xf32>
    %622 = arith.mulf %617, %621 : vector<16x64xf32>
    %cst_703 = arith.constant 0.000000e+00 : f32
    %623 = vector.broadcast %cst_703 : f32 to vector<16x64xf32>
    %624 = arith.cmpf oge, %622, %623 : vector<16x64xf32>
    %cst_704 = arith.constant 2.000000e-01 : f32
    %625 = vector.broadcast %cst_704 : f32 to vector<16x64xf32>
    %626 = arith.mulf %625, %622 : vector<16x64xf32>
    %627 = arith.select %624, %622, %626 : vector<16x64xi1>, vector<16x64xf32>
    %cst_705 = arith.constant 0.000000e+00 : f32
    %628 = vector.broadcast %cst_705 : f32 to vector<20x20x64xf32>
    %c0_706 = arith.constant 0 : index
    %c0_707 = arith.constant 0 : index
    %c0_708 = arith.constant 0 : index
    %629 = vector.load %arg9[%c0_706, %c0_707, %c0_708] : memref<20x20x64xf32, #tpu.memory_space<vmem>>, vector<20x20x64xf32>
    tpu.vector_store %arg9[%c0_706, %c0_707, %c0_708], %628 {strides = array<i32>} : memref<20x20x64xf32, #tpu.memory_space<vmem>>, vector<20x20x64xf32>,
    %630 = vector.extract_strided_slice %627 {offsets = [0, 0], sizes = [4, 64], strides = [1, 1]} : vector<16x64xf32> to vector<4x64xf32>
    %c1_709 = arith.constant 1 : index
    %c1_710 = arith.constant 1 : index
    %c0_711 = arith.constant 0 : index
    %631 = vector.load %arg9[%c1_709, %c1_710, %c0_711] : memref<20x20x64xf32, #tpu.memory_space<vmem>>, vector<1x4x64xf32>
    %632 = vector.shape_cast %631 : vector<1x4x64xf32> to vector<4x64xf32>
    %633 = vector.shape_cast %630 : vector<4x64xf32> to vector<1x4x64xf32>
    tpu.vector_store %arg9[%c1_709, %c1_710, %c0_711], %633 {strides = array<i32>} : memref<20x20x64xf32, #tpu.memory_space<vmem>>, vector<1x4x64xf32>,
    %634 = vector.extract_strided_slice %627 {offsets = [4, 0], sizes = [4, 64], strides = [1, 1]} : vector<16x64xf32> to vector<4x64xf32>
    %c2_712 = arith.constant 2 : index
    %c1_713 = arith.constant 1 : index
    %c0_714 = arith.constant 0 : index
    %635 = vector.load %arg9[%c2_712, %c1_713, %c0_714] : memref<20x20x64xf32, #tpu.memory_space<vmem>>, vector<1x4x64xf32>
    %636 = vector.shape_cast %635 : vector<1x4x64xf32> to vector<4x64xf32>
    %637 = vector.shape_cast %634 : vector<4x64xf32> to vector<1x4x64xf32>
    tpu.vector_store %arg9[%c2_712, %c1_713, %c0_714], %637 {strides = array<i32>} : memref<20x20x64xf32, #tpu.memory_space<vmem>>, vector<1x4x64xf32>,
    %638 = vector.extract_strided_slice %627 {offsets = [8, 0], sizes = [4, 64], strides = [1, 1]} : vector<16x64xf32> to vector<4x64xf32>
    %c3_715 = arith.constant 3 : index
    %c1_716 = arith.constant 1 : index
    %c0_717 = arith.constant 0 : index
    %639 = vector.load %arg9[%c3_715, %c1_716, %c0_717] : memref<20x20x64xf32, #tpu.memory_space<vmem>>, vector<1x4x64xf32>
    %640 = vector.shape_cast %639 : vector<1x4x64xf32> to vector<4x64xf32>
    %641 = vector.shape_cast %638 : vector<4x64xf32> to vector<1x4x64xf32>
    tpu.vector_store %arg9[%c3_715, %c1_716, %c0_717], %641 {strides = array<i32>} : memref<20x20x64xf32, #tpu.memory_space<vmem>>, vector<1x4x64xf32>,
    %642 = vector.extract_strided_slice %627 {offsets = [12, 0], sizes = [4, 64], strides = [1, 1]} : vector<16x64xf32> to vector<4x64xf32>
    %c4_718 = arith.constant 4 : index
    %c1_719 = arith.constant 1 : index
    %c0_720 = arith.constant 0 : index
    %643 = vector.load %arg9[%c4_718, %c1_719, %c0_720] : memref<20x20x64xf32, #tpu.memory_space<vmem>>, vector<1x4x64xf32>
    %644 = vector.shape_cast %643 : vector<1x4x64xf32> to vector<4x64xf32>
    %645 = vector.shape_cast %642 : vector<4x64xf32> to vector<1x4x64xf32>
    tpu.vector_store %arg9[%c4_718, %c1_719, %c0_720], %645 {strides = array<i32>} : memref<20x20x64xf32, #tpu.memory_space<vmem>>, vector<1x4x64xf32>,
    %c0_721 = arith.constant 0 : index
    %c0_722 = arith.constant 0 : index
    %c0_723 = arith.constant 0 : index
    %646 = vector.load %arg9[%c0_721, %c0_722, %c0_723] : memref<20x20x64xf32, #tpu.memory_space<vmem>>, vector<1x3x64xf32>
    %647 = vector.shape_cast %646 : vector<1x3x64xf32> to vector<3x64xf32>
    %c0_724 = arith.constant 0 : index
    %c1_725 = arith.constant 1 : index
    %c0_726 = arith.constant 0 : index
    %648 = vector.load %arg9[%c0_724, %c1_725, %c0_726] : memref<20x20x64xf32, #tpu.memory_space<vmem>>, vector<1x3x64xf32>
    %649 = vector.shape_cast %648 : vector<1x3x64xf32> to vector<3x64xf32>
    %c0_727 = arith.constant 0 : index
    %c2_728 = arith.constant 2 : index
    %c0_729 = arith.constant 0 : index
    %650 = vector.load %arg9[%c0_727, %c2_728, %c0_729] : memref<20x20x64xf32, #tpu.memory_space<vmem>>, vector<1x3x64xf32>
    %651 = vector.shape_cast %650 : vector<1x3x64xf32> to vector<3x64xf32>
    %c0_730 = arith.constant 0 : index
    %c3_731 = arith.constant 3 : index
    %c0_732 = arith.constant 0 : index
    %652 = vector.load %arg9[%c0_730, %c3_731, %c0_732] : memref<20x20x64xf32, #tpu.memory_space<vmem>>, vector<1x3x64xf32>
    %653 = vector.shape_cast %652 : vector<1x3x64xf32> to vector<3x64xf32>
    %c1_733 = arith.constant 1 : index
    %c0_734 = arith.constant 0 : index
    %c0_735 = arith.constant 0 : index
    %654 = vector.load %arg9[%c1_733, %c0_734, %c0_735] : memref<20x20x64xf32, #tpu.memory_space<vmem>>, vector<1x3x64xf32>
    %655 = vector.shape_cast %654 : vector<1x3x64xf32> to vector<3x64xf32>
    %c1_736 = arith.constant 1 : index
    %c1_737 = arith.constant 1 : index
    %c0_738 = arith.constant 0 : index
    %656 = vector.load %arg9[%c1_736, %c1_737, %c0_738] : memref<20x20x64xf32, #tpu.memory_space<vmem>>, vector<1x3x64xf32>
    %657 = vector.shape_cast %656 : vector<1x3x64xf32> to vector<3x64xf32>
    %c1_739 = arith.constant 1 : index
    %c2_740 = arith.constant 2 : index
    %c0_741 = arith.constant 0 : index
    %658 = vector.load %arg9[%c1_739, %c2_740, %c0_741] : memref<20x20x64xf32, #tpu.memory_space<vmem>>, vector<1x3x64xf32>
    %659 = vector.shape_cast %658 : vector<1x3x64xf32> to vector<3x64xf32>
    %c1_742 = arith.constant 1 : index
    %c3_743 = arith.constant 3 : index
    %c0_744 = arith.constant 0 : index
    %660 = vector.load %arg9[%c1_742, %c3_743, %c0_744] : memref<20x20x64xf32, #tpu.memory_space<vmem>>, vector<1x3x64xf32>
    %661 = vector.shape_cast %660 : vector<1x3x64xf32> to vector<3x64xf32>
    %c2_745 = arith.constant 2 : index
    %c0_746 = arith.constant 0 : index
    %c0_747 = arith.constant 0 : index
    %662 = vector.load %arg9[%c2_745, %c0_746, %c0_747] : memref<20x20x64xf32, #tpu.memory_space<vmem>>, vector<1x3x64xf32>
    %663 = vector.shape_cast %662 : vector<1x3x64xf32> to vector<3x64xf32>
    %c2_748 = arith.constant 2 : index
    %c1_749 = arith.constant 1 : index
    %c0_750 = arith.constant 0 : index
    %664 = vector.load %arg9[%c2_748, %c1_749, %c0_750] : memref<20x20x64xf32, #tpu.memory_space<vmem>>, vector<1x3x64xf32>
    %665 = vector.shape_cast %664 : vector<1x3x64xf32> to vector<3x64xf32>
    %c2_751 = arith.constant 2 : index
    %c2_752 = arith.constant 2 : index
    %c0_753 = arith.constant 0 : index
    %666 = vector.load %arg9[%c2_751, %c2_752, %c0_753] : memref<20x20x64xf32, #tpu.memory_space<vmem>>, vector<1x3x64xf32>
    %667 = vector.shape_cast %666 : vector<1x3x64xf32> to vector<3x64xf32>
    %c2_754 = arith.constant 2 : index
    %c3_755 = arith.constant 3 : index
    %c0_756 = arith.constant 0 : index
    %668 = vector.load %arg9[%c2_754, %c3_755, %c0_756] : memref<20x20x64xf32, #tpu.memory_space<vmem>>, vector<1x3x64xf32>
    %669 = vector.shape_cast %668 : vector<1x3x64xf32> to vector<3x64xf32>
    %c3_757 = arith.constant 3 : index
    %c0_758 = arith.constant 0 : index
    %c0_759 = arith.constant 0 : index
    %670 = vector.load %arg9[%c3_757, %c0_758, %c0_759] : memref<20x20x64xf32, #tpu.memory_space<vmem>>, vector<1x3x64xf32>
    %671 = vector.shape_cast %670 : vector<1x3x64xf32> to vector<3x64xf32>
    %c3_760 = arith.constant 3 : index
    %c1_761 = arith.constant 1 : index
    %c0_762 = arith.constant 0 : index
    %672 = vector.load %arg9[%c3_760, %c1_761, %c0_762] : memref<20x20x64xf32, #tpu.memory_space<vmem>>, vector<1x3x64xf32>
    %673 = vector.shape_cast %672 : vector<1x3x64xf32> to vector<3x64xf32>
    %c3_763 = arith.constant 3 : index
    %c2_764 = arith.constant 2 : index
    %c0_765 = arith.constant 0 : index
    %674 = vector.load %arg9[%c3_763, %c2_764, %c0_765] : memref<20x20x64xf32, #tpu.memory_space<vmem>>, vector<1x3x64xf32>
    %675 = vector.shape_cast %674 : vector<1x3x64xf32> to vector<3x64xf32>
    %c3_766 = arith.constant 3 : index
    %c3_767 = arith.constant 3 : index
    %c0_768 = arith.constant 0 : index
    %676 = vector.load %arg9[%c3_766, %c3_767, %c0_768] : memref<20x20x64xf32, #tpu.memory_space<vmem>>, vector<1x3x64xf32>
    %677 = vector.shape_cast %676 : vector<1x3x64xf32> to vector<3x64xf32>
    %678 = tpu.concatenate %647, %649, %651, %653, %655, %657, %659, %661, %663, %665, %667, %669, %671, %673, %675, %677 in 1 : vector<3x64xf32>, vector<3x64xf32>, vector<3x64xf32>, vector<3x64xf32>, vector<3x64xf32>, vector<3x64xf32>, vector<3x64xf32>, vector<3x64xf32>, vector<3x64xf32>, vector<3x64xf32>, vector<3x64xf32>, vector<3x64xf32>, vector<3x64xf32>, vector<3x64xf32>, vector<3x64xf32>, vector<3x64xf32> -> vector<3x1024xf32>
    %c0_769 = arith.constant 0 : index
    %c0_770 = arith.constant 0 : index
    %679 = vector.load %arg10[%c0_769, %c0_770] : memref<16x1024xf32, #tpu.memory_space<vmem>>, vector<3x1024xf32>
    tpu.vector_store %arg10[%c0_769, %c0_770], %678 {strides = array<i32>} : memref<16x1024xf32, #tpu.memory_space<vmem>>, vector<3x1024xf32>,
    %c1_771 = arith.constant 1 : index
    %c0_772 = arith.constant 0 : index
    %c0_773 = arith.constant 0 : index
    %680 = vector.load %arg9[%c1_771, %c0_772, %c0_773] : memref<20x20x64xf32, #tpu.memory_space<vmem>>, vector<1x3x64xf32>
    %681 = vector.shape_cast %680 : vector<1x3x64xf32> to vector<3x64xf32>
    %c1_774 = arith.constant 1 : index
    %c1_775 = arith.constant 1 : index
    %c0_776 = arith.constant 0 : index
    %682 = vector.load %arg9[%c1_774, %c1_775, %c0_776] : memref<20x20x64xf32, #tpu.memory_space<vmem>>, vector<1x3x64xf32>
    %683 = vector.shape_cast %682 : vector<1x3x64xf32> to vector<3x64xf32>
    %c1_777 = arith.constant 1 : index
    %c2_778 = arith.constant 2 : index
    %c0_779 = arith.constant 0 : index
    %684 = vector.load %arg9[%c1_777, %c2_778, %c0_779] : memref<20x20x64xf32, #tpu.memory_space<vmem>>, vector<1x3x64xf32>
    %685 = vector.shape_cast %684 : vector<1x3x64xf32> to vector<3x64xf32>
    %c1_780 = arith.constant 1 : index
    %c3_781 = arith.constant 3 : index
    %c0_782 = arith.constant 0 : index
    %686 = vector.load %arg9[%c1_780, %c3_781, %c0_782] : memref<20x20x64xf32, #tpu.memory_space<vmem>>, vector<1x3x64xf32>
    %687 = vector.shape_cast %686 : vector<1x3x64xf32> to vector<3x64xf32>
    %c2_783 = arith.constant 2 : index
    %c0_784 = arith.constant 0 : index
    %c0_785 = arith.constant 0 : index
    %688 = vector.load %arg9[%c2_783, %c0_784, %c0_785] : memref<20x20x64xf32, #tpu.memory_space<vmem>>, vector<1x3x64xf32>
    %689 = vector.shape_cast %688 : vector<1x3x64xf32> to vector<3x64xf32>
    %c2_786 = arith.constant 2 : index
    %c1_787 = arith.constant 1 : index
    %c0_788 = arith.constant 0 : index
    %690 = vector.load %arg9[%c2_786, %c1_787, %c0_788] : memref<20x20x64xf32, #tpu.memory_space<vmem>>, vector<1x3x64xf32>
    %691 = vector.shape_cast %690 : vector<1x3x64xf32> to vector<3x64xf32>
    %c2_789 = arith.constant 2 : index
    %c2_790 = arith.constant 2 : index
    %c0_791 = arith.constant 0 : index
    %692 = vector.load %arg9[%c2_789, %c2_790, %c0_791] : memref<20x20x64xf32, #tpu.memory_space<vmem>>, vector<1x3x64xf32>
    %693 = vector.shape_cast %692 : vector<1x3x64xf32> to vector<3x64xf32>
    %c2_792 = arith.constant 2 : index
    %c3_793 = arith.constant 3 : index
    %c0_794 = arith.constant 0 : index
    %694 = vector.load %arg9[%c2_792, %c3_793, %c0_794] : memref<20x20x64xf32, #tpu.memory_space<vmem>>, vector<1x3x64xf32>
    %695 = vector.shape_cast %694 : vector<1x3x64xf32> to vector<3x64xf32>
    %c3_795 = arith.constant 3 : index
    %c0_796 = arith.constant 0 : index
    %c0_797 = arith.constant 0 : index
    %696 = vector.load %arg9[%c3_795, %c0_796, %c0_797] : memref<20x20x64xf32, #tpu.memory_space<vmem>>, vector<1x3x64xf32>
    %697 = vector.shape_cast %696 : vector<1x3x64xf32> to vector<3x64xf32>
    %c3_798 = arith.constant 3 : index
    %c1_799 = arith.constant 1 : index
    %c0_800 = arith.constant 0 : index
    %698 = vector.load %arg9[%c3_798, %c1_799, %c0_800] : memref<20x20x64xf32, #tpu.memory_space<vmem>>, vector<1x3x64xf32>
    %699 = vector.shape_cast %698 : vector<1x3x64xf32> to vector<3x64xf32>
    %c3_801 = arith.constant 3 : index
    %c2_802 = arith.constant 2 : index
    %c0_803 = arith.constant 0 : index
    %700 = vector.load %arg9[%c3_801, %c2_802, %c0_803] : memref<20x20x64xf32, #tpu.memory_space<vmem>>, vector<1x3x64xf32>
    %701 = vector.shape_cast %700 : vector<1x3x64xf32> to vector<3x64xf32>
    %c3_804 = arith.constant 3 : index
    %c3_805 = arith.constant 3 : index
    %c0_806 = arith.constant 0 : index
    %702 = vector.load %arg9[%c3_804, %c3_805, %c0_806] : memref<20x20x64xf32, #tpu.memory_space<vmem>>, vector<1x3x64xf32>
    %703 = vector.shape_cast %702 : vector<1x3x64xf32> to vector<3x64xf32>
    %c4_807 = arith.constant 4 : index
    %c0_808 = arith.constant 0 : index
    %c0_809 = arith.constant 0 : index
    %704 = vector.load %arg9[%c4_807, %c0_808, %c0_809] : memref<20x20x64xf32, #tpu.memory_space<vmem>>, vector<1x3x64xf32>
    %705 = vector.shape_cast %704 : vector<1x3x64xf32> to vector<3x64xf32>
    %c4_810 = arith.constant 4 : index
    %c1_811 = arith.constant 1 : index
    %c0_812 = arith.constant 0 : index
    %706 = vector.load %arg9[%c4_810, %c1_811, %c0_812] : memref<20x20x64xf32, #tpu.memory_space<vmem>>, vector<1x3x64xf32>
    %707 = vector.shape_cast %706 : vector<1x3x64xf32> to vector<3x64xf32>
    %c4_813 = arith.constant 4 : index
    %c2_814 = arith.constant 2 : index
    %c0_815 = arith.constant 0 : index
    %708 = vector.load %arg9[%c4_813, %c2_814, %c0_815] : memref<20x20x64xf32, #tpu.memory_space<vmem>>, vector<1x3x64xf32>
    %709 = vector.shape_cast %708 : vector<1x3x64xf32> to vector<3x64xf32>
    %c4_816 = arith.constant 4 : index
    %c3_817 = arith.constant 3 : index
    %c0_818 = arith.constant 0 : index
    %710 = vector.load %arg9[%c4_816, %c3_817, %c0_818] : memref<20x20x64xf32, #tpu.memory_space<vmem>>, vector<1x3x64xf32>
    %711 = vector.shape_cast %710 : vector<1x3x64xf32> to vector<3x64xf32>
    %712 = tpu.concatenate %681, %683, %685, %687, %689, %691, %693, %695, %697, %699, %701, %703, %705, %707, %709, %711 in 1 : vector<3x64xf32>, vector<3x64xf32>, vector<3x64xf32>, vector<3x64xf32>, vector<3x64xf32>, vector<3x64xf32>, vector<3x64xf32>, vector<3x64xf32>, vector<3x64xf32>, vector<3x64xf32>, vector<3x64xf32>, vector<3x64xf32>, vector<3x64xf32>, vector<3x64xf32>, vector<3x64xf32>, vector<3x64xf32> -> vector<3x1024xf32>
    %c3_819 = arith.constant 3 : index
    %c0_820 = arith.constant 0 : index
    %713 = vector.load %arg10[%c3_819, %c0_820] : memref<16x1024xf32, #tpu.memory_space<vmem>>, vector<3x1024xf32>
    tpu.vector_store %arg10[%c3_819, %c0_820], %712 {strides = array<i32>} : memref<16x1024xf32, #tpu.memory_space<vmem>>, vector<3x1024xf32>,
    %c2_821 = arith.constant 2 : index
    %c0_822 = arith.constant 0 : index
    %c0_823 = arith.constant 0 : index
    %714 = vector.load %arg9[%c2_821, %c0_822, %c0_823] : memref<20x20x64xf32, #tpu.memory_space<vmem>>, vector<1x3x64xf32>
    %715 = vector.shape_cast %714 : vector<1x3x64xf32> to vector<3x64xf32>
    %c2_824 = arith.constant 2 : index
    %c1_825 = arith.constant 1 : index
    %c0_826 = arith.constant 0 : index
    %716 = vector.load %arg9[%c2_824, %c1_825, %c0_826] : memref<20x20x64xf32, #tpu.memory_space<vmem>>, vector<1x3x64xf32>
    %717 = vector.shape_cast %716 : vector<1x3x64xf32> to vector<3x64xf32>
    %c2_827 = arith.constant 2 : index
    %c2_828 = arith.constant 2 : index
    %c0_829 = arith.constant 0 : index
    %718 = vector.load %arg9[%c2_827, %c2_828, %c0_829] : memref<20x20x64xf32, #tpu.memory_space<vmem>>, vector<1x3x64xf32>
    %719 = vector.shape_cast %718 : vector<1x3x64xf32> to vector<3x64xf32>
    %c2_830 = arith.constant 2 : index
    %c3_831 = arith.constant 3 : index
    %c0_832 = arith.constant 0 : index
    %720 = vector.load %arg9[%c2_830, %c3_831, %c0_832] : memref<20x20x64xf32, #tpu.memory_space<vmem>>, vector<1x3x64xf32>
    %721 = vector.shape_cast %720 : vector<1x3x64xf32> to vector<3x64xf32>
    %c3_833 = arith.constant 3 : index
    %c0_834 = arith.constant 0 : index
    %c0_835 = arith.constant 0 : index
    %722 = vector.load %arg9[%c3_833, %c0_834, %c0_835] : memref<20x20x64xf32, #tpu.memory_space<vmem>>, vector<1x3x64xf32>
    %723 = vector.shape_cast %722 : vector<1x3x64xf32> to vector<3x64xf32>
    %c3_836 = arith.constant 3 : index
    %c1_837 = arith.constant 1 : index
    %c0_838 = arith.constant 0 : index
    %724 = vector.load %arg9[%c3_836, %c1_837, %c0_838] : memref<20x20x64xf32, #tpu.memory_space<vmem>>, vector<1x3x64xf32>
    %725 = vector.shape_cast %724 : vector<1x3x64xf32> to vector<3x64xf32>
    %c3_839 = arith.constant 3 : index
    %c2_840 = arith.constant 2 : index
    %c0_841 = arith.constant 0 : index
    %726 = vector.load %arg9[%c3_839, %c2_840, %c0_841] : memref<20x20x64xf32, #tpu.memory_space<vmem>>, vector<1x3x64xf32>
    %727 = vector.shape_cast %726 : vector<1x3x64xf32> to vector<3x64xf32>
    %c3_842 = arith.constant 3 : index
    %c3_843 = arith.constant 3 : index
    %c0_844 = arith.constant 0 : index
    %728 = vector.load %arg9[%c3_842, %c3_843, %c0_844] : memref<20x20x64xf32, #tpu.memory_space<vmem>>, vector<1x3x64xf32>
    %729 = vector.shape_cast %728 : vector<1x3x64xf32> to vector<3x64xf32>
    %c4_845 = arith.constant 4 : index
    %c0_846 = arith.constant 0 : index
    %c0_847 = arith.constant 0 : index
    %730 = vector.load %arg9[%c4_845, %c0_846, %c0_847] : memref<20x20x64xf32, #tpu.memory_space<vmem>>, vector<1x3x64xf32>
    %731 = vector.shape_cast %730 : vector<1x3x64xf32> to vector<3x64xf32>
    %c4_848 = arith.constant 4 : index
    %c1_849 = arith.constant 1 : index
    %c0_850 = arith.constant 0 : index
    %732 = vector.load %arg9[%c4_848, %c1_849, %c0_850] : memref<20x20x64xf32, #tpu.memory_space<vmem>>, vector<1x3x64xf32>
    %733 = vector.shape_cast %732 : vector<1x3x64xf32> to vector<3x64xf32>
    %c4_851 = arith.constant 4 : index
    %c2_852 = arith.constant 2 : index
    %c0_853 = arith.constant 0 : index
    %734 = vector.load %arg9[%c4_851, %c2_852, %c0_853] : memref<20x20x64xf32, #tpu.memory_space<vmem>>, vector<1x3x64xf32>
    %735 = vector.shape_cast %734 : vector<1x3x64xf32> to vector<3x64xf32>
    %c4_854 = arith.constant 4 : index
    %c3_855 = arith.constant 3 : index
    %c0_856 = arith.constant 0 : index
    %736 = vector.load %arg9[%c4_854, %c3_855, %c0_856] : memref<20x20x64xf32, #tpu.memory_space<vmem>>, vector<1x3x64xf32>
    %737 = vector.shape_cast %736 : vector<1x3x64xf32> to vector<3x64xf32>
    %c5_857 = arith.constant 5 : index
    %c0_858 = arith.constant 0 : index
    %c0_859 = arith.constant 0 : index
    %738 = vector.load %arg9[%c5_857, %c0_858, %c0_859] : memref<20x20x64xf32, #tpu.memory_space<vmem>>, vector<1x3x64xf32>
    %739 = vector.shape_cast %738 : vector<1x3x64xf32> to vector<3x64xf32>
    %c5_860 = arith.constant 5 : index
    %c1_861 = arith.constant 1 : index
    %c0_862 = arith.constant 0 : index
    %740 = vector.load %arg9[%c5_860, %c1_861, %c0_862] : memref<20x20x64xf32, #tpu.memory_space<vmem>>, vector<1x3x64xf32>
    %741 = vector.shape_cast %740 : vector<1x3x64xf32> to vector<3x64xf32>
    %c5_863 = arith.constant 5 : index
    %c2_864 = arith.constant 2 : index
    %c0_865 = arith.constant 0 : index
    %742 = vector.load %arg9[%c5_863, %c2_864, %c0_865] : memref<20x20x64xf32, #tpu.memory_space<vmem>>, vector<1x3x64xf32>
    %743 = vector.shape_cast %742 : vector<1x3x64xf32> to vector<3x64xf32>
    %c5_866 = arith.constant 5 : index
    %c3_867 = arith.constant 3 : index
    %c0_868 = arith.constant 0 : index
    %744 = vector.load %arg9[%c5_866, %c3_867, %c0_868] : memref<20x20x64xf32, #tpu.memory_space<vmem>>, vector<1x3x64xf32>
    %745 = vector.shape_cast %744 : vector<1x3x64xf32> to vector<3x64xf32>
    %746 = tpu.concatenate %715, %717, %719, %721, %723, %725, %727, %729, %731, %733, %735, %737, %739, %741, %743, %745 in 1 : vector<3x64xf32>, vector<3x64xf32>, vector<3x64xf32>, vector<3x64xf32>, vector<3x64xf32>, vector<3x64xf32>, vector<3x64xf32>, vector<3x64xf32>, vector<3x64xf32>, vector<3x64xf32>, vector<3x64xf32>, vector<3x64xf32>, vector<3x64xf32>, vector<3x64xf32>, vector<3x64xf32>, vector<3x64xf32> -> vector<3x1024xf32>
    %c6_869 = arith.constant 6 : index
    %c0_870 = arith.constant 0 : index
    %747 = vector.load %arg10[%c6_869, %c0_870] : memref<16x1024xf32, #tpu.memory_space<vmem>>, vector<3x1024xf32>
    tpu.vector_store %arg10[%c6_869, %c0_870], %746 {strides = array<i32>} : memref<16x1024xf32, #tpu.memory_space<vmem>>, vector<3x1024xf32>,
    %c0_871 = arith.constant 0 : index
    %c0_872 = arith.constant 0 : index
    %748 = vector.load %arg10[%c0_871, %c0_872] : memref<16x1024xf32, #tpu.memory_space<vmem>>, vector<9x1024xf32>
    %749 = arith.truncf %748 : vector<9x1024xf32> to vector<9x1024xbf16>
    %c0_873 = arith.constant 0 : index
    %c0_874 = arith.constant 0 : index
    %750 = vector.load %arg7[%c0_873, %c0_874] : memref<1024x1xbf16, #tpu.memory_space<vmem>>, vector<1024x1xbf16>
    %cst_875 = arith.constant dense<0.000000e+00> : vector<9x1xf32>
    %751 = tpu.matmul %749, %750, %cst_875 {dimension_numbers = #tpu.dot_dimension_numbers<[1], [0], [0], [1], [0, 0, 1, 1], [], []>} : vector<9x1024xbf16>, vector<1024x1xbf16>, vector<9x1xf32> -> vector<9x1xf32>
    %c0_876 = arith.constant 0 : index
    %c0_877 = arith.constant 0 : index
    %c0_878 = arith.constant 0 : index
    %752 = vector.load %arg8[%c0_876, %c0_877, %c0_878] : memref<1x9x1xf32, #tpu.memory_space<vmem>>, vector<1x9x1xf32>
    %753 = vector.shape_cast %752 : vector<1x9x1xf32> to vector<9x1xf32>
    %754 = vector.shape_cast %751 : vector<9x1xf32> to vector<1x9x1xf32>
    tpu.vector_store %arg8[%c0_876, %c0_877, %c0_878], %754 {strides = array<i32>} : memref<1x9x1xf32, #tpu.memory_space<vmem>>, vector<1x9x1xf32>,
    return
  }
  func.func @transform_0(%arg0: i32) -> (i32, i32, i32) {
    %c0_i32 = arith.constant 0 : i32
    %c0_i32_0 = arith.constant 0 : i32
    %c0_i32_1 = arith.constant 0 : i32
    return %arg0, %c0_i32, %c0_i32_0 : i32, i32, i32
  }
  func.func @transform_1(%arg0: i32) -> (i32, i32) {
    %c0_i32 = arith.constant 0 : i32
    %c0_i32_0 = arith.constant 0 : i32
    %c0_i32_1 = arith.constant 0 : i32
    return %c0_i32, %c0_i32_0 : i32, i32
  }
  func.func @transform_2(%arg0: i32) -> (i32, i32) {
    %c0_i32 = arith.constant 0 : i32
    %c0_i32_0 = arith.constant 0 : i32
    %c0_i32_1 = arith.constant 0 : i32
    return %c0_i32, %c0_i32_0 : i32, i32
  }
  func.func @transform_3(%arg0: i32) -> (i32, i32) {
    %c0_i32 = arith.constant 0 : i32
    %c0_i32_0 = arith.constant 0 : i32
    %c0_i32_1 = arith.constant 0 : i32
    return %c0_i32, %c0_i32_0 : i32, i32
  }
  func.func @transform_4(%arg0: i32) -> (i32, i32) {
    %c0_i32 = arith.constant 0 : i32
    %c0_i32_0 = arith.constant 0 : i32
    %c0_i32_1 = arith.constant 0 : i32
    return %c0_i32, %c0_i32_0 : i32, i32
  }
  func.func @transform_5(%arg0: i32) -> (i32, i32) {
    %c0_i32 = arith.constant 0 : i32
    %c0_i32_0 = arith.constant 0 : i32
    %c0_i32_1 = arith.constant 0 : i32
    return %c0_i32, %c0_i32_0 : i32, i32
  }
  func.func @transform_6(%arg0: i32) -> (i32, i32) {
    %c0_i32 = arith.constant 0 : i32
    %c0_i32_0 = arith.constant 0 : i32
    %c0_i32_1 = arith.constant 0 : i32
    return %c0_i32, %c0_i32_0 : i32, i32
  }
  func.func @transform_7(%arg0: i32) -> (i32, i32, i32) {
    %c0_i32 = arith.constant 0 : i32
    %c0_i32_0 = arith.constant 0 : i32
    %c0_i32_1 = arith.constant 0 : i32
    return %arg0, %c0_i32, %c0_i32_0 : i32, i32, i32
  }
}

</mosaic_0001>

<llo_original>
// kernel: discriminator_forward.4
$region0: #{discriminator_forward.4}
  #allocation0 [shape = 'u32[]', space=smem, size = 0x4, offset = 0x4, fixed_abs, tag = 'smem constant byte address 0x4 - core index']
  #allocation1 [shape = 'u32[72,128]{1,0:T(1,128)}', space=vmem, size = 0x9000, scoped, tag = 'internal scratch']
  %s0 = inlined_call_operand.vmem [shape: bf16[512,96], index: 0, kind: input, shape index: {}]
  %s1 = inlined_call_operand.vmem [shape: bf16[96,16], index: 1, kind: input, shape index: {}]
  %s2 = inlined_call_operand.vmem [shape: f32[1,16], index: 2, kind: input, shape index: {}]
  %s3 = inlined_call_operand.vmem [shape: f32[512,16], index: 3, kind: output, shape index: {}]
  %s4 = sld [smem:[#allocation0]]
  $region22: #{discriminator_forward.4} parent=0
    _
  %s6 = ssub.s32 1, %s4
  %s7 = scalar_select 0, %s6, %s4
  // Predicated region
  $region2: #{discriminator_forward.4} parent=0 // pred_check
    _
  $region3: #{discriminator_forward.4} parent=0 // pred_check_branch
    %9 = sbr.rel (0) target = $region5
  $region4: #{discriminator_forward.4} parent=0 // pred_region
    _
  $region5: #{discriminator_forward.4} parent=0 // pred_fallthru
    _
  // Predicated region
  $region6: #{discriminator_forward.4} parent=0 // pred_check
    _
  $region7: #{discriminator_forward.4} parent=0 // pred_check_branch
    %11 = sbr.rel (0) target = $region9
  $region8: #{discriminator_forward.4} parent=0 // pred_region
    _
  $region9: #{discriminator_forward.4} parent=0 // pred_fallthru
    _
  // Predicated region
  $region10: #{discriminator_forward.4} parent=0 // pred_check
    _
  $region11: #{discriminator_forward.4} parent=0 // pred_check_branch
    %13 = sbr.rel (0) target = $region13
  $region12: #{discriminator_forward.4} parent=0 // pred_region
    _
  $region13: #{discriminator_forward.4} parent=0 // pred_fallthru
    _
  %v15 = vld [vmem:[%s0] sm:$0xf]
  %v16 = vld [vmem:[%s0 + $0x4] sm:$0xf]
  %v17 = vld [vmem:[%s0 + $0x8] sm:$0xf]
  %v18 = vld [vmem:[%s0 + $0xc] sm:$0xf]
  %v19 = vld [vmem:[%s0 + $0x10] sm:$0xf]
  %v20 = vld [vmem:[%s0 + $0x14] sm:$0xf]
  %v21 = vld [vmem:[%s0 + $0x18] sm:$0xf]
  %v22 = vld [vmem:[%s0 + $0x1c] sm:$0xf]
  %v23 = vld [vmem:[%s0 + $0x20] sm:$0xf]
  %v24 = vld [vmem:[%s0 + $0x24] sm:$0xf]
  %v25 = vld [vmem:[%s0 + $0x28] sm:$0xf]
  %v26 = vld [vmem:[%s0 + $0x2c] sm:$0xf]
  %v27 = vld [vmem:[%s0 + $0x30] sm:$0xf]
  %v28 = vld [vmem:[%s0 + $0x34] sm:$0xf]
  %v29 = vld [vmem:[%s0 + $0x38] sm:$0xf]
  %v30 = vld [vmem:[%s0 + $0x3c] sm:$0xf]
  %v31 = vld [vmem:[%s0 + $0x40] sm:$0xf]
  %v32 = vld [vmem:[%s0 + $0x44] sm:$0xf]
  %v33 = vld [vmem:[%s0 + $0x48] sm:$0xf]
  %v34 = vld [vmem:[%s0 + $0x4c] sm:$0xf]
  %v35 = vld [vmem:[%s0 + $0x50] sm:$0xf]
  %v36 = vld [vmem:[%s0 + $0x54] sm:$0xf]
  %v37 = vld [vmem:[%s0 + $0x58] sm:$0xf]
  %v38 = vld [vmem:[%s0 + $0x5c] sm:$0xf]
  %v39 = vld [vmem:[%s0 + $0x60] sm:$0xf]
  %v40 = vld [vmem:[%s0 + $0x64] sm:$0xf]
  %v41 = vld [vmem:[%s0 + $0x68] sm:$0xf]
  %v42 = vld [vmem:[%s0 + $0x6c] sm:$0xf]
  %v43 = vld [vmem:[%s0 + $0x70] sm:$0xf]
  %v44 = vld [vmem:[%s0 + $0x74] sm:$0xf]
  %v45 = vld [vmem:[%s0 + $0x78] sm:$0xf]
  %v46 = vld [vmem:[%s0 + $0x7c] sm:$0xf]
  %v47 = vld [vmem:[%s0 + $0x80] sm:$0xf]
  %v48 = vld [vmem:[%s0 + $0x84] sm:$0xf]
  %v49 = vld [vmem:[%s0 + $0x88] sm:$0xf]
  %v50 = vld [vmem:[%s0 + $0x8c] sm:$0xf]
  %v51 = vld [vmem:[%s0 + $0x90] sm:$0xf]
  %v52 = vld [vmem:[%s0 + $0x94] sm:$0xf]
  %v53 = vld [vmem:[%s0 + $0x98] sm:$0xf]
  %v54 = vld [vmem:[%s0 + $0x9c] sm:$0xf]
  %v55 = vld [vmem:[%s0 + $0xa0] sm:$0xf]
  %v56 = vld [vmem:[%s0 + $0xa4] sm:$0xf]
  %v57 = vld [vmem:[%s0 + $0xa8] sm:$0xf]
  %v58 = vld [vmem:[%s0 + $0xac] sm:$0xf]
  %v59 = vld [vmem:[%s0 + $0xb0] sm:$0xf]
  %v60 = vld [vmem:[%s0 + $0xb4] sm:$0xf]
  %v61 = vld [vmem:[%s0 + $0xb8] sm:$0xf]
  %v62 = vld [vmem:[%s0 + $0xbc] sm:$0xf]
  %v63 = vld [vmem:[%s0 + $0xc0] sm:$0xf]
  %v64 = vld [vmem:[%s0 + $0xc4] sm:$0xf]
  %v65 = vld [vmem:[%s0 + $0xc8] sm:$0xf]
  %v66 = vld [vmem:[%s0 + $0xcc] sm:$0xf]
  %v67 = vld [vmem:[%s0 + $0xd0] sm:$0xf]
  %v68 = vld [vmem:[%s0 + $0xd4] sm:$0xf]
  %v69 = vld [vmem:[%s0 + $0xd8] sm:$0xf]
  %v70 = vld [vmem:[%s0 + $0xdc] sm:$0xf]
  %v71 = vld [vmem:[%s0 + $0xe0] sm:$0xf]
  %v72 = vld [vmem:[%s0 + $0xe4] sm:$0xf]
  %v73 = vld [vmem:[%s0 + $0xe8] sm:$0xf]
  %v74 = vld [vmem:[%s0 + $0xec] sm:$0xf]
  %v75 = vld [vmem:[%s0 + $0xf0] sm:$0xf]
  %v76 = vld [vmem:[%s0 + $0xf4] sm:$0xf]
  %v77 = vld [vmem:[%s0 + $0xf8] sm:$0xf]
  %v78 = vld [vmem:[%s0 + $0xfc] sm:$0xf]
  %v79 = vld [vmem:[%s1] sm:$0xf]
  %v80 = vld [vmem:[%s1 + $0x4] sm:$0xf]
  %v81 = vld [vmem:[%s1 + $0x8] sm:$0xf]
  %v82 = vld [vmem:[%s1 + $0xc] sm:$0xf]
  %v83 = vld [vmem:[%s1 + $0x10] sm:$0xf]
  %v84 = vld [vmem:[%s1 + $0x14] sm:$0xf]
  %v85 = vld [vmem:[%s1 + $0x18] sm:$0xf]
  %v86 = vld [vmem:[%s1 + $0x1c] sm:$0xf]
  %v87 = vld [vmem:[%s1 + $0x20] sm:$0xf]
  %v88 = vld [vmem:[%s1 + $0x24] sm:$0xf]
  %v89 = vld [vmem:[%s1 + $0x28] sm:$0xf]
  %v90 = vld [vmem:[%s1 + $0x2c] sm:$0xf]
  %v91 = vld [vmem:[%s2] sm:$0x1]
  %v93 = vperm.slane %v91, 0
  %v159 = vunpack.c.l.b16 %v15
  %v160 = vunpack.c.l.b16 %v16
  %v161 = vunpack.c.l.b16 %v17
  %v162 = vunpack.c.l.b16 %v18
  %v163 = vunpack.c.l.b16 %v19
  %v164 = vunpack.c.l.b16 %v20
  %v165 = vunpack.c.l.b16 %v21
  %v166 = vunpack.c.l.b16 %v22
  %v167 = vunpack.c.l.b16 %v23
  %v168 = vunpack.c.l.b16 %v24
  %v169 = vunpack.c.l.b16 %v25
  %v170 = vunpack.c.l.b16 %v26
  %v171 = vunpack.c.l.b16 %v27
  %v172 = vunpack.c.l.b16 %v28
  %v173 = vunpack.c.l.b16 %v29
  %v174 = vunpack.c.l.b16 %v30
  %v175 = vunpack.c.l.b16 %v31
  %v176 = vunpack.c.l.b16 %v32
  %v177 = vunpack.c.l.b16 %v33
  %v178 = vunpack.c.l.b16 %v34
  %v179 = vunpack.c.l.b16 %v35
  %v180 = vunpack.c.l.b16 %v36
  %v181 = vunpack.c.l.b16 %v37
  %v182 = vunpack.c.l.b16 %v38
  %v183 = vunpack.c.l.b16 %v39
  %v184 = vunpack.c.l.b16 %v40
  %v185 = vunpack.c.l.b16 %v41
  %v186 = vunpack.c.l.b16 %v42
  %v187 = vunpack.c.l.b16 %v43
  %v188 = vunpack.c.l.b16 %v44
  %v189 = vunpack.c.l.b16 %v45
  %v190 = vunpack.c.l.b16 %v46
  %v191 = vunpack.c.l.b16 %v47
  %v192 = vunpack.c.l.b16 %v48
  %v193 = vunpack.c.l.b16 %v49
  %v194 = vunpack.c.l.b16 %v50
  %v195 = vunpack.c.l.b16 %v51
  %v196 = vunpack.c.l.b16 %v52
  %v197 = vunpack.c.l.b16 %v53
  %v198 = vunpack.c.l.b16 %v54
  %v199 = vunpack.c.l.b16 %v55
  %v200 = vunpack.c.l.b16 %v56
  %v201 = vunpack.c.l.b16 %v57
  %v202 = vunpack.c.l.b16 %v58
  %v203 = vunpack.c.l.b16 %v59
  %v204 = vunpack.c.l.b16 %v60
  %v205 = vunpack.c.l.b16 %v61
  %v206 = vunpack.c.l.b16 %v62
  %v207 = vunpack.c.l.b16 %v63
  %v208 = vunpack.c.l.b16 %v64
  %v209 = vunpack.c.l.b16 %v65
  %v210 = vunpack.c.l.b16 %v66
  %v211 = vunpack.c.l.b16 %v67
  %v212 = vunpack.c.l.b16 %v68
  %v213 = vunpack.c.l.b16 %v69
  %v214 = vunpack.c.l.b16 %v70
  %v215 = vunpack.c.l.b16 %v71
  %v216 = vunpack.c.l.b16 %v72
  %v217 = vunpack.c.l.b16 %v73
  %v218 = vunpack.c.l.b16 %v74
  %v219 = vunpack.c.l.b16 %v75
  %v220 = vunpack.c.l.b16 %v76
  %v221 = vunpack.c.l.b16 %v77
  %v222 = vunpack.c.l.b16 %v78
  %v223 = vpack.c.b16 %v160, %v159
  %v224 = vpack.c.b16 %v162, %v161
  %v225 = vpack.c.b16 %v164, %v163
  %v226 = vpack.c.b16 %v166, %v165
  %v227 = vpack.c.b16 %v168, %v167
  %v228 = vpack.c.b16 %v170, %v169
  %v229 = vpack.c.b16 %v172, %v171
  %v230 = vpack.c.b16 %v174, %v173
  %v231 = vpack.c.b16 %v176, %v175
  %v232 = vpack.c.b16 %v178, %v177
  %v233 = vpack.c.b16 %v180, %v179
  %v234 = vpack.c.b16 %v182, %v181
  %v235 = vpack.c.b16 %v184, %v183
  %v236 = vpack.c.b16 %v186, %v185
  %v237 = vpack.c.b16 %v188, %v187
  %v238 = vpack.c.b16 %v190, %v189
  %v239 = vpack.c.b16 %v192, %v191
  %v240 = vpack.c.b16 %v194, %v193
  %v241 = vpack.c.b16 %v196, %v195
  %v242 = vpack.c.b16 %v198, %v197
  %v243 = vpack.c.b16 %v200, %v199
  %v244 = vpack.c.b16 %v202, %v201
  %v245 = vpack.c.b16 %v204, %v203
  %v246 = vpack.c.b16 %v206, %v205
  %v247 = vpack.c.b16 %v208, %v207
  %v248 = vpack.c.b16 %v210, %v209
  %v249 = vpack.c.b16 %v212, %v211
  %v250 = vpack.c.b16 %v214, %v213
  %v251 = vpack.c.b16 %v216, %v215
  %v252 = vpack.c.b16 %v218, %v217
  %v253 = vpack.c.b16 %v220, %v219
  %v254 = vpack.c.b16 %v222, %v221
  %v267 = vunpack.c.l.b16 %v79
  %v268 = vunpack.c.l.b16 %v80
  %v269 = vunpack.c.l.b16 %v81
  %v270 = vunpack.c.l.b16 %v82
  %v271 = vunpack.c.l.b16 %v83
  %v272 = vunpack.c.l.b16 %v84
  %v273 = vunpack.c.l.b16 %v85
  %v274 = vunpack.c.l.b16 %v86
  %v275 = vunpack.c.l.b16 %v87
  %v276 = vunpack.c.l.b16 %v88
  %v277 = vunpack.c.l.b16 %v89
  %v278 = vunpack.c.l.b16 %v90
  %v279 = vpack.c.b16 %v268, %v267
  %v280 = vpack.c.b16 %v270, %v269
  %v281 = vpack.c.b16 %v272, %v271
  %v282 = vpack.c.b16 %v274, %v273
  %v283 = vpack.c.b16 %v276, %v275
  %v284 = vpack.c.b16 %v278, %v277
  %vm291 = vcmask 785408
  %v293 = vsel %vm291, %v223, 0
  %v296 = vsel %vm291, %v224, 0
  %v299 = vsel %vm291, %v225, 0
  %v302 = vsel %vm291, %v226, 0
  %v305 = vsel %vm291, %v227, 0
  %v308 = vsel %vm291, %v228, 0
  %v311 = vsel %vm291, %v229, 0
  %v314 = vsel %vm291, %v230, 0
  %v317 = vsel %vm291, %v231, 0
  %v320 = vsel %vm291, %v232, 0
  %v323 = vsel %vm291, %v233, 0
  %v326 = vsel %vm291, %v234, 0
  %v329 = vsel %vm291, %v235, 0
  %v332 = vsel %vm291, %v236, 0
  %v335 = vsel %vm291, %v237, 0
  %v338 = vsel %vm291, %v238, 0
  %v341 = vsel %vm291, %v239, 0
  %v344 = vsel %vm291, %v240, 0
  %v347 = vsel %vm291, %v241, 0
  %v350 = vsel %vm291, %v242, 0
  %v353 = vsel %vm291, %v243, 0
  %v356 = vsel %vm291, %v244, 0
  %v359 = vsel %vm291, %v245, 0
  %v362 = vsel %vm291, %v246, 0
  %v365 = vsel %vm291, %v247, 0
  %v368 = vsel %vm291, %v248, 0
  %v371 = vsel %vm291, %v249, 0
  %v374 = vsel %vm291, %v250, 0
  %v377 = vsel %vm291, %v251, 0
  %v380 = vsel %vm291, %v252, 0
  %v383 = vsel %vm291, %v253, 0
  %v386 = vsel %vm291, %v254, 0
  %388 = vmatpush.bf16.msra.mxu0 0
  %389 = vmatpush.bf16.msra.mxu0 0
  %390 = vmatpush.bf16.msra.mxu0 %v284
  %391 = vmatpush.bf16.msra.mxu0 %v283
  %392 = vmatpush.bf16.msra.mxu0 %v282
  %393 = vmatpush.bf16.msra.mxu0 %v281
  %394 = vmatpush.bf16.msra.mxu0 %v280
  %395 = vmatpush.bf16.msra.mxu0 %v279
  %396 = vmatmul.bf16.gmra.mxu0 %v293
  %v397 = vpop.f32.mrf.mxu0
  %v398 = vadd.f32 %v93, %v397
  %v399 = vpop.f32.mrf.mxu0
  %v400 = vadd.f32 %v93, %v399
  %401 = vmatmul.bf16.gmra.mxu0 %v296
  %v402 = vpop.f32.mrf.mxu0
  %v403 = vadd.f32 %v93, %v402
  %v404 = vpop.f32.mrf.mxu0
  %v405 = vadd.f32 %v93, %v404
  %406 = vmatmul.bf16.gmra.mxu0 %v299
  %v407 = vpop.f32.mrf.mxu0
  %v408 = vadd.f32 %v93, %v407
  %v409 = vpop.f32.mrf.mxu0
  %v410 = vadd.f32 %v93, %v409
  %411 = vmatmul.bf16.gmra.mxu0 %v302
  %v412 = vpop.f32.mrf.mxu0
  %v413 = vadd.f32 %v93, %v412
  %v414 = vpop.f32.mrf.mxu0
  %v415 = vadd.f32 %v93, %v414
  %416 = vmatmul.bf16.gmra.mxu0 %v305
  %v417 = vpop.f32.mrf.mxu0
  %v418 = vadd.f32 %v93, %v417
  %v419 = vpop.f32.mrf.mxu0
  %v420 = vadd.f32 %v93, %v419
  %421 = vmatmul.bf16.gmra.mxu0 %v308
  %v422 = vpop.f32.mrf.mxu0
  %v423 = vadd.f32 %v93, %v422
  %v424 = vpop.f32.mrf.mxu0
  %v425 = vadd.f32 %v93, %v424
  %426 = vmatmul.bf16.gmra.mxu0 %v311
  %v427 = vpop.f32.mrf.mxu0
  %v428 = vadd.f32 %v93, %v427
  %v429 = vpop.f32.mrf.mxu0
  %v430 = vadd.f32 %v93, %v429
  %431 = vmatmul.bf16.gmra.mxu0 %v314
  %v432 = vpop.f32.mrf.mxu0
  %v433 = vadd.f32 %v93, %v432
  %v434 = vpop.f32.mrf.mxu0
  %v435 = vadd.f32 %v93, %v434
  %436 = vmatmul.bf16.gmra.mxu0 %v317
  %v437 = vpop.f32.mrf.mxu0
  %v438 = vadd.f32 %v93, %v437
  %v439 = vpop.f32.mrf.mxu0
  %v440 = vadd.f32 %v93, %v439
  %441 = vmatmul.bf16.gmra.mxu0 %v320
  %v442 = vpop.f32.mrf.mxu0
  %v443 = vadd.f32 %v93, %v442
  %v444 = vpop.f32.mrf.mxu0
  %v445 = vadd.f32 %v93, %v444
  %446 = vmatmul.bf16.gmra.mxu0 %v323
  %v447 = vpop.f32.mrf.mxu0
  %v448 = vadd.f32 %v93, %v447
  %v449 = vpop.f32.mrf.mxu0
  %v450 = vadd.f32 %v93, %v449
  %451 = vmatmul.bf16.gmra.mxu0 %v326
  %v452 = vpop.f32.mrf.mxu0
  %v453 = vadd.f32 %v93, %v452
  %v454 = vpop.f32.mrf.mxu0
  %v455 = vadd.f32 %v93, %v454
  %456 = vmatmul.bf16.gmra.mxu0 %v329
  %v457 = vpop.f32.mrf.mxu0
  %v458 = vadd.f32 %v93, %v457
  %v459 = vpop.f32.mrf.mxu0
  %v460 = vadd.f32 %v93, %v459
  %461 = vmatmul.bf16.gmra.mxu0 %v332
  %v462 = vpop.f32.mrf.mxu0
  %v463 = vadd.f32 %v93, %v462
  %v464 = vpop.f32.mrf.mxu0
  %v465 = vadd.f32 %v93, %v464
  %466 = vmatmul.bf16.gmra.mxu0 %v335
  %v467 = vpop.f32.mrf.mxu0
  %v468 = vadd.f32 %v93, %v467
  %v469 = vpop.f32.mrf.mxu0
  %v470 = vadd.f32 %v93, %v469
  %471 = vmatmul.bf16.gmra.mxu0 %v338
  %v472 = vpop.f32.mrf.mxu0
  %v473 = vadd.f32 %v93, %v472
  %v474 = vpop.f32.mrf.mxu0
  %v475 = vadd.f32 %v93, %v474
  %476 = vmatmul.bf16.gmra.mxu0 %v341
  %v477 = vpop.f32.mrf.mxu0
  %v478 = vadd.f32 %v93, %v477
  %v479 = vpop.f32.mrf.mxu0
  %v480 = vadd.f32 %v93, %v479
  %481 = vmatmul.bf16.gmra.mxu0 %v344
  %v482 = vpop.f32.mrf.mxu0
  %v483 = vadd.f32 %v93, %v482
  %v484 = vpop.f32.mrf.mxu0
  %v485 = vadd.f32 %v93, %v484
  %486 = vmatmul.bf16.gmra.mxu0 %v347
  %v487 = vpop.f32.mrf.mxu0
  %v488 = vadd.f32 %v93, %v487
  %v489 = vpop.f32.mrf.mxu0
  %v490 = vadd.f32 %v93, %v489
  %491 = vmatmul.bf16.gmra.mxu0 %v350
  %v492 = vpop.f32.mrf.mxu0
  %v493 = vadd.f32 %v93, %v492
  %v494 = vpop.f32.mrf.mxu0
  %v495 = vadd.f32 %v93, %v494
  %496 = vmatmul.bf16.gmra.mxu0 %v353
  %v497 = vpop.f32.mrf.mxu0
  %v498 = vadd.f32 %v93, %v497
  %v499 = vpop.f32.mrf.mxu0
  %v500 = vadd.f32 %v93, %v499
  %501 = vmatmul.bf16.gmra.mxu0 %v356
  %v502 = vpop.f32.mrf.mxu0
  %v503 = vadd.f32 %v93, %v502
  %v504 = vpop.f32.mrf.mxu0
  %v505 = vadd.f32 %v93, %v504
  %506 = vmatmul.bf16.gmra.mxu0 %v359
  %v507 = vpop.f32.mrf.mxu0
  %v508 = vadd.f32 %v93, %v507
  %v509 = vpop.f32.mrf.mxu0
  %v510 = vadd.f32 %v93, %v509
  %511 = vmatmul.bf16.gmra.mxu0 %v362
  %v512 = vpop.f32.mrf.mxu0
  %v513 = vadd.f32 %v93, %v512
  %v514 = vpop.f32.mrf.mxu0
  %v515 = vadd.f32 %v93, %v514
  %516 = vmatmul.bf16.gmra.mxu0 %v365
  %v517 = vpop.f32.mrf.mxu0
  %v518 = vadd.f32 %v93, %v517
  %v519 = vpop.f32.mrf.mxu0
  %v520 = vadd.f32 %v93, %v519
  %521 = vmatmul.bf16.gmra.mxu0 %v368
  %v522 = vpop.f32.mrf.mxu0
  %v523 = vadd.f32 %v93, %v522
  %v524 = vpop.f32.mrf.mxu0
  %v525 = vadd.f32 %v93, %v524
  %526 = vmatmul.bf16.gmra.mxu0 %v371
  %v527 = vpop.f32.mrf.mxu0
  %v528 = vadd.f32 %v93, %v527
  %v529 = vpop.f32.mrf.mxu0
  %v530 = vadd.f32 %v93, %v529
  %531 = vmatmul.bf16.gmra.mxu0 %v374
  %v532 = vpop.f32.mrf.mxu0
  %v533 = vadd.f32 %v93, %v532
  %v534 = vpop.f32.mrf.mxu0
  %v535 = vadd.f32 %v93, %v534
  %536 = vmatmul.bf16.gmra.mxu0 %v377
  %v537 = vpop.f32.mrf.mxu0
  %v538 = vadd.f32 %v93, %v537
  %v539 = vpop.f32.mrf.mxu0
  %v540 = vadd.f32 %v93, %v539
  %541 = vmatmul.bf16.gmra.mxu0 %v380
  %v542 = vpop.f32.mrf.mxu0
  %v543 = vadd.f32 %v93, %v542
  %v544 = vpop.f32.mrf.mxu0
  %v545 = vadd.f32 %v93, %v544
  %546 = vmatmul.bf16.gmra.mxu0 %v383
  %v547 = vpop.f32.mrf.mxu0
  %v548 = vadd.f32 %v93, %v547
  %v549 = vpop.f32.mrf.mxu0
  %v550 = vadd.f32 %v93, %v549
  %551 = vmatmul.bf16.gmra.mxu0 %v386
  %v552 = vpop.f32.mrf.mxu0
  %v553 = vadd.f32 %v93, %v552
  %v554 = vpop.f32.mrf.mxu0
  %v555 = vadd.f32 %v93, %v554
  %556 = vdwg.mxu0
  %vm557 = vcmp.ge.f32.partialorder %v398, 0.0
  %vm558 = vcmp.ge.f32.partialorder %v400, 0.0
  %vm559 = vcmp.ge.f32.partialorder %v403, 0.0
  %vm560 = vcmp.ge.f32.partialorder %v405, 0.0
  %vm561 = vcmp.ge.f32.partialorder %v408, 0.0
  %vm562 = vcmp.ge.f32.partialorder %v410, 0.0
  %vm563 = vcmp.ge.f32.partialorder %v413, 0.0
  %vm564 = vcmp.ge.f32.partialorder %v415, 0.0
  %vm565 = vcmp.ge.f32.partialorder %v418, 0.0
  %vm566 = vcmp.ge.f32.partialorder %v420, 0.0
  %vm567 = vcmp.ge.f32.partialorder %v423, 0.0
  %vm568 = vcmp.ge.f32.partialorder %v425, 0.0
  %vm569 = vcmp.ge.f32.partialorder %v428, 0.0
  %vm570 = vcmp.ge.f32.partialorder %v430, 0.0
  %vm571 = vcmp.ge.f32.partialorder %v433, 0.0
  %vm572 = vcmp.ge.f32.partialorder %v435, 0.0
  %vm573 = vcmp.ge.f32.partialorder %v438, 0.0
  %vm574 = vcmp.ge.f32.partialorder %v440, 0.0
  %vm575 = vcmp.ge.f32.partialorder %v443, 0.0
  %vm576 = vcmp.ge.f32.partialorder %v445, 0.0
  %vm577 = vcmp.ge.f32.partialorder %v448, 0.0
  %vm578 = vcmp.ge.f32.partialorder %v450, 0.0
  %vm579 = vcmp.ge.f32.partialorder %v453, 0.0
  %vm580 = vcmp.ge.f32.partialorder %v455, 0.0
  %vm581 = vcmp.ge.f32.partialorder %v458, 0.0
  %vm582 = vcmp.ge.f32.partialorder %v460, 0.0
  %vm583 = vcmp.ge.f32.partialorder %v463, 0.0
  %vm584 = vcmp.ge.f32.partialorder %v465, 0.0
  %vm585 = vcmp.ge.f32.partialorder %v468, 0.0
  %vm586 = vcmp.ge.f32.partialorder %v470, 0.0
  %vm587 = vcmp.ge.f32.partialorder %v473, 0.0
  %vm588 = vcmp.ge.f32.partialorder %v475, 0.0
  %vm589 = vcmp.ge.f32.partialorder %v478, 0.0
  %vm590 = vcmp.ge.f32.partialorder %v480, 0.0
  %vm591 = vcmp.ge.f32.partialorder %v483, 0.0
  %vm592 = vcmp.ge.f32.partialorder %v485, 0.0
  %vm593 = vcmp.ge.f32.partialorder %v488, 0.0
  %vm594 = vcmp.ge.f32.partialorder %v490, 0.0
  %vm595 = vcmp.ge.f32.partialorder %v493, 0.0
  %vm596 = vcmp.ge.f32.partialorder %v495, 0.0
  %vm597 = vcmp.ge.f32.partialorder %v498, 0.0
  %vm598 = vcmp.ge.f32.partialorder %v500, 0.0
  %vm599 = vcmp.ge.f32.partialorder %v503, 0.0
  %vm600 = vcmp.ge.f32.partialorder %v505, 0.0
  %vm601 = vcmp.ge.f32.partialorder %v508, 0.0
  %vm602 = vcmp.ge.f32.partialorder %v510, 0.0
  %vm603 = vcmp.ge.f32.partialorder %v513, 0.0
  %vm604 = vcmp.ge.f32.partialorder %v515, 0.0
  %vm605 = vcmp.ge.f32.partialorder %v518, 0.0
  %vm606 = vcmp.ge.f32.partialorder %v520, 0.0
  %vm607 = vcmp.ge.f32.partialorder %v523, 0.0
  %vm608 = vcmp.ge.f32.partialorder %v525, 0.0
  %vm609 = vcmp.ge.f32.partialorder %v528, 0.0
  %vm610 = vcmp.ge.f32.partialorder %v530, 0.0
  %vm611 = vcmp.ge.f32.partialorder %v533, 0.0
  %vm612 = vcmp.ge.f32.partialorder %v535, 0.0
  %vm613 = vcmp.ge.f32.partialorder %v538, 0.0
  %vm614 = vcmp.ge.f32.partialorder %v540, 0.0
  %vm615 = vcmp.ge.f32.partialorder %v543, 0.0
  %vm616 = vcmp.ge.f32.partialorder %v545, 0.0
  %vm617 = vcmp.ge.f32.partialorder %v548, 0.0
  %vm618 = vcmp.ge.f32.partialorder %v550, 0.0
  %vm619 = vcmp.ge.f32.partialorder %v553, 0.0
  %vm620 = vcmp.ge.f32.partialorder %v555, 0.0
  %v621 = vmul.f32 %v398, 0.2
  %v622 = vmul.f32 %v400, 0.2
  %v623 = vmul.f32 %v403, 0.2
  %v624 = vmul.f32 %v405, 0.2
  %v625 = vmul.f32 %v408, 0.2
  %v626 = vmul.f32 %v410, 0.2
  %v627 = vmul.f32 %v413, 0.2
  %v628 = vmul.f32 %v415, 0.2
  %v629 = vmul.f32 %v418, 0.2
  %v630 = vmul.f32 %v420, 0.2
  %v631 = vmul.f32 %v423, 0.2
  %v632 = vmul.f32 %v425, 0.2
  %v633 = vmul.f32 %v428, 0.2
  %v634 = vmul.f32 %v430, 0.2
  %v635 = vmul.f32 %v433, 0.2
  %v636 = vmul.f32 %v435, 0.2
  %v637 = vmul.f32 %v438, 0.2
  %v638 = vmul.f32 %v440, 0.2
  %v639 = vmul.f32 %v443, 0.2
  %v640 = vmul.f32 %v445, 0.2
  %v641 = vmul.f32 %v448, 0.2
  %v642 = vmul.f32 %v450, 0.2
  %v643 = vmul.f32 %v453, 0.2
  %v644 = vmul.f32 %v455, 0.2
  %v645 = vmul.f32 %v458, 0.2
  %v646 = vmul.f32 %v460, 0.2
  %v647 = vmul.f32 %v463, 0.2
  %v648 = vmul.f32 %v465, 0.2
  %v649 = vmul.f32 %v468, 0.2
  %v650 = vmul.f32 %v470, 0.2
  %v651 = vmul.f32 %v473, 0.2
  %v652 = vmul.f32 %v475, 0.2
  %v653 = vmul.f32 %v478, 0.2
  %v654 = vmul.f32 %v480, 0.2
  %v655 = vmul.f32 %v483, 0.2
  %v656 = vmul.f32 %v485, 0.2
  %v657 = vmul.f32 %v488, 0.2
  %v658 = vmul.f32 %v490, 0.2
  %v659 = vmul.f32 %v493, 0.2
  %v660 = vmul.f32 %v495, 0.2
  %v661 = vmul.f32 %v498, 0.2
  %v662 = vmul.f32 %v500, 0.2
  %v663 = vmul.f32 %v503, 0.2
  %v664 = vmul.f32 %v505, 0.2
  %v665 = vmul.f32 %v508, 0.2
  %v666 = vmul.f32 %v510, 0.2
  %v667 = vmul.f32 %v513, 0.2
  %v668 = vmul.f32 %v515, 0.2
  %v669 = vmul.f32 %v518, 0.2
  %v670 = vmul.f32 %v520, 0.2
  %v671 = vmul.f32 %v523, 0.2
  %v672 = vmul.f32 %v525, 0.2
  %v673 = vmul.f32 %v528, 0.2
  %v674 = vmul.f32 %v530, 0.2
  %v675 = vmul.f32 %v533, 0.2
  %v676 = vmul.f32 %v535, 0.2
  %v677 = vmul.f32 %v538, 0.2
  %v678 = vmul.f32 %v540, 0.2
  %v679 = vmul.f32 %v543, 0.2
  %v680 = vmul.f32 %v545, 0.2
  %v681 = vmul.f32 %v548, 0.2
  %v682 = vmul.f32 %v550, 0.2
  %v683 = vmul.f32 %v553, 0.2
  %v684 = vmul.f32 %v555, 0.2
  %v685 = vsel %vm557, %v398, %v621
  %v686 = vsel %vm558, %v400, %v622
  %v687 = vsel %vm559, %v403, %v623
  %v688 = vsel %vm560, %v405, %v624
  %v689 = vsel %vm561, %v408, %v625
  %v690 = vsel %vm562, %v410, %v626
  %v691 = vsel %vm563, %v413, %v627
  %v692 = vsel %vm564, %v415, %v628
  %v693 = vsel %vm565, %v418, %v629
  %v694 = vsel %vm566, %v420, %v630
  %v695 = vsel %vm567, %v423, %v631
  %v696 = vsel %vm568, %v425, %v632
  %v697 = vsel %vm569, %v428, %v633
  %v698 = vsel %vm570, %v430, %v634
  %v699 = vsel %vm571, %v433, %v635
  %v700 = vsel %vm572, %v435, %v636
  %v701 = vsel %vm573, %v438, %v637
  %v702 = vsel %vm574, %v440, %v638
  %v703 = vsel %vm575, %v443, %v639
  %v704 = vsel %vm576, %v445, %v640
  %v705 = vsel %vm577, %v448, %v641
  %v706 = vsel %vm578, %v450, %v642
  %v707 = vsel %vm579, %v453, %v643
  %v708 = vsel %vm580, %v455, %v644
  %v709 = vsel %vm581, %v458, %v645
  %v710 = vsel %vm582, %v460, %v646
  %v711 = vsel %vm583, %v463, %v647
  %v712 = vsel %vm584, %v465, %v648
  %v713 = vsel %vm585, %v468, %v649
  %v714 = vsel %vm586, %v470, %v650
  %v715 = vsel %vm587, %v473, %v651
  %v716 = vsel %vm588, %v475, %v652
  %v717 = vsel %vm589, %v478, %v653
  %v718 = vsel %vm590, %v480, %v654
  %v719 = vsel %vm591, %v483, %v655
  %v720 = vsel %vm592, %v485, %v656
  %v721 = vsel %vm593, %v488, %v657
  %v722 = vsel %vm594, %v490, %v658
  %v723 = vsel %vm595, %v493, %v659
  %v724 = vsel %vm596, %v495, %v660
  %v725 = vsel %vm597, %v498, %v661
  %v726 = vsel %vm598, %v500, %v662
  %v727 = vsel %vm599, %v503, %v663
  %v728 = vsel %vm600, %v505, %v664
  %v729 = vsel %vm601, %v508, %v665
  %v730 = vsel %vm602, %v510, %v666
  %v731 = vsel %vm603, %v513, %v667
  %v732 = vsel %vm604, %v515, %v668
  %v733 = vsel %vm605, %v518, %v669
  %v734 = vsel %vm606, %v520, %v670
  %v735 = vsel %vm607, %v523, %v671
  %v736 = vsel %vm608, %v525, %v672
  %v737 = vsel %vm609, %v528, %v673
  %v738 = vsel %vm610, %v530, %v674
  %v739 = vsel %vm611, %v533, %v675
  %v740 = vsel %vm612, %v535, %v676
  %v741 = vsel %vm613, %v538, %v677
  %v742 = vsel %vm614, %v540, %v678
  %v743 = vsel %vm615, %v543, %v679
  %v744 = vsel %vm616, %v545, %v680
  %v745 = vsel %vm617, %v548, %v681
  %v746 = vsel %vm618, %v550, %v682
  %v747 = vsel %vm619, %v553, %v683
  %v748 = vsel %vm620, %v555, %v684
  %vm749 = vcmask 130048
  %750 = vst.msk [vmem:[%s3] sm:$0xff] %vm749, %v685
  %751 = vst.msk [vmem:[%s3 + $0x8] sm:$0xff] %vm749, %v686
  %752 = vst.msk [vmem:[%s3 + $0x10] sm:$0xff] %vm749, %v687
  %753 = vst.msk [vmem:[%s3 + $0x18] sm:$0xff] %vm749, %v688
  %754 = vst.msk [vmem:[%s3 + $0x20] sm:$0xff] %vm749, %v689
  %755 = vst.msk [vmem:[%s3 + $0x28] sm:$0xff] %vm749, %v690
  %756 = vst.msk [vmem:[%s3 + $0x30] sm:$0xff] %vm749, %v691
  %757 = vst.msk [vmem:[%s3 + $0x38] sm:$0xff] %vm749, %v692
  %758 = vst.msk [vmem:[%s3 + $0x40] sm:$0xff] %vm749, %v693
  %759 = vst.msk [vmem:[%s3 + $0x48] sm:$0xff] %vm749, %v694
  %760 = vst.msk [vmem:[%s3 + $0x50] sm:$0xff] %vm749, %v695
  %761 = vst.msk [vmem:[%s3 + $0x58] sm:$0xff] %vm749, %v696
  %762 = vst.msk [vmem:[%s3 + $0x60] sm:$0xff] %vm749, %v697
  %763 = vst.msk [vmem:[%s3 + $0x68] sm:$0xff] %vm749, %v698
  %764 = vst.msk [vmem:[%s3 + $0x70] sm:$0xff] %vm749, %v699
  %765 = vst.msk [vmem:[%s3 + $0x78] sm:$0xff] %vm749, %v700
  %766 = vst.msk [vmem:[%s3 + $0x80] sm:$0xff] %vm749, %v701
  %767 = vst.msk [vmem:[%s3 + $0x88] sm:$0xff] %vm749, %v702
  %768 = vst.msk [vmem:[%s3 + $0x90] sm:$0xff] %vm749, %v703
  %769 = vst.msk [vmem:[%s3 + $0x98] sm:$0xff] %vm749, %v704
  %770 = vst.msk [vmem:[%s3 + $0xa0] sm:$0xff] %vm749, %v705
  %771 = vst.msk [vmem:[%s3 + $0xa8] sm:$0xff] %vm749, %v706
  %772 = vst.msk [vmem:[%s3 + $0xb0] sm:$0xff] %vm749, %v707
  %773 = vst.msk [vmem:[%s3 + $0xb8] sm:$0xff] %vm749, %v708
  %774 = vst.msk [vmem:[%s3 + $0xc0] sm:$0xff] %vm749, %v709
  %775 = vst.msk [vmem:[%s3 + $0xc8] sm:$0xff] %vm749, %v710
  %776 = vst.msk [vmem:[%s3 + $0xd0] sm:$0xff] %vm749, %v711
  %777 = vst.msk [vmem:[%s3 + $0xd8] sm:$0xff] %vm749, %v712
  %778 = vst.msk [vmem:[%s3 + $0xe0] sm:$0xff] %vm749, %v713
  %779 = vst.msk [vmem:[%s3 + $0xe8] sm:$0xff] %vm749, %v714
  %780 = vst.msk [vmem:[%s3 + $0xf0] sm:$0xff] %vm749, %v715
  %781 = vst.msk [vmem:[%s3 + $0xf8] sm:$0xff] %vm749, %v716
  %782 = vst.msk [vmem:[%s3 + $0x100] sm:$0xff] %vm749, %v717
  %783 = vst.msk [vmem:[%s3 + $0x108] sm:$0xff] %vm749, %v718
  %784 = vst.msk [vmem:[%s3 + $0x110] sm:$0xff] %vm749, %v719
  %785 = vst.msk [vmem:[%s3 + $0x118] sm:$0xff] %vm749, %v720
  %786 = vst.msk [vmem:[%s3 + $0x120] sm:$0xff] %vm749, %v721
  %787 = vst.msk [vmem:[%s3 + $0x128] sm:$0xff] %vm749, %v722
  %788 = vst.msk [vmem:[%s3 + $0x130] sm:$0xff] %vm749, %v723
  %789 = vst.msk [vmem:[%s3 + $0x138] sm:$0xff] %vm749, %v724
  %790 = vst.msk [vmem:[%s3 + $0x140] sm:$0xff] %vm749, %v725
  %791 = vst.msk [vmem:[%s3 + $0x148] sm:$0xff] %vm749, %v726
  %792 = vst.msk [vmem:[%s3 + $0x150] sm:$0xff] %vm749, %v727
  %793 = vst.msk [vmem:[%s3 + $0x158] sm:$0xff] %vm749, %v728
  %794 = vst.msk [vmem:[%s3 + $0x160] sm:$0xff] %vm749, %v729
  %795 = vst.msk [vmem:[%s3 + $0x168] sm:$0xff] %vm749, %v730
  %796 = vst.msk [vmem:[%s3 + $0x170] sm:$0xff] %vm749, %v731
  %797 = vst.msk [vmem:[%s3 + $0x178] sm:$0xff] %vm749, %v732
  %798 = vst.msk [vmem:[%s3 + $0x180] sm:$0xff] %vm749, %v733
  %799 = vst.msk [vmem:[%s3 + $0x188] sm:$0xff] %vm749, %v734
  %800 = vst.msk [vmem:[%s3 + $0x190] sm:$0xff] %vm749, %v735
  %801 = vst.msk [vmem:[%s3 + $0x198] sm:$0xff] %vm749, %v736
  %802 = vst.msk [vmem:[%s3 + $0x1a0] sm:$0xff] %vm749, %v737
  %803 = vst.msk [vmem:[%s3 + $0x1a8] sm:$0xff] %vm749, %v738
  %804 = vst.msk [vmem:[%s3 + $0x1b0] sm:$0xff] %vm749, %v739
  %805 = vst.msk [vmem:[%s3 + $0x1b8] sm:$0xff] %vm749, %v740
  %806 = vst.msk [vmem:[%s3 + $0x1c0] sm:$0xff] %vm749, %v741
  %807 = vst.msk [vmem:[%s3 + $0x1c8] sm:$0xff] %vm749, %v742
  %808 = vst.msk [vmem:[%s3 + $0x1d0] sm:$0xff] %vm749, %v743
  %809 = vst.msk [vmem:[%s3 + $0x1d8] sm:$0xff] %vm749, %v744
  %810 = vst.msk [vmem:[%s3 + $0x1e0] sm:$0xff] %vm749, %v745
  %811 = vst.msk [vmem:[%s3 + $0x1e8] sm:$0xff] %vm749, %v746
  %812 = vst.msk [vmem:[%s3 + $0x1f0] sm:$0xff] %vm749, %v747
  %813 = vst.msk [vmem:[%s3 + $0x1f8] sm:$0xff] %vm749, %v748
  // Predicated region
  $region14: #{discriminator_forward.4} parent=0 // pred_check
    _
  $region15: #{discriminator_forward.4} parent=0 // pred_check_branch
    %815 = sbr.rel (0) target = $region17
  $region16: #{discriminator_forward.4} parent=0 // pred_region
    _
  $region17: #{discriminator_forward.4} parent=0 // pred_fallthru
    _
  // Predicated region
  $region18: #{discriminator_forward.4} parent=0 // pred_check
    _
  $region19: #{discriminator_forward.4} parent=0 // pred_check_branch
    %817 = sbr.rel (0) target = $region21
  $region20: #{discriminator_forward.4} parent=0 // pred_region
    _
  $region21: #{discriminator_forward.4} parent=0 // pred_fallthru
    _

// kernel: discriminator_forward.5
$region0: #{discriminator_forward.5}
  #allocation0 [shape = 'u32[]', space=smem, size = 0x4, offset = 0x4, fixed_abs, tag = 'smem constant byte address 0x4 - core index']
  #allocation1 [shape = 'u32[72,128]{1,0:T(1,128)}', space=vmem, size = 0x9000, scoped, tag = 'internal scratch']
  %s0 = inlined_call_operand.vmem [shape: bf16[2,64,256], index: 0, kind: input, shape index: {}]
  %s1 = inlined_call_operand.vmem [shape: bf16[256,32], index: 1, kind: input, shape index: {}]
  %s2 = inlined_call_operand.vmem [shape: f32[2,64,32], index: 2, kind: output, shape index: {}]
  %s3 = sld [smem:[#allocation0]]
  $region41: #{discriminator_forward.5} parent=0
    _
  %s5 = ssub.s32 1, %s3
  %s6 = scalar_select 0, %s5, %s3
  loop: start=0, step=1, limit=4
  $region2: #{discriminator_forward.5} parent=0 // loop_pre_header
    _
  $region3: #{discriminator_forward.5} parent=0 // loop_header
    %s8 = sphi 0, %s12
    %p9 = scmp.ge.s32.totalorder %s8, 4
    %s18 = sphi 0, %s20
    %s21 = sphi 0, %s18
    %s22 = sphi 0, %s21
    %s38 = sphi 0, %s22
    %s42 = sphi 0, %s42
    %s44 = sphi 0, %s42
    %s45 = sphi 0, %s44
    %s59 = sphi 0, %s45
    %s65 = sphi 0, %s67
    %s68 = sphi 0, %s65
    %s69 = sphi 0, %s68
    %s85 = sphi 0, %s69
  $region4: #{discriminator_forward.5} parent=0 // loop_header_branch
    %11 = sbr.rel (%p9) target = $region8
  $region5: #{discriminator_forward.5} parent=0 // loop_body
    %s13 = ssub.s32 %s8, 1
    %s14 = ssub.s32 %s8, 2
    %s15 = sadd.s32 %s8, 1
    %s16 = ssub.s32 %s8, %s15
    %p17 = scmp.eq.s32.totalorder %s16, 0
    %s19 = sadd.s32 %s18, 1
    %s20 = scalar_select %p17, %s18, %s19
    %p23 = pneg %p17
    %p24 = scmp.eq.s32.totalorder %s8, 1
    %p25 = por %p23, %p24
    %p26 = scmp.ne.s32.totalorder %s18, %s21
    %p27 = scmp.eq.s32.totalorder %s8, 0
    %p28 = por %p26, %p27
    %p29 = scmp.ne.s32.totalorder %s18, %s21
    %p30 = scmp.eq.s32.totalorder %s13, 1
    %p31 = por %p29, %p30
    %p32 = scmp.ne.s32.totalorder %s21, %s22
    %p33 = scmp.eq.s32.totalorder %s13, 0
    %p34 = por %p32, %p33
    %p35 = scmp.ne.s32.totalorder %s21, %s22
    %p36 = scmp.eq.s32.totalorder %s14, 1
    %p37 = por %p35, %p36
    %p39 = scmp.ne.s32.totalorder %s22, %s38
    %p40 = scmp.eq.s32.totalorder %s14, 0
    %p41 = por %p39, %p40
    %s43 = sadd.s32 %s42, 1
    %p46 = scmp.eq.s32.totalorder %s8, 1
    %p47 = scmp.ne.s32.totalorder %s42, %s44
    %p48 = scmp.eq.s32.totalorder %s8, 0
    %p49 = por %p47, %p48
    %p50 = scmp.ne.s32.totalorder %s42, %s44
    %p51 = scmp.eq.s32.totalorder %s13, 1
    %p52 = por %p50, %p51
    %p53 = scmp.ne.s32.totalorder %s44, %s45
    %p54 = scmp.eq.s32.totalorder %s13, 0
    %p55 = por %p53, %p54
    %p56 = scmp.ne.s32.totalorder %s44, %s45
    %p57 = scmp.eq.s32.totalorder %s14, 1
    %p58 = por %p56, %p57
    %p60 = scmp.ne.s32.totalorder %s45, %s59
    %p61 = scmp.eq.s32.totalorder %s14, 0
    %p62 = por %p60, %p61
    %s63 = ssub.s32 %s8, %s15
    %p64 = scmp.eq.s32.totalorder %s63, 0
    %s66 = sadd.s32 %s65, 1
    %s67 = scalar_select %p64, %s65, %s66
    %p70 = pneg %p64
    %p71 = scmp.eq.s32.totalorder %s8, 1
    %p72 = por %p70, %p71
    %p73 = scmp.ne.s32.totalorder %s65, %s68
    %p74 = scmp.eq.s32.totalorder %s8, 0
    %p75 = por %p73, %p74
    %p76 = scmp.ne.s32.totalorder %s65, %s68
    %p77 = scmp.eq.s32.totalorder %s13, 1
    %p78 = por %p76, %p77
    %p79 = scmp.ne.s32.totalorder %s68, %s69
    %p80 = scmp.eq.s32.totalorder %s13, 0
    %p81 = por %p79, %p80
    %p82 = scmp.ne.s32.totalorder %s68, %s69
    %p83 = scmp.eq.s32.totalorder %s14, 1
    %p84 = por %p82, %p83
    %p86 = scmp.ne.s32.totalorder %s69, %s85
    %p87 = scmp.eq.s32.totalorder %s14, 0
    %p88 = por %p86, %p87
    %p89 = scmp.le.s32.totalorder 1, %s8
    %p90 = scmp.lt.s32.totalorder %s8, 3
    %p91 = pnand %p89, %p90
    %p92 = pneg %p91
    // Predicated region
    $region9: #{discriminator_forward.5} parent=5 // pred_check
      _
    $region10: #{discriminator_forward.5} parent=5 // pred_check_branch
      %94 = sbr.rel (%p91) target = $region12
    $region11: #{discriminator_forward.5} parent=5 // pred_region
      %s95 = ssub.s32 %s8, 1
      // Predicated region
      $region13: #{discriminator_forward.5} parent=11 // pred_check
        %p96 = pneg %p55
      $region14: #{discriminator_forward.5} parent=11 // pred_check_branch
        %98 = sbr.rel (%p96) target = $region16
      $region15: #{discriminator_forward.5} parent=11 // pred_region
        _
      $region16: #{discriminator_forward.5} parent=11 // pred_fallthru
        _
    $region12: #{discriminator_forward.5} parent=5 // pred_fallthru
      _
    %p99 = scmp.lt.s32.totalorder %s8, 2
    // Predicated region
    $region17: #{discriminator_forward.5} parent=5 // pred_check
      %p100 = pneg %p99
    $region18: #{discriminator_forward.5} parent=5 // pred_check_branch
      %102 = sbr.rel (%p100) target = $region20
    $region19: #{discriminator_forward.5} parent=5 // pred_region
      // Predicated region
      $region21: #{discriminator_forward.5} parent=19 // pred_check
        %p103 = pneg %p28
      $region22: #{discriminator_forward.5} parent=19 // pred_check_branch
        %105 = sbr.rel (%p103) target = $region24
      $region23: #{discriminator_forward.5} parent=19 // pred_region
        %p106 = scmp.lt.s32.totalorder %s8, 1
        %s107 = scalar_select %p106, %s8, 1
        %s108 = smul.addr %s107, 16
        %s109 = smul.addr %s108, 4
        %s110 = scalar_lea.vmem %s0, %s109
      $region24: #{discriminator_forward.5} parent=19 // pred_fallthru
        _
    $region20: #{discriminator_forward.5} parent=5 // pred_fallthru
      _
    %p111 = scmp.le.s32.totalorder 1, %s8
    %p112 = scmp.lt.s32.totalorder %s8, 3
    %p113 = pnand %p111, %p112
    %p114 = pneg %p113
    // Predicated region
    $region25: #{discriminator_forward.5} parent=5 // pred_check
      _
    $region26: #{discriminator_forward.5} parent=5 // pred_check_branch
      %116 = sbr.rel (%p113) target = $region28
    $region27: #{discriminator_forward.5} parent=5 // pred_region
      %s117 = ssub.s32 %s8, 1
      %p118 = scmp.lt.s32.totalorder %s13, 1
      %s119 = scalar_select %p118, %s13, 1
      %s120 = smul.addr %s119, 16
      %s121 = smul.addr %s120, 4
      %s122 = scalar_lea.vmem %s0, %s121
      %p123 = pneg %p34
      %p124 = pneg %p31
      %p125 = pneg %p55
      %p126 = pneg %p52
      %p127 = pneg %p81
      %p128 = pneg %p78
      %p129 = scmp.lt.s32.totalorder %s13, 1
      %s130 = scalar_select %p129, %s13, 1
      %s131 = smul.addr %s130, 8
      %s132 = smul.addr %s131, 8
      %s133 = scalar_lea.vmem %s2, %s132
      %p134 = scmp.lt.s32.totalorder %s13, 1
      %s135 = scalar_select %p134, %s13, 1
      %s136 = smul.addr %s135, 16
      %s137 = smul.addr %s136, 4
      %s138 = scalar_lea.vmem %s0, %s137
      %p139 = scmp.lt.s32.totalorder %s13, 1
      %s140 = scalar_select %p139, %s13, 1
      %s141 = smul.addr %s140, 8
      %s142 = smul.addr %s141, 8
      %s143 = scalar_lea.vmem %s2, %s142
      %v144 = vld [vmem:[%s138] sm:$0xff]
      %v145 = vld [vmem:[%s138 + $0x8] sm:$0xff]
      %v146 = vld [vmem:[%s138 + $0x10] sm:$0xff]
      %v147 = vld [vmem:[%s138 + $0x18] sm:$0xff]
      %v148 = vld [vmem:[%s138 + $0x20] sm:$0xff]
      %v149 = vld [vmem:[%s138 + $0x28] sm:$0xff]
      %v150 = vld [vmem:[%s138 + $0x30] sm:$0xff]
      %v151 = vld [vmem:[%s138 + $0x38] sm:$0xff]
      %v152 = vld [vmem:[%s1] sm:$0xf]
      %v153 = vld [vmem:[%s1 + $0x4] sm:$0xf]
      %v154 = vld [vmem:[%s1 + $0x8] sm:$0xf]
      %v155 = vld [vmem:[%s1 + $0xc] sm:$0xf]
      %v156 = vld [vmem:[%s1 + $0x10] sm:$0xf]
      %v157 = vld [vmem:[%s1 + $0x14] sm:$0xf]
      %v158 = vld [vmem:[%s1 + $0x18] sm:$0xf]
      %v159 = vld [vmem:[%s1 + $0x1c] sm:$0xf]
      %v160 = vld [vmem:[%s1 + $0x20] sm:$0xf]
      %v161 = vld [vmem:[%s1 + $0x24] sm:$0xf]
      %v162 = vld [vmem:[%s1 + $0x28] sm:$0xf]
      %v163 = vld [vmem:[%s1 + $0x2c] sm:$0xf]
      %v164 = vld [vmem:[%s1 + $0x30] sm:$0xf]
      %v165 = vld [vmem:[%s1 + $0x34] sm:$0xf]
      %v166 = vld [vmem:[%s1 + $0x38] sm:$0xf]
      %v167 = vld [vmem:[%s1 + $0x3c] sm:$0xf]
      %v168 = vld [vmem:[%s1 + $0x40] sm:$0xf]
      %v169 = vld [vmem:[%s1 + $0x44] sm:$0xf]
      %v170 = vld [vmem:[%s1 + $0x48] sm:$0xf]
      %v171 = vld [vmem:[%s1 + $0x4c] sm:$0xf]
      %v172 = vld [vmem:[%s1 + $0x50] sm:$0xf]
      %v173 = vld [vmem:[%s1 + $0x54] sm:$0xf]
      %v174 = vld [vmem:[%s1 + $0x58] sm:$0xf]
      %v175 = vld [vmem:[%s1 + $0x5c] sm:$0xf]
      %v176 = vld [vmem:[%s1 + $0x60] sm:$0xf]
      %v177 = vld [vmem:[%s1 + $0x64] sm:$0xf]
      %v178 = vld [vmem:[%s1 + $0x68] sm:$0xf]
      %v179 = vld [vmem:[%s1 + $0x6c] sm:$0xf]
      %v180 = vld [vmem:[%s1 + $0x70] sm:$0xf]
      %v181 = vld [vmem:[%s1 + $0x74] sm:$0xf]
      %v182 = vld [vmem:[%s1 + $0x78] sm:$0xf]
      %v183 = vld [vmem:[%s1 + $0x7c] sm:$0xf]
      %v192 = vunpack.c.l.b16 %v144
      %v193 = vunpack.c.h.b16 %v144
      %v194 = vunpack.c.l.b16 %v145
      %v195 = vunpack.c.h.b16 %v145
      %v196 = vunpack.c.l.b16 %v146
      %v197 = vunpack.c.h.b16 %v146
      %v198 = vunpack.c.l.b16 %v147
      %v199 = vunpack.c.h.b16 %v147
      %v200 = vunpack.c.l.b16 %v148
      %v201 = vunpack.c.h.b16 %v148
      %v202 = vunpack.c.l.b16 %v149
      %v203 = vunpack.c.h.b16 %v149
      %v204 = vunpack.c.l.b16 %v150
      %v205 = vunpack.c.h.b16 %v150
      %v206 = vunpack.c.l.b16 %v151
      %v207 = vunpack.c.h.b16 %v151
      %v208 = vpack.c.b16 %v194, %v192
      %v209 = vpack.c.b16 %v195, %v193
      %v210 = vpack.c.b16 %v198, %v196
      %v211 = vpack.c.b16 %v199, %v197
      %v212 = vpack.c.b16 %v202, %v200
      %v213 = vpack.c.b16 %v203, %v201
      %v214 = vpack.c.b16 %v206, %v204
      %v215 = vpack.c.b16 %v207, %v205
      %v256 = vunpack.c.l.b16 %v152
      %v257 = vunpack.c.l.b16 %v153
      %v258 = vunpack.c.l.b16 %v154
      %v259 = vunpack.c.l.b16 %v155
      %v260 = vunpack.c.l.b16 %v156
      %v261 = vunpack.c.l.b16 %v157
      %v262 = vunpack.c.l.b16 %v158
      %v263 = vunpack.c.l.b16 %v159
      %v264 = vunpack.c.l.b16 %v160
      %v265 = vunpack.c.l.b16 %v161
      %v266 = vunpack.c.l.b16 %v162
      %v267 = vunpack.c.l.b16 %v163
      %v268 = vunpack.c.l.b16 %v164
      %v269 = vunpack.c.l.b16 %v165
      %v270 = vunpack.c.l.b16 %v166
      %v271 = vunpack.c.l.b16 %v167
      %v272 = vunpack.c.l.b16 %v168
      %v273 = vunpack.c.l.b16 %v169
      %v274 = vunpack.c.l.b16 %v170
      %v275 = vunpack.c.l.b16 %v171
      %v276 = vunpack.c.l.b16 %v172
      %v277 = vunpack.c.l.b16 %v173
      %v278 = vunpack.c.l.b16 %v174
      %v279 = vunpack.c.l.b16 %v175
      %v280 = vunpack.c.l.b16 %v176
      %v281 = vunpack.c.l.b16 %v177
      %v282 = vunpack.c.l.b16 %v178
      %v283 = vunpack.c.l.b16 %v179
      %v284 = vunpack.c.l.b16 %v180
      %v285 = vunpack.c.l.b16 %v181
      %v286 = vunpack.c.l.b16 %v182
      %v287 = vunpack.c.l.b16 %v183
      %v288 = vpack.c.b16 %v257, %v256
      %v289 = vpack.c.b16 %v259, %v258
      %v290 = vpack.c.b16 %v261, %v260
      %v291 = vpack.c.b16 %v263, %v262
      %v292 = vpack.c.b16 %v265, %v264
      %v293 = vpack.c.b16 %v267, %v266
      %v294 = vpack.c.b16 %v269, %v268
      %v295 = vpack.c.b16 %v271, %v270
      %v296 = vpack.c.b16 %v273, %v272
      %v297 = vpack.c.b16 %v275, %v274
      %v298 = vpack.c.b16 %v277, %v276
      %v299 = vpack.c.b16 %v279, %v278
      %v300 = vpack.c.b16 %v281, %v280
      %v301 = vpack.c.b16 %v283, %v282
      %v302 = vpack.c.b16 %v285, %v284
      %v303 = vpack.c.b16 %v287, %v286
      %320 = vmatpush.bf16.msra.mxu0 %v295
      %321 = vmatpush.bf16.msra.mxu0 %v294
      %322 = vmatpush.bf16.msra.mxu0 %v293
      %323 = vmatpush.bf16.msra.mxu0 %v292
      %324 = vmatpush.bf16.msra.mxu0 %v291
      %325 = vmatpush.bf16.msra.mxu0 %v290
      %326 = vmatpush.bf16.msra.mxu0 %v289
      %327 = vmatpush.bf16.msra.mxu0 %v288
      %328 = vmatmul.bf16.gmra.mxu0 %v208
      %v329 = vpop.f32.mrf.mxu0
      %v330 = vadd.f32 0.0, %v329
      %v331 = vpop.f32.mrf.mxu0
      %v332 = vadd.f32 0.0, %v331
      %333 = vmatmul.bf16.gmra.mxu0 %v210
      %v334 = vpop.f32.mrf.mxu0
      %v335 = vadd.f32 0.0, %v334
      %v336 = vpop.f32.mrf.mxu0
      %v337 = vadd.f32 0.0, %v336
      %338 = vmatmul.bf16.gmra.mxu0 %v212
      %v339 = vpop.f32.mrf.mxu0
      %v340 = vadd.f32 0.0, %v339
      %v341 = vpop.f32.mrf.mxu0
      %v342 = vadd.f32 0.0, %v341
      %343 = vmatmul.bf16.gmra.mxu0 %v214
      %v344 = vpop.f32.mrf.mxu0
      %v345 = vadd.f32 0.0, %v344
      %v346 = vpop.f32.mrf.mxu0
      %v347 = vadd.f32 0.0, %v346
      %348 = vdwg.mxu0
      %349 = vmatpush.bf16.msra.mxu0 %v303
      %350 = vmatpush.bf16.msra.mxu0 %v302
      %351 = vmatpush.bf16.msra.mxu0 %v301
      %352 = vmatpush.bf16.msra.mxu0 %v300
      %353 = vmatpush.bf16.msra.mxu0 %v299
      %354 = vmatpush.bf16.msra.mxu0 %v298
      %355 = vmatpush.bf16.msra.mxu0 %v297
      %356 = vmatpush.bf16.msra.mxu0 %v296
      %357 = vmatmul.bf16.gmra.mxu0 %v209
      %v358 = vpop.f32.mrf.mxu0
      %v359 = vadd.f32 %v330, %v358
      %v360 = vpop.f32.mrf.mxu0
      %v361 = vadd.f32 %v332, %v360
      %362 = vmatmul.bf16.gmra.mxu0 %v211
      %v363 = vpop.f32.mrf.mxu0
      %v364 = vadd.f32 %v335, %v363
      %v365 = vpop.f32.mrf.mxu0
      %v366 = vadd.f32 %v337, %v365
      %367 = vmatmul.bf16.gmra.mxu0 %v213
      %v368 = vpop.f32.mrf.mxu0
      %v369 = vadd.f32 %v340, %v368
      %v370 = vpop.f32.mrf.mxu0
      %v371 = vadd.f32 %v342, %v370
      %372 = vmatmul.bf16.gmra.mxu0 %v215
      %v373 = vpop.f32.mrf.mxu0
      %v374 = vadd.f32 %v345, %v373
      %v375 = vpop.f32.mrf.mxu0
      %v376 = vadd.f32 %v347, %v375
      %377 = vdwg.mxu0
      %vm378 = vcmask 261120
      %v379 = vsel %vm378, %v359, 0.0
      %v380 = vsel %vm378, %v361, 0.0
      %v381 = vadd.f32 %v379, %v380
      %v382 = vsel %vm378, %v364, 0.0
      %v383 = vadd.f32 %v381, %v382
      %v384 = vsel %vm378, %v366, 0.0
      %v385 = vadd.f32 %v383, %v384
      %v386 = vsel %vm378, %v369, 0.0
      %v387 = vadd.f32 %v385, %v386
      %v388 = vsel %vm378, %v371, 0.0
      %v389 = vadd.f32 %v387, %v388
      %v390 = vsel %vm378, %v374, 0.0
      %v391 = vadd.f32 %v389, %v390
      %v392 = vsel %vm378, %v376, 0.0
      %v393 = vadd.f32 %v391, %v392
      %v394 = vrot.slane %v393, 4
      %v395 = vadd.f32 %v393, %v394
      %v396 = vrot.slane %v395, 2
      %v397 = vadd.f32 %v395, %v396
      %v398 = vrot.slane %v397, 1
      %v399 = vadd.f32 %v397, %v398
      %v400 = vrcp.pop 64.0
      %v401 = vmul.f32 64.0, %v400
      %v402 = vsub.f32 1.0, %v401
      %v403 = vmul.f32 %v400, %v402
      %v404 = vadd.f32 %v400, %v403
      %vm405 = vweird.f32 %v400
      %v406 = vsel %vm405, %v400, %v404
      %v407 = vmul.f32 %v399, %v406
      %v408 = vsub.f32 %v359, %v407
      %v409 = vsub.f32 %v361, %v407
      %v410 = vsub.f32 %v364, %v407
      %v411 = vsub.f32 %v366, %v407
      %v412 = vsub.f32 %v369, %v407
      %v413 = vsub.f32 %v371, %v407
      %v414 = vsub.f32 %v374, %v407
      %v415 = vsub.f32 %v376, %v407
      %v416 = vmul.f32 %v408, %v408
      %v417 = vmul.f32 %v409, %v409
      %v418 = vmul.f32 %v410, %v410
      %v419 = vmul.f32 %v411, %v411
      %v420 = vmul.f32 %v412, %v412
      %v421 = vmul.f32 %v413, %v413
      %v422 = vmul.f32 %v414, %v414
      %v423 = vmul.f32 %v415, %v415
      %v424 = vsel %vm378, %v416, 0.0
      %v425 = vsel %vm378, %v417, 0.0
      %v426 = vadd.f32 %v424, %v425
      %v427 = vsel %vm378, %v418, 0.0
      %v428 = vadd.f32 %v426, %v427
      %v429 = vsel %vm378, %v419, 0.0
      %v430 = vadd.f32 %v428, %v429
      %v431 = vsel %vm378, %v420, 0.0
      %v432 = vadd.f32 %v430, %v431
      %v433 = vsel %vm378, %v421, 0.0
      %v434 = vadd.f32 %v432, %v433
      %v435 = vsel %vm378, %v422, 0.0
      %v436 = vadd.f32 %v434, %v435
      %v437 = vsel %vm378, %v423, 0.0
      %v438 = vadd.f32 %v436, %v437
      %v439 = vrot.slane %v438, 4
      %v440 = vadd.f32 %v438, %v439
      %v441 = vrot.slane %v440, 2
      %v442 = vadd.f32 %v440, %v441
      %v443 = vrot.slane %v442, 1
      %v444 = vadd.f32 %v442, %v443
      %v445 = vmul.f32 %v444, %v406
      %v446 = vadd.f32 %v445, 1e-05
      %v447 = vrsqrt.pop %v446
      %v448 = vmul.f32 %v447, %v446
      %v449 = vmul.f32 %v448, %v447
      %v450 = vmul.f32 0.5, %v449
      %v451 = vsub.f32 1.5, %v450
      %v452 = vmul.f32 %v447, %v451
      %vm453 = vweird.f32 %v446
      %vm454 = vweird.f32 %v447
      %vm455 = vmor %vm453, %vm454
      %v456 = vsel %vm455, %v447, %v452
      %v457 = vmul.f32 %v408, %v456
      %v458 = vmul.f32 %v409, %v456
      %v459 = vmul.f32 %v410, %v456
      %v460 = vmul.f32 %v411, %v456
      %v461 = vmul.f32 %v412, %v456
      %v462 = vmul.f32 %v413, %v456
      %v463 = vmul.f32 %v414, %v456
      %v464 = vmul.f32 %v415, %v456
      %vm465 = vcmp.ge.f32.partialorder %v457, 0.0
      %vm466 = vcmp.ge.f32.partialorder %v458, 0.0
      %vm467 = vcmp.ge.f32.partialorder %v459, 0.0
      %vm468 = vcmp.ge.f32.partialorder %v460, 0.0
      %vm469 = vcmp.ge.f32.partialorder %v461, 0.0
      %vm470 = vcmp.ge.f32.partialorder %v462, 0.0
      %vm471 = vcmp.ge.f32.partialorder %v463, 0.0
      %vm472 = vcmp.ge.f32.partialorder %v464, 0.0
      %v473 = vmul.f32 %v457, 0.2
      %v474 = vmul.f32 %v458, 0.2
      %v475 = vmul.f32 %v459, 0.2
      %v476 = vmul.f32 %v460, 0.2
      %v477 = vmul.f32 %v461, 0.2
      %v478 = vmul.f32 %v462, 0.2
      %v479 = vmul.f32 %v463, 0.2
      %v480 = vmul.f32 %v464, 0.2
      %v481 = vsel %vm465, %v457, %v473
      %v482 = vsel %vm466, %v458, %v474
      %v483 = vsel %vm467, %v459, %v475
      %v484 = vsel %vm468, %v460, %v476
      %v485 = vsel %vm469, %v461, %v477
      %v486 = vsel %vm470, %v462, %v478
      %v487 = vsel %vm471, %v463, %v479
      %v488 = vsel %vm472, %v464, %v480
      %489 = vst.msk [vmem:[%s143] sm:$0xff] %vm378, %v481
      %490 = vst.msk [vmem:[%s143 + $0x8] sm:$0xff] %vm378, %v482
      %491 = vst.msk [vmem:[%s143 + $0x10] sm:$0xff] %vm378, %v483
      %492 = vst.msk [vmem:[%s143 + $0x18] sm:$0xff] %vm378, %v484
      %493 = vst.msk [vmem:[%s143 + $0x20] sm:$0xff] %vm378, %v485
      %494 = vst.msk [vmem:[%s143 + $0x28] sm:$0xff] %vm378, %v486
      %495 = vst.msk [vmem:[%s143 + $0x30] sm:$0xff] %vm378, %v487
      %496 = vst.msk [vmem:[%s143 + $0x38] sm:$0xff] %vm378, %v488
      %p497 = scmp.lt.s32.totalorder %s13, 1
      %s498 = scalar_select %p497, %s13, 1
      %s499 = smul.addr %s498, 8
      %s500 = smul.addr %s499, 8
      %s501 = scalar_lea.vmem %s2, %s500
      // Predicated region
      $region29: #{discriminator_forward.5} parent=27 // pred_check
        %p502 = pneg %p78
      $region30: #{discriminator_forward.5} parent=27 // pred_check_branch
        %504 = sbr.rel (%p502) target = $region32
      $region31: #{discriminator_forward.5} parent=27 // pred_region
        _
      $region32: #{discriminator_forward.5} parent=27 // pred_fallthru
        _
    $region28: #{discriminator_forward.5} parent=5 // pred_fallthru
      _
    %p505 = scmp.le.s32.totalorder 2, %s8
    // Predicated region
    $region33: #{discriminator_forward.5} parent=5 // pred_check
      %p506 = pneg %p505
    $region34: #{discriminator_forward.5} parent=5 // pred_check_branch
      %508 = sbr.rel (%p506) target = $region36
    $region35: #{discriminator_forward.5} parent=5 // pred_region
      %s509 = ssub.s32 %s8, 2
      // Predicated region
      $region37: #{discriminator_forward.5} parent=35 // pred_check
        %p510 = pneg %p84
      $region38: #{discriminator_forward.5} parent=35 // pred_check_branch
        %512 = sbr.rel (%p510) target = $region40
      $region39: #{discriminator_forward.5} parent=35 // pred_region
        %p513 = scmp.lt.s32.totalorder %s14, 1
        %s514 = scalar_select %p513, %s14, 1
        %s515 = smul.addr %s514, 8
        %s516 = smul.addr %s515, 8
        %s517 = scalar_lea.vmem %s2, %s516
      $region40: #{discriminator_forward.5} parent=35 // pred_fallthru
        _
    $region36: #{discriminator_forward.5} parent=5 // pred_fallthru
      _
  $region6: #{discriminator_forward.5} parent=0 // loop_footer
    %s12 = sadd.s32 1, %s8
  $region7: #{discriminator_forward.5} parent=0 // loop_footer_branch
    %7 = sbr.rel target = $region3
  $region8: #{discriminator_forward.5} parent=0 // loop_exit
    _

// kernel: discriminator_forward.6
$region0: #{discriminator_forward.6}
  #allocation0 [shape = 'u32[]', space=smem, size = 0x4, offset = 0x4, fixed_abs, tag = 'smem constant byte address 0x4 - core index']
  #allocation1 [shape = 'u32[72,128]{1,0:T(1,128)}', space=vmem, size = 0x9000, scoped, tag = 'internal scratch']
  %s0 = inlined_call_operand.vmem [shape: bf16[2,16,512], index: 0, kind: input, shape index: {}]
  %s1 = inlined_call_operand.vmem [shape: bf16[512,64], index: 1, kind: input, shape index: {}]
  %s2 = inlined_call_operand.vmem [shape: f32[2,16,64], index: 2, kind: output, shape index: {}]
  %s3 = sld [smem:[#allocation0]]
  $region41: #{discriminator_forward.6} parent=0
    _
  %s5 = ssub.s32 1, %s3
  %s6 = scalar_select 0, %s5, %s3
  loop: start=0, step=1, limit=4
  $region2: #{discriminator_forward.6} parent=0 // loop_pre_header
    _
  $region3: #{discriminator_forward.6} parent=0 // loop_header
    %s8 = sphi 0, %s12
    %p9 = scmp.ge.s32.totalorder %s8, 4
    %s18 = sphi 0, %s20
    %s21 = sphi 0, %s18
    %s22 = sphi 0, %s21
    %s38 = sphi 0, %s22
    %s42 = sphi 0, %s42
    %s44 = sphi 0, %s42
    %s45 = sphi 0, %s44
    %s59 = sphi 0, %s45
    %s65 = sphi 0, %s67
    %s68 = sphi 0, %s65
    %s69 = sphi 0, %s68
    %s85 = sphi 0, %s69
  $region4: #{discriminator_forward.6} parent=0 // loop_header_branch
    %11 = sbr.rel (%p9) target = $region8
  $region5: #{discriminator_forward.6} parent=0 // loop_body
    %s13 = ssub.s32 %s8, 1
    %s14 = ssub.s32 %s8, 2
    %s15 = sadd.s32 %s8, 1
    %s16 = ssub.s32 %s8, %s15
    %p17 = scmp.eq.s32.totalorder %s16, 0
    %s19 = sadd.s32 %s18, 1
    %s20 = scalar_select %p17, %s18, %s19
    %p23 = pneg %p17
    %p24 = scmp.eq.s32.totalorder %s8, 1
    %p25 = por %p23, %p24
    %p26 = scmp.ne.s32.totalorder %s18, %s21
    %p27 = scmp.eq.s32.totalorder %s8, 0
    %p28 = por %p26, %p27
    %p29 = scmp.ne.s32.totalorder %s18, %s21
    %p30 = scmp.eq.s32.totalorder %s13, 1
    %p31 = por %p29, %p30
    %p32 = scmp.ne.s32.totalorder %s21, %s22
    %p33 = scmp.eq.s32.totalorder %s13, 0
    %p34 = por %p32, %p33
    %p35 = scmp.ne.s32.totalorder %s21, %s22
    %p36 = scmp.eq.s32.totalorder %s14, 1
    %p37 = por %p35, %p36
    %p39 = scmp.ne.s32.totalorder %s22, %s38
    %p40 = scmp.eq.s32.totalorder %s14, 0
    %p41 = por %p39, %p40
    %s43 = sadd.s32 %s42, 1
    %p46 = scmp.eq.s32.totalorder %s8, 1
    %p47 = scmp.ne.s32.totalorder %s42, %s44
    %p48 = scmp.eq.s32.totalorder %s8, 0
    %p49 = por %p47, %p48
    %p50 = scmp.ne.s32.totalorder %s42, %s44
    %p51 = scmp.eq.s32.totalorder %s13, 1
    %p52 = por %p50, %p51
    %p53 = scmp.ne.s32.totalorder %s44, %s45
    %p54 = scmp.eq.s32.totalorder %s13, 0
    %p55 = por %p53, %p54
    %p56 = scmp.ne.s32.totalorder %s44, %s45
    %p57 = scmp.eq.s32.totalorder %s14, 1
    %p58 = por %p56, %p57
    %p60 = scmp.ne.s32.totalorder %s45, %s59
    %p61 = scmp.eq.s32.totalorder %s14, 0
    %p62 = por %p60, %p61
    %s63 = ssub.s32 %s8, %s15
    %p64 = scmp.eq.s32.totalorder %s63, 0
    %s66 = sadd.s32 %s65, 1
    %s67 = scalar_select %p64, %s65, %s66
    %p70 = pneg %p64
    %p71 = scmp.eq.s32.totalorder %s8, 1
    %p72 = por %p70, %p71
    %p73 = scmp.ne.s32.totalorder %s65, %s68
    %p74 = scmp.eq.s32.totalorder %s8, 0
    %p75 = por %p73, %p74
    %p76 = scmp.ne.s32.totalorder %s65, %s68
    %p77 = scmp.eq.s32.totalorder %s13, 1
    %p78 = por %p76, %p77
    %p79 = scmp.ne.s32.totalorder %s68, %s69
    %p80 = scmp.eq.s32.totalorder %s13, 0
    %p81 = por %p79, %p80
    %p82 = scmp.ne.s32.totalorder %s68, %s69
    %p83 = scmp.eq.s32.totalorder %s14, 1
    %p84 = por %p82, %p83
    %p86 = scmp.ne.s32.totalorder %s69, %s85
    %p87 = scmp.eq.s32.totalorder %s14, 0
    %p88 = por %p86, %p87
    %p89 = scmp.le.s32.totalorder 1, %s8
    %p90 = scmp.lt.s32.totalorder %s8, 3
    %p91 = pnand %p89, %p90
    %p92 = pneg %p91
    // Predicated region
    $region9: #{discriminator_forward.6} parent=5 // pred_check
      _
    $region10: #{discriminator_forward.6} parent=5 // pred_check_branch
      %94 = sbr.rel (%p91) target = $region12
    $region11: #{discriminator_forward.6} parent=5 // pred_region
      %s95 = ssub.s32 %s8, 1
      // Predicated region
      $region13: #{discriminator_forward.6} parent=11 // pred_check
        %p96 = pneg %p55
      $region14: #{discriminator_forward.6} parent=11 // pred_check_branch
        %98 = sbr.rel (%p96) target = $region16
      $region15: #{discriminator_forward.6} parent=11 // pred_region
        _
      $region16: #{discriminator_forward.6} parent=11 // pred_fallthru
        _
    $region12: #{discriminator_forward.6} parent=5 // pred_fallthru
      _
    %p99 = scmp.lt.s32.totalorder %s8, 2
    // Predicated region
    $region17: #{discriminator_forward.6} parent=5 // pred_check
      %p100 = pneg %p99
    $region18: #{discriminator_forward.6} parent=5 // pred_check_branch
      %102 = sbr.rel (%p100) target = $region20
    $region19: #{discriminator_forward.6} parent=5 // pred_region
      // Predicated region
      $region21: #{discriminator_forward.6} parent=19 // pred_check
        %p103 = pneg %p28
      $region22: #{discriminator_forward.6} parent=19 // pred_check_branch
        %105 = sbr.rel (%p103) target = $region24
      $region23: #{discriminator_forward.6} parent=19 // pred_region
        %p106 = scmp.lt.s32.totalorder %s8, 1
        %s107 = scalar_select %p106, %s8, 1
        %s108 = smul.addr %s107, 8
        %s109 = smul.addr %s108, 4
        %s110 = scalar_lea.vmem %s0, %s109
      $region24: #{discriminator_forward.6} parent=19 // pred_fallthru
        _
    $region20: #{discriminator_forward.6} parent=5 // pred_fallthru
      _
    %p111 = scmp.le.s32.totalorder 1, %s8
    %p112 = scmp.lt.s32.totalorder %s8, 3
    %p113 = pnand %p111, %p112
    %p114 = pneg %p113
    // Predicated region
    $region25: #{discriminator_forward.6} parent=5 // pred_check
      _
    $region26: #{discriminator_forward.6} parent=5 // pred_check_branch
      %116 = sbr.rel (%p113) target = $region28
    $region27: #{discriminator_forward.6} parent=5 // pred_region
      %s117 = ssub.s32 %s8, 1
      %p118 = scmp.lt.s32.totalorder %s13, 1
      %s119 = scalar_select %p118, %s13, 1
      %s120 = smul.addr %s119, 8
      %s121 = smul.addr %s120, 4
      %s122 = scalar_lea.vmem %s0, %s121
      %p123 = pneg %p34
      %p124 = pneg %p31
      %p125 = pneg %p55
      %p126 = pneg %p52
      %p127 = pneg %p81
      %p128 = pneg %p78
      %p129 = scmp.lt.s32.totalorder %s13, 1
      %s130 = scalar_select %p129, %s13, 1
      %s131 = smul.addr %s130, 2
      %s132 = smul.addr %s131, 8
      %s133 = scalar_lea.vmem %s2, %s132
      %p134 = scmp.lt.s32.totalorder %s13, 1
      %s135 = scalar_select %p134, %s13, 1
      %s136 = smul.addr %s135, 8
      %s137 = smul.addr %s136, 4
      %s138 = scalar_lea.vmem %s0, %s137
      %p139 = scmp.lt.s32.totalorder %s13, 1
      %s140 = scalar_select %p139, %s13, 1
      %s141 = smul.addr %s140, 2
      %s142 = smul.addr %s141, 8
      %s143 = scalar_lea.vmem %s2, %s142
      %v144 = vld [vmem:[%s138] sm:$0xff]
      %v145 = vld [vmem:[%s138 + $0x8] sm:$0xff]
      %v146 = vld [vmem:[%s138 + $0x10] sm:$0xff]
      %v147 = vld [vmem:[%s138 + $0x18] sm:$0xff]
      %v148 = vld [vmem:[%s1] sm:$0xf]
      %v149 = vld [vmem:[%s1 + $0x4] sm:$0xf]
      %v150 = vld [vmem:[%s1 + $0x8] sm:$0xf]
      %v151 = vld [vmem:[%s1 + $0xc] sm:$0xf]
      %v152 = vld [vmem:[%s1 + $0x10] sm:$0xf]
      %v153 = vld [vmem:[%s1 + $0x14] sm:$0xf]
      %v154 = vld [vmem:[%s1 + $0x18] sm:$0xf]
      %v155 = vld [vmem:[%s1 + $0x1c] sm:$0xf]
      %v156 = vld [vmem:[%s1 + $0x20] sm:$0xf]
      %v157 = vld [vmem:[%s1 + $0x24] sm:$0xf]
      %v158 = vld [vmem:[%s1 + $0x28] sm:$0xf]
      %v159 = vld [vmem:[%s1 + $0x2c] sm:$0xf]
      %v160 = vld [vmem:[%s1 + $0x30] sm:$0xf]
      %v161 = vld [vmem:[%s1 + $0x34] sm:$0xf]
      %v162 = vld [vmem:[%s1 + $0x38] sm:$0xf]
      %v163 = vld [vmem:[%s1 + $0x3c] sm:$0xf]
      %v164 = vld [vmem:[%s1 + $0x40] sm:$0xf]
      %v165 = vld [vmem:[%s1 + $0x44] sm:$0xf]
      %v166 = vld [vmem:[%s1 + $0x48] sm:$0xf]
      %v167 = vld [vmem:[%s1 + $0x4c] sm:$0xf]
      %v168 = vld [vmem:[%s1 + $0x50] sm:$0xf]
      %v169 = vld [vmem:[%s1 + $0x54] sm:$0xf]
      %v170 = vld [vmem:[%s1 + $0x58] sm:$0xf]
      %v171 = vld [vmem:[%s1 + $0x5c] sm:$0xf]
      %v172 = vld [vmem:[%s1 + $0x60] sm:$0xf]
      %v173 = vld [vmem:[%s1 + $0x64] sm:$0xf]
      %v174 = vld [vmem:[%s1 + $0x68] sm:$0xf]
      %v175 = vld [vmem:[%s1 + $0x6c] sm:$0xf]
      %v176 = vld [vmem:[%s1 + $0x70] sm:$0xf]
      %v177 = vld [vmem:[%s1 + $0x74] sm:$0xf]
      %v178 = vld [vmem:[%s1 + $0x78] sm:$0xf]
      %v179 = vld [vmem:[%s1 + $0x7c] sm:$0xf]
      %v180 = vld [vmem:[%s1 + $0x80] sm:$0xf]
      %v181 = vld [vmem:[%s1 + $0x84] sm:$0xf]
      %v182 = vld [vmem:[%s1 + $0x88] sm:$0xf]
      %v183 = vld [vmem:[%s1 + $0x8c] sm:$0xf]
      %v184 = vld [vmem:[%s1 + $0x90] sm:$0xf]
      %v185 = vld [vmem:[%s1 + $0x94] sm:$0xf]
      %v186 = vld [vmem:[%s1 + $0x98] sm:$0xf]
      %v187 = vld [vmem:[%s1 + $0x9c] sm:$0xf]
      %v188 = vld [vmem:[%s1 + $0xa0] sm:$0xf]
      %v189 = vld [vmem:[%s1 + $0xa4] sm:$0xf]
      %v190 = vld [vmem:[%s1 + $0xa8] sm:$0xf]
      %v191 = vld [vmem:[%s1 + $0xac] sm:$0xf]
      %v192 = vld [vmem:[%s1 + $0xb0] sm:$0xf]
      %v193 = vld [vmem:[%s1 + $0xb4] sm:$0xf]
      %v194 = vld [vmem:[%s1 + $0xb8] sm:$0xf]
      %v195 = vld [vmem:[%s1 + $0xbc] sm:$0xf]
      %v196 = vld [vmem:[%s1 + $0xc0] sm:$0xf]
      %v197 = vld [vmem:[%s1 + $0xc4] sm:$0xf]
      %v198 = vld [vmem:[%s1 + $0xc8] sm:$0xf]
      %v199 = vld [vmem:[%s1 + $0xcc] sm:$0xf]
      %v200 = vld [vmem:[%s1 + $0xd0] sm:$0xf]
      %v201 = vld [vmem:[%s1 + $0xd4] sm:$0xf]
      %v202 = vld [vmem:[%s1 + $0xd8] sm:$0xf]
      %v203 = vld [vmem:[%s1 + $0xdc] sm:$0xf]
      %v204 = vld [vmem:[%s1 + $0xe0] sm:$0xf]
      %v205 = vld [vmem:[%s1 + $0xe4] sm:$0xf]
      %v206 = vld [vmem:[%s1 + $0xe8] sm:$0xf]
      %v207 = vld [vmem:[%s1 + $0xec] sm:$0xf]
      %v208 = vld [vmem:[%s1 + $0xf0] sm:$0xf]
      %v209 = vld [vmem:[%s1 + $0xf4] sm:$0xf]
      %v210 = vld [vmem:[%s1 + $0xf8] sm:$0xf]
      %v211 = vld [vmem:[%s1 + $0xfc] sm:$0xf]
      %v216 = vunpack.c.l.b16 %v144
      %v217 = vunpack.c.h.b16 %v144
      %v218 = vunpack.c.l.b16 %v145
      %v219 = vunpack.c.h.b16 %v145
      %v220 = vunpack.c.l.b16 %v146
      %v221 = vunpack.c.h.b16 %v146
      %v222 = vunpack.c.l.b16 %v147
      %v223 = vunpack.c.h.b16 %v147
      %v224 = vpack.c.b16 %v220, %v216
      %v225 = vpack.c.b16 %v221, %v217
      %v226 = vpack.c.b16 %v222, %v218
      %v227 = vpack.c.b16 %v223, %v219
      %v296 = vunpack.c.l.b16 %v148
      %v297 = vunpack.c.l.b16 %v149
      %v298 = vunpack.c.l.b16 %v150
      %v299 = vunpack.c.l.b16 %v151
      %v300 = vunpack.c.l.b16 %v152
      %v301 = vunpack.c.l.b16 %v153
      %v302 = vunpack.c.l.b16 %v154
      %v303 = vunpack.c.l.b16 %v155
      %v304 = vunpack.c.l.b16 %v156
      %v305 = vunpack.c.l.b16 %v157
      %v306 = vunpack.c.l.b16 %v158
      %v307 = vunpack.c.l.b16 %v159
      %v308 = vunpack.c.l.b16 %v160
      %v309 = vunpack.c.l.b16 %v161
      %v310 = vunpack.c.l.b16 %v162
      %v311 = vunpack.c.l.b16 %v163
      %v312 = vunpack.c.l.b16 %v164
      %v313 = vunpack.c.l.b16 %v165
      %v314 = vunpack.c.l.b16 %v166
      %v315 = vunpack.c.l.b16 %v167
      %v316 = vunpack.c.l.b16 %v168
      %v317 = vunpack.c.l.b16 %v169
      %v318 = vunpack.c.l.b16 %v170
      %v319 = vunpack.c.l.b16 %v171
      %v320 = vunpack.c.l.b16 %v172
      %v321 = vunpack.c.l.b16 %v173
      %v322 = vunpack.c.l.b16 %v174
      %v323 = vunpack.c.l.b16 %v175
      %v324 = vunpack.c.l.b16 %v176
      %v325 = vunpack.c.l.b16 %v177
      %v326 = vunpack.c.l.b16 %v178
      %v327 = vunpack.c.l.b16 %v179
      %v328 = vunpack.c.l.b16 %v180
      %v329 = vunpack.c.l.b16 %v181
      %v330 = vunpack.c.l.b16 %v182
      %v331 = vunpack.c.l.b16 %v183
      %v332 = vunpack.c.l.b16 %v184
      %v333 = vunpack.c.l.b16 %v185
      %v334 = vunpack.c.l.b16 %v186
      %v335 = vunpack.c.l.b16 %v187
      %v336 = vunpack.c.l.b16 %v188
      %v337 = vunpack.c.l.b16 %v189
      %v338 = vunpack.c.l.b16 %v190
      %v339 = vunpack.c.l.b16 %v191
      %v340 = vunpack.c.l.b16 %v192
      %v341 = vunpack.c.l.b16 %v193
      %v342 = vunpack.c.l.b16 %v194
      %v343 = vunpack.c.l.b16 %v195
      %v344 = vunpack.c.l.b16 %v196
      %v345 = vunpack.c.l.b16 %v197
      %v346 = vunpack.c.l.b16 %v198
      %v347 = vunpack.c.l.b16 %v199
      %v348 = vunpack.c.l.b16 %v200
      %v349 = vunpack.c.l.b16 %v201
      %v350 = vunpack.c.l.b16 %v202
      %v351 = vunpack.c.l.b16 %v203
      %v352 = vunpack.c.l.b16 %v204
      %v353 = vunpack.c.l.b16 %v205
      %v354 = vunpack.c.l.b16 %v206
      %v355 = vunpack.c.l.b16 %v207
      %v356 = vunpack.c.l.b16 %v208
      %v357 = vunpack.c.l.b16 %v209
      %v358 = vunpack.c.l.b16 %v210
      %v359 = vunpack.c.l.b16 %v211
      %v360 = vpack.c.b16 %v297, %v296
      %v361 = vpack.c.b16 %v299, %v298
      %v362 = vpack.c.b16 %v301, %v300
      %v363 = vpack.c.b16 %v303, %v302
      %v364 = vpack.c.b16 %v305, %v304
      %v365 = vpack.c.b16 %v307, %v306
      %v366 = vpack.c.b16 %v309, %v308
      %v367 = vpack.c.b16 %v311, %v310
      %v368 = vpack.c.b16 %v313, %v312
      %v369 = vpack.c.b16 %v315, %v314
      %v370 = vpack.c.b16 %v317, %v316
      %v371 = vpack.c.b16 %v319, %v318
      %v372 = vpack.c.b16 %v321, %v320
      %v373 = vpack.c.b16 %v323, %v322
      %v374 = vpack.c.b16 %v325, %v324
      %v375 = vpack.c.b16 %v327, %v326
      %v376 = vpack.c.b16 %v329, %v328
      %v377 = vpack.c.b16 %v331, %v330
      %v378 = vpack.c.b16 %v333, %v332
      %v379 = vpack.c.b16 %v335, %v334
      %v380 = vpack.c.b16 %v337, %v336
      %v381 = vpack.c.b16 %v339, %v338
      %v382 = vpack.c.b16 %v341, %v340
      %v383 = vpack.c.b16 %v343, %v342
      %v384 = vpack.c.b16 %v345, %v344
      %v385 = vpack.c.b16 %v347, %v346
      %v386 = vpack.c.b16 %v349, %v348
      %v387 = vpack.c.b16 %v351, %v350
      %v388 = vpack.c.b16 %v353, %v352
      %v389 = vpack.c.b16 %v355, %v354
      %v390 = vpack.c.b16 %v357, %v356
      %v391 = vpack.c.b16 %v359, %v358
      %424 = vmatpush.bf16.msra.mxu0 %v367
      %425 = vmatpush.bf16.msra.mxu0 %v366
      %426 = vmatpush.bf16.msra.mxu0 %v365
      %427 = vmatpush.bf16.msra.mxu0 %v364
      %428 = vmatpush.bf16.msra.mxu0 %v363
      %429 = vmatpush.bf16.msra.mxu0 %v362
      %430 = vmatpush.bf16.msra.mxu0 %v361
      %431 = vmatpush.bf16.msra.mxu0 %v360
      %432 = vmatmul.bf16.gmra.mxu0 %v224
      %v433 = vpop.f32.mrf.mxu0
      %v434 = vadd.f32 0.0, %v433
      %v435 = vpop.f32.mrf.mxu0
      %v436 = vadd.f32 0.0, %v435
      %437 = vdwg.mxu0
      %438 = vmatpush.bf16.msra.mxu0 %v375
      %439 = vmatpush.bf16.msra.mxu0 %v374
      %440 = vmatpush.bf16.msra.mxu0 %v373
      %441 = vmatpush.bf16.msra.mxu0 %v372
      %442 = vmatpush.bf16.msra.mxu0 %v371
      %443 = vmatpush.bf16.msra.mxu0 %v370
      %444 = vmatpush.bf16.msra.mxu0 %v369
      %445 = vmatpush.bf16.msra.mxu0 %v368
      %446 = vmatmul.bf16.gmra.mxu0 %v225
      %v447 = vpop.f32.mrf.mxu0
      %v448 = vadd.f32 %v434, %v447
      %v449 = vpop.f32.mrf.mxu0
      %v450 = vadd.f32 %v436, %v449
      %451 = vdwg.mxu0
      %452 = vmatpush.bf16.msra.mxu0 %v383
      %453 = vmatpush.bf16.msra.mxu0 %v382
      %454 = vmatpush.bf16.msra.mxu0 %v381
      %455 = vmatpush.bf16.msra.mxu0 %v380
      %456 = vmatpush.bf16.msra.mxu0 %v379
      %457 = vmatpush.bf16.msra.mxu0 %v378
      %458 = vmatpush.bf16.msra.mxu0 %v377
      %459 = vmatpush.bf16.msra.mxu0 %v376
      %460 = vmatmul.bf16.gmra.mxu0 %v226
      %v461 = vpop.f32.mrf.mxu0
      %v462 = vadd.f32 %v448, %v461
      %v463 = vpop.f32.mrf.mxu0
      %v464 = vadd.f32 %v450, %v463
      %465 = vdwg.mxu0
      %466 = vmatpush.bf16.msra.mxu0 %v391
      %467 = vmatpush.bf16.msra.mxu0 %v390
      %468 = vmatpush.bf16.msra.mxu0 %v389
      %469 = vmatpush.bf16.msra.mxu0 %v388
      %470 = vmatpush.bf16.msra.mxu0 %v387
      %471 = vmatpush.bf16.msra.mxu0 %v386
      %472 = vmatpush.bf16.msra.mxu0 %v385
      %473 = vmatpush.bf16.msra.mxu0 %v384
      %474 = vmatmul.bf16.gmra.mxu0 %v227
      %v475 = vpop.f32.mrf.mxu0
      %v476 = vadd.f32 %v462, %v475
      %v477 = vpop.f32.mrf.mxu0
      %v478 = vadd.f32 %v464, %v477
      %479 = vdwg.mxu0
      %vm480 = vcmask 523264
      %v481 = vsel %vm480, %v476, 0.0
      %v482 = vsel %vm480, %v478, 0.0
      %v483 = vadd.f32 %v481, %v482
      %v484 = vrot.slane %v483, 4
      %v485 = vadd.f32 %v483, %v484
      %v486 = vrot.slane %v485, 2
      %v487 = vadd.f32 %v485, %v486
      %v488 = vrot.slane %v487, 1
      %v489 = vadd.f32 %v487, %v488
      %v490 = vrcp.pop 16.0
      %v491 = vmul.f32 16.0, %v490
      %v492 = vsub.f32 1.0, %v491
      %v493 = vmul.f32 %v490, %v492
      %v494 = vadd.f32 %v490, %v493
      %vm495 = vweird.f32 %v490
      %v496 = vsel %vm495, %v490, %v494
      %v497 = vmul.f32 %v489, %v496
      %v498 = vsub.f32 %v476, %v497
      %v499 = vsub.f32 %v478, %v497
      %v500 = vmul.f32 %v498, %v498
      %v501 = vmul.f32 %v499, %v499
      %v502 = vsel %vm480, %v500, 0.0
      %v503 = vsel %vm480, %v501, 0.0
      %v504 = vadd.f32 %v502, %v503
      %v505 = vrot.slane %v504, 4
      %v506 = vadd.f32 %v504, %v505
      %v507 = vrot.slane %v506, 2
      %v508 = vadd.f32 %v506, %v507
      %v509 = vrot.slane %v508, 1
      %v510 = vadd.f32 %v508, %v509
      %v511 = vmul.f32 %v510, %v496
      %v512 = vadd.f32 %v511, 1e-05
      %v513 = vrsqrt.pop %v512
      %v514 = vmul.f32 %v513, %v512
      %v515 = vmul.f32 %v514, %v513
      %v516 = vmul.f32 0.5, %v515
      %v517 = vsub.f32 1.5, %v516
      %v518 = vmul.f32 %v513, %v517
      %vm519 = vweird.f32 %v512
      %vm520 = vweird.f32 %v513
      %vm521 = vmor %vm519, %vm520
      %v522 = vsel %vm521, %v513, %v518
      %v523 = vmul.f32 %v498, %v522
      %v524 = vmul.f32 %v499, %v522
      %vm525 = vcmp.ge.f32.partialorder %v523, 0.0
      %vm526 = vcmp.ge.f32.partialorder %v524, 0.0
      %v527 = vmul.f32 %v523, 0.2
      %v528 = vmul.f32 %v524, 0.2
      %v529 = vsel %vm525, %v523, %v527
      %v530 = vsel %vm526, %v524, %v528
      %531 = vst.msk [vmem:[%s143] sm:$0xff] %vm480, %v529
      %532 = vst.msk [vmem:[%s143 + $0x8] sm:$0xff] %vm480, %v530
      %p533 = scmp.lt.s32.totalorder %s13, 1
      %s534 = scalar_select %p533, %s13, 1
      %s535 = smul.addr %s534, 2
      %s536 = smul.addr %s535, 8
      %s537 = scalar_lea.vmem %s2, %s536
      // Predicated region
      $region29: #{discriminator_forward.6} parent=27 // pred_check
        %p538 = pneg %p78
      $region30: #{discriminator_forward.6} parent=27 // pred_check_branch
        %540 = sbr.rel (%p538) target = $region32
      $region31: #{discriminator_forward.6} parent=27 // pred_region
        _
      $region32: #{discriminator_forward.6} parent=27 // pred_fallthru
        _
    $region28: #{discriminator_forward.6} parent=5 // pred_fallthru
      _
    %p541 = scmp.le.s32.totalorder 2, %s8
    // Predicated region
    $region33: #{discriminator_forward.6} parent=5 // pred_check
      %p542 = pneg %p541
    $region34: #{discriminator_forward.6} parent=5 // pred_check_branch
      %544 = sbr.rel (%p542) target = $region36
    $region35: #{discriminator_forward.6} parent=5 // pred_region
      %s545 = ssub.s32 %s8, 2
      // Predicated region
      $region37: #{discriminator_forward.6} parent=35 // pred_check
        %p546 = pneg %p84
      $region38: #{discriminator_forward.6} parent=35 // pred_check_branch
        %548 = sbr.rel (%p546) target = $region40
      $region39: #{discriminator_forward.6} parent=35 // pred_region
        %p549 = scmp.lt.s32.totalorder %s14, 1
        %s550 = scalar_select %p549, %s14, 1
        %s551 = smul.addr %s550, 2
        %s552 = smul.addr %s551, 8
        %s553 = scalar_lea.vmem %s2, %s552
      $region40: #{discriminator_forward.6} parent=35 // pred_fallthru
        _
    $region36: #{discriminator_forward.6} parent=5 // pred_fallthru
      _
  $region6: #{discriminator_forward.6} parent=0 // loop_footer
    %s12 = sadd.s32 1, %s8
  $region7: #{discriminator_forward.6} parent=0 // loop_footer_branch
    %7 = sbr.rel target = $region3
  $region8: #{discriminator_forward.6} parent=0 // loop_exit
    _

// kernel: discriminator_forward.7
$region0: #{discriminator_forward.7}
  #allocation0 [shape = 'u32[]', space=smem, size = 0x4, offset = 0x4, fixed_abs, tag = 'smem constant byte address 0x4 - core index']
  #allocation1 [shape = 'u32[72,128]{1,0:T(1,128)}', space=vmem, size = 0x9000, scoped, tag = 'internal scratch']
  #allocation2 [shape = 'f32[20,20,64]{2,1,0:T(8,128)}', space=vmem, size = 0x3c000, scoped, tag = 'scratch operand']
  #allocation3 [shape = 'f32[16,1024]{1,0:T(8,128)}', space=vmem, size = 0x10000, scoped, tag = 'scratch operand']
  %s0 = inlined_call_operand.vmem [shape: f32[2,16,64], index: 0, kind: input, shape index: {}]
  %s1 = inlined_call_operand.vmem [shape: bf16[576,64], index: 1, kind: input, shape index: {}]
  %s2 = inlined_call_operand.vmem [shape: bf16[576,64], index: 2, kind: input, shape index: {}]
  %s3 = inlined_call_operand.vmem [shape: bf16[576,64], index: 3, kind: input, shape index: {}]
  %s4 = inlined_call_operand.vmem [shape: bf16[576,64], index: 4, kind: input, shape index: {}]
  %s5 = inlined_call_operand.vmem [shape: bf16[576,64], index: 5, kind: input, shape index: {}]
  %s6 = inlined_call_operand.vmem [shape: bf16[1024,1], index: 6, kind: input, shape index: {}]
  %s7 = inlined_call_operand.vmem [shape: f32[2,9,1], index: 7, kind: output, shape index: {}]
  %s8 = sld [smem:[#allocation0]]
  $region61: #{discriminator_forward.7} parent=0
    _
  %s10 = ssub.s32 1, %s8
  %s11 = scalar_select 0, %s10, %s8
  loop: start=0, step=1, limit=4
  $region2: #{discriminator_forward.7} parent=0 // loop_pre_header
    _
  $region3: #{discriminator_forward.7} parent=0 // loop_header
    %s13 = sphi 0, %s17
    %p14 = scmp.ge.s32.totalorder %s13, 4
    %s23 = sphi 0, %s25
    %s26 = sphi 0, %s23
    %s27 = sphi 0, %s26
    %s43 = sphi 0, %s27
    %s47 = sphi 0, %s47
    %s49 = sphi 0, %s47
    %s50 = sphi 0, %s49
    %s64 = sphi 0, %s50
    %s68 = sphi 0, %s68
    %s70 = sphi 0, %s68
    %s71 = sphi 0, %s70
    %s85 = sphi 0, %s71
    %s89 = sphi 0, %s89
    %s91 = sphi 0, %s89
    %s92 = sphi 0, %s91
    %s106 = sphi 0, %s92
    %s110 = sphi 0, %s110
    %s112 = sphi 0, %s110
    %s113 = sphi 0, %s112
    %s127 = sphi 0, %s113
    %s131 = sphi 0, %s131
    %s133 = sphi 0, %s131
    %s134 = sphi 0, %s133
    %s148 = sphi 0, %s134
    %s152 = sphi 0, %s152
    %s154 = sphi 0, %s152
    %s155 = sphi 0, %s154
    %s169 = sphi 0, %s155
    %s175 = sphi 0, %s177
    %s178 = sphi 0, %s175
    %s179 = sphi 0, %s178
    %s195 = sphi 0, %s179
  $region4: #{discriminator_forward.7} parent=0 // loop_header_branch
    %16 = sbr.rel (%p14) target = $region8
  $region5: #{discriminator_forward.7} parent=0 // loop_body
    %s18 = ssub.s32 %s13, 1
    %s19 = ssub.s32 %s13, 2
    %s20 = sadd.s32 %s13, 1
    %s21 = ssub.s32 %s13, %s20
    %p22 = scmp.eq.s32.totalorder %s21, 0
    %s24 = sadd.s32 %s23, 1
    %s25 = scalar_select %p22, %s23, %s24
    %p28 = pneg %p22
    %p29 = scmp.eq.s32.totalorder %s13, 1
    %p30 = por %p28, %p29
    %p31 = scmp.ne.s32.totalorder %s23, %s26
    %p32 = scmp.eq.s32.totalorder %s13, 0
    %p33 = por %p31, %p32
    %p34 = scmp.ne.s32.totalorder %s23, %s26
    %p35 = scmp.eq.s32.totalorder %s18, 1
    %p36 = por %p34, %p35
    %p37 = scmp.ne.s32.totalorder %s26, %s27
    %p38 = scmp.eq.s32.totalorder %s18, 0
    %p39 = por %p37, %p38
    %p40 = scmp.ne.s32.totalorder %s26, %s27
    %p41 = scmp.eq.s32.totalorder %s19, 1
    %p42 = por %p40, %p41
    %p44 = scmp.ne.s32.totalorder %s27, %s43
    %p45 = scmp.eq.s32.totalorder %s19, 0
    %p46 = por %p44, %p45
    %s48 = sadd.s32 %s47, 1
    %p51 = scmp.eq.s32.totalorder %s13, 1
    %p52 = scmp.ne.s32.totalorder %s47, %s49
    %p53 = scmp.eq.s32.totalorder %s13, 0
    %p54 = por %p52, %p53
    %p55 = scmp.ne.s32.totalorder %s47, %s49
    %p56 = scmp.eq.s32.totalorder %s18, 1
    %p57 = por %p55, %p56
    %p58 = scmp.ne.s32.totalorder %s49, %s50
    %p59 = scmp.eq.s32.totalorder %s18, 0
    %p60 = por %p58, %p59
    %p61 = scmp.ne.s32.totalorder %s49, %s50
    %p62 = scmp.eq.s32.totalorder %s19, 1
    %p63 = por %p61, %p62
    %p65 = scmp.ne.s32.totalorder %s50, %s64
    %p66 = scmp.eq.s32.totalorder %s19, 0
    %p67 = por %p65, %p66
    %s69 = sadd.s32 %s68, 1
    %p72 = scmp.eq.s32.totalorder %s13, 1
    %p73 = scmp.ne.s32.totalorder %s68, %s70
    %p74 = scmp.eq.s32.totalorder %s13, 0
    %p75 = por %p73, %p74
    %p76 = scmp.ne.s32.totalorder %s68, %s70
    %p77 = scmp.eq.s32.totalorder %s18, 1
    %p78 = por %p76, %p77
    %p79 = scmp.ne.s32.totalorder %s70, %s71
    %p80 = scmp.eq.s32.totalorder %s18, 0
    %p81 = por %p79, %p80
    %p82 = scmp.ne.s32.totalorder %s70, %s71
    %p83 = scmp.eq.s32.totalorder %s19, 1
    %p84 = por %p82, %p83
    %p86 = scmp.ne.s32.totalorder %s71, %s85
    %p87 = scmp.eq.s32.totalorder %s19, 0
    %p88 = por %p86, %p87
    %s90 = sadd.s32 %s89, 1
    %p93 = scmp.eq.s32.totalorder %s13, 1
    %p94 = scmp.ne.s32.totalorder %s89, %s91
    %p95 = scmp.eq.s32.totalorder %s13, 0
    %p96 = por %p94, %p95
    %p97 = scmp.ne.s32.totalorder %s89, %s91
    %p98 = scmp.eq.s32.totalorder %s18, 1
    %p99 = por %p97, %p98
    %p100 = scmp.ne.s32.totalorder %s91, %s92
    %p101 = scmp.eq.s32.totalorder %s18, 0
    %p102 = por %p100, %p101
    %p103 = scmp.ne.s32.totalorder %s91, %s92
    %p104 = scmp.eq.s32.totalorder %s19, 1
    %p105 = por %p103, %p104
    %p107 = scmp.ne.s32.totalorder %s92, %s106
    %p108 = scmp.eq.s32.totalorder %s19, 0
    %p109 = por %p107, %p108
    %s111 = sadd.s32 %s110, 1
    %p114 = scmp.eq.s32.totalorder %s13, 1
    %p115 = scmp.ne.s32.totalorder %s110, %s112
    %p116 = scmp.eq.s32.totalorder %s13, 0
    %p117 = por %p115, %p116
    %p118 = scmp.ne.s32.totalorder %s110, %s112
    %p119 = scmp.eq.s32.totalorder %s18, 1
    %p120 = por %p118, %p119
    %p121 = scmp.ne.s32.totalorder %s112, %s113
    %p122 = scmp.eq.s32.totalorder %s18, 0
    %p123 = por %p121, %p122
    %p124 = scmp.ne.s32.totalorder %s112, %s113
    %p125 = scmp.eq.s32.totalorder %s19, 1
    %p126 = por %p124, %p125
    %p128 = scmp.ne.s32.totalorder %s113, %s127
    %p129 = scmp.eq.s32.totalorder %s19, 0
    %p130 = por %p128, %p129
    %s132 = sadd.s32 %s131, 1
    %p135 = scmp.eq.s32.totalorder %s13, 1
    %p136 = scmp.ne.s32.totalorder %s131, %s133
    %p137 = scmp.eq.s32.totalorder %s13, 0
    %p138 = por %p136, %p137
    %p139 = scmp.ne.s32.totalorder %s131, %s133
    %p140 = scmp.eq.s32.totalorder %s18, 1
    %p141 = por %p139, %p140
    %p142 = scmp.ne.s32.totalorder %s133, %s134
    %p143 = scmp.eq.s32.totalorder %s18, 0
    %p144 = por %p142, %p143
    %p145 = scmp.ne.s32.totalorder %s133, %s134
    %p146 = scmp.eq.s32.totalorder %s19, 1
    %p147 = por %p145, %p146
    %p149 = scmp.ne.s32.totalorder %s134, %s148
    %p150 = scmp.eq.s32.totalorder %s19, 0
    %p151 = por %p149, %p150
    %s153 = sadd.s32 %s152, 1
    %p156 = scmp.eq.s32.totalorder %s13, 1
    %p157 = scmp.ne.s32.totalorder %s152, %s154
    %p158 = scmp.eq.s32.totalorder %s13, 0
    %p159 = por %p157, %p158
    %p160 = scmp.ne.s32.totalorder %s152, %s154
    %p161 = scmp.eq.s32.totalorder %s18, 1
    %p162 = por %p160, %p161
    %p163 = scmp.ne.s32.totalorder %s154, %s155
    %p164 = scmp.eq.s32.totalorder %s18, 0
    %p165 = por %p163, %p164
    %p166 = scmp.ne.s32.totalorder %s154, %s155
    %p167 = scmp.eq.s32.totalorder %s19, 1
    %p168 = por %p166, %p167
    %p170 = scmp.ne.s32.totalorder %s155, %s169
    %p171 = scmp.eq.s32.totalorder %s19, 0
    %p172 = por %p170, %p171
    %s173 = ssub.s32 %s13, %s20
    %p174 = scmp.eq.s32.totalorder %s173, 0
    %s176 = sadd.s32 %s175, 1
    %s177 = scalar_select %p174, %s175, %s176
    %p180 = pneg %p174
    %p181 = scmp.eq.s32.totalorder %s13, 1
    %p182 = por %p180, %p181
    %p183 = scmp.ne.s32.totalorder %s175, %s178
    %p184 = scmp.eq.s32.totalorder %s13, 0
    %p185 = por %p183, %p184
    %p186 = scmp.ne.s32.totalorder %s175, %s178
    %p187 = scmp.eq.s32.totalorder %s18, 1
    %p188 = por %p186, %p187
    %p189 = scmp.ne.s32.totalorder %s178, %s179
    %p190 = scmp.eq.s32.totalorder %s18, 0
    %p191 = por %p189, %p190
    %p192 = scmp.ne.s32.totalorder %s178, %s179
    %p193 = scmp.eq.s32.totalorder %s19, 1
    %p194 = por %p192, %p193
    %p196 = scmp.ne.s32.totalorder %s179, %s195
    %p197 = scmp.eq.s32.totalorder %s19, 0
    %p198 = por %p196, %p197
    %p199 = scmp.le.s32.totalorder 1, %s13
    %p200 = scmp.lt.s32.totalorder %s13, 3
    %p201 = pnand %p199, %p200
    %p202 = pneg %p201
    // Predicated region
    $region9: #{discriminator_forward.7} parent=5 // pred_check
      _
    $region10: #{discriminator_forward.7} parent=5 // pred_check_branch
      %204 = sbr.rel (%p201) target = $region12
    $region11: #{discriminator_forward.7} parent=5 // pred_region
      %s205 = ssub.s32 %s13, 1
      // Predicated region
      $region13: #{discriminator_forward.7} parent=11 // pred_check
        %p206 = pneg %p60
      $region14: #{discriminator_forward.7} parent=11 // pred_check_branch
        %208 = sbr.rel (%p206) target = $region16
      $region15: #{discriminator_forward.7} parent=11 // pred_region
        _
      $region16: #{discriminator_forward.7} parent=11 // pred_fallthru
        _
      // Predicated region
      $region17: #{discriminator_forward.7} parent=11 // pred_check
        %p209 = pneg %p81
      $region18: #{discriminator_forward.7} parent=11 // pred_check_branch
        %211 = sbr.rel (%p209) target = $region20
      $region19: #{discriminator_forward.7} parent=11 // pred_region
        _
      $region20: #{discriminator_forward.7} parent=11 // pred_fallthru
        _
      // Predicated region
      $region21: #{discriminator_forward.7} parent=11 // pred_check
        %p212 = pneg %p102
      $region22: #{discriminator_forward.7} parent=11 // pred_check_branch
        %214 = sbr.rel (%p212) target = $region24
      $region23: #{discriminator_forward.7} parent=11 // pred_region
        _
      $region24: #{discriminator_forward.7} parent=11 // pred_fallthru
        _
      // Predicated region
      $region25: #{discriminator_forward.7} parent=11 // pred_check
        %p215 = pneg %p123
      $region26: #{discriminator_forward.7} parent=11 // pred_check_branch
        %217 = sbr.rel (%p215) target = $region28
      $region27: #{discriminator_forward.7} parent=11 // pred_region
        _
      $region28: #{discriminator_forward.7} parent=11 // pred_fallthru
        _
      // Predicated region
      $region29: #{discriminator_forward.7} parent=11 // pred_check
        %p218 = pneg %p144
      $region30: #{discriminator_forward.7} parent=11 // pred_check_branch
        %220 = sbr.rel (%p218) target = $region32
      $region31: #{discriminator_forward.7} parent=11 // pred_region
        _
      $region32: #{discriminator_forward.7} parent=11 // pred_fallthru
        _
      // Predicated region
      $region33: #{discriminator_forward.7} parent=11 // pred_check
        %p221 = pneg %p165
      $region34: #{discriminator_forward.7} parent=11 // pred_check_branch
        %223 = sbr.rel (%p221) target = $region36
      $region35: #{discriminator_forward.7} parent=11 // pred_region
        _
      $region36: #{discriminator_forward.7} parent=11 // pred_fallthru
        _
    $region12: #{discriminator_forward.7} parent=5 // pred_fallthru
      _
    %p224 = scmp.lt.s32.totalorder %s13, 2
    // Predicated region
    $region37: #{discriminator_forward.7} parent=5 // pred_check
      %p225 = pneg %p224
    $region38: #{discriminator_forward.7} parent=5 // pred_check_branch
      %227 = sbr.rel (%p225) target = $region40
    $region39: #{discriminator_forward.7} parent=5 // pred_region
      // Predicated region
      $region41: #{discriminator_forward.7} parent=39 // pred_check
        %p228 = pneg %p33
      $region42: #{discriminator_forward.7} parent=39 // pred_check_branch
        %230 = sbr.rel (%p228) target = $region44
      $region43: #{discriminator_forward.7} parent=39 // pred_region
        %p231 = scmp.lt.s32.totalorder %s13, 1
        %s232 = scalar_select %p231, %s13, 1
        %s233 = smul.addr %s232, 2
        %s234 = smul.addr %s233, 8
        %s235 = scalar_lea.vmem %s0, %s234
      $region44: #{discriminator_forward.7} parent=39 // pred_fallthru
        _
    $region40: #{discriminator_forward.7} parent=5 // pred_fallthru
      _
    %p236 = scmp.le.s32.totalorder 1, %s13
    %p237 = scmp.lt.s32.totalorder %s13, 3
    %p238 = pnand %p236, %p237
    %p239 = pneg %p238
    // Predicated region
    $region45: #{discriminator_forward.7} parent=5 // pred_check
      _
    $region46: #{discriminator_forward.7} parent=5 // pred_check_branch
      %241 = sbr.rel (%p238) target = $region48
    $region47: #{discriminator_forward.7} parent=5 // pred_region
      %s242 = ssub.s32 %s13, 1
      %p243 = scmp.lt.s32.totalorder %s18, 1
      %s244 = scalar_select %p243, %s18, 1
      %s245 = smul.addr %s244, 2
      %s246 = smul.addr %s245, 8
      %s247 = scalar_lea.vmem %s0, %s246
      %p248 = pneg %p39
      %p249 = pneg %p36
      %p250 = pneg %p60
      %p251 = pneg %p57
      %p252 = pneg %p81
      %p253 = pneg %p78
      %p254 = pneg %p102
      %p255 = pneg %p99
      %p256 = pneg %p123
      %p257 = pneg %p120
      %p258 = pneg %p144
      %p259 = pneg %p141
      %p260 = pneg %p165
      %p261 = pneg %p162
      %p262 = pneg %p191
      %p263 = pneg %p188
      %p264 = scmp.lt.s32.totalorder %s18, 1
      %s265 = scalar_select %p264, %s18, 1
      %s266 = smul.addr %s265, 2
      %s267 = smul.addr %s266, 8
      %s268 = scalar_lea.vmem %s7, %s267
      %p269 = scmp.lt.s32.totalorder %s18, 1
      %s270 = scalar_select %p269, %s18, 1
      %s271 = smul.addr %s270, 2
      %s272 = smul.addr %s271, 8
      %s273 = scalar_lea.vmem %s0, %s272
      %p274 = scmp.lt.s32.totalorder %s18, 1
      %s275 = scalar_select %p274, %s18, 1
      %s276 = smul.addr %s275, 2
      %s277 = smul.addr %s276, 8
      %s278 = scalar_lea.vmem %s7, %s277
      %v280 = vld [vmem:[%s273] sm:$0xff]
      %v281 = vld [vmem:[%s273 + $0x8] sm:$0xff]
      %vm282 = vcmask 523264
      %283 = vst.msk [vmem:[#allocation2] sm:$0xff] %vm282, 0.0
      %284 = vst.msk [vmem:[#allocation2 + $0x8] sm:$0xff] %vm282, 0.0
      %vm285 = vcmask 519168
      %286 = vst.msk [vmem:[#allocation2 + $0x10] sm:$0xf] %vm285, 0.0
      %287 = vst.msk [vmem:[#allocation2 + $0x18] sm:$0xff] %vm282, 0.0
      %288 = vst.msk [vmem:[#allocation2 + $0x20] sm:$0xff] %vm282, 0.0
      %289 = vst.msk [vmem:[#allocation2 + $0x28] sm:$0xf] %vm285, 0.0
      %290 = vst.msk [vmem:[#allocation2 + $0x30] sm:$0xff] %vm282, 0.0
      %291 = vst.msk [vmem:[#allocation2 + $0x38] sm:$0xff] %vm282, 0.0
      %292 = vst.msk [vmem:[#allocation2 + $0x40] sm:$0xf] %vm285, 0.0
      %293 = vst.msk [vmem:[#allocation2 + $0x48] sm:$0xff] %vm282, 0.0
      %294 = vst.msk [vmem:[#allocation2 + $0x50] sm:$0xff] %vm282, 0.0
      %295 = vst.msk [vmem:[#allocation2 + $0x58] sm:$0xf] %vm285, 0.0
      %296 = vst.msk [vmem:[#allocation2 + $0x60] sm:$0xff] %vm282, 0.0
      %297 = vst.msk [vmem:[#allocation2 + $0x68] sm:$0xff] %vm282, 0.0
      %298 = vst.msk [vmem:[#allocation2 + $0x70] sm:$0xf] %vm285, 0.0
      %299 = vst.msk [vmem:[#allocation2 + $0x78] sm:$0xff] %vm282, 0.0
      %300 = vst.msk [vmem:[#allocation2 + $0x80] sm:$0xff] %vm282, 0.0
      %301 = vst.msk [vmem:[#allocation2 + $0x88] sm:$0xf] %vm285, 0.0
      %302 = vst.msk [vmem:[#allocation2 + $0x90] sm:$0xff] %vm282, 0.0
      %303 = vst.msk [vmem:[#allocation2 + $0x98] sm:$0xff] %vm282, 0.0
      %304 = vst.msk [vmem:[#allocation2 + $0xa0] sm:$0xf] %vm285, 0.0
      %305 = vst.msk [vmem:[#allocation2 + $0xa8] sm:$0xff] %vm282, 0.0
      %306 = vst.msk [vmem:[#allocation2 + $0xb0] sm:$0xff] %vm282, 0.0
      %307 = vst.msk [vmem:[#allocation2 + $0xb8] sm:$0xf] %vm285, 0.0
      %308 = vst.msk [vmem:[#allocation2 + $0xc0] sm:$0xff] %vm282, 0.0
      %309 = vst.msk [vmem:[#allocation2 + $0xc8] sm:$0xff] %vm282, 0.0
      %310 = vst.msk [vmem:[#allocation2 + $0xd0] sm:$0xf] %vm285, 0.0
      %311 = vst.msk [vmem:[#allocation2 + $0xd8] sm:$0xff] %vm282, 0.0
      %312 = vst.msk [vmem:[#allocation2 + $0xe0] sm:$0xff] %vm282, 0.0
      %313 = vst.msk [vmem:[#allocation2 + $0xe8] sm:$0xf] %vm285, 0.0
      %314 = vst.msk [vmem:[#allocation2 + $0xf0] sm:$0xff] %vm282, 0.0
      %315 = vst.msk [vmem:[#allocation2 + $0xf8] sm:$0xff] %vm282, 0.0
      %316 = vst.msk [vmem:[#allocation2 + $0x100] sm:$0xf] %vm285, 0.0
      %317 = vst.msk [vmem:[#allocation2 + $0x108] sm:$0xff] %vm282, 0.0
      %318 = vst.msk [vmem:[#allocation2 + $0x110] sm:$0xff] %vm282, 0.0
      %319 = vst.msk [vmem:[#allocation2 + $0x118] sm:$0xf] %vm285, 0.0
      %320 = vst.msk [vmem:[#allocation2 + $0x120] sm:$0xff] %vm282, 0.0
      %321 = vst.msk [vmem:[#allocation2 + $0x128] sm:$0xff] %vm282, 0.0
      %322 = vst.msk [vmem:[#allocation2 + $0x130] sm:$0xf] %vm285, 0.0
      %323 = vst.msk [vmem:[#allocation2 + $0x138] sm:$0xff] %vm282, 0.0
      %324 = vst.msk [vmem:[#allocation2 + $0x140] sm:$0xff] %vm282, 0.0
      %325 = vst.msk [vmem:[#allocation2 + $0x148] sm:$0xf] %vm285, 0.0
      %326 = vst.msk [vmem:[#allocation2 + $0x150] sm:$0xff] %vm282, 0.0
      %327 = vst.msk [vmem:[#allocation2 + $0x158] sm:$0xff] %vm282, 0.0
      %328 = vst.msk [vmem:[#allocation2 + $0x160] sm:$0xf] %vm285, 0.0
      %329 = vst.msk [vmem:[#allocation2 + $0x168] sm:$0xff] %vm282, 0.0
      %330 = vst.msk [vmem:[#allocation2 + $0x170] sm:$0xff] %vm282, 0.0
      %331 = vst.msk [vmem:[#allocation2 + $0x178] sm:$0xf] %vm285, 0.0
      %332 = vst.msk [vmem:[#allocation2 + $0x180] sm:$0xff] %vm282, 0.0
      %333 = vst.msk [vmem:[#allocation2 + $0x188] sm:$0xff] %vm282, 0.0
      %334 = vst.msk [vmem:[#allocation2 + $0x190] sm:$0xf] %vm285, 0.0
      %335 = vst.msk [vmem:[#allocation2 + $0x198] sm:$0xff] %vm282, 0.0
      %336 = vst.msk [vmem:[#allocation2 + $0x1a0] sm:$0xff] %vm282, 0.0
      %337 = vst.msk [vmem:[#allocation2 + $0x1a8] sm:$0xf] %vm285, 0.0
      %338 = vst.msk [vmem:[#allocation2 + $0x1b0] sm:$0xff] %vm282, 0.0
      %339 = vst.msk [vmem:[#allocation2 + $0x1b8] sm:$0xff] %vm282, 0.0
      %340 = vst.msk [vmem:[#allocation2 + $0x1c0] sm:$0xf] %vm285, 0.0
      %341 = vst.msk [vmem:[#allocation2 + $0x1c8] sm:$0xff] %vm282, 0.0
      %342 = vst.msk [vmem:[#allocation2 + $0x1d0] sm:$0xff] %vm282, 0.0
      %343 = vst.msk [vmem:[#allocation2 + $0x1d8] sm:$0xf] %vm285, 0.0
      %s344 = scalar_lea.vmem [#allocation2], 24
      %345 = vst.msk [vmem:[%s344 + $0x1] sm:$0xf] %vm285, %v280
      %s346 = scalar_lea.vmem [#allocation2], 48
      %vm347 = vcmask 523268
      %348 = vst.msk [vmem:[%s346 - $0x3] sm:$0xf0] %vm347, %v280
      %s349 = scalar_lea.vmem [#allocation2], 72
      %350 = vst.msk [vmem:[%s349 + $0x1] sm:$0xf] %vm285, %v281
      %s351 = scalar_lea.vmem [#allocation2], 96
      %352 = vst.msk [vmem:[%s351 - $0x3] sm:$0xf0] %vm347, %v281
      %v353 = vld [vmem:[#allocation2] sm:$0xf]
      %v354 = vld [vmem:[#allocation2 + $0x1] sm:$0xf]
      %v355 = vld [vmem:[#allocation2 + $0x2] sm:$0xf]
      %v356 = vld [vmem:[%s344] sm:$0xf]
      %v357 = vld [vmem:[%s344 + $0x1] sm:$0xf]
      %v358 = vld [vmem:[%s344 + $0x2] sm:$0xf]
      %v359 = vld [vmem:[%s346] sm:$0xf]
      %v360 = vld [vmem:[%s346 + $0x1] sm:$0xf]
      %v361 = vld [vmem:[%s346 + $0x2] sm:$0xf]
      %363 = vrot.lane.b32.xlu0 %v354, 64
      %v364 = vpop.permute.xlu0 %363
      %367 = vrot.lane.b32.xlu0 %v356, 64
      %v368 = vpop.permute.xlu0 %367
      %371 = vrot.lane.b32.xlu0 %v358, 64
      %v372 = vpop.permute.xlu0 %371
      %375 = vrot.lane.b32.xlu0 %v360, 64
      %v376 = vpop.permute.xlu0 %375
      %v378 = vsel %vm282, %v353, %v364
      %v379 = vsel %vm282, %v355, %v368
      %v380 = vsel %vm282, %v357, %v372
      %v381 = vsel %vm282, %v359, %v376
      %382 = vst [vmem:[#allocation3] sm:$0xf] %v378
      %383 = vst [vmem:[#allocation3 + $0x8] sm:$0xf] %v379
      %384 = vst [vmem:[#allocation3 + $0x10] sm:$0xf] %v380
      %385 = vst [vmem:[#allocation3 + $0x18] sm:$0xf] %v381
      %386 = vst.msk [vmem:[#allocation3 + $0x20] sm:$0xf] %vm285, %v361
      %v387 = vld [vmem:[%s344] sm:$0xf]
      %v388 = vld [vmem:[%s344 + $0x1] sm:$0xf]
      %v389 = vld [vmem:[%s344 + $0x2] sm:$0xf]
      %v390 = vld [vmem:[%s346] sm:$0xf]
      %v391 = vld [vmem:[%s346 + $0x1] sm:$0xf]
      %v392 = vld [vmem:[%s346 + $0x2] sm:$0xf]
      %v393 = vld [vmem:[%s349] sm:$0xf]
      %v394 = vld [vmem:[%s349 + $0x1] sm:$0xf]
      %v395 = vld [vmem:[%s349 + $0x2] sm:$0xf]
      %397 = vrot.lane.b32.xlu0 %v388, 64
      %v398 = vpop.permute.xlu0 %397
      %401 = vrot.lane.b32.xlu0 %v390, 64
      %v402 = vpop.permute.xlu0 %401
      %405 = vrot.lane.b32.xlu0 %v392, 64
      %v406 = vpop.permute.xlu0 %405
      %409 = vrot.lane.b32.xlu0 %v394, 64
      %v410 = vpop.permute.xlu0 %409
      %v412 = vsel %vm282, %v387, %v398
      %v413 = vsel %vm282, %v389, %v402
      %v414 = vsel %vm282, %v391, %v406
      %v415 = vsel %vm282, %v393, %v410
      %v421 = vrot.slane %v412, 4
      %v422 = vrot.slane %v413, 4
      %v423 = vrot.slane %v414, 4
      %v424 = vrot.slane %v415, 4
      %v425 = vrot.slane %v395, 4
      %431 = vst [vmem:[#allocation3] sm:$0xf0] %v421
      %432 = vst [vmem:[#allocation3 + $0x8] sm:$0xf0] %v422
      %433 = vst [vmem:[#allocation3 + $0x10] sm:$0xf0] %v423
      %434 = vst [vmem:[#allocation3 + $0x18] sm:$0xf0] %v424
      %435 = vst.msk [vmem:[#allocation3 + $0x20] sm:$0xf0] %vm347, %v425
      %v436 = vld [vmem:[%s346] sm:$0xf]
      %v437 = vld [vmem:[%s346 + $0x1] sm:$0xf]
      %v438 = vld [vmem:[%s346 + $0x2] sm:$0xf]
      %v439 = vld [vmem:[%s349] sm:$0xf]
      %v440 = vld [vmem:[%s349 + $0x1] sm:$0xf]
      %v441 = vld [vmem:[%s349 + $0x2] sm:$0xf]
      %v442 = vld [vmem:[%s351] sm:$0xf]
      %v443 = vld [vmem:[%s351 + $0x1] sm:$0xf]
      %v444 = vld [vmem:[%s351 + $0x2] sm:$0xf]
      %446 = vrot.lane.b32.xlu0 %v437, 64
      %v447 = vpop.permute.xlu0 %446
      %450 = vrot.lane.b32.xlu0 %v439, 64
      %v451 = vpop.permute.xlu0 %450
      %454 = vrot.lane.b32.xlu0 %v441, 64
      %v455 = vpop.permute.xlu0 %454
      %458 = vrot.lane.b32.xlu0 %v443, 64
      %v459 = vpop.permute.xlu0 %458
      %v461 = vsel %vm282, %v436, %v447
      %v462 = vsel %vm282, %v438, %v451
      %v463 = vsel %vm282, %v440, %v455
      %v464 = vsel %vm282, %v442, %v459
      %465 = vst [vmem:[#allocation3 + $0x40] sm:$0xf] %v461
      %466 = vst [vmem:[#allocation3 + $0x48] sm:$0xf] %v462
      %467 = vst [vmem:[#allocation3 + $0x50] sm:$0xf] %v463
      %468 = vst [vmem:[#allocation3 + $0x58] sm:$0xf] %v464
      %469 = vst.msk [vmem:[#allocation3 + $0x60] sm:$0xf] %vm285, %v444
      %v470 = vld [vmem:[%s349] sm:$0xf]
      %v471 = vld [vmem:[%s349 + $0x1] sm:$0xf]
      %v472 = vld [vmem:[%s349 + $0x2] sm:$0xf]
      %v473 = vld [vmem:[%s351] sm:$0xf]
      %v474 = vld [vmem:[%s351 + $0x1] sm:$0xf]
      %v475 = vld [vmem:[%s351 + $0x2] sm:$0xf]
      %s476 = scalar_lea.vmem [#allocation2], 120
      %v477 = vld [vmem:[%s476] sm:$0xf]
      %v478 = vld [vmem:[%s476 + $0x1] sm:$0xf]
      %v479 = vld [vmem:[%s476 + $0x2] sm:$0xf]
      %481 = vrot.lane.b32.xlu0 %v471, 64
      %v482 = vpop.permute.xlu0 %481
      %485 = vrot.lane.b32.xlu0 %v473, 64
      %v486 = vpop.permute.xlu0 %485
      %489 = vrot.lane.b32.xlu0 %v475, 64
      %v490 = vpop.permute.xlu0 %489
      %493 = vrot.lane.b32.xlu0 %v478, 64
      %v494 = vpop.permute.xlu0 %493
      %v496 = vsel %vm282, %v470, %v482
      %v497 = vsel %vm282, %v472, %v486
      %v498 = vsel %vm282, %v474, %v490
      %v499 = vsel %vm282, %v477, %v494
      %v505 = vrot.slane %v496, 4
      %v506 = vrot.slane %v497, 4
      %v507 = vrot.slane %v498, 4
      %v508 = vrot.slane %v499, 4
      %v509 = vrot.slane %v479, 4
      %515 = vst [vmem:[#allocation3 + $0x40] sm:$0xf0] %v505
      %516 = vst [vmem:[#allocation3 + $0x48] sm:$0xf0] %v506
      %517 = vst [vmem:[#allocation3 + $0x50] sm:$0xf0] %v507
      %518 = vst [vmem:[#allocation3 + $0x58] sm:$0xf0] %v508
      %519 = vst.msk [vmem:[#allocation3 + $0x60] sm:$0xf0] %vm347, %v509
      %v520 = vld [vmem:[#allocation3] sm:$0xff]
      %v521 = vld [vmem:[#allocation3 + $0x8] sm:$0xff]
      %v522 = vld [vmem:[#allocation3 + $0x10] sm:$0xff]
      %v523 = vld [vmem:[#allocation3 + $0x18] sm:$0xff]
      %v524 = vld [vmem:[#allocation3 + $0x20] sm:$0xff]
      %v525 = vld [vmem:[#allocation3 + $0x40] sm:$0xff]
      %v526 = vld [vmem:[#allocation3 + $0x48] sm:$0xff]
      %v527 = vld [vmem:[#allocation3 + $0x50] sm:$0xff]
      %v528 = vld [vmem:[#allocation3 + $0x58] sm:$0xff]
      %v529 = vld [vmem:[#allocation3 + $0x60] sm:$0xff]
      %v530 = vpack.c.bf16 %v525, %v520
      %v531 = vpack.c.bf16 %v526, %v521
      %v532 = vpack.c.bf16 %v527, %v522
      %v533 = vpack.c.bf16 %v528, %v523
      %v534 = vpack.c.bf16 %v529, %v524
      %v535 = vld [vmem:[%s1] sm:$0xf]
      %v536 = vld [vmem:[%s1 + $0x4] sm:$0xf]
      %v537 = vld [vmem:[%s1 + $0x8] sm:$0xf]
      %v538 = vld [vmem:[%s1 + $0xc] sm:$0xf]
      %v539 = vld [vmem:[%s1 + $0x10] sm:$0xf]
      %v540 = vld [vmem:[%s1 + $0x14] sm:$0xf]
      %v541 = vld [vmem:[%s1 + $0x18] sm:$0xf]
      %v542 = vld [vmem:[%s1 + $0x1c] sm:$0xf]
      %v543 = vld [vmem:[%s1 + $0x20] sm:$0xf]
      %v544 = vld [vmem:[%s1 + $0x24] sm:$0xf]
      %v545 = vld [vmem:[%s1 + $0x28] sm:$0xf]
      %v546 = vld [vmem:[%s1 + $0x2c] sm:$0xf]
      %v547 = vld [vmem:[%s1 + $0x30] sm:$0xf]
      %v548 = vld [vmem:[%s1 + $0x34] sm:$0xf]
      %v549 = vld [vmem:[%s1 + $0x38] sm:$0xf]
      %v550 = vld [vmem:[%s1 + $0x3c] sm:$0xf]
      %v551 = vld [vmem:[%s1 + $0x40] sm:$0xf]
      %v552 = vld [vmem:[%s1 + $0x44] sm:$0xf]
      %v553 = vld [vmem:[%s1 + $0x48] sm:$0xf]
      %v554 = vld [vmem:[%s1 + $0x4c] sm:$0xf]
      %v555 = vld [vmem:[%s1 + $0x50] sm:$0xf]
      %v556 = vld [vmem:[%s1 + $0x54] sm:$0xf]
      %v557 = vld [vmem:[%s1 + $0x58] sm:$0xf]
      %v558 = vld [vmem:[%s1 + $0x5c] sm:$0xf]
      %v559 = vld [vmem:[%s1 + $0x60] sm:$0xf]
      %v560 = vld [vmem:[%s1 + $0x64] sm:$0xf]
      %v561 = vld [vmem:[%s1 + $0x68] sm:$0xf]
      %v562 = vld [vmem:[%s1 + $0x6c] sm:$0xf]
      %v563 = vld [vmem:[%s1 + $0x70] sm:$0xf]
      %v564 = vld [vmem:[%s1 + $0x74] sm:$0xf]
      %v565 = vld [vmem:[%s1 + $0x78] sm:$0xf]
      %v566 = vld [vmem:[%s1 + $0x7c] sm:$0xf]
      %v567 = vld [vmem:[%s1 + $0x80] sm:$0xf]
      %v568 = vld [vmem:[%s1 + $0x84] sm:$0xf]
      %v569 = vld [vmem:[%s1 + $0x88] sm:$0xf]
      %v570 = vld [vmem:[%s1 + $0x8c] sm:$0xf]
      %v571 = vld [vmem:[%s1 + $0x90] sm:$0xf]
      %v572 = vld [vmem:[%s1 + $0x94] sm:$0xf]
      %v573 = vld [vmem:[%s1 + $0x98] sm:$0xf]
      %v574 = vld [vmem:[%s1 + $0x9c] sm:$0xf]
      %v575 = vld [vmem:[%s1 + $0xa0] sm:$0xf]
      %v576 = vld [vmem:[%s1 + $0xa4] sm:$0xf]
      %v577 = vld [vmem:[%s1 + $0xa8] sm:$0xf]
      %v578 = vld [vmem:[%s1 + $0xac] sm:$0xf]
      %v579 = vld [vmem:[%s1 + $0xb0] sm:$0xf]
      %v580 = vld [vmem:[%s1 + $0xb4] sm:$0xf]
      %v581 = vld [vmem:[%s1 + $0xb8] sm:$0xf]
      %v582 = vld [vmem:[%s1 + $0xbc] sm:$0xf]
      %v583 = vld [vmem:[%s1 + $0xc0] sm:$0xf]
      %v584 = vld [vmem:[%s1 + $0xc4] sm:$0xf]
      %v585 = vld [vmem:[%s1 + $0xc8] sm:$0xf]
      %v586 = vld [vmem:[%s1 + $0xcc] sm:$0xf]
      %v587 = vld [vmem:[%s1 + $0xd0] sm:$0xf]
      %v588 = vld [vmem:[%s1 + $0xd4] sm:$0xf]
      %v589 = vld [vmem:[%s1 + $0xd8] sm:$0xf]
      %v590 = vld [vmem:[%s1 + $0xdc] sm:$0xf]
      %v591 = vld [vmem:[%s1 + $0xe0] sm:$0xf]
      %v592 = vld [vmem:[%s1 + $0xe4] sm:$0xf]
      %v593 = vld [vmem:[%s1 + $0xe8] sm:$0xf]
      %v594 = vld [vmem:[%s1 + $0xec] sm:$0xf]
      %v595 = vld [vmem:[%s1 + $0xf0] sm:$0xf]
      %v596 = vld [vmem:[%s1 + $0xf4] sm:$0xf]
      %v597 = vld [vmem:[%s1 + $0xf8] sm:$0xf]
      %v598 = vld [vmem:[%s1 + $0xfc] sm:$0xf]
      %v599 = vld [vmem:[%s1 + $0x100] sm:$0xf]
      %v600 = vld [vmem:[%s1 + $0x104] sm:$0xf]
      %v601 = vld [vmem:[%s1 + $0x108] sm:$0xf]
      %v602 = vld [vmem:[%s1 + $0x10c] sm:$0xf]
      %v603 = vld [vmem:[%s1 + $0x110] sm:$0xf]
      %v604 = vld [vmem:[%s1 + $0x114] sm:$0xf]
      %v605 = vld [vmem:[%s1 + $0x118] sm:$0xf]
      %v606 = vld [vmem:[%s1 + $0x11c] sm:$0xf]
      %v679 = vunpack.c.l.b16 %v535
      %v680 = vunpack.c.l.b16 %v536
      %v681 = vunpack.c.l.b16 %v537
      %v682 = vunpack.c.l.b16 %v538
      %v683 = vunpack.c.l.b16 %v539
      %v684 = vunpack.c.l.b16 %v540
      %v685 = vunpack.c.l.b16 %v541
      %v686 = vunpack.c.l.b16 %v542
      %v687 = vunpack.c.l.b16 %v543
      %v688 = vunpack.c.l.b16 %v544
      %v689 = vunpack.c.l.b16 %v545
      %v690 = vunpack.c.l.b16 %v546
      %v691 = vunpack.c.l.b16 %v547
      %v692 = vunpack.c.l.b16 %v548
      %v693 = vunpack.c.l.b16 %v549
      %v694 = vunpack.c.l.b16 %v550
      %v695 = vunpack.c.l.b16 %v551
      %v696 = vunpack.c.l.b16 %v552
      %v697 = vunpack.c.l.b16 %v553
      %v698 = vunpack.c.l.b16 %v554
      %v699 = vunpack.c.l.b16 %v555
      %v700 = vunpack.c.l.b16 %v556
      %v701 = vunpack.c.l.b16 %v557
      %v702 = vunpack.c.l.b16 %v558
      %v703 = vunpack.c.l.b16 %v559
      %v704 = vunpack.c.l.b16 %v560
      %v705 = vunpack.c.l.b16 %v561
      %v706 = vunpack.c.l.b16 %v562
      %v707 = vunpack.c.l.b16 %v563
      %v708 = vunpack.c.l.b16 %v564
      %v709 = vunpack.c.l.b16 %v565
      %v710 = vunpack.c.l.b16 %v566
      %v711 = vunpack.c.l.b16 %v567
      %v712 = vunpack.c.l.b16 %v568
      %v713 = vunpack.c.l.b16 %v569
      %v714 = vunpack.c.l.b16 %v570
      %v715 = vunpack.c.l.b16 %v571
      %v716 = vunpack.c.l.b16 %v572
      %v717 = vunpack.c.l.b16 %v573
      %v718 = vunpack.c.l.b16 %v574
      %v719 = vunpack.c.l.b16 %v575
      %v720 = vunpack.c.l.b16 %v576
      %v721 = vunpack.c.l.b16 %v577
      %v722 = vunpack.c.l.b16 %v578
      %v723 = vunpack.c.l.b16 %v579
      %v724 = vunpack.c.l.b16 %v580
      %v725 = vunpack.c.l.b16 %v581
      %v726 = vunpack.c.l.b16 %v582
      %v727 = vunpack.c.l.b16 %v583
      %v728 = vunpack.c.l.b16 %v584
      %v729 = vunpack.c.l.b16 %v585
      %v730 = vunpack.c.l.b16 %v586
      %v731 = vunpack.c.l.b16 %v587
      %v732 = vunpack.c.l.b16 %v588
      %v733 = vunpack.c.l.b16 %v589
      %v734 = vunpack.c.l.b16 %v590
      %v735 = vunpack.c.l.b16 %v591
      %v736 = vunpack.c.l.b16 %v592
      %v737 = vunpack.c.l.b16 %v593
      %v738 = vunpack.c.l.b16 %v594
      %v739 = vunpack.c.l.b16 %v595
      %v740 = vunpack.c.l.b16 %v596
      %v741 = vunpack.c.l.b16 %v597
      %v742 = vunpack.c.l.b16 %v598
      %v743 = vunpack.c.l.b16 %v599
      %v744 = vunpack.c.l.b16 %v600
      %v745 = vunpack.c.l.b16 %v601
      %v746 = vunpack.c.l.b16 %v602
      %v747 = vunpack.c.l.b16 %v603
      %v748 = vunpack.c.l.b16 %v604
      %v749 = vunpack.c.l.b16 %v605
      %v750 = vunpack.c.l.b16 %v606
      %v751 = vpack.c.b16 %v680, %v679
      %v752 = vpack.c.b16 %v682, %v681
      %v753 = vpack.c.b16 %v684, %v683
      %v754 = vpack.c.b16 %v686, %v685
      %v755 = vpack.c.b16 %v688, %v687
      %v756 = vpack.c.b16 %v690, %v689
      %v757 = vpack.c.b16 %v692, %v691
      %v758 = vpack.c.b16 %v694, %v693
      %v759 = vpack.c.b16 %v696, %v695
      %v760 = vpack.c.b16 %v698, %v697
      %v761 = vpack.c.b16 %v700, %v699
      %v762 = vpack.c.b16 %v702, %v701
      %v763 = vpack.c.b16 %v704, %v703
      %v764 = vpack.c.b16 %v706, %v705
      %v765 = vpack.c.b16 %v708, %v707
      %v766 = vpack.c.b16 %v710, %v709
      %v767 = vpack.c.b16 %v712, %v711
      %v768 = vpack.c.b16 %v714, %v713
      %v769 = vpack.c.b16 %v716, %v715
      %v770 = vpack.c.b16 %v718, %v717
      %v771 = vpack.c.b16 %v720, %v719
      %v772 = vpack.c.b16 %v722, %v721
      %v773 = vpack.c.b16 %v724, %v723
      %v774 = vpack.c.b16 %v726, %v725
      %v775 = vpack.c.b16 %v728, %v727
      %v776 = vpack.c.b16 %v730, %v729
      %v777 = vpack.c.b16 %v732, %v731
      %v778 = vpack.c.b16 %v734, %v733
      %v779 = vpack.c.b16 %v736, %v735
      %v780 = vpack.c.b16 %v738, %v737
      %v781 = vpack.c.b16 %v740, %v739
      %v782 = vpack.c.b16 %v742, %v741
      %v783 = vpack.c.b16 %v744, %v743
      %v784 = vpack.c.b16 %v746, %v745
      %v785 = vpack.c.b16 %v748, %v747
      %v786 = vpack.c.b16 %v750, %v749
      %v824 = vsel %vm282, %v534, 0
      %826 = vmatpush.bf16.msra.mxu0 %v758
      %827 = vmatpush.bf16.msra.mxu0 %v757
      %828 = vmatpush.bf16.msra.mxu0 %v756
      %829 = vmatpush.bf16.msra.mxu0 %v755
      %830 = vmatpush.bf16.msra.mxu0 %v754
      %831 = vmatpush.bf16.msra.mxu0 %v753
      %832 = vmatpush.bf16.msra.mxu0 %v752
      %833 = vmatpush.bf16.msra.mxu0 %v751
      %834 = vmatmul.bf16.gmra.mxu0 %v530
      %v835 = vpop.f32.mrf.mxu0
      %v836 = vadd.f32 0.0, %v835
      %v837 = vpop.f32.mrf.mxu0
      %v838 = vadd.f32 0.0, %v837
      %839 = vdwg.mxu0
      %840 = vmatpush.bf16.msra.mxu0 %v766
      %841 = vmatpush.bf16.msra.mxu0 %v765
      %842 = vmatpush.bf16.msra.mxu0 %v764
      %843 = vmatpush.bf16.msra.mxu0 %v763
      %844 = vmatpush.bf16.msra.mxu0 %v762
      %845 = vmatpush.bf16.msra.mxu0 %v761
      %846 = vmatpush.bf16.msra.mxu0 %v760
      %847 = vmatpush.bf16.msra.mxu0 %v759
      %848 = vmatmul.bf16.gmra.mxu0 %v531
      %v849 = vpop.f32.mrf.mxu0
      %v850 = vadd.f32 %v836, %v849
      %v851 = vpop.f32.mrf.mxu0
      %v852 = vadd.f32 %v838, %v851
      %853 = vdwg.mxu0
      %854 = vmatpush.bf16.msra.mxu0 %v774
      %855 = vmatpush.bf16.msra.mxu0 %v773
      %856 = vmatpush.bf16.msra.mxu0 %v772
      %857 = vmatpush.bf16.msra.mxu0 %v771
      %858 = vmatpush.bf16.msra.mxu0 %v770
      %859 = vmatpush.bf16.msra.mxu0 %v769
      %860 = vmatpush.bf16.msra.mxu0 %v768
      %861 = vmatpush.bf16.msra.mxu0 %v767
      %862 = vmatmul.bf16.gmra.mxu0 %v532
      %v863 = vpop.f32.mrf.mxu0
      %v864 = vadd.f32 %v850, %v863
      %v865 = vpop.f32.mrf.mxu0
      %v866 = vadd.f32 %v852, %v865
      %867 = vdwg.mxu0
      %868 = vmatpush.bf16.msra.mxu0 %v782
      %869 = vmatpush.bf16.msra.mxu0 %v781
      %870 = vmatpush.bf16.msra.mxu0 %v780
      %871 = vmatpush.bf16.msra.mxu0 %v779
      %872 = vmatpush.bf16.msra.mxu0 %v778
      %873 = vmatpush.bf16.msra.mxu0 %v777
      %874 = vmatpush.bf16.msra.mxu0 %v776
      %875 = vmatpush.bf16.msra.mxu0 %v775
      %876 = vmatmul.bf16.gmra.mxu0 %v533
      %v877 = vpop.f32.mrf.mxu0
      %v878 = vadd.f32 %v864, %v877
      %v879 = vpop.f32.mrf.mxu0
      %v880 = vadd.f32 %v866, %v879
      %881 = vdwg.mxu0
      %882 = vmatpush.bf16.msra.mxu0 0
      %883 = vmatpush.bf16.msra.mxu0 0
      %884 = vmatpush.bf16.msra.mxu0 0
      %885 = vmatpush.bf16.msra.mxu0 0
      %886 = vmatpush.bf16.msra.mxu0 %v786
      %887 = vmatpush.bf16.msra.mxu0 %v785
      %888 = vmatpush.bf16.msra.mxu0 %v784
      %889 = vmatpush.bf16.msra.mxu0 %v783
      %890 = vmatmul.bf16.gmra.mxu0 %v824
      %v891 = vpop.f32.mrf.mxu0
      %v892 = vadd.f32 %v878, %v891
      %v893 = vpop.f32.mrf.mxu0
      %v894 = vadd.f32 %v880, %v893
      %895 = vdwg.mxu0
      %v896 = vsel %vm282, %v892, 0.0
      %v897 = vsel %vm282, %v894, 0.0
      %v898 = vadd.f32 %v896, %v897
      %v899 = vrot.slane %v898, 4
      %v900 = vadd.f32 %v898, %v899
      %v901 = vrot.slane %v900, 2
      %v902 = vadd.f32 %v900, %v901
      %v903 = vrot.slane %v902, 1
      %v904 = vadd.f32 %v902, %v903
      %v905 = vrcp.pop 16.0
      %v906 = vmul.f32 16.0, %v905
      %v907 = vsub.f32 1.0, %v906
      %v908 = vmul.f32 %v905, %v907
      %v909 = vadd.f32 %v905, %v908
      %vm910 = vweird.f32 %v905
      %v911 = vsel %vm910, %v905, %v909
      %v912 = vmul.f32 %v904, %v911
      %v913 = vsub.f32 %v892, %v912
      %v914 = vsub.f32 %v894, %v912
      %v915 = vmul.f32 %v913, %v913
      %v916 = vmul.f32 %v914, %v914
      %v917 = vsel %vm282, %v915, 0.0
      %v918 = vsel %vm282, %v916, 0.0
      %v919 = vadd.f32 %v917, %v918
      %v920 = vrot.slane %v919, 4
      %v921 = vadd.f32 %v919, %v920
      %v922 = vrot.slane %v921, 2
      %v923 = vadd.f32 %v921, %v922
      %v924 = vrot.slane %v923, 1
      %v925 = vadd.f32 %v923, %v924
      %v926 = vmul.f32 %v925, %v911
      %v927 = vadd.f32 %v926, 1e-05
      %v928 = vrsqrt.pop %v927
      %v929 = vmul.f32 %v928, %v927
      %v930 = vmul.f32 %v929, %v928
      %v931 = vmul.f32 0.5, %v930
      %v932 = vsub.f32 1.5, %v931
      %v933 = vmul.f32 %v928, %v932
      %vm934 = vweird.f32 %v927
      %vm935 = vweird.f32 %v928
      %vm936 = vmor %vm934, %vm935
      %v937 = vsel %vm936, %v928, %v933
      %v938 = vmul.f32 %v913, %v937
      %v939 = vmul.f32 %v914, %v937
      %vm940 = vcmp.ge.f32.partialorder %v938, 0.0
      %vm941 = vcmp.ge.f32.partialorder %v939, 0.0
      %v942 = vmul.f32 %v938, 0.2
      %v943 = vmul.f32 %v939, 0.2
      %v944 = vsel %vm940, %v938, %v942
      %v945 = vsel %vm941, %v939, %v943
      %946 = vst.msk [vmem:[#allocation2] sm:$0xff] %vm282, 0.0
      %947 = vst.msk [vmem:[#allocation2 + $0x8] sm:$0xff] %vm282, 0.0
      %948 = vst.msk [vmem:[#allocation2 + $0x10] sm:$0xf] %vm285, 0.0
      %949 = vst.msk [vmem:[#allocation2 + $0x18] sm:$0xff] %vm282, 0.0
      %950 = vst.msk [vmem:[#allocation2 + $0x20] sm:$0xff] %vm282, 0.0
      %951 = vst.msk [vmem:[#allocation2 + $0x28] sm:$0xf] %vm285, 0.0
      %952 = vst.msk [vmem:[#allocation2 + $0x30] sm:$0xff] %vm282, 0.0
      %953 = vst.msk [vmem:[#allocation2 + $0x38] sm:$0xff] %vm282, 0.0
      %954 = vst.msk [vmem:[#allocation2 + $0x40] sm:$0xf] %vm285, 0.0
      %955 = vst.msk [vmem:[#allocation2 + $0x48] sm:$0xff] %vm282, 0.0
      %956 = vst.msk [vmem:[#allocation2 + $0x50] sm:$0xff] %vm282, 0.0
      %957 = vst.msk [vmem:[#allocation2 + $0x58] sm:$0xf] %vm285, 0.0
      %958 = vst.msk [vmem:[#allocation2 + $0x60] sm:$0xff] %vm282, 0.0
      %959 = vst.msk [vmem:[#allocation2 + $0x68] sm:$0xff] %vm282, 0.0
      %960 = vst.msk [vmem:[#allocation2 + $0x70] sm:$0xf] %vm285, 0.0
      %961 = vst.msk [vmem:[#allocation2 + $0x78] sm:$0xff] %vm282, 0.0
      %962 = vst.msk [vmem:[#allocation2 + $0x80] sm:$0xff] %vm282, 0.0
      %963 = vst.msk [vmem:[#allocation2 + $0x88] sm:$0xf] %vm285, 0.0
      %964 = vst.msk [vmem:[#allocation2 + $0x90] sm:$0xff] %vm282, 0.0
      %965 = vst.msk [vmem:[#allocation2 + $0x98] sm:$0xff] %vm282, 0.0
      %966 = vst.msk [vmem:[#allocation2 + $0xa0] sm:$0xf] %vm285, 0.0
      %967 = vst.msk [vmem:[#allocation2 + $0xa8] sm:$0xff] %vm282, 0.0
      %968 = vst.msk [vmem:[#allocation2 + $0xb0] sm:$0xff] %vm282, 0.0
      %969 = vst.msk [vmem:[#allocation2 + $0xb8] sm:$0xf] %vm285, 0.0
      %970 = vst.msk [vmem:[#allocation2 + $0xc0] sm:$0xff] %vm282, 0.0
      %971 = vst.msk [vmem:[#allocation2 + $0xc8] sm:$0xff] %vm282, 0.0
      %972 = vst.msk [vmem:[#allocation2 + $0xd0] sm:$0xf] %vm285, 0.0
      %973 = vst.msk [vmem:[#allocation2 + $0xd8] sm:$0xff] %vm282, 0.0
      %974 = vst.msk [vmem:[#allocation2 + $0xe0] sm:$0xff] %vm282, 0.0
      %975 = vst.msk [vmem:[#allocation2 + $0xe8] sm:$0xf] %vm285, 0.0
      %976 = vst.msk [vmem:[#allocation2 + $0xf0] sm:$0xff] %vm282, 0.0
      %977 = vst.msk [vmem:[#allocation2 + $0xf8] sm:$0xff] %vm282, 0.0
      %978 = vst.msk [vmem:[#allocation2 + $0x100] sm:$0xf] %vm285, 0.0
      %979 = vst.msk [vmem:[#allocation2 + $0x108] sm:$0xff] %vm282, 0.0
      %980 = vst.msk [vmem:[#allocation2 + $0x110] sm:$0xff] %vm282, 0.0
      %981 = vst.msk [vmem:[#allocation2 + $0x118] sm:$0xf] %vm285, 0.0
      %982 = vst.msk [vmem:[#allocation2 + $0x120] sm:$0xff] %vm282, 0.0
      %983 = vst.msk [vmem:[#allocation2 + $0x128] sm:$0xff] %vm282, 0.0
      %984 = vst.msk [vmem:[#allocation2 + $0x130] sm:$0xf] %vm285, 0.0
      %985 = vst.msk [vmem:[#allocation2 + $0x138] sm:$0xff] %vm282, 0.0
      %986 = vst.msk [vmem:[#allocation2 + $0x140] sm:$0xff] %vm282, 0.0
      %987 = vst.msk [vmem:[#allocation2 + $0x148] sm:$0xf] %vm285, 0.0
      %988 = vst.msk [vmem:[#allocation2 + $0x150] sm:$0xff] %vm282, 0.0
      %989 = vst.msk [vmem:[#allocation2 + $0x158] sm:$0xff] %vm282, 0.0
      %990 = vst.msk [vmem:[#allocation2 + $0x160] sm:$0xf] %vm285, 0.0
      %991 = vst.msk [vmem:[#allocation2 + $0x168] sm:$0xff] %vm282, 0.0
      %992 = vst.msk [vmem:[#allocation2 + $0x170] sm:$0xff] %vm282, 0.0
      %993 = vst.msk [vmem:[#allocation2 + $0x178] sm:$0xf] %vm285, 0.0
      %994 = vst.msk [vmem:[#allocation2 + $0x180] sm:$0xff] %vm282, 0.0
      %995 = vst.msk [vmem:[#allocation2 + $0x188] sm:$0xff] %vm282, 0.0
      %996 = vst.msk [vmem:[#allocation2 + $0x190] sm:$0xf] %vm285, 0.0
      %997 = vst.msk [vmem:[#allocation2 + $0x198] sm:$0xff] %vm282, 0.0
      %998 = vst.msk [vmem:[#allocation2 + $0x1a0] sm:$0xff] %vm282, 0.0
      %999 = vst.msk [vmem:[#allocation2 + $0x1a8] sm:$0xf] %vm285, 0.0
      %1000 = vst.msk [vmem:[#allocation2 + $0x1b0] sm:$0xff] %vm282, 0.0
      %1001 = vst.msk [vmem:[#allocation2 + $0x1b8] sm:$0xff] %vm282, 0.0
      %1002 = vst.msk [vmem:[#allocation2 + $0x1c0] sm:$0xf] %vm285, 0.0
      %1003 = vst.msk [vmem:[#allocation2 + $0x1c8] sm:$0xff] %vm282, 0.0
      %1004 = vst.msk [vmem:[#allocation2 + $0x1d0] sm:$0xff] %vm282, 0.0
      %1005 = vst.msk [vmem:[#allocation2 + $0x1d8] sm:$0xf] %vm285, 0.0
      %1006 = vst.msk [vmem:[%s346 + $0x2] sm:$0xf] %vm285, %v944
      %1007 = vst.msk [vmem:[%s349 - $0x2] sm:$0xf0] %vm347, %v944
      %1008 = vst.msk [vmem:[%s351 + $0x2] sm:$0xf] %vm285, %v945
      %1009 = vst.msk [vmem:[%s476 - $0x2] sm:$0xf0] %vm347, %v945
      %v1010 = vld [vmem:[#allocation2] sm:$0xf]
      %v1011 = vld [vmem:[#allocation2 + $0x2] sm:$0xf]
      %v1012 = vld [vmem:[#allocation2 + $0x4] sm:$0xf]
      %v1013 = vld [vmem:[%s346] sm:$0xf]
      %v1014 = vld [vmem:[%s346 + $0x2] sm:$0xf]
      %v1015 = vld [vmem:[%s346 + $0x4] sm:$0xf]
      %v1016 = vld [vmem:[%s351] sm:$0xf]
      %v1017 = vld [vmem:[%s351 + $0x2] sm:$0xf]
      %v1018 = vld [vmem:[%s351 + $0x4] sm:$0xf]
      %1020 = vrot.lane.b32.xlu0 %v1011, 64
      %v1021 = vpop.permute.xlu0 %1020
      %1024 = vrot.lane.b32.xlu0 %v1013, 64
      %v1025 = vpop.permute.xlu0 %1024
      %1028 = vrot.lane.b32.xlu0 %v1015, 64
      %v1029 = vpop.permute.xlu0 %1028
      %1032 = vrot.lane.b32.xlu0 %v1017, 64
      %v1033 = vpop.permute.xlu0 %1032
      %v1035 = vsel %vm282, %v1010, %v1021
      %v1036 = vsel %vm282, %v1012, %v1025
      %v1037 = vsel %vm282, %v1014, %v1029
      %v1038 = vsel %vm282, %v1016, %v1033
      %1039 = vst [vmem:[#allocation3] sm:$0xf] %v1035
      %1040 = vst [vmem:[#allocation3 + $0x8] sm:$0xf] %v1036
      %1041 = vst [vmem:[#allocation3 + $0x10] sm:$0xf] %v1037
      %1042 = vst [vmem:[#allocation3 + $0x18] sm:$0xf] %v1038
      %1043 = vst.msk [vmem:[#allocation3 + $0x20] sm:$0xf] %vm285, %v1018
      %v1044 = vld [vmem:[%s344] sm:$0xf]
      %v1045 = vld [vmem:[%s344 + $0x2] sm:$0xf]
      %v1046 = vld [vmem:[%s344 + $0x4] sm:$0xf]
      %v1047 = vld [vmem:[%s349] sm:$0xf]
      %v1048 = vld [vmem:[%s349 + $0x2] sm:$0xf]
      %v1049 = vld [vmem:[%s349 + $0x4] sm:$0xf]
      %v1050 = vld [vmem:[%s476] sm:$0xf]
      %v1051 = vld [vmem:[%s476 + $0x2] sm:$0xf]
      %v1052 = vld [vmem:[%s476 + $0x4] sm:$0xf]
      %1054 = vrot.lane.b32.xlu0 %v1045, 64
      %v1055 = vpop.permute.xlu0 %1054
      %1058 = vrot.lane.b32.xlu0 %v1047, 64
      %v1059 = vpop.permute.xlu0 %1058
      %1062 = vrot.lane.b32.xlu0 %v1049, 64
      %v1063 = vpop.permute.xlu0 %1062
      %1066 = vrot.lane.b32.xlu0 %v1051, 64
      %v1067 = vpop.permute.xlu0 %1066
      %v1069 = vsel %vm282, %v1044, %v1055
      %v1070 = vsel %vm282, %v1046, %v1059
      %v1071 = vsel %vm282, %v1048, %v1063
      %v1072 = vsel %vm282, %v1050, %v1067
      %v1078 = vrot.slane %v1069, 4
      %v1079 = vrot.slane %v1070, 4
      %v1080 = vrot.slane %v1071, 4
      %v1081 = vrot.slane %v1072, 4
      %v1082 = vrot.slane %v1052, 4
      %1088 = vst [vmem:[#allocation3] sm:$0xf0] %v1078
      %1089 = vst [vmem:[#allocation3 + $0x8] sm:$0xf0] %v1079
      %1090 = vst [vmem:[#allocation3 + $0x10] sm:$0xf0] %v1080
      %1091 = vst [vmem:[#allocation3 + $0x18] sm:$0xf0] %v1081
      %1092 = vst.msk [vmem:[#allocation3 + $0x20] sm:$0xf0] %vm347, %v1082
      %v1093 = vld [vmem:[%s346] sm:$0xf]
      %v1094 = vld [vmem:[%s346 + $0x2] sm:$0xf]
      %v1095 = vld [vmem:[%s346 + $0x4] sm:$0xf]
      %v1096 = vld [vmem:[%s351] sm:$0xf]
      %v1097 = vld [vmem:[%s351 + $0x2] sm:$0xf]
      %v1098 = vld [vmem:[%s351 + $0x4] sm:$0xf]
      %s1099 = scalar_lea.vmem [#allocation2], 144
      %v1100 = vld [vmem:[%s1099] sm:$0xf]
      %v1101 = vld [vmem:[%s1099 + $0x2] sm:$0xf]
      %v1102 = vld [vmem:[%s1099 + $0x4] sm:$0xf]
      %1104 = vrot.lane.b32.xlu0 %v1094, 64
      %v1105 = vpop.permute.xlu0 %1104
      %1108 = vrot.lane.b32.xlu0 %v1096, 64
      %v1109 = vpop.permute.xlu0 %1108
      %1112 = vrot.lane.b32.xlu0 %v1098, 64
      %v1113 = vpop.permute.xlu0 %1112
      %1116 = vrot.lane.b32.xlu0 %v1101, 64
      %v1117 = vpop.permute.xlu0 %1116
      %v1119 = vsel %vm282, %v1093, %v1105
      %v1120 = vsel %vm282, %v1095, %v1109
      %v1121 = vsel %vm282, %v1097, %v1113
      %v1122 = vsel %vm282, %v1100, %v1117
      %1123 = vst [vmem:[#allocation3 + $0x40] sm:$0xf] %v1119
      %1124 = vst [vmem:[#allocation3 + $0x48] sm:$0xf] %v1120
      %1125 = vst [vmem:[#allocation3 + $0x50] sm:$0xf] %v1121
      %1126 = vst [vmem:[#allocation3 + $0x58] sm:$0xf] %v1122
      %1127 = vst.msk [vmem:[#allocation3 + $0x60] sm:$0xf] %vm285, %v1102
      %v1128 = vld [vmem:[%s349] sm:$0xf]
      %v1129 = vld [vmem:[%s349 + $0x2] sm:$0xf]
      %v1130 = vld [vmem:[%s349 + $0x4] sm:$0xf]
      %v1131 = vld [vmem:[%s476] sm:$0xf]
      %v1132 = vld [vmem:[%s476 + $0x2] sm:$0xf]
      %v1133 = vld [vmem:[%s476 + $0x4] sm:$0xf]
      %s1134 = scalar_lea.vmem [#allocation2], 168
      %v1135 = vld [vmem:[%s1134] sm:$0xf]
      %v1136 = vld [vmem:[%s1134 + $0x2] sm:$0xf]
      %v1137 = vld [vmem:[%s1134 + $0x4] sm:$0xf]
      %1139 = vrot.lane.b32.xlu0 %v1129, 64
      %v1140 = vpop.permute.xlu0 %1139
      %1143 = vrot.lane.b32.xlu0 %v1131, 64
      %v1144 = vpop.permute.xlu0 %1143
      %1147 = vrot.lane.b32.xlu0 %v1133, 64
      %v1148 = vpop.permute.xlu0 %1147
      %1151 = vrot.lane.b32.xlu0 %v1136, 64
      %v1152 = vpop.permute.xlu0 %1151
      %v1154 = vsel %vm282, %v1128, %v1140
      %v1155 = vsel %vm282, %v1130, %v1144
      %v1156 = vsel %vm282, %v1132, %v1148
      %v1157 = vsel %vm282, %v1135, %v1152
      %v1163 = vrot.slane %v1154, 4
      %v1164 = vrot.slane %v1155, 4
      %v1165 = vrot.slane %v1156, 4
      %v1166 = vrot.slane %v1157, 4
      %v1167 = vrot.slane %v1137, 4
      %1173 = vst [vmem:[#allocation3 + $0x40] sm:$0xf0] %v1163
      %1174 = vst [vmem:[#allocation3 + $0x48] sm:$0xf0] %v1164
      %1175 = vst [vmem:[#allocation3 + $0x50] sm:$0xf0] %v1165
      %1176 = vst [vmem:[#allocation3 + $0x58] sm:$0xf0] %v1166
      %1177 = vst.msk [vmem:[#allocation3 + $0x60] sm:$0xf0] %vm347, %v1167
      %v1178 = vld [vmem:[#allocation3] sm:$0xff]
      %v1179 = vld [vmem:[#allocation3 + $0x8] sm:$0xff]
      %v1180 = vld [vmem:[#allocation3 + $0x10] sm:$0xff]
      %v1181 = vld [vmem:[#allocation3 + $0x18] sm:$0xff]
      %v1182 = vld [vmem:[#allocation3 + $0x20] sm:$0xff]
      %v1183 = vld [vmem:[#allocation3 + $0x40] sm:$0xff]
      %v1184 = vld [vmem:[#allocation3 + $0x48] sm:$0xff]
      %v1185 = vld [vmem:[#allocation3 + $0x50] sm:$0xff]
      %v1186 = vld [vmem:[#allocation3 + $0x58] sm:$0xff]
      %v1187 = vld [vmem:[#allocation3 + $0x60] sm:$0xff]
      %v1188 = vpack.c.bf16 %v1183, %v1178
      %v1189 = vpack.c.bf16 %v1184, %v1179
      %v1190 = vpack.c.bf16 %v1185, %v1180
      %v1191 = vpack.c.bf16 %v1186, %v1181
      %v1192 = vpack.c.bf16 %v1187, %v1182
      %v1193 = vld [vmem:[%s2] sm:$0xf]
      %v1194 = vld [vmem:[%s2 + $0x4] sm:$0xf]
      %v1195 = vld [vmem:[%s2 + $0x8] sm:$0xf]
      %v1196 = vld [vmem:[%s2 + $0xc] sm:$0xf]
      %v1197 = vld [vmem:[%s2 + $0x10] sm:$0xf]
      %v1198 = vld [vmem:[%s2 + $0x14] sm:$0xf]
      %v1199 = vld [vmem:[%s2 + $0x18] sm:$0xf]
      %v1200 = vld [vmem:[%s2 + $0x1c] sm:$0xf]
      %v1201 = vld [vmem:[%s2 + $0x20] sm:$0xf]
      %v1202 = vld [vmem:[%s2 + $0x24] sm:$0xf]
      %v1203 = vld [vmem:[%s2 + $0x28] sm:$0xf]
      %v1204 = vld [vmem:[%s2 + $0x2c] sm:$0xf]
      %v1205 = vld [vmem:[%s2 + $0x30] sm:$0xf]
      %v1206 = vld [vmem:[%s2 + $0x34] sm:$0xf]
      %v1207 = vld [vmem:[%s2 + $0x38] sm:$0xf]
      %v1208 = vld [vmem:[%s2 + $0x3c] sm:$0xf]
      %v1209 = vld [vmem:[%s2 + $0x40] sm:$0xf]
      %v1210 = vld [vmem:[%s2 + $0x44] sm:$0xf]
      %v1211 = vld [vmem:[%s2 + $0x48] sm:$0xf]
      %v1212 = vld [vmem:[%s2 + $0x4c] sm:$0xf]
      %v1213 = vld [vmem:[%s2 + $0x50] sm:$0xf]
      %v1214 = vld [vmem:[%s2 + $0x54] sm:$0xf]
      %v1215 = vld [vmem:[%s2 + $0x58] sm:$0xf]
      %v1216 = vld [vmem:[%s2 + $0x5c] sm:$0xf]
      %v1217 = vld [vmem:[%s2 + $0x60] sm:$0xf]
      %v1218 = vld [vmem:[%s2 + $0x64] sm:$0xf]
      %v1219 = vld [vmem:[%s2 + $0x68] sm:$0xf]
      %v1220 = vld [vmem:[%s2 + $0x6c] sm:$0xf]
      %v1221 = vld [vmem:[%s2 + $0x70] sm:$0xf]
      %v1222 = vld [vmem:[%s2 + $0x74] sm:$0xf]
      %v1223 = vld [vmem:[%s2 + $0x78] sm:$0xf]
      %v1224 = vld [vmem:[%s2 + $0x7c] sm:$0xf]
      %v1225 = vld [vmem:[%s2 + $0x80] sm:$0xf]
      %v1226 = vld [vmem:[%s2 + $0x84] sm:$0xf]
      %v1227 = vld [vmem:[%s2 + $0x88] sm:$0xf]
      %v1228 = vld [vmem:[%s2 + $0x8c] sm:$0xf]
      %v1229 = vld [vmem:[%s2 + $0x90] sm:$0xf]
      %v1230 = vld [vmem:[%s2 + $0x94] sm:$0xf]
      %v1231 = vld [vmem:[%s2 + $0x98] sm:$0xf]
      %v1232 = vld [vmem:[%s2 + $0x9c] sm:$0xf]
      %v1233 = vld [vmem:[%s2 + $0xa0] sm:$0xf]
      %v1234 = vld [vmem:[%s2 + $0xa4] sm:$0xf]
      %v1235 = vld [vmem:[%s2 + $0xa8] sm:$0xf]
      %v1236 = vld [vmem:[%s2 + $0xac] sm:$0xf]
      %v1237 = vld [vmem:[%s2 + $0xb0] sm:$0xf]
      %v1238 = vld [vmem:[%s2 + $0xb4] sm:$0xf]
      %v1239 = vld [vmem:[%s2 + $0xb8] sm:$0xf]
      %v1240 = vld [vmem:[%s2 + $0xbc] sm:$0xf]
      %v1241 = vld [vmem:[%s2 + $0xc0] sm:$0xf]
      %v1242 = vld [vmem:[%s2 + $0xc4] sm:$0xf]
      %v1243 = vld [vmem:[%s2 + $0xc8] sm:$0xf]
      %v1244 = vld [vmem:[%s2 + $0xcc] sm:$0xf]
      %v1245 = vld [vmem:[%s2 + $0xd0] sm:$0xf]
      %v1246 = vld [vmem:[%s2 + $0xd4] sm:$0xf]
      %v1247 = vld [vmem:[%s2 + $0xd8] sm:$0xf]
      %v1248 = vld [vmem:[%s2 + $0xdc] sm:$0xf]
      %v1249 = vld [vmem:[%s2 + $0xe0] sm:$0xf]
      %v1250 = vld [vmem:[%s2 + $0xe4] sm:$0xf]
      %v1251 = vld [vmem:[%s2 + $0xe8] sm:$0xf]
      %v1252 = vld [vmem:[%s2 + $0xec] sm:$0xf]
      %v1253 = vld [vmem:[%s2 + $0xf0] sm:$0xf]
      %v1254 = vld [vmem:[%s2 + $0xf4] sm:$0xf]
      %v1255 = vld [vmem:[%s2 + $0xf8] sm:$0xf]
      %v1256 = vld [vmem:[%s2 + $0xfc] sm:$0xf]
      %v1257 = vld [vmem:[%s2 + $0x100] sm:$0xf]
      %v1258 = vld [vmem:[%s2 + $0x104] sm:$0xf]
      %v1259 = vld [vmem:[%s2 + $0x108] sm:$0xf]
      %v1260 = vld [vmem:[%s2 + $0x10c] sm:$0xf]
      %v1261 = vld [vmem:[%s2 + $0x110] sm:$0xf]
      %v1262 = vld [vmem:[%s2 + $0x114] sm:$0xf]
      %v1263 = vld [vmem:[%s2 + $0x118] sm:$0xf]
      %v1264 = vld [vmem:[%s2 + $0x11c] sm:$0xf]
      %v1337 = vunpack.c.l.b16 %v1193
      %v1338 = vunpack.c.l.b16 %v1194
      %v1339 = vunpack.c.l.b16 %v1195
      %v1340 = vunpack.c.l.b16 %v1196
      %v1341 = vunpack.c.l.b16 %v1197
      %v1342 = vunpack.c.l.b16 %v1198
      %v1343 = vunpack.c.l.b16 %v1199
      %v1344 = vunpack.c.l.b16 %v1200
      %v1345 = vunpack.c.l.b16 %v1201
      %v1346 = vunpack.c.l.b16 %v1202
      %v1347 = vunpack.c.l.b16 %v1203
      %v1348 = vunpack.c.l.b16 %v1204
      %v1349 = vunpack.c.l.b16 %v1205
      %v1350 = vunpack.c.l.b16 %v1206
      %v1351 = vunpack.c.l.b16 %v1207
      %v1352 = vunpack.c.l.b16 %v1208
      %v1353 = vunpack.c.l.b16 %v1209
      %v1354 = vunpack.c.l.b16 %v1210
      %v1355 = vunpack.c.l.b16 %v1211
      %v1356 = vunpack.c.l.b16 %v1212
      %v1357 = vunpack.c.l.b16 %v1213
      %v1358 = vunpack.c.l.b16 %v1214
      %v1359 = vunpack.c.l.b16 %v1215
      %v1360 = vunpack.c.l.b16 %v1216
      %v1361 = vunpack.c.l.b16 %v1217
      %v1362 = vunpack.c.l.b16 %v1218
      %v1363 = vunpack.c.l.b16 %v1219
      %v1364 = vunpack.c.l.b16 %v1220
      %v1365 = vunpack.c.l.b16 %v1221
      %v1366 = vunpack.c.l.b16 %v1222
      %v1367 = vunpack.c.l.b16 %v1223
      %v1368 = vunpack.c.l.b16 %v1224
      %v1369 = vunpack.c.l.b16 %v1225
      %v1370 = vunpack.c.l.b16 %v1226
      %v1371 = vunpack.c.l.b16 %v1227
      %v1372 = vunpack.c.l.b16 %v1228
      %v1373 = vunpack.c.l.b16 %v1229
      %v1374 = vunpack.c.l.b16 %v1230
      %v1375 = vunpack.c.l.b16 %v1231
      %v1376 = vunpack.c.l.b16 %v1232
      %v1377 = vunpack.c.l.b16 %v1233
      %v1378 = vunpack.c.l.b16 %v1234
      %v1379 = vunpack.c.l.b16 %v1235
      %v1380 = vunpack.c.l.b16 %v1236
      %v1381 = vunpack.c.l.b16 %v1237
      %v1382 = vunpack.c.l.b16 %v1238
      %v1383 = vunpack.c.l.b16 %v1239
      %v1384 = vunpack.c.l.b16 %v1240
      %v1385 = vunpack.c.l.b16 %v1241
      %v1386 = vunpack.c.l.b16 %v1242
      %v1387 = vunpack.c.l.b16 %v1243
      %v1388 = vunpack.c.l.b16 %v1244
      %v1389 = vunpack.c.l.b16 %v1245
      %v1390 = vunpack.c.l.b16 %v1246
      %v1391 = vunpack.c.l.b16 %v1247
      %v1392 = vunpack.c.l.b16 %v1248
      %v1393 = vunpack.c.l.b16 %v1249
      %v1394 = vunpack.c.l.b16 %v1250
      %v1395 = vunpack.c.l.b16 %v1251
      %v1396 = vunpack.c.l.b16 %v1252
      %v1397 = vunpack.c.l.b16 %v1253
      %v1398 = vunpack.c.l.b16 %v1254
      %v1399 = vunpack.c.l.b16 %v1255
      %v1400 = vunpack.c.l.b16 %v1256
      %v1401 = vunpack.c.l.b16 %v1257
      %v1402 = vunpack.c.l.b16 %v1258
      %v1403 = vunpack.c.l.b16 %v1259
      %v1404 = vunpack.c.l.b16 %v1260
      %v1405 = vunpack.c.l.b16 %v1261
      %v1406 = vunpack.c.l.b16 %v1262
      %v1407 = vunpack.c.l.b16 %v1263
      %v1408 = vunpack.c.l.b16 %v1264
      %v1409 = vpack.c.b16 %v1338, %v1337
      %v1410 = vpack.c.b16 %v1340, %v1339
      %v1411 = vpack.c.b16 %v1342, %v1341
      %v1412 = vpack.c.b16 %v1344, %v1343
      %v1413 = vpack.c.b16 %v1346, %v1345
      %v1414 = vpack.c.b16 %v1348, %v1347
      %v1415 = vpack.c.b16 %v1350, %v1349
      %v1416 = vpack.c.b16 %v1352, %v1351
      %v1417 = vpack.c.b16 %v1354, %v1353
      %v1418 = vpack.c.b16 %v1356, %v1355
      %v1419 = vpack.c.b16 %v1358, %v1357
      %v1420 = vpack.c.b16 %v1360, %v1359
      %v1421 = vpack.c.b16 %v1362, %v1361
      %v1422 = vpack.c.b16 %v1364, %v1363
      %v1423 = vpack.c.b16 %v1366, %v1365
      %v1424 = vpack.c.b16 %v1368, %v1367
      %v1425 = vpack.c.b16 %v1370, %v1369
      %v1426 = vpack.c.b16 %v1372, %v1371
      %v1427 = vpack.c.b16 %v1374, %v1373
      %v1428 = vpack.c.b16 %v1376, %v1375
      %v1429 = vpack.c.b16 %v1378, %v1377
      %v1430 = vpack.c.b16 %v1380, %v1379
      %v1431 = vpack.c.b16 %v1382, %v1381
      %v1432 = vpack.c.b16 %v1384, %v1383
      %v1433 = vpack.c.b16 %v1386, %v1385
      %v1434 = vpack.c.b16 %v1388, %v1387
      %v1435 = vpack.c.b16 %v1390, %v1389
      %v1436 = vpack.c.b16 %v1392, %v1391
      %v1437 = vpack.c.b16 %v1394, %v1393
      %v1438 = vpack.c.b16 %v1396, %v1395
      %v1439 = vpack.c.b16 %v1398, %v1397
      %v1440 = vpack.c.b16 %v1400, %v1399
      %v1441 = vpack.c.b16 %v1402, %v1401
      %v1442 = vpack.c.b16 %v1404, %v1403
      %v1443 = vpack.c.b16 %v1406, %v1405
      %v1444 = vpack.c.b16 %v1408, %v1407
      %v1482 = vsel %vm282, %v1192, 0
      %1484 = vmatpush.bf16.msra.mxu0 %v1416
      %1485 = vmatpush.bf16.msra.mxu0 %v1415
      %1486 = vmatpush.bf16.msra.mxu0 %v1414
      %1487 = vmatpush.bf16.msra.mxu0 %v1413
      %1488 = vmatpush.bf16.msra.mxu0 %v1412
      %1489 = vmatpush.bf16.msra.mxu0 %v1411
      %1490 = vmatpush.bf16.msra.mxu0 %v1410
      %1491 = vmatpush.bf16.msra.mxu0 %v1409
      %1492 = vmatmul.bf16.gmra.mxu0 %v1188
      %v1493 = vpop.f32.mrf.mxu0
      %v1494 = vadd.f32 0.0, %v1493
      %v1495 = vpop.f32.mrf.mxu0
      %v1496 = vadd.f32 0.0, %v1495
      %1497 = vdwg.mxu0
      %1498 = vmatpush.bf16.msra.mxu0 %v1424
      %1499 = vmatpush.bf16.msra.mxu0 %v1423
      %1500 = vmatpush.bf16.msra.mxu0 %v1422
      %1501 = vmatpush.bf16.msra.mxu0 %v1421
      %1502 = vmatpush.bf16.msra.mxu0 %v1420
      %1503 = vmatpush.bf16.msra.mxu0 %v1419
      %1504 = vmatpush.bf16.msra.mxu0 %v1418
      %1505 = vmatpush.bf16.msra.mxu0 %v1417
      %1506 = vmatmul.bf16.gmra.mxu0 %v1189
      %v1507 = vpop.f32.mrf.mxu0
      %v1508 = vadd.f32 %v1494, %v1507
      %v1509 = vpop.f32.mrf.mxu0
      %v1510 = vadd.f32 %v1496, %v1509
      %1511 = vdwg.mxu0
      %1512 = vmatpush.bf16.msra.mxu0 %v1432
      %1513 = vmatpush.bf16.msra.mxu0 %v1431
      %1514 = vmatpush.bf16.msra.mxu0 %v1430
      %1515 = vmatpush.bf16.msra.mxu0 %v1429
      %1516 = vmatpush.bf16.msra.mxu0 %v1428
      %1517 = vmatpush.bf16.msra.mxu0 %v1427
      %1518 = vmatpush.bf16.msra.mxu0 %v1426
      %1519 = vmatpush.bf16.msra.mxu0 %v1425
      %1520 = vmatmul.bf16.gmra.mxu0 %v1190
      %v1521 = vpop.f32.mrf.mxu0
      %v1522 = vadd.f32 %v1508, %v1521
      %v1523 = vpop.f32.mrf.mxu0
      %v1524 = vadd.f32 %v1510, %v1523
      %1525 = vdwg.mxu0
      %1526 = vmatpush.bf16.msra.mxu0 %v1440
      %1527 = vmatpush.bf16.msra.mxu0 %v1439
      %1528 = vmatpush.bf16.msra.mxu0 %v1438
      %1529 = vmatpush.bf16.msra.mxu0 %v1437
      %1530 = vmatpush.bf16.msra.mxu0 %v1436
      %1531 = vmatpush.bf16.msra.mxu0 %v1435
      %1532 = vmatpush.bf16.msra.mxu0 %v1434
      %1533 = vmatpush.bf16.msra.mxu0 %v1433
      %1534 = vmatmul.bf16.gmra.mxu0 %v1191
      %v1535 = vpop.f32.mrf.mxu0
      %v1536 = vadd.f32 %v1522, %v1535
      %v1537 = vpop.f32.mrf.mxu0
      %v1538 = vadd.f32 %v1524, %v1537
      %1539 = vdwg.mxu0
      %1540 = vmatpush.bf16.msra.mxu0 0
      %1541 = vmatpush.bf16.msra.mxu0 0
      %1542 = vmatpush.bf16.msra.mxu0 0
      %1543 = vmatpush.bf16.msra.mxu0 0
      %1544 = vmatpush.bf16.msra.mxu0 %v1444
      %1545 = vmatpush.bf16.msra.mxu0 %v1443
      %1546 = vmatpush.bf16.msra.mxu0 %v1442
      %1547 = vmatpush.bf16.msra.mxu0 %v1441
      %1548 = vmatmul.bf16.gmra.mxu0 %v1482
      %v1549 = vpop.f32.mrf.mxu0
      %v1550 = vadd.f32 %v1536, %v1549
      %v1551 = vpop.f32.mrf.mxu0
      %v1552 = vadd.f32 %v1538, %v1551
      %1553 = vdwg.mxu0
      %v1554 = vsel %vm282, %v1550, 0.0
      %v1555 = vsel %vm282, %v1552, 0.0
      %v1556 = vadd.f32 %v1554, %v1555
      %v1557 = vrot.slane %v1556, 4
      %v1558 = vadd.f32 %v1556, %v1557
      %v1559 = vrot.slane %v1558, 2
      %v1560 = vadd.f32 %v1558, %v1559
      %v1561 = vrot.slane %v1560, 1
      %v1562 = vadd.f32 %v1560, %v1561
      %v1563 = vmul.f32 %v1562, %v911
      %v1564 = vsub.f32 %v1550, %v1563
      %v1565 = vsub.f32 %v1552, %v1563
      %v1566 = vmul.f32 %v1564, %v1564
      %v1567 = vmul.f32 %v1565, %v1565
      %v1568 = vsel %vm282, %v1566, 0.0
      %v1569 = vsel %vm282, %v1567, 0.0
      %v1570 = vadd.f32 %v1568, %v1569
      %v1571 = vrot.slane %v1570, 4
      %v1572 = vadd.f32 %v1570, %v1571
      %v1573 = vrot.slane %v1572, 2
      %v1574 = vadd.f32 %v1572, %v1573
      %v1575 = vrot.slane %v1574, 1
      %v1576 = vadd.f32 %v1574, %v1575
      %v1577 = vmul.f32 %v1576, %v911
      %v1578 = vadd.f32 %v1577, 1e-05
      %v1579 = vrsqrt.pop %v1578
      %v1580 = vmul.f32 %v1579, %v1578
      %v1581 = vmul.f32 %v1580, %v1579
      %v1582 = vmul.f32 0.5, %v1581
      %v1583 = vsub.f32 1.5, %v1582
      %v1584 = vmul.f32 %v1579, %v1583
      %vm1585 = vweird.f32 %v1578
      %vm1586 = vweird.f32 %v1579
      %vm1587 = vmor %vm1585, %vm1586
      %v1588 = vsel %vm1587, %v1579, %v1584
      %v1589 = vmul.f32 %v1564, %v1588
      %v1590 = vmul.f32 %v1565, %v1588
      %vm1591 = vcmp.ge.f32.partialorder %v1589, 0.0
      %vm1592 = vcmp.ge.f32.partialorder %v1590, 0.0
      %v1593 = vmul.f32 %v1589, 0.2
      %v1594 = vmul.f32 %v1590, 0.2
      %v1595 = vsel %vm1591, %v1589, %v1593
      %v1596 = vsel %vm1592, %v1590, %v1594
      %1597 = vst.msk [vmem:[#allocation2] sm:$0xff] %vm282, 0.0
      %1598 = vst.msk [vmem:[#allocation2 + $0x8] sm:$0xff] %vm282, 0.0
      %1599 = vst.msk [vmem:[#allocation2 + $0x10] sm:$0xf] %vm285, 0.0
      %1600 = vst.msk [vmem:[#allocation2 + $0x18] sm:$0xff] %vm282, 0.0
      %1601 = vst.msk [vmem:[#allocation2 + $0x20] sm:$0xff] %vm282, 0.0
      %1602 = vst.msk [vmem:[#allocation2 + $0x28] sm:$0xf] %vm285, 0.0
      %1603 = vst.msk [vmem:[#allocation2 + $0x30] sm:$0xff] %vm282, 0.0
      %1604 = vst.msk [vmem:[#allocation2 + $0x38] sm:$0xff] %vm282, 0.0
      %1605 = vst.msk [vmem:[#allocation2 + $0x40] sm:$0xf] %vm285, 0.0
      %1606 = vst.msk [vmem:[#allocation2 + $0x48] sm:$0xff] %vm282, 0.0
      %1607 = vst.msk [vmem:[#allocation2 + $0x50] sm:$0xff] %vm282, 0.0
      %1608 = vst.msk [vmem:[#allocation2 + $0x58] sm:$0xf] %vm285, 0.0
      %1609 = vst.msk [vmem:[#allocation2 + $0x60] sm:$0xff] %vm282, 0.0
      %1610 = vst.msk [vmem:[#allocation2 + $0x68] sm:$0xff] %vm282, 0.0
      %1611 = vst.msk [vmem:[#allocation2 + $0x70] sm:$0xf] %vm285, 0.0
      %1612 = vst.msk [vmem:[#allocation2 + $0x78] sm:$0xff] %vm282, 0.0
      %1613 = vst.msk [vmem:[#allocation2 + $0x80] sm:$0xff] %vm282, 0.0
      %1614 = vst.msk [vmem:[#allocation2 + $0x88] sm:$0xf] %vm285, 0.0
      %1615 = vst.msk [vmem:[#allocation2 + $0x90] sm:$0xff] %vm282, 0.0
      %1616 = vst.msk [vmem:[#allocation2 + $0x98] sm:$0xff] %vm282, 0.0
      %1617 = vst.msk [vmem:[#allocation2 + $0xa0] sm:$0xf] %vm285, 0.0
      %1618 = vst.msk [vmem:[#allocation2 + $0xa8] sm:$0xff] %vm282, 0.0
      %1619 = vst.msk [vmem:[#allocation2 + $0xb0] sm:$0xff] %vm282, 0.0
      %1620 = vst.msk [vmem:[#allocation2 + $0xb8] sm:$0xf] %vm285, 0.0
      %1621 = vst.msk [vmem:[#allocation2 + $0xc0] sm:$0xff] %vm282, 0.0
      %1622 = vst.msk [vmem:[#allocation2 + $0xc8] sm:$0xff] %vm282, 0.0
      %1623 = vst.msk [vmem:[#allocation2 + $0xd0] sm:$0xf] %vm285, 0.0
      %1624 = vst.msk [vmem:[#allocation2 + $0xd8] sm:$0xff] %vm282, 0.0
      %1625 = vst.msk [vmem:[#allocation2 + $0xe0] sm:$0xff] %vm282, 0.0
      %1626 = vst.msk [vmem:[#allocation2 + $0xe8] sm:$0xf] %vm285, 0.0
      %1627 = vst.msk [vmem:[#allocation2 + $0xf0] sm:$0xff] %vm282, 0.0
      %1628 = vst.msk [vmem:[#allocation2 + $0xf8] sm:$0xff] %vm282, 0.0
      %1629 = vst.msk [vmem:[#allocation2 + $0x100] sm:$0xf] %vm285, 0.0
      %1630 = vst.msk [vmem:[#allocation2 + $0x108] sm:$0xff] %vm282, 0.0
      %1631 = vst.msk [vmem:[#allocation2 + $0x110] sm:$0xff] %vm282, 0.0
      %1632 = vst.msk [vmem:[#allocation2 + $0x118] sm:$0xf] %vm285, 0.0
      %1633 = vst.msk [vmem:[#allocation2 + $0x120] sm:$0xff] %vm282, 0.0
      %1634 = vst.msk [vmem:[#allocation2 + $0x128] sm:$0xff] %vm282, 0.0
      %1635 = vst.msk [vmem:[#allocation2 + $0x130] sm:$0xf] %vm285, 0.0
      %1636 = vst.msk [vmem:[#allocation2 + $0x138] sm:$0xff] %vm282, 0.0
      %1637 = vst.msk [vmem:[#allocation2 + $0x140] sm:$0xff] %vm282, 0.0
      %1638 = vst.msk [vmem:[#allocation2 + $0x148] sm:$0xf] %vm285, 0.0
      %1639 = vst.msk [vmem:[#allocation2 + $0x150] sm:$0xff] %vm282, 0.0
      %1640 = vst.msk [vmem:[#allocation2 + $0x158] sm:$0xff] %vm282, 0.0
      %1641 = vst.msk [vmem:[#allocation2 + $0x160] sm:$0xf] %vm285, 0.0
      %1642 = vst.msk [vmem:[#allocation2 + $0x168] sm:$0xff] %vm282, 0.0
      %1643 = vst.msk [vmem:[#allocation2 + $0x170] sm:$0xff] %vm282, 0.0
      %1644 = vst.msk [vmem:[#allocation2 + $0x178] sm:$0xf] %vm285, 0.0
      %1645 = vst.msk [vmem:[#allocation2 + $0x180] sm:$0xff] %vm282, 0.0
      %1646 = vst.msk [vmem:[#allocation2 + $0x188] sm:$0xff] %vm282, 0.0
      %1647 = vst.msk [vmem:[#allocation2 + $0x190] sm:$0xf] %vm285, 0.0
      %1648 = vst.msk [vmem:[#allocation2 + $0x198] sm:$0xff] %vm282, 0.0
      %1649 = vst.msk [vmem:[#allocation2 + $0x1a0] sm:$0xff] %vm282, 0.0
      %1650 = vst.msk [vmem:[#allocation2 + $0x1a8] sm:$0xf] %vm285, 0.0
      %1651 = vst.msk [vmem:[#allocation2 + $0x1b0] sm:$0xff] %vm282, 0.0
      %1652 = vst.msk [vmem:[#allocation2 + $0x1b8] sm:$0xff] %vm282, 0.0
      %1653 = vst.msk [vmem:[#allocation2 + $0x1c0] sm:$0xf] %vm285, 0.0
      %1654 = vst.msk [vmem:[#allocation2 + $0x1c8] sm:$0xff] %vm282, 0.0
      %1655 = vst.msk [vmem:[#allocation2 + $0x1d0] sm:$0xff] %vm282, 0.0
      %1656 = vst.msk [vmem:[#allocation2 + $0x1d8] sm:$0xf] %vm285, 0.0
      %1657 = vst.msk [vmem:[%s351 + $0x4] sm:$0xf] %vm285, %v1595
      %1658 = vst.msk [vmem:[%s476] sm:$0xf0] %vm347, %v1595
      %1659 = vst.msk [vmem:[%s1099 + $0x4] sm:$0xf] %vm285, %v1596
      %1660 = vst.msk [vmem:[%s1134] sm:$0xf0] %vm347, %v1596
      %v1661 = vld [vmem:[#allocation2] sm:$0xf]
      %v1662 = vld [vmem:[#allocation2 + $0x4] sm:$0xf]
      %v1663 = vld [vmem:[#allocation2 + $0x8] sm:$0xf]
      %v1664 = vld [vmem:[%s351] sm:$0xf]
      %v1665 = vld [vmem:[%s351 + $0x4] sm:$0xf]
      %v1666 = vld [vmem:[%s351 + $0x8] sm:$0xf]
      %s1667 = scalar_lea.vmem [#allocation2], 192
      %v1668 = vld [vmem:[%s1667] sm:$0xf]
      %v1669 = vld [vmem:[%s1667 + $0x4] sm:$0xf]
      %v1670 = vld [vmem:[%s1667 + $0x8] sm:$0xf]
      %1672 = vrot.lane.b32.xlu0 %v1662, 64
      %v1673 = vpop.permute.xlu0 %1672
      %1676 = vrot.lane.b32.xlu0 %v1664, 64
      %v1677 = vpop.permute.xlu0 %1676
      %1680 = vrot.lane.b32.xlu0 %v1666, 64
      %v1681 = vpop.permute.xlu0 %1680
      %1684 = vrot.lane.b32.xlu0 %v1669, 64
      %v1685 = vpop.permute.xlu0 %1684
      %v1687 = vsel %vm282, %v1661, %v1673
      %v1688 = vsel %vm282, %v1663, %v1677
      %v1689 = vsel %vm282, %v1665, %v1681
      %v1690 = vsel %vm282, %v1668, %v1685
      %1691 = vst [vmem:[#allocation3] sm:$0xf] %v1687
      %1692 = vst [vmem:[#allocation3 + $0x8] sm:$0xf] %v1688
      %1693 = vst [vmem:[#allocation3 + $0x10] sm:$0xf] %v1689
      %1694 = vst [vmem:[#allocation3 + $0x18] sm:$0xf] %v1690
      %1695 = vst.msk [vmem:[#allocation3 + $0x20] sm:$0xf] %vm285, %v1670
      %v1696 = vld [vmem:[%s344] sm:$0xf]
      %v1697 = vld [vmem:[%s344 + $0x4] sm:$0xf]
      %v1698 = vld [vmem:[%s344 + $0x8] sm:$0xf]
      %v1699 = vld [vmem:[%s476] sm:$0xf]
      %v1700 = vld [vmem:[%s476 + $0x4] sm:$0xf]
      %v1701 = vld [vmem:[%s476 + $0x8] sm:$0xf]
      %s1702 = scalar_lea.vmem [#allocation2], 216
      %v1703 = vld [vmem:[%s1702] sm:$0xf]
      %v1704 = vld [vmem:[%s1702 + $0x4] sm:$0xf]
      %v1705 = vld [vmem:[%s1702 + $0x8] sm:$0xf]
      %1707 = vrot.lane.b32.xlu0 %v1697, 64
      %v1708 = vpop.permute.xlu0 %1707
      %1711 = vrot.lane.b32.xlu0 %v1699, 64
      %v1712 = vpop.permute.xlu0 %1711
      %1715 = vrot.lane.b32.xlu0 %v1701, 64
      %v1716 = vpop.permute.xlu0 %1715
      %1719 = vrot.lane.b32.xlu0 %v1704, 64
      %v1720 = vpop.permute.xlu0 %1719
      %v1722 = vsel %vm282, %v1696, %v1708
      %v1723 = vsel %vm282, %v1698, %v1712
      %v1724 = vsel %vm282, %v1700, %v1716
      %v1725 = vsel %vm282, %v1703, %v1720
      %v1731 = vrot.slane %v1722, 4
      %v1732 = vrot.slane %v1723, 4
      %v1733 = vrot.slane %v1724, 4
      %v1734 = vrot.slane %v1725, 4
      %v1735 = vrot.slane %v1705, 4
      %1741 = vst [vmem:[#allocation3] sm:$0xf0] %v1731
      %1742 = vst [vmem:[#allocation3 + $0x8] sm:$0xf0] %v1732
      %1743 = vst [vmem:[#allocation3 + $0x10] sm:$0xf0] %v1733
      %1744 = vst [vmem:[#allocation3 + $0x18] sm:$0xf0] %v1734
      %1745 = vst.msk [vmem:[#allocation3 + $0x20] sm:$0xf0] %vm347, %v1735
      %v1746 = vld [vmem:[%s346] sm:$0xf]
      %v1747 = vld [vmem:[%s346 + $0x4] sm:$0xf]
      %v1748 = vld [vmem:[%s346 + $0x8] sm:$0xf]
      %v1749 = vld [vmem:[%s1099] sm:$0xf]
      %v1750 = vld [vmem:[%s1099 + $0x4] sm:$0xf]
      %v1751 = vld [vmem:[%s1099 + $0x8] sm:$0xf]
      %s1752 = scalar_lea.vmem [#allocation2], 240
      %v1753 = vld [vmem:[%s1752] sm:$0xf]
      %v1754 = vld [vmem:[%s1752 + $0x4] sm:$0xf]
      %v1755 = vld [vmem:[%s1752 + $0x8] sm:$0xf]
      %1757 = vrot.lane.b32.xlu0 %v1747, 64
      %v1758 = vpop.permute.xlu0 %1757
      %1761 = vrot.lane.b32.xlu0 %v1749, 64
      %v1762 = vpop.permute.xlu0 %1761
      %1765 = vrot.lane.b32.xlu0 %v1751, 64
      %v1766 = vpop.permute.xlu0 %1765
      %1769 = vrot.lane.b32.xlu0 %v1754, 64
      %v1770 = vpop.permute.xlu0 %1769
      %v1772 = vsel %vm282, %v1746, %v1758
      %v1773 = vsel %vm282, %v1748, %v1762
      %v1774 = vsel %vm282, %v1750, %v1766
      %v1775 = vsel %vm282, %v1753, %v1770
      %1776 = vst [vmem:[#allocation3 + $0x40] sm:$0xf] %v1772
      %1777 = vst [vmem:[#allocation3 + $0x48] sm:$0xf] %v1773
      %1778 = vst [vmem:[#allocation3 + $0x50] sm:$0xf] %v1774
      %1779 = vst [vmem:[#allocation3 + $0x58] sm:$0xf] %v1775
      %1780 = vst.msk [vmem:[#allocation3 + $0x60] sm:$0xf] %vm285, %v1755
      %v1781 = vld [vmem:[%s349] sm:$0xf]
      %v1782 = vld [vmem:[%s349 + $0x4] sm:$0xf]
      %v1783 = vld [vmem:[%s349 + $0x8] sm:$0xf]
      %v1784 = vld [vmem:[%s1134] sm:$0xf]
      %v1785 = vld [vmem:[%s1134 + $0x4] sm:$0xf]
      %v1786 = vld [vmem:[%s1134 + $0x8] sm:$0xf]
      %s1787 = scalar_lea.vmem [#allocation2], 264
      %v1788 = vld [vmem:[%s1787] sm:$0xf]
      %v1789 = vld [vmem:[%s1787 + $0x4] sm:$0xf]
      %v1790 = vld [vmem:[%s1787 + $0x8] sm:$0xf]
      %1792 = vrot.lane.b32.xlu0 %v1782, 64
      %v1793 = vpop.permute.xlu0 %1792
      %1796 = vrot.lane.b32.xlu0 %v1784, 64
      %v1797 = vpop.permute.xlu0 %1796
      %1800 = vrot.lane.b32.xlu0 %v1786, 64
      %v1801 = vpop.permute.xlu0 %1800
      %1804 = vrot.lane.b32.xlu0 %v1789, 64
      %v1805 = vpop.permute.xlu0 %1804
      %v1807 = vsel %vm282, %v1781, %v1793
      %v1808 = vsel %vm282, %v1783, %v1797
      %v1809 = vsel %vm282, %v1785, %v1801
      %v1810 = vsel %vm282, %v1788, %v1805
      %v1816 = vrot.slane %v1807, 4
      %v1817 = vrot.slane %v1808, 4
      %v1818 = vrot.slane %v1809, 4
      %v1819 = vrot.slane %v1810, 4
      %v1820 = vrot.slane %v1790, 4
      %1826 = vst [vmem:[#allocation3 + $0x40] sm:$0xf0] %v1816
      %1827 = vst [vmem:[#allocation3 + $0x48] sm:$0xf0] %v1817
      %1828 = vst [vmem:[#allocation3 + $0x50] sm:$0xf0] %v1818
      %1829 = vst [vmem:[#allocation3 + $0x58] sm:$0xf0] %v1819
      %1830 = vst.msk [vmem:[#allocation3 + $0x60] sm:$0xf0] %vm347, %v1820
      %v1831 = vld [vmem:[#allocation3] sm:$0xff]
      %v1832 = vld [vmem:[#allocation3 + $0x8] sm:$0xff]
      %v1833 = vld [vmem:[#allocation3 + $0x10] sm:$0xff]
      %v1834 = vld [vmem:[#allocation3 + $0x18] sm:$0xff]
      %v1835 = vld [vmem:[#allocation3 + $0x20] sm:$0xff]
      %v1836 = vld [vmem:[#allocation3 + $0x40] sm:$0xff]
      %v1837 = vld [vmem:[#allocation3 + $0x48] sm:$0xff]
      %v1838 = vld [vmem:[#allocation3 + $0x50] sm:$0xff]
      %v1839 = vld [vmem:[#allocation3 + $0x58] sm:$0xff]
      %v1840 = vld [vmem:[#allocation3 + $0x60] sm:$0xff]
      %v1841 = vpack.c.bf16 %v1836, %v1831
      %v1842 = vpack.c.bf16 %v1837, %v1832
      %v1843 = vpack.c.bf16 %v1838, %v1833
      %v1844 = vpack.c.bf16 %v1839, %v1834
      %v1845 = vpack.c.bf16 %v1840, %v1835
      %v1846 = vld [vmem:[%s3] sm:$0xf]
      %v1847 = vld [vmem:[%s3 + $0x4] sm:$0xf]
      %v1848 = vld [vmem:[%s3 + $0x8] sm:$0xf]
      %v1849 = vld [vmem:[%s3 + $0xc] sm:$0xf]
      %v1850 = vld [vmem:[%s3 + $0x10] sm:$0xf]
      %v1851 = vld [vmem:[%s3 + $0x14] sm:$0xf]
      %v1852 = vld [vmem:[%s3 + $0x18] sm:$0xf]
      %v1853 = vld [vmem:[%s3 + $0x1c] sm:$0xf]
      %v1854 = vld [vmem:[%s3 + $0x20] sm:$0xf]
      %v1855 = vld [vmem:[%s3 + $0x24] sm:$0xf]
      %v1856 = vld [vmem:[%s3 + $0x28] sm:$0xf]
      %v1857 = vld [vmem:[%s3 + $0x2c] sm:$0xf]
      %v1858 = vld [vmem:[%s3 + $0x30] sm:$0xf]
      %v1859 = vld [vmem:[%s3 + $0x34] sm:$0xf]
      %v1860 = vld [vmem:[%s3 + $0x38] sm:$0xf]
      %v1861 = vld [vmem:[%s3 + $0x3c] sm:$0xf]
      %v1862 = vld [vmem:[%s3 + $0x40] sm:$0xf]
      %v1863 = vld [vmem:[%s3 + $0x44] sm:$0xf]
      %v1864 = vld [vmem:[%s3 + $0x48] sm:$0xf]
      %v1865 = vld [vmem:[%s3 + $0x4c] sm:$0xf]
      %v1866 = vld [vmem:[%s3 + $0x50] sm:$0xf]
      %v1867 = vld [vmem:[%s3 + $0x54] sm:$0xf]
      %v1868 = vld [vmem:[%s3 + $0x58] sm:$0xf]
      %v1869 = vld [vmem:[%s3 + $0x5c] sm:$0xf]
      %v1870 = vld [vmem:[%s3 + $0x60] sm:$0xf]
      %v1871 = vld [vmem:[%s3 + $0x64] sm:$0xf]
      %v1872 = vld [vmem:[%s3 + $0x68] sm:$0xf]
      %v1873 = vld [vmem:[%s3 + $0x6c] sm:$0xf]
      %v1874 = vld [vmem:[%s3 + $0x70] sm:$0xf]
      %v1875 = vld [vmem:[%s3 + $0x74] sm:$0xf]
      %v1876 = vld [vmem:[%s3 + $0x78] sm:$0xf]
      %v1877 = vld [vmem:[%s3 + $0x7c] sm:$0xf]
      %v1878 = vld [vmem:[%s3 + $0x80] sm:$0xf]
      %v1879 = vld [vmem:[%s3 + $0x84] sm:$0xf]
      %v1880 = vld [vmem:[%s3 + $0x88] sm:$0xf]
      %v1881 = vld [vmem:[%s3 + $0x8c] sm:$0xf]
      %v1882 = vld [vmem:[%s3 + $0x90] sm:$0xf]
      %v1883 = vld [vmem:[%s3 + $0x94] sm:$0xf]
      %v1884 = vld [vmem:[%s3 + $0x98] sm:$0xf]
      %v1885 = vld [vmem:[%s3 + $0x9c] sm:$0xf]
      %v1886 = vld [vmem:[%s3 + $0xa0] sm:$0xf]
      %v1887 = vld [vmem:[%s3 + $0xa4] sm:$0xf]
      %v1888 = vld [vmem:[%s3 + $0xa8] sm:$0xf]
      %v1889 = vld [vmem:[%s3 + $0xac] sm:$0xf]
      %v1890 = vld [vmem:[%s3 + $0xb0] sm:$0xf]
      %v1891 = vld [vmem:[%s3 + $0xb4] sm:$0xf]
      %v1892 = vld [vmem:[%s3 + $0xb8] sm:$0xf]
      %v1893 = vld [vmem:[%s3 + $0xbc] sm:$0xf]
      %v1894 = vld [vmem:[%s3 + $0xc0] sm:$0xf]
      %v1895 = vld [vmem:[%s3 + $0xc4] sm:$0xf]
      %v1896 = vld [vmem:[%s3 + $0xc8] sm:$0xf]
      %v1897 = vld [vmem:[%s3 + $0xcc] sm:$0xf]
      %v1898 = vld [vmem:[%s3 + $0xd0] sm:$0xf]
      %v1899 = vld [vmem:[%s3 + $0xd4] sm:$0xf]
      %v1900 = vld [vmem:[%s3 + $0xd8] sm:$0xf]
      %v1901 = vld [vmem:[%s3 + $0xdc] sm:$0xf]
      %v1902 = vld [vmem:[%s3 + $0xe0] sm:$0xf]
      %v1903 = vld [vmem:[%s3 + $0xe4] sm:$0xf]
      %v1904 = vld [vmem:[%s3 + $0xe8] sm:$0xf]
      %v1905 = vld [vmem:[%s3 + $0xec] sm:$0xf]
      %v1906 = vld [vmem:[%s3 + $0xf0] sm:$0xf]
      %v1907 = vld [vmem:[%s3 + $0xf4] sm:$0xf]
      %v1908 = vld [vmem:[%s3 + $0xf8] sm:$0xf]
      %v1909 = vld [vmem:[%s3 + $0xfc] sm:$0xf]
      %v1910 = vld [vmem:[%s3 + $0x100] sm:$0xf]
      %v1911 = vld [vmem:[%s3 + $0x104] sm:$0xf]
      %v1912 = vld [vmem:[%s3 + $0x108] sm:$0xf]
      %v1913 = vld [vmem:[%s3 + $0x10c] sm:$0xf]
      %v1914 = vld [vmem:[%s3 + $0x110] sm:$0xf]
      %v1915 = vld [vmem:[%s3 + $0x114] sm:$0xf]
      %v1916 = vld [vmem:[%s3 + $0x118] sm:$0xf]
      %v1917 = vld [vmem:[%s3 + $0x11c] sm:$0xf]
      %v1990 = vunpack.c.l.b16 %v1846
      %v1991 = vunpack.c.l.b16 %v1847
      %v1992 = vunpack.c.l.b16 %v1848
      %v1993 = vunpack.c.l.b16 %v1849
      %v1994 = vunpack.c.l.b16 %v1850
      %v1995 = vunpack.c.l.b16 %v1851
      %v1996 = vunpack.c.l.b16 %v1852
      %v1997 = vunpack.c.l.b16 %v1853
      %v1998 = vunpack.c.l.b16 %v1854
      %v1999 = vunpack.c.l.b16 %v1855
      %v2000 = vunpack.c.l.b16 %v1856
      %v2001 = vunpack.c.l.b16 %v1857
      %v2002 = vunpack.c.l.b16 %v1858
      %v2003 = vunpack.c.l.b16 %v1859
      %v2004 = vunpack.c.l.b16 %v1860
      %v2005 = vunpack.c.l.b16 %v1861
      %v2006 = vunpack.c.l.b16 %v1862
      %v2007 = vunpack.c.l.b16 %v1863
      %v2008 = vunpack.c.l.b16 %v1864
      %v2009 = vunpack.c.l.b16 %v1865
      %v2010 = vunpack.c.l.b16 %v1866
      %v2011 = vunpack.c.l.b16 %v1867
      %v2012 = vunpack.c.l.b16 %v1868
      %v2013 = vunpack.c.l.b16 %v1869
      %v2014 = vunpack.c.l.b16 %v1870
      %v2015 = vunpack.c.l.b16 %v1871
      %v2016 = vunpack.c.l.b16 %v1872
      %v2017 = vunpack.c.l.b16 %v1873
      %v2018 = vunpack.c.l.b16 %v1874
      %v2019 = vunpack.c.l.b16 %v1875
      %v2020 = vunpack.c.l.b16 %v1876
      %v2021 = vunpack.c.l.b16 %v1877
      %v2022 = vunpack.c.l.b16 %v1878
      %v2023 = vunpack.c.l.b16 %v1879
      %v2024 = vunpack.c.l.b16 %v1880
      %v2025 = vunpack.c.l.b16 %v1881
      %v2026 = vunpack.c.l.b16 %v1882
      %v2027 = vunpack.c.l.b16 %v1883
      %v2028 = vunpack.c.l.b16 %v1884
      %v2029 = vunpack.c.l.b16 %v1885
      %v2030 = vunpack.c.l.b16 %v1886
      %v2031 = vunpack.c.l.b16 %v1887
      %v2032 = vunpack.c.l.b16 %v1888
      %v2033 = vunpack.c.l.b16 %v1889
      %v2034 = vunpack.c.l.b16 %v1890
      %v2035 = vunpack.c.l.b16 %v1891
      %v2036 = vunpack.c.l.b16 %v1892
      %v2037 = vunpack.c.l.b16 %v1893
      %v2038 = vunpack.c.l.b16 %v1894
      %v2039 = vunpack.c.l.b16 %v1895
      %v2040 = vunpack.c.l.b16 %v1896
      %v2041 = vunpack.c.l.b16 %v1897
      %v2042 = vunpack.c.l.b16 %v1898
      %v2043 = vunpack.c.l.b16 %v1899
      %v2044 = vunpack.c.l.b16 %v1900
      %v2045 = vunpack.c.l.b16 %v1901
      %v2046 = vunpack.c.l.b16 %v1902
      %v2047 = vunpack.c.l.b16 %v1903
      %v2048 = vunpack.c.l.b16 %v1904
      %v2049 = vunpack.c.l.b16 %v1905
      %v2050 = vunpack.c.l.b16 %v1906
      %v2051 = vunpack.c.l.b16 %v1907
      %v2052 = vunpack.c.l.b16 %v1908
      %v2053 = vunpack.c.l.b16 %v1909
      %v2054 = vunpack.c.l.b16 %v1910
      %v2055 = vunpack.c.l.b16 %v1911
      %v2056 = vunpack.c.l.b16 %v1912
      %v2057 = vunpack.c.l.b16 %v1913
      %v2058 = vunpack.c.l.b16 %v1914
      %v2059 = vunpack.c.l.b16 %v1915
      %v2060 = vunpack.c.l.b16 %v1916
      %v2061 = vunpack.c.l.b16 %v1917
      %v2062 = vpack.c.b16 %v1991, %v1990
      %v2063 = vpack.c.b16 %v1993, %v1992
      %v2064 = vpack.c.b16 %v1995, %v1994
      %v2065 = vpack.c.b16 %v1997, %v1996
      %v2066 = vpack.c.b16 %v1999, %v1998
      %v2067 = vpack.c.b16 %v2001, %v2000
      %v2068 = vpack.c.b16 %v2003, %v2002
      %v2069 = vpack.c.b16 %v2005, %v2004
      %v2070 = vpack.c.b16 %v2007, %v2006
      %v2071 = vpack.c.b16 %v2009, %v2008
      %v2072 = vpack.c.b16 %v2011, %v2010
      %v2073 = vpack.c.b16 %v2013, %v2012
      %v2074 = vpack.c.b16 %v2015, %v2014
      %v2075 = vpack.c.b16 %v2017, %v2016
      %v2076 = vpack.c.b16 %v2019, %v2018
      %v2077 = vpack.c.b16 %v2021, %v2020
      %v2078 = vpack.c.b16 %v2023, %v2022
      %v2079 = vpack.c.b16 %v2025, %v2024
      %v2080 = vpack.c.b16 %v2027, %v2026
      %v2081 = vpack.c.b16 %v2029, %v2028
      %v2082 = vpack.c.b16 %v2031, %v2030
      %v2083 = vpack.c.b16 %v2033, %v2032
      %v2084 = vpack.c.b16 %v2035, %v2034
      %v2085 = vpack.c.b16 %v2037, %v2036
      %v2086 = vpack.c.b16 %v2039, %v2038
      %v2087 = vpack.c.b16 %v2041, %v2040
      %v2088 = vpack.c.b16 %v2043, %v2042
      %v2089 = vpack.c.b16 %v2045, %v2044
      %v2090 = vpack.c.b16 %v2047, %v2046
      %v2091 = vpack.c.b16 %v2049, %v2048
      %v2092 = vpack.c.b16 %v2051, %v2050
      %v2093 = vpack.c.b16 %v2053, %v2052
      %v2094 = vpack.c.b16 %v2055, %v2054
      %v2095 = vpack.c.b16 %v2057, %v2056
      %v2096 = vpack.c.b16 %v2059, %v2058
      %v2097 = vpack.c.b16 %v2061, %v2060
      %v2135 = vsel %vm282, %v1845, 0
      %2137 = vmatpush.bf16.msra.mxu0 %v2069
      %2138 = vmatpush.bf16.msra.mxu0 %v2068
      %2139 = vmatpush.bf16.msra.mxu0 %v2067
      %2140 = vmatpush.bf16.msra.mxu0 %v2066
      %2141 = vmatpush.bf16.msra.mxu0 %v2065
      %2142 = vmatpush.bf16.msra.mxu0 %v2064
      %2143 = vmatpush.bf16.msra.mxu0 %v2063
      %2144 = vmatpush.bf16.msra.mxu0 %v2062
      %2145 = vmatmul.bf16.gmra.mxu0 %v1841
      %v2146 = vpop.f32.mrf.mxu0
      %v2147 = vadd.f32 0.0, %v2146
      %v2148 = vpop.f32.mrf.mxu0
      %v2149 = vadd.f32 0.0, %v2148
      %2150 = vdwg.mxu0
      %2151 = vmatpush.bf16.msra.mxu0 %v2077
      %2152 = vmatpush.bf16.msra.mxu0 %v2076
      %2153 = vmatpush.bf16.msra.mxu0 %v2075
      %2154 = vmatpush.bf16.msra.mxu0 %v2074
      %2155 = vmatpush.bf16.msra.mxu0 %v2073
      %2156 = vmatpush.bf16.msra.mxu0 %v2072
      %2157 = vmatpush.bf16.msra.mxu0 %v2071
      %2158 = vmatpush.bf16.msra.mxu0 %v2070
      %2159 = vmatmul.bf16.gmra.mxu0 %v1842
      %v2160 = vpop.f32.mrf.mxu0
      %v2161 = vadd.f32 %v2147, %v2160
      %v2162 = vpop.f32.mrf.mxu0
      %v2163 = vadd.f32 %v2149, %v2162
      %2164 = vdwg.mxu0
      %2165 = vmatpush.bf16.msra.mxu0 %v2085
      %2166 = vmatpush.bf16.msra.mxu0 %v2084
      %2167 = vmatpush.bf16.msra.mxu0 %v2083
      %2168 = vmatpush.bf16.msra.mxu0 %v2082
      %2169 = vmatpush.bf16.msra.mxu0 %v2081
      %2170 = vmatpush.bf16.msra.mxu0 %v2080
      %2171 = vmatpush.bf16.msra.mxu0 %v2079
      %2172 = vmatpush.bf16.msra.mxu0 %v2078
      %2173 = vmatmul.bf16.gmra.mxu0 %v1843
      %v2174 = vpop.f32.mrf.mxu0
      %v2175 = vadd.f32 %v2161, %v2174
      %v2176 = vpop.f32.mrf.mxu0
      %v2177 = vadd.f32 %v2163, %v2176
      %2178 = vdwg.mxu0
      %2179 = vmatpush.bf16.msra.mxu0 %v2093
      %2180 = vmatpush.bf16.msra.mxu0 %v2092
      %2181 = vmatpush.bf16.msra.mxu0 %v2091
      %2182 = vmatpush.bf16.msra.mxu0 %v2090
      %2183 = vmatpush.bf16.msra.mxu0 %v2089
      %2184 = vmatpush.bf16.msra.mxu0 %v2088
      %2185 = vmatpush.bf16.msra.mxu0 %v2087
      %2186 = vmatpush.bf16.msra.mxu0 %v2086
      %2187 = vmatmul.bf16.gmra.mxu0 %v1844
      %v2188 = vpop.f32.mrf.mxu0
      %v2189 = vadd.f32 %v2175, %v2188
      %v2190 = vpop.f32.mrf.mxu0
      %v2191 = vadd.f32 %v2177, %v2190
      %2192 = vdwg.mxu0
      %2193 = vmatpush.bf16.msra.mxu0 0
      %2194 = vmatpush.bf16.msra.mxu0 0
      %2195 = vmatpush.bf16.msra.mxu0 0
      %2196 = vmatpush.bf16.msra.mxu0 0
      %2197 = vmatpush.bf16.msra.mxu0 %v2097
      %2198 = vmatpush.bf16.msra.mxu0 %v2096
      %2199 = vmatpush.bf16.msra.mxu0 %v2095
      %2200 = vmatpush.bf16.msra.mxu0 %v2094
      %2201 = vmatmul.bf16.gmra.mxu0 %v2135
      %v2202 = vpop.f32.mrf.mxu0
      %v2203 = vadd.f32 %v2189, %v2202
      %v2204 = vpop.f32.mrf.mxu0
      %v2205 = vadd.f32 %v2191, %v2204
      %2206 = vdwg.mxu0
      %v2207 = vsel %vm282, %v2203, 0.0
      %v2208 = vsel %vm282, %v2205, 0.0
      %v2209 = vadd.f32 %v2207, %v2208
      %v2210 = vrot.slane %v2209, 4
      %v2211 = vadd.f32 %v2209, %v2210
      %v2212 = vrot.slane %v2211, 2
      %v2213 = vadd.f32 %v2211, %v2212
      %v2214 = vrot.slane %v2213, 1
      %v2215 = vadd.f32 %v2213, %v2214
      %v2216 = vmul.f32 %v2215, %v911
      %v2217 = vsub.f32 %v2203, %v2216
      %v2218 = vsub.f32 %v2205, %v2216
      %v2219 = vmul.f32 %v2217, %v2217
      %v2220 = vmul.f32 %v2218, %v2218
      %v2221 = vsel %vm282, %v2219, 0.0
      %v2222 = vsel %vm282, %v2220, 0.0
      %v2223 = vadd.f32 %v2221, %v2222
      %v2224 = vrot.slane %v2223, 4
      %v2225 = vadd.f32 %v2223, %v2224
      %v2226 = vrot.slane %v2225, 2
      %v2227 = vadd.f32 %v2225, %v2226
      %v2228 = vrot.slane %v2227, 1
      %v2229 = vadd.f32 %v2227, %v2228
      %v2230 = vmul.f32 %v2229, %v911
      %v2231 = vadd.f32 %v2230, 1e-05
      %v2232 = vrsqrt.pop %v2231
      %v2233 = vmul.f32 %v2232, %v2231
      %v2234 = vmul.f32 %v2233, %v2232
      %v2235 = vmul.f32 0.5, %v2234
      %v2236 = vsub.f32 1.5, %v2235
      %v2237 = vmul.f32 %v2232, %v2236
      %vm2238 = vweird.f32 %v2231
      %vm2239 = vweird.f32 %v2232
      %vm2240 = vmor %vm2238, %vm2239
      %v2241 = vsel %vm2240, %v2232, %v2237
      %v2242 = vmul.f32 %v2217, %v2241
      %v2243 = vmul.f32 %v2218, %v2241
      %vm2244 = vcmp.ge.f32.partialorder %v2242, 0.0
      %vm2245 = vcmp.ge.f32.partialorder %v2243, 0.0
      %v2246 = vmul.f32 %v2242, 0.2
      %v2247 = vmul.f32 %v2243, 0.2
      %v2248 = vsel %vm2244, %v2242, %v2246
      %v2249 = vsel %vm2245, %v2243, %v2247
      %2250 = vst.msk [vmem:[#allocation2] sm:$0xff] %vm282, 0.0
      %2251 = vst.msk [vmem:[#allocation2 + $0x8] sm:$0xff] %vm282, 0.0
      %2252 = vst.msk [vmem:[#allocation2 + $0x10] sm:$0xf] %vm285, 0.0
      %2253 = vst.msk [vmem:[#allocation2 + $0x18] sm:$0xff] %vm282, 0.0
      %2254 = vst.msk [vmem:[#allocation2 + $0x20] sm:$0xff] %vm282, 0.0
      %2255 = vst.msk [vmem:[#allocation2 + $0x28] sm:$0xf] %vm285, 0.0
      %2256 = vst.msk [vmem:[#allocation2 + $0x30] sm:$0xff] %vm282, 0.0
      %2257 = vst.msk [vmem:[#allocation2 + $0x38] sm:$0xff] %vm282, 0.0
      %2258 = vst.msk [vmem:[#allocation2 + $0x40] sm:$0xf] %vm285, 0.0
      %2259 = vst.msk [vmem:[#allocation2 + $0x48] sm:$0xff] %vm282, 0.0
      %2260 = vst.msk [vmem:[#allocation2 + $0x50] sm:$0xff] %vm282, 0.0
      %2261 = vst.msk [vmem:[#allocation2 + $0x58] sm:$0xf] %vm285, 0.0
      %2262 = vst.msk [vmem:[#allocation2 + $0x60] sm:$0xff] %vm282, 0.0
      %2263 = vst.msk [vmem:[#allocation2 + $0x68] sm:$0xff] %vm282, 0.0
      %2264 = vst.msk [vmem:[#allocation2 + $0x70] sm:$0xf] %vm285, 0.0
      %2265 = vst.msk [vmem:[#allocation2 + $0x78] sm:$0xff] %vm282, 0.0
      %2266 = vst.msk [vmem:[#allocation2 + $0x80] sm:$0xff] %vm282, 0.0
      %2267 = vst.msk [vmem:[#allocation2 + $0x88] sm:$0xf] %vm285, 0.0
      %2268 = vst.msk [vmem:[#allocation2 + $0x90] sm:$0xff] %vm282, 0.0
      %2269 = vst.msk [vmem:[#allocation2 + $0x98] sm:$0xff] %vm282, 0.0
      %2270 = vst.msk [vmem:[#allocation2 + $0xa0] sm:$0xf] %vm285, 0.0
      %2271 = vst.msk [vmem:[#allocation2 + $0xa8] sm:$0xff] %vm282, 0.0
      %2272 = vst.msk [vmem:[#allocation2 + $0xb0] sm:$0xff] %vm282, 0.0
      %2273 = vst.msk [vmem:[#allocation2 + $0xb8] sm:$0xf] %vm285, 0.0
      %2274 = vst.msk [vmem:[#allocation2 + $0xc0] sm:$0xff] %vm282, 0.0
      %2275 = vst.msk [vmem:[#allocation2 + $0xc8] sm:$0xff] %vm282, 0.0
      %2276 = vst.msk [vmem:[#allocation2 + $0xd0] sm:$0xf] %vm285, 0.0
      %2277 = vst.msk [vmem:[#allocation2 + $0xd8] sm:$0xff] %vm282, 0.0
      %2278 = vst.msk [vmem:[#allocation2 + $0xe0] sm:$0xff] %vm282, 0.0
      %2279 = vst.msk [vmem:[#allocation2 + $0xe8] sm:$0xf] %vm285, 0.0
      %2280 = vst.msk [vmem:[#allocation2 + $0xf0] sm:$0xff] %vm282, 0.0
      %2281 = vst.msk [vmem:[#allocation2 + $0xf8] sm:$0xff] %vm282, 0.0
      %2282 = vst.msk [vmem:[#allocation2 + $0x100] sm:$0xf] %vm285, 0.0
      %2283 = vst.msk [vmem:[#allocation2 + $0x108] sm:$0xff] %vm282, 0.0
      %2284 = vst.msk [vmem:[#allocation2 + $0x110] sm:$0xff] %vm282, 0.0
      %2285 = vst.msk [vmem:[#allocation2 + $0x118] sm:$0xf] %vm285, 0.0
      %2286 = vst.msk [vmem:[#allocation2 + $0x120] sm:$0xff] %vm282, 0.0
      %2287 = vst.msk [vmem:[#allocation2 + $0x128] sm:$0xff] %vm282, 0.0
      %2288 = vst.msk [vmem:[#allocation2 + $0x130] sm:$0xf] %vm285, 0.0
      %2289 = vst.msk [vmem:[#allocation2 + $0x138] sm:$0xff] %vm282, 0.0
      %2290 = vst.msk [vmem:[#allocation2 + $0x140] sm:$0xff] %vm282, 0.0
      %2291 = vst.msk [vmem:[#allocation2 + $0x148] sm:$0xf] %vm285, 0.0
      %2292 = vst.msk [vmem:[#allocation2 + $0x150] sm:$0xff] %vm282, 0.0
      %2293 = vst.msk [vmem:[#allocation2 + $0x158] sm:$0xff] %vm282, 0.0
      %2294 = vst.msk [vmem:[#allocation2 + $0x160] sm:$0xf] %vm285, 0.0
      %2295 = vst.msk [vmem:[#allocation2 + $0x168] sm:$0xff] %vm282, 0.0
      %2296 = vst.msk [vmem:[#allocation2 + $0x170] sm:$0xff] %vm282, 0.0
      %2297 = vst.msk [vmem:[#allocation2 + $0x178] sm:$0xf] %vm285, 0.0
      %2298 = vst.msk [vmem:[#allocation2 + $0x180] sm:$0xff] %vm282, 0.0
      %2299 = vst.msk [vmem:[#allocation2 + $0x188] sm:$0xff] %vm282, 0.0
      %2300 = vst.msk [vmem:[#allocation2 + $0x190] sm:$0xf] %vm285, 0.0
      %2301 = vst.msk [vmem:[#allocation2 + $0x198] sm:$0xff] %vm282, 0.0
      %2302 = vst.msk [vmem:[#allocation2 + $0x1a0] sm:$0xff] %vm282, 0.0
      %2303 = vst.msk [vmem:[#allocation2 + $0x1a8] sm:$0xf] %vm285, 0.0
      %2304 = vst.msk [vmem:[#allocation2 + $0x1b0] sm:$0xff] %vm282, 0.0
      %2305 = vst.msk [vmem:[#allocation2 + $0x1b8] sm:$0xff] %vm282, 0.0
      %2306 = vst.msk [vmem:[#allocation2 + $0x1c0] sm:$0xf] %vm285, 0.0
      %2307 = vst.msk [vmem:[#allocation2 + $0x1c8] sm:$0xff] %vm282, 0.0
      %2308 = vst.msk [vmem:[#allocation2 + $0x1d0] sm:$0xff] %vm282, 0.0
      %2309 = vst.msk [vmem:[#allocation2 + $0x1d8] sm:$0xf] %vm285, 0.0
      %2310 = vst.msk [vmem:[%s1667 + $0x8] sm:$0xf] %vm285, %v2248
      %2311 = vst.msk [vmem:[%s1702 + $0x4] sm:$0xf0] %vm347, %v2248
      %2312 = vst.msk [vmem:[%s1752 + $0x8] sm:$0xf] %vm285, %v2249
      %2313 = vst.msk [vmem:[%s1787 + $0x4] sm:$0xf0] %vm347, %v2249
      %v2314 = vld [vmem:[#allocation2] sm:$0xf]
      %v2315 = vld [vmem:[#allocation2 + $0x8] sm:$0xf]
      %v2316 = vld [vmem:[#allocation2 + $0x10] sm:$0xf]
      %v2317 = vld [vmem:[%s1667] sm:$0xf]
      %v2318 = vld [vmem:[%s1667 + $0x8] sm:$0xf]
      %v2319 = vld [vmem:[%s1667 + $0x10] sm:$0xf]
      %s2320 = scalar_lea.vmem [#allocation2], 384
      %v2321 = vld [vmem:[%s2320] sm:$0xf]
      %v2322 = vld [vmem:[%s2320 + $0x8] sm:$0xf]
      %v2323 = vld [vmem:[%s2320 + $0x10] sm:$0xf]
      %2325 = vrot.lane.b32.xlu0 %v2315, 64
      %v2326 = vpop.permute.xlu0 %2325
      %2329 = vrot.lane.b32.xlu0 %v2317, 64
      %v2330 = vpop.permute.xlu0 %2329
      %2333 = vrot.lane.b32.xlu0 %v2319, 64
      %v2334 = vpop.permute.xlu0 %2333
      %2337 = vrot.lane.b32.xlu0 %v2322, 64
      %v2338 = vpop.permute.xlu0 %2337
      %v2340 = vsel %vm282, %v2314, %v2326
      %v2341 = vsel %vm282, %v2316, %v2330
      %v2342 = vsel %vm282, %v2318, %v2334
      %v2343 = vsel %vm282, %v2321, %v2338
      %2344 = vst [vmem:[#allocation3] sm:$0xf] %v2340
      %2345 = vst [vmem:[#allocation3 + $0x8] sm:$0xf] %v2341
      %2346 = vst [vmem:[#allocation3 + $0x10] sm:$0xf] %v2342
      %2347 = vst [vmem:[#allocation3 + $0x18] sm:$0xf] %v2343
      %2348 = vst.msk [vmem:[#allocation3 + $0x20] sm:$0xf] %vm285, %v2323
      %v2349 = vld [vmem:[%s344] sm:$0xf]
      %v2350 = vld [vmem:[%s344 + $0x8] sm:$0xf]
      %v2351 = vld [vmem:[%s344 + $0x10] sm:$0xf]
      %v2352 = vld [vmem:[%s1702] sm:$0xf]
      %v2353 = vld [vmem:[%s1702 + $0x8] sm:$0xf]
      %v2354 = vld [vmem:[%s1702 + $0x10] sm:$0xf]
      %s2355 = scalar_lea.vmem [#allocation2], 408
      %v2356 = vld [vmem:[%s2355] sm:$0xf]
      %v2357 = vld [vmem:[%s2355 + $0x8] sm:$0xf]
      %v2358 = vld [vmem:[%s2355 + $0x10] sm:$0xf]
      %2360 = vrot.lane.b32.xlu0 %v2350, 64
      %v2361 = vpop.permute.xlu0 %2360
      %2364 = vrot.lane.b32.xlu0 %v2352, 64
      %v2365 = vpop.permute.xlu0 %2364
      %2368 = vrot.lane.b32.xlu0 %v2354, 64
      %v2369 = vpop.permute.xlu0 %2368
      %2372 = vrot.lane.b32.xlu0 %v2357, 64
      %v2373 = vpop.permute.xlu0 %2372
      %v2375 = vsel %vm282, %v2349, %v2361
      %v2376 = vsel %vm282, %v2351, %v2365
      %v2377 = vsel %vm282, %v2353, %v2369
      %v2378 = vsel %vm282, %v2356, %v2373
      %v2384 = vrot.slane %v2375, 4
      %v2385 = vrot.slane %v2376, 4
      %v2386 = vrot.slane %v2377, 4
      %v2387 = vrot.slane %v2378, 4
      %v2388 = vrot.slane %v2358, 4
      %2394 = vst [vmem:[#allocation3] sm:$0xf0] %v2384
      %2395 = vst [vmem:[#allocation3 + $0x8] sm:$0xf0] %v2385
      %2396 = vst [vmem:[#allocation3 + $0x10] sm:$0xf0] %v2386
      %2397 = vst [vmem:[#allocation3 + $0x18] sm:$0xf0] %v2387
      %2398 = vst.msk [vmem:[#allocation3 + $0x20] sm:$0xf0] %vm347, %v2388
      %v2399 = vld [vmem:[%s346] sm:$0xf]
      %v2400 = vld [vmem:[%s346 + $0x8] sm:$0xf]
      %v2401 = vld [vmem:[%s346 + $0x10] sm:$0xf]
      %v2402 = vld [vmem:[%s1752] sm:$0xf]
      %v2403 = vld [vmem:[%s1752 + $0x8] sm:$0xf]
      %v2404 = vld [vmem:[%s1752 + $0x10] sm:$0xf]
      %s2405 = scalar_lea.vmem [#allocation2], 432
      %v2406 = vld [vmem:[%s2405] sm:$0xf]
      %v2407 = vld [vmem:[%s2405 + $0x8] sm:$0xf]
      %v2408 = vld [vmem:[%s2405 + $0x10] sm:$0xf]
      %2410 = vrot.lane.b32.xlu0 %v2400, 64
      %v2411 = vpop.permute.xlu0 %2410
      %2414 = vrot.lane.b32.xlu0 %v2402, 64
      %v2415 = vpop.permute.xlu0 %2414
      %2418 = vrot.lane.b32.xlu0 %v2404, 64
      %v2419 = vpop.permute.xlu0 %2418
      %2422 = vrot.lane.b32.xlu0 %v2407, 64
      %v2423 = vpop.permute.xlu0 %2422
      %v2425 = vsel %vm282, %v2399, %v2411
      %v2426 = vsel %vm282, %v2401, %v2415
      %v2427 = vsel %vm282, %v2403, %v2419
      %v2428 = vsel %vm282, %v2406, %v2423
      %2429 = vst [vmem:[#allocation3 + $0x40] sm:$0xf] %v2425
      %2430 = vst [vmem:[#allocation3 + $0x48] sm:$0xf] %v2426
      %2431 = vst [vmem:[#allocation3 + $0x50] sm:$0xf] %v2427
      %2432 = vst [vmem:[#allocation3 + $0x58] sm:$0xf] %v2428
      %2433 = vst.msk [vmem:[#allocation3 + $0x60] sm:$0xf] %vm285, %v2408
      %v2434 = vld [vmem:[%s349] sm:$0xf]
      %v2435 = vld [vmem:[%s349 + $0x8] sm:$0xf]
      %v2436 = vld [vmem:[%s349 + $0x10] sm:$0xf]
      %v2437 = vld [vmem:[%s1787] sm:$0xf]
      %v2438 = vld [vmem:[%s1787 + $0x8] sm:$0xf]
      %v2439 = vld [vmem:[%s1787 + $0x10] sm:$0xf]
      %s2440 = scalar_lea.vmem [#allocation2], 456
      %v2441 = vld [vmem:[%s2440] sm:$0xf]
      %v2442 = vld [vmem:[%s2440 + $0x8] sm:$0xf]
      %v2443 = vld [vmem:[%s2440 + $0x10] sm:$0xf]
      %2445 = vrot.lane.b32.xlu0 %v2435, 64
      %v2446 = vpop.permute.xlu0 %2445
      %2449 = vrot.lane.b32.xlu0 %v2437, 64
      %v2450 = vpop.permute.xlu0 %2449
      %2453 = vrot.lane.b32.xlu0 %v2439, 64
      %v2454 = vpop.permute.xlu0 %2453
      %2457 = vrot.lane.b32.xlu0 %v2442, 64
      %v2458 = vpop.permute.xlu0 %2457
      %v2460 = vsel %vm282, %v2434, %v2446
      %v2461 = vsel %vm282, %v2436, %v2450
      %v2462 = vsel %vm282, %v2438, %v2454
      %v2463 = vsel %vm282, %v2441, %v2458
      %v2469 = vrot.slane %v2460, 4
      %v2470 = vrot.slane %v2461, 4
      %v2471 = vrot.slane %v2462, 4
      %v2472 = vrot.slane %v2463, 4
      %v2473 = vrot.slane %v2443, 4
      %2479 = vst [vmem:[#allocation3 + $0x40] sm:$0xf0] %v2469
      %2480 = vst [vmem:[#allocation3 + $0x48] sm:$0xf0] %v2470
      %2481 = vst [vmem:[#allocation3 + $0x50] sm:$0xf0] %v2471
      %2482 = vst [vmem:[#allocation3 + $0x58] sm:$0xf0] %v2472
      %2483 = vst.msk [vmem:[#allocation3 + $0x60] sm:$0xf0] %vm347, %v2473
      %v2484 = vld [vmem:[#allocation3] sm:$0xff]
      %v2485 = vld [vmem:[#allocation3 + $0x8] sm:$0xff]
      %v2486 = vld [vmem:[#allocation3 + $0x10] sm:$0xff]
      %v2487 = vld [vmem:[#allocation3 + $0x18] sm:$0xff]
      %v2488 = vld [vmem:[#allocation3 + $0x20] sm:$0xff]
      %v2489 = vld [vmem:[#allocation3 + $0x40] sm:$0xff]
      %v2490 = vld [vmem:[#allocation3 + $0x48] sm:$0xff]
      %v2491 = vld [vmem:[#allocation3 + $0x50] sm:$0xff]
      %v2492 = vld [vmem:[#allocation3 + $0x58] sm:$0xff]
      %v2493 = vld [vmem:[#allocation3 + $0x60] sm:$0xff]
      %v2494 = vpack.c.bf16 %v2489, %v2484
      %v2495 = vpack.c.bf16 %v2490, %v2485
      %v2496 = vpack.c.bf16 %v2491, %v2486
      %v2497 = vpack.c.bf16 %v2492, %v2487
      %v2498 = vpack.c.bf16 %v2493, %v2488
      %v2499 = vld [vmem:[%s4] sm:$0xf]
      %v2500 = vld [vmem:[%s4 + $0x4] sm:$0xf]
      %v2501 = vld [vmem:[%s4 + $0x8] sm:$0xf]
      %v2502 = vld [vmem:[%s4 + $0xc] sm:$0xf]
      %v2503 = vld [vmem:[%s4 + $0x10] sm:$0xf]
      %v2504 = vld [vmem:[%s4 + $0x14] sm:$0xf]
      %v2505 = vld [vmem:[%s4 + $0x18] sm:$0xf]
      %v2506 = vld [vmem:[%s4 + $0x1c] sm:$0xf]
      %v2507 = vld [vmem:[%s4 + $0x20] sm:$0xf]
      %v2508 = vld [vmem:[%s4 + $0x24] sm:$0xf]
      %v2509 = vld [vmem:[%s4 + $0x28] sm:$0xf]
      %v2510 = vld [vmem:[%s4 + $0x2c] sm:$0xf]
      %v2511 = vld [vmem:[%s4 + $0x30] sm:$0xf]
      %v2512 = vld [vmem:[%s4 + $0x34] sm:$0xf]
      %v2513 = vld [vmem:[%s4 + $0x38] sm:$0xf]
      %v2514 = vld [vmem:[%s4 + $0x3c] sm:$0xf]
      %v2515 = vld [vmem:[%s4 + $0x40] sm:$0xf]
      %v2516 = vld [vmem:[%s4 + $0x44] sm:$0xf]
      %v2517 = vld [vmem:[%s4 + $0x48] sm:$0xf]
      %v2518 = vld [vmem:[%s4 + $0x4c] sm:$0xf]
      %v2519 = vld [vmem:[%s4 + $0x50] sm:$0xf]
      %v2520 = vld [vmem:[%s4 + $0x54] sm:$0xf]
      %v2521 = vld [vmem:[%s4 + $0x58] sm:$0xf]
      %v2522 = vld [vmem:[%s4 + $0x5c] sm:$0xf]
      %v2523 = vld [vmem:[%s4 + $0x60] sm:$0xf]
      %v2524 = vld [vmem:[%s4 + $0x64] sm:$0xf]
      %v2525 = vld [vmem:[%s4 + $0x68] sm:$0xf]
      %v2526 = vld [vmem:[%s4 + $0x6c] sm:$0xf]
      %v2527 = vld [vmem:[%s4 + $0x70] sm:$0xf]
      %v2528 = vld [vmem:[%s4 + $0x74] sm:$0xf]
      %v2529 = vld [vmem:[%s4 + $0x78] sm:$0xf]
      %v2530 = vld [vmem:[%s4 + $0x7c] sm:$0xf]
      %v2531 = vld [vmem:[%s4 + $0x80] sm:$0xf]
      %v2532 = vld [vmem:[%s4 + $0x84] sm:$0xf]
      %v2533 = vld [vmem:[%s4 + $0x88] sm:$0xf]
      %v2534 = vld [vmem:[%s4 + $0x8c] sm:$0xf]
      %v2535 = vld [vmem:[%s4 + $0x90] sm:$0xf]
      %v2536 = vld [vmem:[%s4 + $0x94] sm:$0xf]
      %v2537 = vld [vmem:[%s4 + $0x98] sm:$0xf]
      %v2538 = vld [vmem:[%s4 + $0x9c] sm:$0xf]
      %v2539 = vld [vmem:[%s4 + $0xa0] sm:$0xf]
      %v2540 = vld [vmem:[%s4 + $0xa4] sm:$0xf]
      %v2541 = vld [vmem:[%s4 + $0xa8] sm:$0xf]
      %v2542 = vld [vmem:[%s4 + $0xac] sm:$0xf]
      %v2543 = vld [vmem:[%s4 + $0xb0] sm:$0xf]
      %v2544 = vld [vmem:[%s4 + $0xb4] sm:$0xf]
      %v2545 = vld [vmem:[%s4 + $0xb8] sm:$0xf]
      %v2546 = vld [vmem:[%s4 + $0xbc] sm:$0xf]
      %v2547 = vld [vmem:[%s4 + $0xc0] sm:$0xf]
      %v2548 = vld [vmem:[%s4 + $0xc4] sm:$0xf]
      %v2549 = vld [vmem:[%s4 + $0xc8] sm:$0xf]
      %v2550 = vld [vmem:[%s4 + $0xcc] sm:$0xf]
      %v2551 = vld [vmem:[%s4 + $0xd0] sm:$0xf]
      %v2552 = vld [vmem:[%s4 + $0xd4] sm:$0xf]
      %v2553 = vld [vmem:[%s4 + $0xd8] sm:$0xf]
      %v2554 = vld [vmem:[%s4 + $0xdc] sm:$0xf]
      %v2555 = vld [vmem:[%s4 + $0xe0] sm:$0xf]
      %v2556 = vld [vmem:[%s4 + $0xe4] sm:$0xf]
      %v2557 = vld [vmem:[%s4 + $0xe8] sm:$0xf]
      %v2558 = vld [vmem:[%s4 + $0xec] sm:$0xf]
      %v2559 = vld [vmem:[%s4 + $0xf0] sm:$0xf]
      %v2560 = vld [vmem:[%s4 + $0xf4] sm:$0xf]
      %v2561 = vld [vmem:[%s4 + $0xf8] sm:$0xf]
      %v2562 = vld [vmem:[%s4 + $0xfc] sm:$0xf]
      %v2563 = vld [vmem:[%s4 + $0x100] sm:$0xf]
      %v2564 = vld [vmem:[%s4 + $0x104] sm:$0xf]
      %v2565 = vld [vmem:[%s4 + $0x108] sm:$0xf]
      %v2566 = vld [vmem:[%s4 + $0x10c] sm:$0xf]
      %v2567 = vld [vmem:[%s4 + $0x110] sm:$0xf]
      %v2568 = vld [vmem:[%s4 + $0x114] sm:$0xf]
      %v2569 = vld [vmem:[%s4 + $0x118] sm:$0xf]
      %v2570 = vld [vmem:[%s4 + $0x11c] sm:$0xf]
      %v2643 = vunpack.c.l.b16 %v2499
      %v2644 = vunpack.c.l.b16 %v2500
      %v2645 = vunpack.c.l.b16 %v2501
      %v2646 = vunpack.c.l.b16 %v2502
      %v2647 = vunpack.c.l.b16 %v2503
      %v2648 = vunpack.c.l.b16 %v2504
      %v2649 = vunpack.c.l.b16 %v2505
      %v2650 = vunpack.c.l.b16 %v2506
      %v2651 = vunpack.c.l.b16 %v2507
      %v2652 = vunpack.c.l.b16 %v2508
      %v2653 = vunpack.c.l.b16 %v2509
      %v2654 = vunpack.c.l.b16 %v2510
      %v2655 = vunpack.c.l.b16 %v2511
      %v2656 = vunpack.c.l.b16 %v2512
      %v2657 = vunpack.c.l.b16 %v2513
      %v2658 = vunpack.c.l.b16 %v2514
      %v2659 = vunpack.c.l.b16 %v2515
      %v2660 = vunpack.c.l.b16 %v2516
      %v2661 = vunpack.c.l.b16 %v2517
      %v2662 = vunpack.c.l.b16 %v2518
      %v2663 = vunpack.c.l.b16 %v2519
      %v2664 = vunpack.c.l.b16 %v2520
      %v2665 = vunpack.c.l.b16 %v2521
      %v2666 = vunpack.c.l.b16 %v2522
      %v2667 = vunpack.c.l.b16 %v2523
      %v2668 = vunpack.c.l.b16 %v2524
      %v2669 = vunpack.c.l.b16 %v2525
      %v2670 = vunpack.c.l.b16 %v2526
      %v2671 = vunpack.c.l.b16 %v2527
      %v2672 = vunpack.c.l.b16 %v2528
      %v2673 = vunpack.c.l.b16 %v2529
      %v2674 = vunpack.c.l.b16 %v2530
      %v2675 = vunpack.c.l.b16 %v2531
      %v2676 = vunpack.c.l.b16 %v2532
      %v2677 = vunpack.c.l.b16 %v2533
      %v2678 = vunpack.c.l.b16 %v2534
      %v2679 = vunpack.c.l.b16 %v2535
      %v2680 = vunpack.c.l.b16 %v2536
      %v2681 = vunpack.c.l.b16 %v2537
      %v2682 = vunpack.c.l.b16 %v2538
      %v2683 = vunpack.c.l.b16 %v2539
      %v2684 = vunpack.c.l.b16 %v2540
      %v2685 = vunpack.c.l.b16 %v2541
      %v2686 = vunpack.c.l.b16 %v2542
      %v2687 = vunpack.c.l.b16 %v2543
      %v2688 = vunpack.c.l.b16 %v2544
      %v2689 = vunpack.c.l.b16 %v2545
      %v2690 = vunpack.c.l.b16 %v2546
      %v2691 = vunpack.c.l.b16 %v2547
      %v2692 = vunpack.c.l.b16 %v2548
      %v2693 = vunpack.c.l.b16 %v2549
      %v2694 = vunpack.c.l.b16 %v2550
      %v2695 = vunpack.c.l.b16 %v2551
      %v2696 = vunpack.c.l.b16 %v2552
      %v2697 = vunpack.c.l.b16 %v2553
      %v2698 = vunpack.c.l.b16 %v2554
      %v2699 = vunpack.c.l.b16 %v2555
      %v2700 = vunpack.c.l.b16 %v2556
      %v2701 = vunpack.c.l.b16 %v2557
      %v2702 = vunpack.c.l.b16 %v2558
      %v2703 = vunpack.c.l.b16 %v2559
      %v2704 = vunpack.c.l.b16 %v2560
      %v2705 = vunpack.c.l.b16 %v2561
      %v2706 = vunpack.c.l.b16 %v2562
      %v2707 = vunpack.c.l.b16 %v2563
      %v2708 = vunpack.c.l.b16 %v2564
      %v2709 = vunpack.c.l.b16 %v2565
      %v2710 = vunpack.c.l.b16 %v2566
      %v2711 = vunpack.c.l.b16 %v2567
      %v2712 = vunpack.c.l.b16 %v2568
      %v2713 = vunpack.c.l.b16 %v2569
      %v2714 = vunpack.c.l.b16 %v2570
      %v2715 = vpack.c.b16 %v2644, %v2643
      %v2716 = vpack.c.b16 %v2646, %v2645
      %v2717 = vpack.c.b16 %v2648, %v2647
      %v2718 = vpack.c.b16 %v2650, %v2649
      %v2719 = vpack.c.b16 %v2652, %v2651
      %v2720 = vpack.c.b16 %v2654, %v2653
      %v2721 = vpack.c.b16 %v2656, %v2655
      %v2722 = vpack.c.b16 %v2658, %v2657
      %v2723 = vpack.c.b16 %v2660, %v2659
      %v2724 = vpack.c.b16 %v2662, %v2661
      %v2725 = vpack.c.b16 %v2664, %v2663
      %v2726 = vpack.c.b16 %v2666, %v2665
      %v2727 = vpack.c.b16 %v2668, %v2667
      %v2728 = vpack.c.b16 %v2670, %v2669
      %v2729 = vpack.c.b16 %v2672, %v2671
      %v2730 = vpack.c.b16 %v2674, %v2673
      %v2731 = vpack.c.b16 %v2676, %v2675
      %v2732 = vpack.c.b16 %v2678, %v2677
      %v2733 = vpack.c.b16 %v2680, %v2679
      %v2734 = vpack.c.b16 %v2682, %v2681
      %v2735 = vpack.c.b16 %v2684, %v2683
      %v2736 = vpack.c.b16 %v2686, %v2685
      %v2737 = vpack.c.b16 %v2688, %v2687
      %v2738 = vpack.c.b16 %v2690, %v2689
      %v2739 = vpack.c.b16 %v2692, %v2691
      %v2740 = vpack.c.b16 %v2694, %v2693
      %v2741 = vpack.c.b16 %v2696, %v2695
      %v2742 = vpack.c.b16 %v2698, %v2697
      %v2743 = vpack.c.b16 %v2700, %v2699
      %v2744 = vpack.c.b16 %v2702, %v2701
      %v2745 = vpack.c.b16 %v2704, %v2703
      %v2746 = vpack.c.b16 %v2706, %v2705
      %v2747 = vpack.c.b16 %v2708, %v2707
      %v2748 = vpack.c.b16 %v2710, %v2709
      %v2749 = vpack.c.b16 %v2712, %v2711
      %v2750 = vpack.c.b16 %v2714, %v2713
      %v2788 = vsel %vm282, %v2498, 0
      %2790 = vmatpush.bf16.msra.mxu0 %v2722
      %2791 = vmatpush.bf16.msra.mxu0 %v2721
      %2792 = vmatpush.bf16.msra.mxu0 %v2720
      %2793 = vmatpush.bf16.msra.mxu0 %v2719
      %2794 = vmatpush.bf16.msra.mxu0 %v2718
      %2795 = vmatpush.bf16.msra.mxu0 %v2717
      %2796 = vmatpush.bf16.msra.mxu0 %v2716
      %2797 = vmatpush.bf16.msra.mxu0 %v2715
      %2798 = vmatmul.bf16.gmra.mxu0 %v2494
      %v2799 = vpop.f32.mrf.mxu0
      %v2800 = vadd.f32 0.0, %v2799
      %v2801 = vpop.f32.mrf.mxu0
      %v2802 = vadd.f32 0.0, %v2801
      %2803 = vdwg.mxu0
      %2804 = vmatpush.bf16.msra.mxu0 %v2730
      %2805 = vmatpush.bf16.msra.mxu0 %v2729
      %2806 = vmatpush.bf16.msra.mxu0 %v2728
      %2807 = vmatpush.bf16.msra.mxu0 %v2727
      %2808 = vmatpush.bf16.msra.mxu0 %v2726
      %2809 = vmatpush.bf16.msra.mxu0 %v2725
      %2810 = vmatpush.bf16.msra.mxu0 %v2724
      %2811 = vmatpush.bf16.msra.mxu0 %v2723
      %2812 = vmatmul.bf16.gmra.mxu0 %v2495
      %v2813 = vpop.f32.mrf.mxu0
      %v2814 = vadd.f32 %v2800, %v2813
      %v2815 = vpop.f32.mrf.mxu0
      %v2816 = vadd.f32 %v2802, %v2815
      %2817 = vdwg.mxu0
      %2818 = vmatpush.bf16.msra.mxu0 %v2738
      %2819 = vmatpush.bf16.msra.mxu0 %v2737
      %2820 = vmatpush.bf16.msra.mxu0 %v2736
      %2821 = vmatpush.bf16.msra.mxu0 %v2735
      %2822 = vmatpush.bf16.msra.mxu0 %v2734
      %2823 = vmatpush.bf16.msra.mxu0 %v2733
      %2824 = vmatpush.bf16.msra.mxu0 %v2732
      %2825 = vmatpush.bf16.msra.mxu0 %v2731
      %2826 = vmatmul.bf16.gmra.mxu0 %v2496
      %v2827 = vpop.f32.mrf.mxu0
      %v2828 = vadd.f32 %v2814, %v2827
      %v2829 = vpop.f32.mrf.mxu0
      %v2830 = vadd.f32 %v2816, %v2829
      %2831 = vdwg.mxu0
      %2832 = vmatpush.bf16.msra.mxu0 %v2746
      %2833 = vmatpush.bf16.msra.mxu0 %v2745
      %2834 = vmatpush.bf16.msra.mxu0 %v2744
      %2835 = vmatpush.bf16.msra.mxu0 %v2743
      %2836 = vmatpush.bf16.msra.mxu0 %v2742
      %2837 = vmatpush.bf16.msra.mxu0 %v2741
      %2838 = vmatpush.bf16.msra.mxu0 %v2740
      %2839 = vmatpush.bf16.msra.mxu0 %v2739
      %2840 = vmatmul.bf16.gmra.mxu0 %v2497
      %v2841 = vpop.f32.mrf.mxu0
      %v2842 = vadd.f32 %v2828, %v2841
      %v2843 = vpop.f32.mrf.mxu0
      %v2844 = vadd.f32 %v2830, %v2843
      %2845 = vdwg.mxu0
      %2846 = vmatpush.bf16.msra.mxu0 0
      %2847 = vmatpush.bf16.msra.mxu0 0
      %2848 = vmatpush.bf16.msra.mxu0 0
      %2849 = vmatpush.bf16.msra.mxu0 0
      %2850 = vmatpush.bf16.msra.mxu0 %v2750
      %2851 = vmatpush.bf16.msra.mxu0 %v2749
      %2852 = vmatpush.bf16.msra.mxu0 %v2748
      %2853 = vmatpush.bf16.msra.mxu0 %v2747
      %2854 = vmatmul.bf16.gmra.mxu0 %v2788
      %v2855 = vpop.f32.mrf.mxu0
      %v2856 = vadd.f32 %v2842, %v2855
      %v2857 = vpop.f32.mrf.mxu0
      %v2858 = vadd.f32 %v2844, %v2857
      %2859 = vdwg.mxu0
      %v2860 = vsel %vm282, %v2856, 0.0
      %v2861 = vsel %vm282, %v2858, 0.0
      %v2862 = vadd.f32 %v2860, %v2861
      %v2863 = vrot.slane %v2862, 4
      %v2864 = vadd.f32 %v2862, %v2863
      %v2865 = vrot.slane %v2864, 2
      %v2866 = vadd.f32 %v2864, %v2865
      %v2867 = vrot.slane %v2866, 1
      %v2868 = vadd.f32 %v2866, %v2867
      %v2869 = vmul.f32 %v2868, %v911
      %v2870 = vsub.f32 %v2856, %v2869
      %v2871 = vsub.f32 %v2858, %v2869
      %v2872 = vmul.f32 %v2870, %v2870
      %v2873 = vmul.f32 %v2871, %v2871
      %v2874 = vsel %vm282, %v2872, 0.0
      %v2875 = vsel %vm282, %v2873, 0.0
      %v2876 = vadd.f32 %v2874, %v2875
      %v2877 = vrot.slane %v2876, 4
      %v2878 = vadd.f32 %v2876, %v2877
      %v2879 = vrot.slane %v2878, 2
      %v2880 = vadd.f32 %v2878, %v2879
      %v2881 = vrot.slane %v2880, 1
      %v2882 = vadd.f32 %v2880, %v2881
      %v2883 = vmul.f32 %v2882, %v911
      %v2884 = vadd.f32 %v2883, 1e-05
      %v2885 = vrsqrt.pop %v2884
      %v2886 = vmul.f32 %v2885, %v2884
      %v2887 = vmul.f32 %v2886, %v2885
      %v2888 = vmul.f32 0.5, %v2887
      %v2889 = vsub.f32 1.5, %v2888
      %v2890 = vmul.f32 %v2885, %v2889
      %vm2891 = vweird.f32 %v2884
      %vm2892 = vweird.f32 %v2885
      %vm2893 = vmor %vm2891, %vm2892
      %v2894 = vsel %vm2893, %v2885, %v2890
      %v2895 = vmul.f32 %v2870, %v2894
      %v2896 = vmul.f32 %v2871, %v2894
      %vm2897 = vcmp.ge.f32.partialorder %v2895, 0.0
      %vm2898 = vcmp.ge.f32.partialorder %v2896, 0.0
      %v2899 = vmul.f32 %v2895, 0.2
      %v2900 = vmul.f32 %v2896, 0.2
      %v2901 = vsel %vm2897, %v2895, %v2899
      %v2902 = vsel %vm2898, %v2896, %v2900
      %v2903 = vadd.f32 %v944, %v2901
      %v2904 = vadd.f32 %v945, %v2902
      %2905 = vst.msk [vmem:[#allocation2] sm:$0xff] %vm282, 0.0
      %2906 = vst.msk [vmem:[#allocation2 + $0x8] sm:$0xff] %vm282, 0.0
      %2907 = vst.msk [vmem:[#allocation2 + $0x10] sm:$0xf] %vm285, 0.0
      %2908 = vst.msk [vmem:[#allocation2 + $0x18] sm:$0xff] %vm282, 0.0
      %2909 = vst.msk [vmem:[#allocation2 + $0x20] sm:$0xff] %vm282, 0.0
      %2910 = vst.msk [vmem:[#allocation2 + $0x28] sm:$0xf] %vm285, 0.0
      %2911 = vst.msk [vmem:[#allocation2 + $0x30] sm:$0xff] %vm282, 0.0
      %2912 = vst.msk [vmem:[#allocation2 + $0x38] sm:$0xff] %vm282, 0.0
      %2913 = vst.msk [vmem:[#allocation2 + $0x40] sm:$0xf] %vm285, 0.0
      %2914 = vst.msk [vmem:[#allocation2 + $0x48] sm:$0xff] %vm282, 0.0
      %2915 = vst.msk [vmem:[#allocation2 + $0x50] sm:$0xff] %vm282, 0.0
      %2916 = vst.msk [vmem:[#allocation2 + $0x58] sm:$0xf] %vm285, 0.0
      %2917 = vst.msk [vmem:[#allocation2 + $0x60] sm:$0xff] %vm282, 0.0
      %2918 = vst.msk [vmem:[#allocation2 + $0x68] sm:$0xff] %vm282, 0.0
      %2919 = vst.msk [vmem:[#allocation2 + $0x70] sm:$0xf] %vm285, 0.0
      %2920 = vst.msk [vmem:[#allocation2 + $0x78] sm:$0xff] %vm282, 0.0
      %2921 = vst.msk [vmem:[#allocation2 + $0x80] sm:$0xff] %vm282, 0.0
      %2922 = vst.msk [vmem:[#allocation2 + $0x88] sm:$0xf] %vm285, 0.0
      %2923 = vst.msk [vmem:[#allocation2 + $0x90] sm:$0xff] %vm282, 0.0
      %2924 = vst.msk [vmem:[#allocation2 + $0x98] sm:$0xff] %vm282, 0.0
      %2925 = vst.msk [vmem:[#allocation2 + $0xa0] sm:$0xf] %vm285, 0.0
      %2926 = vst.msk [vmem:[#allocation2 + $0xa8] sm:$0xff] %vm282, 0.0
      %2927 = vst.msk [vmem:[#allocation2 + $0xb0] sm:$0xff] %vm282, 0.0
      %2928 = vst.msk [vmem:[#allocation2 + $0xb8] sm:$0xf] %vm285, 0.0
      %2929 = vst.msk [vmem:[#allocation2 + $0xc0] sm:$0xff] %vm282, 0.0
      %2930 = vst.msk [vmem:[#allocation2 + $0xc8] sm:$0xff] %vm282, 0.0
      %2931 = vst.msk [vmem:[#allocation2 + $0xd0] sm:$0xf] %vm285, 0.0
      %2932 = vst.msk [vmem:[#allocation2 + $0xd8] sm:$0xff] %vm282, 0.0
      %2933 = vst.msk [vmem:[#allocation2 + $0xe0] sm:$0xff] %vm282, 0.0
      %2934 = vst.msk [vmem:[#allocation2 + $0xe8] sm:$0xf] %vm285, 0.0
      %2935 = vst.msk [vmem:[#allocation2 + $0xf0] sm:$0xff] %vm282, 0.0
      %2936 = vst.msk [vmem:[#allocation2 + $0xf8] sm:$0xff] %vm282, 0.0
      %2937 = vst.msk [vmem:[#allocation2 + $0x100] sm:$0xf] %vm285, 0.0
      %2938 = vst.msk [vmem:[#allocation2 + $0x108] sm:$0xff] %vm282, 0.0
      %2939 = vst.msk [vmem:[#allocation2 + $0x110] sm:$0xff] %vm282, 0.0
      %2940 = vst.msk [vmem:[#allocation2 + $0x118] sm:$0xf] %vm285, 0.0
      %2941 = vst.msk [vmem:[#allocation2 + $0x120] sm:$0xff] %vm282, 0.0
      %2942 = vst.msk [vmem:[#allocation2 + $0x128] sm:$0xff] %vm282, 0.0
      %2943 = vst.msk [vmem:[#allocation2 + $0x130] sm:$0xf] %vm285, 0.0
      %2944 = vst.msk [vmem:[#allocation2 + $0x138] sm:$0xff] %vm282, 0.0
      %2945 = vst.msk [vmem:[#allocation2 + $0x140] sm:$0xff] %vm282, 0.0
      %2946 = vst.msk [vmem:[#allocation2 + $0x148] sm:$0xf] %vm285, 0.0
      %2947 = vst.msk [vmem:[#allocation2 + $0x150] sm:$0xff] %vm282, 0.0
      %2948 = vst.msk [vmem:[#allocation2 + $0x158] sm:$0xff] %vm282, 0.0
      %2949 = vst.msk [vmem:[#allocation2 + $0x160] sm:$0xf] %vm285, 0.0
      %2950 = vst.msk [vmem:[#allocation2 + $0x168] sm:$0xff] %vm282, 0.0
      %2951 = vst.msk [vmem:[#allocation2 + $0x170] sm:$0xff] %vm282, 0.0
      %2952 = vst.msk [vmem:[#allocation2 + $0x178] sm:$0xf] %vm285, 0.0
      %2953 = vst.msk [vmem:[#allocation2 + $0x180] sm:$0xff] %vm282, 0.0
      %2954 = vst.msk [vmem:[#allocation2 + $0x188] sm:$0xff] %vm282, 0.0
      %2955 = vst.msk [vmem:[#allocation2 + $0x190] sm:$0xf] %vm285, 0.0
      %2956 = vst.msk [vmem:[#allocation2 + $0x198] sm:$0xff] %vm282, 0.0
      %2957 = vst.msk [vmem:[#allocation2 + $0x1a0] sm:$0xff] %vm282, 0.0
      %2958 = vst.msk [vmem:[#allocation2 + $0x1a8] sm:$0xf] %vm285, 0.0
      %2959 = vst.msk [vmem:[#allocation2 + $0x1b0] sm:$0xff] %vm282, 0.0
      %2960 = vst.msk [vmem:[#allocation2 + $0x1b8] sm:$0xff] %vm282, 0.0
      %2961 = vst.msk [vmem:[#allocation2 + $0x1c0] sm:$0xf] %vm285, 0.0
      %2962 = vst.msk [vmem:[#allocation2 + $0x1c8] sm:$0xff] %vm282, 0.0
      %2963 = vst.msk [vmem:[#allocation2 + $0x1d0] sm:$0xff] %vm282, 0.0
      %2964 = vst.msk [vmem:[#allocation2 + $0x1d8] sm:$0xf] %vm285, 0.0
      %2965 = vst.msk [vmem:[%s344 + $0x1] sm:$0xf] %vm285, %v2903
      %2966 = vst.msk [vmem:[%s346 - $0x3] sm:$0xf0] %vm347, %v2903
      %2967 = vst.msk [vmem:[%s349 + $0x1] sm:$0xf] %vm285, %v2904
      %2968 = vst.msk [vmem:[%s351 - $0x3] sm:$0xf0] %vm347, %v2904
      %v2969 = vld [vmem:[#allocation2] sm:$0xf]
      %v2970 = vld [vmem:[#allocation2 + $0x1] sm:$0xf]
      %v2971 = vld [vmem:[#allocation2 + $0x2] sm:$0xf]
      %v2972 = vld [vmem:[%s344] sm:$0xf]
      %v2973 = vld [vmem:[%s344 + $0x1] sm:$0xf]
      %v2974 = vld [vmem:[%s344 + $0x2] sm:$0xf]
      %v2975 = vld [vmem:[%s346] sm:$0xf]
      %v2976 = vld [vmem:[%s346 + $0x1] sm:$0xf]
      %v2977 = vld [vmem:[%s346 + $0x2] sm:$0xf]
      %2979 = vrot.lane.b32.xlu0 %v2970, 64
      %v2980 = vpop.permute.xlu0 %2979
      %2983 = vrot.lane.b32.xlu0 %v2972, 64
      %v2984 = vpop.permute.xlu0 %2983
      %2987 = vrot.lane.b32.xlu0 %v2974, 64
      %v2988 = vpop.permute.xlu0 %2987
      %2991 = vrot.lane.b32.xlu0 %v2976, 64
      %v2992 = vpop.permute.xlu0 %2991
      %v2994 = vsel %vm282, %v2969, %v2980
      %v2995 = vsel %vm282, %v2971, %v2984
      %v2996 = vsel %vm282, %v2973, %v2988
      %v2997 = vsel %vm282, %v2975, %v2992
      %2998 = vst [vmem:[#allocation3] sm:$0xf] %v2994
      %2999 = vst [vmem:[#allocation3 + $0x8] sm:$0xf] %v2995
      %3000 = vst [vmem:[#allocation3 + $0x10] sm:$0xf] %v2996
      %3001 = vst [vmem:[#allocation3 + $0x18] sm:$0xf] %v2997
      %3002 = vst.msk [vmem:[#allocation3 + $0x20] sm:$0xf] %vm285, %v2977
      %v3003 = vld [vmem:[%s344] sm:$0xf]
      %v3004 = vld [vmem:[%s344 + $0x1] sm:$0xf]
      %v3005 = vld [vmem:[%s344 + $0x2] sm:$0xf]
      %v3006 = vld [vmem:[%s346] sm:$0xf]
      %v3007 = vld [vmem:[%s346 + $0x1] sm:$0xf]
      %v3008 = vld [vmem:[%s346 + $0x2] sm:$0xf]
      %v3009 = vld [vmem:[%s349] sm:$0xf]
      %v3010 = vld [vmem:[%s349 + $0x1] sm:$0xf]
      %v3011 = vld [vmem:[%s349 + $0x2] sm:$0xf]
      %3013 = vrot.lane.b32.xlu0 %v3004, 64
      %v3014 = vpop.permute.xlu0 %3013
      %3017 = vrot.lane.b32.xlu0 %v3006, 64
      %v3018 = vpop.permute.xlu0 %3017
      %3021 = vrot.lane.b32.xlu0 %v3008, 64
      %v3022 = vpop.permute.xlu0 %3021
      %3025 = vrot.lane.b32.xlu0 %v3010, 64
      %v3026 = vpop.permute.xlu0 %3025
      %v3028 = vsel %vm282, %v3003, %v3014
      %v3029 = vsel %vm282, %v3005, %v3018
      %v3030 = vsel %vm282, %v3007, %v3022
      %v3031 = vsel %vm282, %v3009, %v3026
      %v3037 = vrot.slane %v3028, 4
      %v3038 = vrot.slane %v3029, 4
      %v3039 = vrot.slane %v3030, 4
      %v3040 = vrot.slane %v3031, 4
      %v3041 = vrot.slane %v3011, 4
      %3047 = vst [vmem:[#allocation3] sm:$0xf0] %v3037
      %3048 = vst [vmem:[#allocation3 + $0x8] sm:$0xf0] %v3038
      %3049 = vst [vmem:[#allocation3 + $0x10] sm:$0xf0] %v3039
      %3050 = vst [vmem:[#allocation3 + $0x18] sm:$0xf0] %v3040
      %3051 = vst.msk [vmem:[#allocation3 + $0x20] sm:$0xf0] %vm347, %v3041
      %v3052 = vld [vmem:[%s346] sm:$0xf]
      %v3053 = vld [vmem:[%s346 + $0x1] sm:$0xf]
      %v3054 = vld [vmem:[%s346 + $0x2] sm:$0xf]
      %v3055 = vld [vmem:[%s349] sm:$0xf]
      %v3056 = vld [vmem:[%s349 + $0x1] sm:$0xf]
      %v3057 = vld [vmem:[%s349 + $0x2] sm:$0xf]
      %v3058 = vld [vmem:[%s351] sm:$0xf]
      %v3059 = vld [vmem:[%s351 + $0x1] sm:$0xf]
      %v3060 = vld [vmem:[%s351 + $0x2] sm:$0xf]
      %3062 = vrot.lane.b32.xlu0 %v3053, 64
      %v3063 = vpop.permute.xlu0 %3062
      %3066 = vrot.lane.b32.xlu0 %v3055, 64
      %v3067 = vpop.permute.xlu0 %3066
      %3070 = vrot.lane.b32.xlu0 %v3057, 64
      %v3071 = vpop.permute.xlu0 %3070
      %3074 = vrot.lane.b32.xlu0 %v3059, 64
      %v3075 = vpop.permute.xlu0 %3074
      %v3077 = vsel %vm282, %v3052, %v3063
      %v3078 = vsel %vm282, %v3054, %v3067
      %v3079 = vsel %vm282, %v3056, %v3071
      %v3080 = vsel %vm282, %v3058, %v3075
      %3081 = vst [vmem:[#allocation3 + $0x40] sm:$0xf] %v3077
      %3082 = vst [vmem:[#allocation3 + $0x48] sm:$0xf] %v3078
      %3083 = vst [vmem:[#allocation3 + $0x50] sm:$0xf] %v3079
      %3084 = vst [vmem:[#allocation3 + $0x58] sm:$0xf] %v3080
      %3085 = vst.msk [vmem:[#allocation3 + $0x60] sm:$0xf] %vm285, %v3060
      %v3086 = vld [vmem:[%s349] sm:$0xf]
      %v3087 = vld [vmem:[%s349 + $0x1] sm:$0xf]
      %v3088 = vld [vmem:[%s349 + $0x2] sm:$0xf]
      %v3089 = vld [vmem:[%s351] sm:$0xf]
      %v3090 = vld [vmem:[%s351 + $0x1] sm:$0xf]
      %v3091 = vld [vmem:[%s351 + $0x2] sm:$0xf]
      %v3092 = vld [vmem:[%s476] sm:$0xf]
      %v3093 = vld [vmem:[%s476 + $0x1] sm:$0xf]
      %v3094 = vld [vmem:[%s476 + $0x2] sm:$0xf]
      %3096 = vrot.lane.b32.xlu0 %v3087, 64
      %v3097 = vpop.permute.xlu0 %3096
      %3100 = vrot.lane.b32.xlu0 %v3089, 64
      %v3101 = vpop.permute.xlu0 %3100
      %3104 = vrot.lane.b32.xlu0 %v3091, 64
      %v3105 = vpop.permute.xlu0 %3104
      %3108 = vrot.lane.b32.xlu0 %v3093, 64
      %v3109 = vpop.permute.xlu0 %3108
      %v3111 = vsel %vm282, %v3086, %v3097
      %v3112 = vsel %vm282, %v3088, %v3101
      %v3113 = vsel %vm282, %v3090, %v3105
      %v3114 = vsel %vm282, %v3092, %v3109
      %v3120 = vrot.slane %v3111, 4
      %v3121 = vrot.slane %v3112, 4
      %v3122 = vrot.slane %v3113, 4
      %v3123 = vrot.slane %v3114, 4
      %v3124 = vrot.slane %v3094, 4
      %3130 = vst [vmem:[#allocation3 + $0x40] sm:$0xf0] %v3120
      %3131 = vst [vmem:[#allocation3 + $0x48] sm:$0xf0] %v3121
      %3132 = vst [vmem:[#allocation3 + $0x50] sm:$0xf0] %v3122
      %3133 = vst [vmem:[#allocation3 + $0x58] sm:$0xf0] %v3123
      %3134 = vst.msk [vmem:[#allocation3 + $0x60] sm:$0xf0] %vm347, %v3124
      %v3135 = vld [vmem:[#allocation3] sm:$0xff]
      %v3136 = vld [vmem:[#allocation3 + $0x8] sm:$0xff]
      %v3137 = vld [vmem:[#allocation3 + $0x10] sm:$0xff]
      %v3138 = vld [vmem:[#allocation3 + $0x18] sm:$0xff]
      %v3139 = vld [vmem:[#allocation3 + $0x20] sm:$0xff]
      %v3140 = vld [vmem:[#allocation3 + $0x40] sm:$0xff]
      %v3141 = vld [vmem:[#allocation3 + $0x48] sm:$0xff]
      %v3142 = vld [vmem:[#allocation3 + $0x50] sm:$0xff]
      %v3143 = vld [vmem:[#allocation3 + $0x58] sm:$0xff]
      %v3144 = vld [vmem:[#allocation3 + $0x60] sm:$0xff]
      %v3145 = vpack.c.bf16 %v3140, %v3135
      %v3146 = vpack.c.bf16 %v3141, %v3136
      %v3147 = vpack.c.bf16 %v3142, %v3137
      %v3148 = vpack.c.bf16 %v3143, %v3138
      %v3149 = vpack.c.bf16 %v3144, %v3139
      %v3150 = vld [vmem:[%s5] sm:$0xf]
      %v3151 = vld [vmem:[%s5 + $0x4] sm:$0xf]
      %v3152 = vld [vmem:[%s5 + $0x8] sm:$0xf]
      %v3153 = vld [vmem:[%s5 + $0xc] sm:$0xf]
      %v3154 = vld [vmem:[%s5 + $0x10] sm:$0xf]
      %v3155 = vld [vmem:[%s5 + $0x14] sm:$0xf]
      %v3156 = vld [vmem:[%s5 + $0x18] sm:$0xf]
      %v3157 = vld [vmem:[%s5 + $0x1c] sm:$0xf]
      %v3158 = vld [vmem:[%s5 + $0x20] sm:$0xf]
      %v3159 = vld [vmem:[%s5 + $0x24] sm:$0xf]
      %v3160 = vld [vmem:[%s5 + $0x28] sm:$0xf]
      %v3161 = vld [vmem:[%s5 + $0x2c] sm:$0xf]
      %v3162 = vld [vmem:[%s5 + $0x30] sm:$0xf]
      %v3163 = vld [vmem:[%s5 + $0x34] sm:$0xf]
      %v3164 = vld [vmem:[%s5 + $0x38] sm:$0xf]
      %v3165 = vld [vmem:[%s5 + $0x3c] sm:$0xf]
      %v3166 = vld [vmem:[%s5 + $0x40] sm:$0xf]
      %v3167 = vld [vmem:[%s5 + $0x44] sm:$0xf]
      %v3168 = vld [vmem:[%s5 + $0x48] sm:$0xf]
      %v3169 = vld [vmem:[%s5 + $0x4c] sm:$0xf]
      %v3170 = vld [vmem:[%s5 + $0x50] sm:$0xf]
      %v3171 = vld [vmem:[%s5 + $0x54] sm:$0xf]
      %v3172 = vld [vmem:[%s5 + $0x58] sm:$0xf]
      %v3173 = vld [vmem:[%s5 + $0x5c] sm:$0xf]
      %v3174 = vld [vmem:[%s5 + $0x60] sm:$0xf]
      %v3175 = vld [vmem:[%s5 + $0x64] sm:$0xf]
      %v3176 = vld [vmem:[%s5 + $0x68] sm:$0xf]
      %v3177 = vld [vmem:[%s5 + $0x6c] sm:$0xf]
      %v3178 = vld [vmem:[%s5 + $0x70] sm:$0xf]
      %v3179 = vld [vmem:[%s5 + $0x74] sm:$0xf]
      %v3180 = vld [vmem:[%s5 + $0x78] sm:$0xf]
      %v3181 = vld [vmem:[%s5 + $0x7c] sm:$0xf]
      %v3182 = vld [vmem:[%s5 + $0x80] sm:$0xf]
      %v3183 = vld [vmem:[%s5 + $0x84] sm:$0xf]
      %v3184 = vld [vmem:[%s5 + $0x88] sm:$0xf]
      %v3185 = vld [vmem:[%s5 + $0x8c] sm:$0xf]
      %v3186 = vld [vmem:[%s5 + $0x90] sm:$0xf]
      %v3187 = vld [vmem:[%s5 + $0x94] sm:$0xf]
      %v3188 = vld [vmem:[%s5 + $0x98] sm:$0xf]
      %v3189 = vld [vmem:[%s5 + $0x9c] sm:$0xf]
      %v3190 = vld [vmem:[%s5 + $0xa0] sm:$0xf]
      %v3191 = vld [vmem:[%s5 + $0xa4] sm:$0xf]
      %v3192 = vld [vmem:[%s5 + $0xa8] sm:$0xf]
      %v3193 = vld [vmem:[%s5 + $0xac] sm:$0xf]
      %v3194 = vld [vmem:[%s5 + $0xb0] sm:$0xf]
      %v3195 = vld [vmem:[%s5 + $0xb4] sm:$0xf]
      %v3196 = vld [vmem:[%s5 + $0xb8] sm:$0xf]
      %v3197 = vld [vmem:[%s5 + $0xbc] sm:$0xf]
      %v3198 = vld [vmem:[%s5 + $0xc0] sm:$0xf]
      %v3199 = vld [vmem:[%s5 + $0xc4] sm:$0xf]
      %v3200 = vld [vmem:[%s5 + $0xc8] sm:$0xf]
      %v3201 = vld [vmem:[%s5 + $0xcc] sm:$0xf]
      %v3202 = vld [vmem:[%s5 + $0xd0] sm:$0xf]
      %v3203 = vld [vmem:[%s5 + $0xd4] sm:$0xf]
      %v3204 = vld [vmem:[%s5 + $0xd8] sm:$0xf]
      %v3205 = vld [vmem:[%s5 + $0xdc] sm:$0xf]
      %v3206 = vld [vmem:[%s5 + $0xe0] sm:$0xf]
      %v3207 = vld [vmem:[%s5 + $0xe4] sm:$0xf]
      %v3208 = vld [vmem:[%s5 + $0xe8] sm:$0xf]
      %v3209 = vld [vmem:[%s5 + $0xec] sm:$0xf]
      %v3210 = vld [vmem:[%s5 + $0xf0] sm:$0xf]
      %v3211 = vld [vmem:[%s5 + $0xf4] sm:$0xf]
      %v3212 = vld [vmem:[%s5 + $0xf8] sm:$0xf]
      %v3213 = vld [vmem:[%s5 + $0xfc] sm:$0xf]
      %v3214 = vld [vmem:[%s5 + $0x100] sm:$0xf]
      %v3215 = vld [vmem:[%s5 + $0x104] sm:$0xf]
      %v3216 = vld [vmem:[%s5 + $0x108] sm:$0xf]
      %v3217 = vld [vmem:[%s5 + $0x10c] sm:$0xf]
      %v3218 = vld [vmem:[%s5 + $0x110] sm:$0xf]
      %v3219 = vld [vmem:[%s5 + $0x114] sm:$0xf]
      %v3220 = vld [vmem:[%s5 + $0x118] sm:$0xf]
      %v3221 = vld [vmem:[%s5 + $0x11c] sm:$0xf]
      %v3294 = vunpack.c.l.b16 %v3150
      %v3295 = vunpack.c.l.b16 %v3151
      %v3296 = vunpack.c.l.b16 %v3152
      %v3297 = vunpack.c.l.b16 %v3153
      %v3298 = vunpack.c.l.b16 %v3154
      %v3299 = vunpack.c.l.b16 %v3155
      %v3300 = vunpack.c.l.b16 %v3156
      %v3301 = vunpack.c.l.b16 %v3157
      %v3302 = vunpack.c.l.b16 %v3158
      %v3303 = vunpack.c.l.b16 %v3159
      %v3304 = vunpack.c.l.b16 %v3160
      %v3305 = vunpack.c.l.b16 %v3161
      %v3306 = vunpack.c.l.b16 %v3162
      %v3307 = vunpack.c.l.b16 %v3163
      %v3308 = vunpack.c.l.b16 %v3164
      %v3309 = vunpack.c.l.b16 %v3165
      %v3310 = vunpack.c.l.b16 %v3166
      %v3311 = vunpack.c.l.b16 %v3167
      %v3312 = vunpack.c.l.b16 %v3168
      %v3313 = vunpack.c.l.b16 %v3169
      %v3314 = vunpack.c.l.b16 %v3170
      %v3315 = vunpack.c.l.b16 %v3171
      %v3316 = vunpack.c.l.b16 %v3172
      %v3317 = vunpack.c.l.b16 %v3173
      %v3318 = vunpack.c.l.b16 %v3174
      %v3319 = vunpack.c.l.b16 %v3175
      %v3320 = vunpack.c.l.b16 %v3176
      %v3321 = vunpack.c.l.b16 %v3177
      %v3322 = vunpack.c.l.b16 %v3178
      %v3323 = vunpack.c.l.b16 %v3179
      %v3324 = vunpack.c.l.b16 %v3180
      %v3325 = vunpack.c.l.b16 %v3181
      %v3326 = vunpack.c.l.b16 %v3182
      %v3327 = vunpack.c.l.b16 %v3183
      %v3328 = vunpack.c.l.b16 %v3184
      %v3329 = vunpack.c.l.b16 %v3185
      %v3330 = vunpack.c.l.b16 %v3186
      %v3331 = vunpack.c.l.b16 %v3187
      %v3332 = vunpack.c.l.b16 %v3188
      %v3333 = vunpack.c.l.b16 %v3189
      %v3334 = vunpack.c.l.b16 %v3190
      %v3335 = vunpack.c.l.b16 %v3191
      %v3336 = vunpack.c.l.b16 %v3192
      %v3337 = vunpack.c.l.b16 %v3193
      %v3338 = vunpack.c.l.b16 %v3194
      %v3339 = vunpack.c.l.b16 %v3195
      %v3340 = vunpack.c.l.b16 %v3196
      %v3341 = vunpack.c.l.b16 %v3197
      %v3342 = vunpack.c.l.b16 %v3198
      %v3343 = vunpack.c.l.b16 %v3199
      %v3344 = vunpack.c.l.b16 %v3200
      %v3345 = vunpack.c.l.b16 %v3201
      %v3346 = vunpack.c.l.b16 %v3202
      %v3347 = vunpack.c.l.b16 %v3203
      %v3348 = vunpack.c.l.b16 %v3204
      %v3349 = vunpack.c.l.b16 %v3205
      %v3350 = vunpack.c.l.b16 %v3206
      %v3351 = vunpack.c.l.b16 %v3207
      %v3352 = vunpack.c.l.b16 %v3208
      %v3353 = vunpack.c.l.b16 %v3209
      %v3354 = vunpack.c.l.b16 %v3210
      %v3355 = vunpack.c.l.b16 %v3211
      %v3356 = vunpack.c.l.b16 %v3212
      %v3357 = vunpack.c.l.b16 %v3213
      %v3358 = vunpack.c.l.b16 %v3214
      %v3359 = vunpack.c.l.b16 %v3215
      %v3360 = vunpack.c.l.b16 %v3216
      %v3361 = vunpack.c.l.b16 %v3217
      %v3362 = vunpack.c.l.b16 %v3218
      %v3363 = vunpack.c.l.b16 %v3219
      %v3364 = vunpack.c.l.b16 %v3220
      %v3365 = vunpack.c.l.b16 %v3221
      %v3366 = vpack.c.b16 %v3295, %v3294
      %v3367 = vpack.c.b16 %v3297, %v3296
      %v3368 = vpack.c.b16 %v3299, %v3298
      %v3369 = vpack.c.b16 %v3301, %v3300
      %v3370 = vpack.c.b16 %v3303, %v3302
      %v3371 = vpack.c.b16 %v3305, %v3304
      %v3372 = vpack.c.b16 %v3307, %v3306
      %v3373 = vpack.c.b16 %v3309, %v3308
      %v3374 = vpack.c.b16 %v3311, %v3310
      %v3375 = vpack.c.b16 %v3313, %v3312
      %v3376 = vpack.c.b16 %v3315, %v3314
      %v3377 = vpack.c.b16 %v3317, %v3316
      %v3378 = vpack.c.b16 %v3319, %v3318
      %v3379 = vpack.c.b16 %v3321, %v3320
      %v3380 = vpack.c.b16 %v3323, %v3322
      %v3381 = vpack.c.b16 %v3325, %v3324
      %v3382 = vpack.c.b16 %v3327, %v3326
      %v3383 = vpack.c.b16 %v3329, %v3328
      %v3384 = vpack.c.b16 %v3331, %v3330
      %v3385 = vpack.c.b16 %v3333, %v3332
      %v3386 = vpack.c.b16 %v3335, %v3334
      %v3387 = vpack.c.b16 %v3337, %v3336
      %v3388 = vpack.c.b16 %v3339, %v3338
      %v3389 = vpack.c.b16 %v3341, %v3340
      %v3390 = vpack.c.b16 %v3343, %v3342
      %v3391 = vpack.c.b16 %v3345, %v3344
      %v3392 = vpack.c.b16 %v3347, %v3346
      %v3393 = vpack.c.b16 %v3349, %v3348
      %v3394 = vpack.c.b16 %v3351, %v3350
      %v3395 = vpack.c.b16 %v3353, %v3352
      %v3396 = vpack.c.b16 %v3355, %v3354
      %v3397 = vpack.c.b16 %v3357, %v3356
      %v3398 = vpack.c.b16 %v3359, %v3358
      %v3399 = vpack.c.b16 %v3361, %v3360
      %v3400 = vpack.c.b16 %v3363, %v3362
      %v3401 = vpack.c.b16 %v3365, %v3364
      %v3439 = vsel %vm282, %v3149, 0
      %3441 = vmatpush.bf16.msra.mxu0 %v3373
      %3442 = vmatpush.bf16.msra.mxu0 %v3372
      %3443 = vmatpush.bf16.msra.mxu0 %v3371
      %3444 = vmatpush.bf16.msra.mxu0 %v3370
      %3445 = vmatpush.bf16.msra.mxu0 %v3369
      %3446 = vmatpush.bf16.msra.mxu0 %v3368
      %3447 = vmatpush.bf16.msra.mxu0 %v3367
      %3448 = vmatpush.bf16.msra.mxu0 %v3366
      %3449 = vmatmul.bf16.gmra.mxu0 %v3145
      %v3450 = vpop.f32.mrf.mxu0
      %v3451 = vadd.f32 0.0, %v3450
      %v3452 = vpop.f32.mrf.mxu0
      %v3453 = vadd.f32 0.0, %v3452
      %3454 = vdwg.mxu0
      %3455 = vmatpush.bf16.msra.mxu0 %v3381
      %3456 = vmatpush.bf16.msra.mxu0 %v3380
      %3457 = vmatpush.bf16.msra.mxu0 %v3379
      %3458 = vmatpush.bf16.msra.mxu0 %v3378
      %3459 = vmatpush.bf16.msra.mxu0 %v3377
      %3460 = vmatpush.bf16.msra.mxu0 %v3376
      %3461 = vmatpush.bf16.msra.mxu0 %v3375
      %3462 = vmatpush.bf16.msra.mxu0 %v3374
      %3463 = vmatmul.bf16.gmra.mxu0 %v3146
      %v3464 = vpop.f32.mrf.mxu0
      %v3465 = vadd.f32 %v3451, %v3464
      %v3466 = vpop.f32.mrf.mxu0
      %v3467 = vadd.f32 %v3453, %v3466
      %3468 = vdwg.mxu0
      %3469 = vmatpush.bf16.msra.mxu0 %v3389
      %3470 = vmatpush.bf16.msra.mxu0 %v3388
      %3471 = vmatpush.bf16.msra.mxu0 %v3387
      %3472 = vmatpush.bf16.msra.mxu0 %v3386
      %3473 = vmatpush.bf16.msra.mxu0 %v3385
      %3474 = vmatpush.bf16.msra.mxu0 %v3384
      %3475 = vmatpush.bf16.msra.mxu0 %v3383
      %3476 = vmatpush.bf16.msra.mxu0 %v3382
      %3477 = vmatmul.bf16.gmra.mxu0 %v3147
      %v3478 = vpop.f32.mrf.mxu0
      %v3479 = vadd.f32 %v3465, %v3478
      %v3480 = vpop.f32.mrf.mxu0
      %v3481 = vadd.f32 %v3467, %v3480
      %3482 = vdwg.mxu0
      %3483 = vmatpush.bf16.msra.mxu0 %v3397
      %3484 = vmatpush.bf16.msra.mxu0 %v3396
      %3485 = vmatpush.bf16.msra.mxu0 %v3395
      %3486 = vmatpush.bf16.msra.mxu0 %v3394
      %3487 = vmatpush.bf16.msra.mxu0 %v3393
      %3488 = vmatpush.bf16.msra.mxu0 %v3392
      %3489 = vmatpush.bf16.msra.mxu0 %v3391
      %3490 = vmatpush.bf16.msra.mxu0 %v3390
      %3491 = vmatmul.bf16.gmra.mxu0 %v3148
      %v3492 = vpop.f32.mrf.mxu0
      %v3493 = vadd.f32 %v3479, %v3492
      %v3494 = vpop.f32.mrf.mxu0
      %v3495 = vadd.f32 %v3481, %v3494
      %3496 = vdwg.mxu0
      %3497 = vmatpush.bf16.msra.mxu0 0
      %3498 = vmatpush.bf16.msra.mxu0 0
      %3499 = vmatpush.bf16.msra.mxu0 0
      %3500 = vmatpush.bf16.msra.mxu0 0
      %3501 = vmatpush.bf16.msra.mxu0 %v3401
      %3502 = vmatpush.bf16.msra.mxu0 %v3400
      %3503 = vmatpush.bf16.msra.mxu0 %v3399
      %3504 = vmatpush.bf16.msra.mxu0 %v3398
      %3505 = vmatmul.bf16.gmra.mxu0 %v3439
      %v3506 = vpop.f32.mrf.mxu0
      %v3507 = vadd.f32 %v3493, %v3506
      %v3508 = vpop.f32.mrf.mxu0
      %v3509 = vadd.f32 %v3495, %v3508
      %3510 = vdwg.mxu0
      %v3511 = vsel %vm282, %v3507, 0.0
      %v3512 = vsel %vm282, %v3509, 0.0
      %v3513 = vadd.f32 %v3511, %v3512
      %v3514 = vrot.slane %v3513, 4
      %v3515 = vadd.f32 %v3513, %v3514
      %v3516 = vrot.slane %v3515, 2
      %v3517 = vadd.f32 %v3515, %v3516
      %v3518 = vrot.slane %v3517, 1
      %v3519 = vadd.f32 %v3517, %v3518
      %v3520 = vmul.f32 %v3519, %v911
      %v3521 = vsub.f32 %v3507, %v3520
      %v3522 = vsub.f32 %v3509, %v3520
      %v3523 = vmul.f32 %v3521, %v3521
      %v3524 = vmul.f32 %v3522, %v3522
      %v3525 = vsel %vm282, %v3523, 0.0
      %v3526 = vsel %vm282, %v3524, 0.0
      %v3527 = vadd.f32 %v3525, %v3526
      %v3528 = vrot.slane %v3527, 4
      %v3529 = vadd.f32 %v3527, %v3528
      %v3530 = vrot.slane %v3529, 2
      %v3531 = vadd.f32 %v3529, %v3530
      %v3532 = vrot.slane %v3531, 1
      %v3533 = vadd.f32 %v3531, %v3532
      %v3534 = vmul.f32 %v3533, %v911
      %v3535 = vadd.f32 %v3534, 1e-05
      %v3536 = vrsqrt.pop %v3535
      %v3537 = vmul.f32 %v3536, %v3535
      %v3538 = vmul.f32 %v3537, %v3536
      %v3539 = vmul.f32 0.5, %v3538
      %v3540 = vsub.f32 1.5, %v3539
      %v3541 = vmul.f32 %v3536, %v3540
      %vm3542 = vweird.f32 %v3535
      %vm3543 = vweird.f32 %v3536
      %vm3544 = vmor %vm3542, %vm3543
      %v3545 = vsel %vm3544, %v3536, %v3541
      %v3546 = vmul.f32 %v3521, %v3545
      %v3547 = vmul.f32 %v3522, %v3545
      %vm3548 = vcmp.ge.f32.partialorder %v3546, 0.0
      %vm3549 = vcmp.ge.f32.partialorder %v3547, 0.0
      %v3550 = vmul.f32 %v3546, 0.2
      %v3551 = vmul.f32 %v3547, 0.2
      %v3552 = vsel %vm3548, %v3546, %v3550
      %v3553 = vsel %vm3549, %v3547, %v3551
      %3554 = vst.msk [vmem:[#allocation2] sm:$0xff] %vm282, 0.0
      %3555 = vst.msk [vmem:[#allocation2 + $0x8] sm:$0xff] %vm282, 0.0
      %3556 = vst.msk [vmem:[#allocation2 + $0x10] sm:$0xf] %vm285, 0.0
      %3557 = vst.msk [vmem:[#allocation2 + $0x18] sm:$0xff] %vm282, 0.0
      %3558 = vst.msk [vmem:[#allocation2 + $0x20] sm:$0xff] %vm282, 0.0
      %3559 = vst.msk [vmem:[#allocation2 + $0x28] sm:$0xf] %vm285, 0.0
      %3560 = vst.msk [vmem:[#allocation2 + $0x30] sm:$0xff] %vm282, 0.0
      %3561 = vst.msk [vmem:[#allocation2 + $0x38] sm:$0xff] %vm282, 0.0
      %3562 = vst.msk [vmem:[#allocation2 + $0x40] sm:$0xf] %vm285, 0.0
      %3563 = vst.msk [vmem:[#allocation2 + $0x48] sm:$0xff] %vm282, 0.0
      %3564 = vst.msk [vmem:[#allocation2 + $0x50] sm:$0xff] %vm282, 0.0
      %3565 = vst.msk [vmem:[#allocation2 + $0x58] sm:$0xf] %vm285, 0.0
      %3566 = vst.msk [vmem:[#allocation2 + $0x60] sm:$0xff] %vm282, 0.0
      %3567 = vst.msk [vmem:[#allocation2 + $0x68] sm:$0xff] %vm282, 0.0
      %3568 = vst.msk [vmem:[#allocation2 + $0x70] sm:$0xf] %vm285, 0.0
      %3569 = vst.msk [vmem:[#allocation2 + $0x78] sm:$0xff] %vm282, 0.0
      %3570 = vst.msk [vmem:[#allocation2 + $0x80] sm:$0xff] %vm282, 0.0
      %3571 = vst.msk [vmem:[#allocation2 + $0x88] sm:$0xf] %vm285, 0.0
      %3572 = vst.msk [vmem:[#allocation2 + $0x90] sm:$0xff] %vm282, 0.0
      %3573 = vst.msk [vmem:[#allocation2 + $0x98] sm:$0xff] %vm282, 0.0
      %3574 = vst.msk [vmem:[#allocation2 + $0xa0] sm:$0xf] %vm285, 0.0
      %3575 = vst.msk [vmem:[#allocation2 + $0xa8] sm:$0xff] %vm282, 0.0
      %3576 = vst.msk [vmem:[#allocation2 + $0xb0] sm:$0xff] %vm282, 0.0
      %3577 = vst.msk [vmem:[#allocation2 + $0xb8] sm:$0xf] %vm285, 0.0
      %3578 = vst.msk [vmem:[#allocation2 + $0xc0] sm:$0xff] %vm282, 0.0
      %3579 = vst.msk [vmem:[#allocation2 + $0xc8] sm:$0xff] %vm282, 0.0
      %3580 = vst.msk [vmem:[#allocation2 + $0xd0] sm:$0xf] %vm285, 0.0
      %3581 = vst.msk [vmem:[#allocation2 + $0xd8] sm:$0xff] %vm282, 0.0
      %3582 = vst.msk [vmem:[#allocation2 + $0xe0] sm:$0xff] %vm282, 0.0
      %3583 = vst.msk [vmem:[#allocation2 + $0xe8] sm:$0xf] %vm285, 0.0
      %3584 = vst.msk [vmem:[#allocation2 + $0xf0] sm:$0xff] %vm282, 0.0
      %3585 = vst.msk [vmem:[#allocation2 + $0xf8] sm:$0xff] %vm282, 0.0
      %3586 = vst.msk [vmem:[#allocation2 + $0x100] sm:$0xf] %vm285, 0.0
      %3587 = vst.msk [vmem:[#allocation2 + $0x108] sm:$0xff] %vm282, 0.0
      %3588 = vst.msk [vmem:[#allocation2 + $0x110] sm:$0xff] %vm282, 0.0
      %3589 = vst.msk [vmem:[#allocation2 + $0x118] sm:$0xf] %vm285, 0.0
      %3590 = vst.msk [vmem:[#allocation2 + $0x120] sm:$0xff] %vm282, 0.0
      %3591 = vst.msk [vmem:[#allocation2 + $0x128] sm:$0xff] %vm282, 0.0
      %3592 = vst.msk [vmem:[#allocation2 + $0x130] sm:$0xf] %vm285, 0.0
      %3593 = vst.msk [vmem:[#allocation2 + $0x138] sm:$0xff] %vm282, 0.0
      %3594 = vst.msk [vmem:[#allocation2 + $0x140] sm:$0xff] %vm282, 0.0
      %3595 = vst.msk [vmem:[#allocation2 + $0x148] sm:$0xf] %vm285, 0.0
      %3596 = vst.msk [vmem:[#allocation2 + $0x150] sm:$0xff] %vm282, 0.0
      %3597 = vst.msk [vmem:[#allocation2 + $0x158] sm:$0xff] %vm282, 0.0
      %3598 = vst.msk [vmem:[#allocation2 + $0x160] sm:$0xf] %vm285, 0.0
      %3599 = vst.msk [vmem:[#allocation2 + $0x168] sm:$0xff] %vm282, 0.0
      %3600 = vst.msk [vmem:[#allocation2 + $0x170] sm:$0xff] %vm282, 0.0
      %3601 = vst.msk [vmem:[#allocation2 + $0x178] sm:$0xf] %vm285, 0.0
      %3602 = vst.msk [vmem:[#allocation2 + $0x180] sm:$0xff] %vm282, 0.0
      %3603 = vst.msk [vmem:[#allocation2 + $0x188] sm:$0xff] %vm282, 0.0
      %3604 = vst.msk [vmem:[#allocation2 + $0x190] sm:$0xf] %vm285, 0.0
      %3605 = vst.msk [vmem:[#allocation2 + $0x198] sm:$0xff] %vm282, 0.0
      %3606 = vst.msk [vmem:[#allocation2 + $0x1a0] sm:$0xff] %vm282, 0.0
      %3607 = vst.msk [vmem:[#allocation2 + $0x1a8] sm:$0xf] %vm285, 0.0
      %3608 = vst.msk [vmem:[#allocation2 + $0x1b0] sm:$0xff] %vm282, 0.0
      %3609 = vst.msk [vmem:[#allocation2 + $0x1b8] sm:$0xff] %vm282, 0.0
      %3610 = vst.msk [vmem:[#allocation2 + $0x1c0] sm:$0xf] %vm285, 0.0
      %3611 = vst.msk [vmem:[#allocation2 + $0x1c8] sm:$0xff] %vm282, 0.0
      %3612 = vst.msk [vmem:[#allocation2 + $0x1d0] sm:$0xff] %vm282, 0.0
      %3613 = vst.msk [vmem:[#allocation2 + $0x1d8] sm:$0xf] %vm285, 0.0
      %3614 = vst.msk [vmem:[%s344 + $0x1] sm:$0xf] %vm285, %v3552
      %3615 = vst.msk [vmem:[%s346 - $0x3] sm:$0xf0] %vm347, %v3552
      %3616 = vst.msk [vmem:[%s349 + $0x1] sm:$0xf] %vm285, %v3553
      %3617 = vst.msk [vmem:[%s351 - $0x3] sm:$0xf0] %vm347, %v3553
      %v3618 = vld [vmem:[#allocation2] sm:$0x7]
      %v3619 = vld [vmem:[#allocation2 + $0x1] sm:$0x7]
      %v3620 = vld [vmem:[#allocation2 + $0x2] sm:$0x7]
      %v3621 = vld [vmem:[#allocation2 + $0x3] sm:$0x7]
      %v3622 = vld [vmem:[%s344] sm:$0x7]
      %v3623 = vld [vmem:[%s344 + $0x1] sm:$0x7]
      %v3624 = vld [vmem:[%s344 + $0x2] sm:$0x7]
      %v3625 = vld [vmem:[%s344 + $0x3] sm:$0x7]
      %v3626 = vld [vmem:[%s346] sm:$0x7]
      %v3627 = vld [vmem:[%s346 + $0x1] sm:$0x7]
      %v3628 = vld [vmem:[%s346 + $0x2] sm:$0x7]
      %v3629 = vld [vmem:[%s346 + $0x3] sm:$0x7]
      %v3630 = vld [vmem:[%s349] sm:$0x7]
      %v3631 = vld [vmem:[%s349 + $0x1] sm:$0x7]
      %v3632 = vld [vmem:[%s349 + $0x2] sm:$0x7]
      %v3633 = vld [vmem:[%s349 + $0x3] sm:$0x7]
      %3635 = vrot.lane.b32.xlu0 %v3619, 64
      %v3636 = vpop.permute.xlu0 %3635
      %3639 = vrot.lane.b32.xlu0 %v3621, 64
      %v3640 = vpop.permute.xlu0 %3639
      %3643 = vrot.lane.b32.xlu0 %v3623, 64
      %v3644 = vpop.permute.xlu0 %3643
      %3647 = vrot.lane.b32.xlu0 %v3625, 64
      %v3648 = vpop.permute.xlu0 %3647
      %3651 = vrot.lane.b32.xlu0 %v3627, 64
      %v3652 = vpop.permute.xlu0 %3651
      %3655 = vrot.lane.b32.xlu0 %v3629, 64
      %v3656 = vpop.permute.xlu0 %3655
      %3659 = vrot.lane.b32.xlu0 %v3631, 64
      %v3660 = vpop.permute.xlu0 %3659
      %3663 = vrot.lane.b32.xlu0 %v3633, 64
      %v3664 = vpop.permute.xlu0 %3663
      %v3666 = vsel %vm282, %v3618, %v3636
      %v3667 = vsel %vm282, %v3620, %v3640
      %v3668 = vsel %vm282, %v3622, %v3644
      %v3669 = vsel %vm282, %v3624, %v3648
      %v3670 = vsel %vm282, %v3626, %v3652
      %v3671 = vsel %vm282, %v3628, %v3656
      %v3672 = vsel %vm282, %v3630, %v3660
      %v3673 = vsel %vm282, %v3632, %v3664
      %3674 = vst [vmem:[#allocation3] sm:$0x7] %v3666
      %3675 = vst [vmem:[#allocation3 + $0x8] sm:$0x7] %v3667
      %3676 = vst [vmem:[#allocation3 + $0x10] sm:$0x7] %v3668
      %3677 = vst [vmem:[#allocation3 + $0x18] sm:$0x7] %v3669
      %3678 = vst [vmem:[#allocation3 + $0x20] sm:$0x7] %v3670
      %3679 = vst [vmem:[#allocation3 + $0x28] sm:$0x7] %v3671
      %3680 = vst [vmem:[#allocation3 + $0x30] sm:$0x7] %v3672
      %3681 = vst [vmem:[#allocation3 + $0x38] sm:$0x7] %v3673
      %v3682 = vld [vmem:[%s344] sm:$0x7]
      %v3683 = vld [vmem:[%s344 + $0x1] sm:$0x7]
      %v3684 = vld [vmem:[%s344 + $0x2] sm:$0x7]
      %v3685 = vld [vmem:[%s344 + $0x3] sm:$0x7]
      %v3686 = vld [vmem:[%s346] sm:$0x7]
      %v3687 = vld [vmem:[%s346 + $0x1] sm:$0x7]
      %v3688 = vld [vmem:[%s346 + $0x2] sm:$0x7]
      %v3689 = vld [vmem:[%s346 + $0x3] sm:$0x7]
      %v3690 = vld [vmem:[%s349] sm:$0x7]
      %v3691 = vld [vmem:[%s349 + $0x1] sm:$0x7]
      %v3692 = vld [vmem:[%s349 + $0x2] sm:$0x7]
      %v3693 = vld [vmem:[%s349 + $0x3] sm:$0x7]
      %v3694 = vld [vmem:[%s351] sm:$0x7]
      %v3695 = vld [vmem:[%s351 + $0x1] sm:$0x7]
      %v3696 = vld [vmem:[%s351 + $0x2] sm:$0x7]
      %v3697 = vld [vmem:[%s351 + $0x3] sm:$0x7]
      %3699 = vrot.lane.b32.xlu0 %v3683, 64
      %v3700 = vpop.permute.xlu0 %3699
      %3703 = vrot.lane.b32.xlu0 %v3685, 64
      %v3704 = vpop.permute.xlu0 %3703
      %3707 = vrot.lane.b32.xlu0 %v3687, 64
      %v3708 = vpop.permute.xlu0 %3707
      %3711 = vrot.lane.b32.xlu0 %v3689, 64
      %v3712 = vpop.permute.xlu0 %3711
      %3715 = vrot.lane.b32.xlu0 %v3691, 64
      %v3716 = vpop.permute.xlu0 %3715
      %3719 = vrot.lane.b32.xlu0 %v3693, 64
      %v3720 = vpop.permute.xlu0 %3719
      %3723 = vrot.lane.b32.xlu0 %v3695, 64
      %v3724 = vpop.permute.xlu0 %3723
      %3727 = vrot.lane.b32.xlu0 %v3697, 64
      %v3728 = vpop.permute.xlu0 %3727
      %v3730 = vsel %vm282, %v3682, %v3700
      %v3731 = vsel %vm282, %v3684, %v3704
      %v3732 = vsel %vm282, %v3686, %v3708
      %v3733 = vsel %vm282, %v3688, %v3712
      %v3734 = vsel %vm282, %v3690, %v3716
      %v3735 = vsel %vm282, %v3692, %v3720
      %v3736 = vsel %vm282, %v3694, %v3724
      %v3737 = vsel %vm282, %v3696, %v3728
      %v3746 = vrot.slane %v3730, 5
      %v3747 = vrot.slane %v3731, 5
      %v3748 = vrot.slane %v3732, 5
      %v3749 = vrot.slane %v3733, 5
      %v3750 = vrot.slane %v3734, 5
      %v3751 = vrot.slane %v3735, 5
      %v3752 = vrot.slane %v3736, 5
      %v3753 = vrot.slane %v3737, 5
      %3762 = vst [vmem:[#allocation3] sm:$0x38] %v3746
      %3763 = vst [vmem:[#allocation3 + $0x8] sm:$0x38] %v3747
      %3764 = vst [vmem:[#allocation3 + $0x10] sm:$0x38] %v3748
      %3765 = vst [vmem:[#allocation3 + $0x18] sm:$0x38] %v3749
      %3766 = vst [vmem:[#allocation3 + $0x20] sm:$0x38] %v3750
      %3767 = vst [vmem:[#allocation3 + $0x28] sm:$0x38] %v3751
      %3768 = vst [vmem:[#allocation3 + $0x30] sm:$0x38] %v3752
      %3769 = vst [vmem:[#allocation3 + $0x38] sm:$0x38] %v3753
      %v3770 = vld [vmem:[%s346] sm:$0x7]
      %v3771 = vld [vmem:[%s346 + $0x1] sm:$0x7]
      %v3772 = vld [vmem:[%s346 + $0x2] sm:$0x7]
      %v3773 = vld [vmem:[%s346 + $0x3] sm:$0x7]
      %v3774 = vld [vmem:[%s349] sm:$0x7]
      %v3775 = vld [vmem:[%s349 + $0x1] sm:$0x7]
      %v3776 = vld [vmem:[%s349 + $0x2] sm:$0x7]
      %v3777 = vld [vmem:[%s349 + $0x3] sm:$0x7]
      %v3778 = vld [vmem:[%s351] sm:$0x7]
      %v3779 = vld [vmem:[%s351 + $0x1] sm:$0x7]
      %v3780 = vld [vmem:[%s351 + $0x2] sm:$0x7]
      %v3781 = vld [vmem:[%s351 + $0x3] sm:$0x7]
      %v3782 = vld [vmem:[%s476] sm:$0x7]
      %v3783 = vld [vmem:[%s476 + $0x1] sm:$0x7]
      %v3784 = vld [vmem:[%s476 + $0x2] sm:$0x7]
      %v3785 = vld [vmem:[%s476 + $0x3] sm:$0x7]
      %3787 = vrot.lane.b32.xlu0 %v3771, 64
      %v3788 = vpop.permute.xlu0 %3787
      %3791 = vrot.lane.b32.xlu0 %v3773, 64
      %v3792 = vpop.permute.xlu0 %3791
      %3795 = vrot.lane.b32.xlu0 %v3775, 64
      %v3796 = vpop.permute.xlu0 %3795
      %3799 = vrot.lane.b32.xlu0 %v3777, 64
      %v3800 = vpop.permute.xlu0 %3799
      %3803 = vrot.lane.b32.xlu0 %v3779, 64
      %v3804 = vpop.permute.xlu0 %3803
      %3807 = vrot.lane.b32.xlu0 %v3781, 64
      %v3808 = vpop.permute.xlu0 %3807
      %3811 = vrot.lane.b32.xlu0 %v3783, 64
      %v3812 = vpop.permute.xlu0 %3811
      %3815 = vrot.lane.b32.xlu0 %v3785, 64
      %v3816 = vpop.permute.xlu0 %3815
      %v3818 = vsel %vm282, %v3770, %v3788
      %v3819 = vsel %vm282, %v3772, %v3792
      %v3820 = vsel %vm282, %v3774, %v3796
      %v3821 = vsel %vm282, %v3776, %v3800
      %v3822 = vsel %vm282, %v3778, %v3804
      %v3823 = vsel %vm282, %v3780, %v3808
      %v3824 = vsel %vm282, %v3782, %v3812
      %v3825 = vsel %vm282, %v3784, %v3816
      %v3834 = vrot.slane %v3818, 2
      %v3835 = vrot.slane %v3819, 2
      %v3836 = vrot.slane %v3820, 2
      %v3837 = vrot.slane %v3821, 2
      %v3838 = vrot.slane %v3822, 2
      %v3839 = vrot.slane %v3823, 2
      %v3840 = vrot.slane %v3824, 2
      %v3841 = vrot.slane %v3825, 2
      %3850 = vst [vmem:[#allocation3] sm:$0xc0] %v3834
      %3851 = vst [vmem:[#allocation3 + $0x8] sm:$0xc0] %v3835
      %3852 = vst [vmem:[#allocation3 + $0x10] sm:$0xc0] %v3836
      %3853 = vst [vmem:[#allocation3 + $0x18] sm:$0xc0] %v3837
      %3854 = vst [vmem:[#allocation3 + $0x20] sm:$0xc0] %v3838
      %3855 = vst [vmem:[#allocation3 + $0x28] sm:$0xc0] %v3839
      %3856 = vst [vmem:[#allocation3 + $0x30] sm:$0xc0] %v3840
      %3857 = vst [vmem:[#allocation3 + $0x38] sm:$0xc0] %v3841
      %3858 = vst [vmem:[#allocation3 + $0x40] sm:$0x1] %v3834
      %3859 = vst [vmem:[#allocation3 + $0x48] sm:$0x1] %v3835
      %3860 = vst [vmem:[#allocation3 + $0x50] sm:$0x1] %v3836
      %3861 = vst [vmem:[#allocation3 + $0x58] sm:$0x1] %v3837
      %3862 = vst [vmem:[#allocation3 + $0x60] sm:$0x1] %v3838
      %3863 = vst [vmem:[#allocation3 + $0x68] sm:$0x1] %v3839
      %3864 = vst [vmem:[#allocation3 + $0x70] sm:$0x1] %v3840
      %3865 = vst [vmem:[#allocation3 + $0x78] sm:$0x1] %v3841
      %v3866 = vld [vmem:[#allocation3] sm:$0xff]
      %v3867 = vld [vmem:[#allocation3 + $0x8] sm:$0xff]
      %v3868 = vld [vmem:[#allocation3 + $0x10] sm:$0xff]
      %v3869 = vld [vmem:[#allocation3 + $0x18] sm:$0xff]
      %v3870 = vld [vmem:[#allocation3 + $0x20] sm:$0xff]
      %v3871 = vld [vmem:[#allocation3 + $0x28] sm:$0xff]
      %v3872 = vld [vmem:[#allocation3 + $0x30] sm:$0xff]
      %v3873 = vld [vmem:[#allocation3 + $0x38] sm:$0xff]
      %v3874 = vld [vmem:[#allocation3 + $0x40] sm:$0x1]
      %v3875 = vld [vmem:[#allocation3 + $0x48] sm:$0x1]
      %v3876 = vld [vmem:[#allocation3 + $0x50] sm:$0x1]
      %v3877 = vld [vmem:[#allocation3 + $0x58] sm:$0x1]
      %v3878 = vld [vmem:[#allocation3 + $0x60] sm:$0x1]
      %v3879 = vld [vmem:[#allocation3 + $0x68] sm:$0x1]
      %v3880 = vld [vmem:[#allocation3 + $0x70] sm:$0x1]
      %v3881 = vld [vmem:[#allocation3 + $0x78] sm:$0x1]
      %v3882 = vpack.c.bf16 %v3874, %v3866
      %v3883 = vpack.c.bf16 %v3875, %v3867
      %v3884 = vpack.c.bf16 %v3876, %v3868
      %v3885 = vpack.c.bf16 %v3877, %v3869
      %v3886 = vpack.c.bf16 %v3878, %v3870
      %v3887 = vpack.c.bf16 %v3879, %v3871
      %v3888 = vpack.c.bf16 %v3880, %v3872
      %v3889 = vpack.c.bf16 %v3881, %v3873
      %v3890 = vld [vmem:[%s6] sm:$0xf]
      %v3891 = vld [vmem:[%s6 + $0x4] sm:$0xf]
      %v3892 = vld [vmem:[%s6 + $0x8] sm:$0xf]
      %v3893 = vld [vmem:[%s6 + $0xc] sm:$0xf]
      %v3894 = vld [vmem:[%s6 + $0x10] sm:$0xf]
      %v3895 = vld [vmem:[%s6 + $0x14] sm:$0xf]
      %v3896 = vld [vmem:[%s6 + $0x18] sm:$0xf]
      %v3897 = vld [vmem:[%s6 + $0x1c] sm:$0xf]
      %v3898 = vld [vmem:[%s6 + $0x20] sm:$0xf]
      %v3899 = vld [vmem:[%s6 + $0x24] sm:$0xf]
      %v3900 = vld [vmem:[%s6 + $0x28] sm:$0xf]
      %v3901 = vld [vmem:[%s6 + $0x2c] sm:$0xf]
      %v3902 = vld [vmem:[%s6 + $0x30] sm:$0xf]
      %v3903 = vld [vmem:[%s6 + $0x34] sm:$0xf]
      %v3904 = vld [vmem:[%s6 + $0x38] sm:$0xf]
      %v3905 = vld [vmem:[%s6 + $0x3c] sm:$0xf]
      %v3906 = vld [vmem:[%s6 + $0x40] sm:$0xf]
      %v3907 = vld [vmem:[%s6 + $0x44] sm:$0xf]
      %v3908 = vld [vmem:[%s6 + $0x48] sm:$0xf]
      %v3909 = vld [vmem:[%s6 + $0x4c] sm:$0xf]
      %v3910 = vld [vmem:[%s6 + $0x50] sm:$0xf]
      %v3911 = vld [vmem:[%s6 + $0x54] sm:$0xf]
      %v3912 = vld [vmem:[%s6 + $0x58] sm:$0xf]
      %v3913 = vld [vmem:[%s6 + $0x5c] sm:$0xf]
      %v3914 = vld [vmem:[%s6 + $0x60] sm:$0xf]
      %v3915 = vld [vmem:[%s6 + $0x64] sm:$0xf]
      %v3916 = vld [vmem:[%s6 + $0x68] sm:$0xf]
      %v3917 = vld [vmem:[%s6 + $0x6c] sm:$0xf]
      %v3918 = vld [vmem:[%s6 + $0x70] sm:$0xf]
      %v3919 = vld [vmem:[%s6 + $0x74] sm:$0xf]
      %v3920 = vld [vmem:[%s6 + $0x78] sm:$0xf]
      %v3921 = vld [vmem:[%s6 + $0x7c] sm:$0xf]
      %v3922 = vld [vmem:[%s6 + $0x80] sm:$0xf]
      %v3923 = vld [vmem:[%s6 + $0x84] sm:$0xf]
      %v3924 = vld [vmem:[%s6 + $0x88] sm:$0xf]
      %v3925 = vld [vmem:[%s6 + $0x8c] sm:$0xf]
      %v3926 = vld [vmem:[%s6 + $0x90] sm:$0xf]
      %v3927 = vld [vmem:[%s6 + $0x94] sm:$0xf]
      %v3928 = vld [vmem:[%s6 + $0x98] sm:$0xf]
      %v3929 = vld [vmem:[%s6 + $0x9c] sm:$0xf]
      %v3930 = vld [vmem:[%s6 + $0xa0] sm:$0xf]
      %v3931 = vld [vmem:[%s6 + $0xa4] sm:$0xf]
      %v3932 = vld [vmem:[%s6 + $0xa8] sm:$0xf]
      %v3933 = vld [vmem:[%s6 + $0xac] sm:$0xf]
      %v3934 = vld [vmem:[%s6 + $0xb0] sm:$0xf]
      %v3935 = vld [vmem:[%s6 + $0xb4] sm:$0xf]
      %v3936 = vld [vmem:[%s6 + $0xb8] sm:$0xf]
      %v3937 = vld [vmem:[%s6 + $0xbc] sm:$0xf]
      %v3938 = vld [vmem:[%s6 + $0xc0] sm:$0xf]
      %v3939 = vld [vmem:[%s6 + $0xc4] sm:$0xf]
      %v3940 = vld [vmem:[%s6 + $0xc8] sm:$0xf]
      %v3941 = vld [vmem:[%s6 + $0xcc] sm:$0xf]
      %v3942 = vld [vmem:[%s6 + $0xd0] sm:$0xf]
      %v3943 = vld [vmem:[%s6 + $0xd4] sm:$0xf]
      %v3944 = vld [vmem:[%s6 + $0xd8] sm:$0xf]
      %v3945 = vld [vmem:[%s6 + $0xdc] sm:$0xf]
      %v3946 = vld [vmem:[%s6 + $0xe0] sm:$0xf]
      %v3947 = vld [vmem:[%s6 + $0xe4] sm:$0xf]
      %v3948 = vld [vmem:[%s6 + $0xe8] sm:$0xf]
      %v3949 = vld [vmem:[%s6 + $0xec] sm:$0xf]
      %v3950 = vld [vmem:[%s6 + $0xf0] sm:$0xf]
      %v3951 = vld [vmem:[%s6 + $0xf4] sm:$0xf]
      %v3952 = vld [vmem:[%s6 + $0xf8] sm:$0xf]
      %v3953 = vld [vmem:[%s6 + $0xfc] sm:$0xf]
      %v3954 = vld [vmem:[%s6 + $0x100] sm:$0xf]
      %v3955 = vld [vmem:[%s6 + $0x104] sm:$0xf]
      %v3956 = vld [vmem:[%s6 + $0x108] sm:$0xf]
      %v3957 = vld [vmem:[%s6 + $0x10c] sm:$0xf]
      %v3958 = vld [vmem:[%s6 + $0x110] sm:$0xf]
      %v3959 = vld [vmem:[%s6 + $0x114] sm:$0xf]
      %v3960 = vld [vmem:[%s6 + $0x118] sm:$0xf]
      %v3961 = vld [vmem:[%s6 + $0x11c] sm:$0xf]
      %v3962 = vld [vmem:[%s6 + $0x120] sm:$0xf]
      %v3963 = vld [vmem:[%s6 + $0x124] sm:$0xf]
      %v3964 = vld [vmem:[%s6 + $0x128] sm:$0xf]
      %v3965 = vld [vmem:[%s6 + $0x12c] sm:$0xf]
      %v3966 = vld [vmem:[%s6 + $0x130] sm:$0xf]
      %v3967 = vld [vmem:[%s6 + $0x134] sm:$0xf]
      %v3968 = vld [vmem:[%s6 + $0x138] sm:$0xf]
      %v3969 = vld [vmem:[%s6 + $0x13c] sm:$0xf]
      %v3970 = vld [vmem:[%s6 + $0x140] sm:$0xf]
      %v3971 = vld [vmem:[%s6 + $0x144] sm:$0xf]
      %v3972 = vld [vmem:[%s6 + $0x148] sm:$0xf]
      %v3973 = vld [vmem:[%s6 + $0x14c] sm:$0xf]
      %v3974 = vld [vmem:[%s6 + $0x150] sm:$0xf]
      %v3975 = vld [vmem:[%s6 + $0x154] sm:$0xf]
      %v3976 = vld [vmem:[%s6 + $0x158] sm:$0xf]
      %v3977 = vld [vmem:[%s6 + $0x15c] sm:$0xf]
      %v3978 = vld [vmem:[%s6 + $0x160] sm:$0xf]
      %v3979 = vld [vmem:[%s6 + $0x164] sm:$0xf]
      %v3980 = vld [vmem:[%s6 + $0x168] sm:$0xf]
      %v3981 = vld [vmem:[%s6 + $0x16c] sm:$0xf]
      %v3982 = vld [vmem:[%s6 + $0x170] sm:$0xf]
      %v3983 = vld [vmem:[%s6 + $0x174] sm:$0xf]
      %v3984 = vld [vmem:[%s6 + $0x178] sm:$0xf]
      %v3985 = vld [vmem:[%s6 + $0x17c] sm:$0xf]
      %v3986 = vld [vmem:[%s6 + $0x180] sm:$0xf]
      %v3987 = vld [vmem:[%s6 + $0x184] sm:$0xf]
      %v3988 = vld [vmem:[%s6 + $0x188] sm:$0xf]
      %v3989 = vld [vmem:[%s6 + $0x18c] sm:$0xf]
      %v3990 = vld [vmem:[%s6 + $0x190] sm:$0xf]
      %v3991 = vld [vmem:[%s6 + $0x194] sm:$0xf]
      %v3992 = vld [vmem:[%s6 + $0x198] sm:$0xf]
      %v3993 = vld [vmem:[%s6 + $0x19c] sm:$0xf]
      %v3994 = vld [vmem:[%s6 + $0x1a0] sm:$0xf]
      %v3995 = vld [vmem:[%s6 + $0x1a4] sm:$0xf]
      %v3996 = vld [vmem:[%s6 + $0x1a8] sm:$0xf]
      %v3997 = vld [vmem:[%s6 + $0x1ac] sm:$0xf]
      %v3998 = vld [vmem:[%s6 + $0x1b0] sm:$0xf]
      %v3999 = vld [vmem:[%s6 + $0x1b4] sm:$0xf]
      %v4000 = vld [vmem:[%s6 + $0x1b8] sm:$0xf]
      %v4001 = vld [vmem:[%s6 + $0x1bc] sm:$0xf]
      %v4002 = vld [vmem:[%s6 + $0x1c0] sm:$0xf]
      %v4003 = vld [vmem:[%s6 + $0x1c4] sm:$0xf]
      %v4004 = vld [vmem:[%s6 + $0x1c8] sm:$0xf]
      %v4005 = vld [vmem:[%s6 + $0x1cc] sm:$0xf]
      %v4006 = vld [vmem:[%s6 + $0x1d0] sm:$0xf]
      %v4007 = vld [vmem:[%s6 + $0x1d4] sm:$0xf]
      %v4008 = vld [vmem:[%s6 + $0x1d8] sm:$0xf]
      %v4009 = vld [vmem:[%s6 + $0x1dc] sm:$0xf]
      %v4010 = vld [vmem:[%s6 + $0x1e0] sm:$0xf]
      %v4011 = vld [vmem:[%s6 + $0x1e4] sm:$0xf]
      %v4012 = vld [vmem:[%s6 + $0x1e8] sm:$0xf]
      %v4013 = vld [vmem:[%s6 + $0x1ec] sm:$0xf]
      %v4014 = vld [vmem:[%s6 + $0x1f0] sm:$0xf]
      %v4015 = vld [vmem:[%s6 + $0x1f4] sm:$0xf]
      %v4016 = vld [vmem:[%s6 + $0x1f8] sm:$0xf]
      %v4017 = vld [vmem:[%s6 + $0x1fc] sm:$0xf]
      %v4146 = vunpack.c.l.b16 %v3890
      %v4147 = vunpack.c.l.b16 %v3891
      %v4148 = vunpack.c.l.b16 %v3892
      %v4149 = vunpack.c.l.b16 %v3893
      %v4150 = vunpack.c.l.b16 %v3894
      %v4151 = vunpack.c.l.b16 %v3895
      %v4152 = vunpack.c.l.b16 %v3896
      %v4153 = vunpack.c.l.b16 %v3897
      %v4154 = vunpack.c.l.b16 %v3898
      %v4155 = vunpack.c.l.b16 %v3899
      %v4156 = vunpack.c.l.b16 %v3900
      %v4157 = vunpack.c.l.b16 %v3901
      %v4158 = vunpack.c.l.b16 %v3902
      %v4159 = vunpack.c.l.b16 %v3903
      %v4160 = vunpack.c.l.b16 %v3904
      %v4161 = vunpack.c.l.b16 %v3905
      %v4162 = vunpack.c.l.b16 %v3906
      %v4163 = vunpack.c.l.b16 %v3907
      %v4164 = vunpack.c.l.b16 %v3908
      %v4165 = vunpack.c.l.b16 %v3909
      %v4166 = vunpack.c.l.b16 %v3910
      %v4167 = vunpack.c.l.b16 %v3911
      %v4168 = vunpack.c.l.b16 %v3912
      %v4169 = vunpack.c.l.b16 %v3913
      %v4170 = vunpack.c.l.b16 %v3914
      %v4171 = vunpack.c.l.b16 %v3915
      %v4172 = vunpack.c.l.b16 %v3916
      %v4173 = vunpack.c.l.b16 %v3917
      %v4174 = vunpack.c.l.b16 %v3918
      %v4175 = vunpack.c.l.b16 %v3919
      %v4176 = vunpack.c.l.b16 %v3920
      %v4177 = vunpack.c.l.b16 %v3921
      %v4178 = vunpack.c.l.b16 %v3922
      %v4179 = vunpack.c.l.b16 %v3923
      %v4180 = vunpack.c.l.b16 %v3924
      %v4181 = vunpack.c.l.b16 %v3925
      %v4182 = vunpack.c.l.b16 %v3926
      %v4183 = vunpack.c.l.b16 %v3927
      %v4184 = vunpack.c.l.b16 %v3928
      %v4185 = vunpack.c.l.b16 %v3929
      %v4186 = vunpack.c.l.b16 %v3930
      %v4187 = vunpack.c.l.b16 %v3931
      %v4188 = vunpack.c.l.b16 %v3932
      %v4189 = vunpack.c.l.b16 %v3933
      %v4190 = vunpack.c.l.b16 %v3934
      %v4191 = vunpack.c.l.b16 %v3935
      %v4192 = vunpack.c.l.b16 %v3936
      %v4193 = vunpack.c.l.b16 %v3937
      %v4194 = vunpack.c.l.b16 %v3938
      %v4195 = vunpack.c.l.b16 %v3939
      %v4196 = vunpack.c.l.b16 %v3940
      %v4197 = vunpack.c.l.b16 %v3941
      %v4198 = vunpack.c.l.b16 %v3942
      %v4199 = vunpack.c.l.b16 %v3943
      %v4200 = vunpack.c.l.b16 %v3944
      %v4201 = vunpack.c.l.b16 %v3945
      %v4202 = vunpack.c.l.b16 %v3946
      %v4203 = vunpack.c.l.b16 %v3947
      %v4204 = vunpack.c.l.b16 %v3948
      %v4205 = vunpack.c.l.b16 %v3949
      %v4206 = vunpack.c.l.b16 %v3950
      %v4207 = vunpack.c.l.b16 %v3951
      %v4208 = vunpack.c.l.b16 %v3952
      %v4209 = vunpack.c.l.b16 %v3953
      %v4210 = vunpack.c.l.b16 %v3954
      %v4211 = vunpack.c.l.b16 %v3955
      %v4212 = vunpack.c.l.b16 %v3956
      %v4213 = vunpack.c.l.b16 %v3957
      %v4214 = vunpack.c.l.b16 %v3958
      %v4215 = vunpack.c.l.b16 %v3959
      %v4216 = vunpack.c.l.b16 %v3960
      %v4217 = vunpack.c.l.b16 %v3961
      %v4218 = vunpack.c.l.b16 %v3962
      %v4219 = vunpack.c.l.b16 %v3963
      %v4220 = vunpack.c.l.b16 %v3964
      %v4221 = vunpack.c.l.b16 %v3965
      %v4222 = vunpack.c.l.b16 %v3966
      %v4223 = vunpack.c.l.b16 %v3967
      %v4224 = vunpack.c.l.b16 %v3968
      %v4225 = vunpack.c.l.b16 %v3969
      %v4226 = vunpack.c.l.b16 %v3970
      %v4227 = vunpack.c.l.b16 %v3971
      %v4228 = vunpack.c.l.b16 %v3972
      %v4229 = vunpack.c.l.b16 %v3973
      %v4230 = vunpack.c.l.b16 %v3974
      %v4231 = vunpack.c.l.b16 %v3975
      %v4232 = vunpack.c.l.b16 %v3976
      %v4233 = vunpack.c.l.b16 %v3977
      %v4234 = vunpack.c.l.b16 %v3978
      %v4235 = vunpack.c.l.b16 %v3979
      %v4236 = vunpack.c.l.b16 %v3980
      %v4237 = vunpack.c.l.b16 %v3981
      %v4238 = vunpack.c.l.b16 %v3982
      %v4239 = vunpack.c.l.b16 %v3983
      %v4240 = vunpack.c.l.b16 %v3984
      %v4241 = vunpack.c.l.b16 %v3985
      %v4242 = vunpack.c.l.b16 %v3986
      %v4243 = vunpack.c.l.b16 %v3987
      %v4244 = vunpack.c.l.b16 %v3988
      %v4245 = vunpack.c.l.b16 %v3989
      %v4246 = vunpack.c.l.b16 %v3990
      %v4247 = vunpack.c.l.b16 %v3991
      %v4248 = vunpack.c.l.b16 %v3992
      %v4249 = vunpack.c.l.b16 %v3993
      %v4250 = vunpack.c.l.b16 %v3994
      %v4251 = vunpack.c.l.b16 %v3995
      %v4252 = vunpack.c.l.b16 %v3996
      %v4253 = vunpack.c.l.b16 %v3997
      %v4254 = vunpack.c.l.b16 %v3998
      %v4255 = vunpack.c.l.b16 %v3999
      %v4256 = vunpack.c.l.b16 %v4000
      %v4257 = vunpack.c.l.b16 %v4001
      %v4258 = vunpack.c.l.b16 %v4002
      %v4259 = vunpack.c.l.b16 %v4003
      %v4260 = vunpack.c.l.b16 %v4004
      %v4261 = vunpack.c.l.b16 %v4005
      %v4262 = vunpack.c.l.b16 %v4006
      %v4263 = vunpack.c.l.b16 %v4007
      %v4264 = vunpack.c.l.b16 %v4008
      %v4265 = vunpack.c.l.b16 %v4009
      %v4266 = vunpack.c.l.b16 %v4010
      %v4267 = vunpack.c.l.b16 %v4011
      %v4268 = vunpack.c.l.b16 %v4012
      %v4269 = vunpack.c.l.b16 %v4013
      %v4270 = vunpack.c.l.b16 %v4014
      %v4271 = vunpack.c.l.b16 %v4015
      %v4272 = vunpack.c.l.b16 %v4016
      %v4273 = vunpack.c.l.b16 %v4017
      %v4274 = vpack.c.b16 %v4147, %v4146
      %v4275 = vpack.c.b16 %v4149, %v4148
      %v4276 = vpack.c.b16 %v4151, %v4150
      %v4277 = vpack.c.b16 %v4153, %v4152
      %v4278 = vpack.c.b16 %v4155, %v4154
      %v4279 = vpack.c.b16 %v4157, %v4156
      %v4280 = vpack.c.b16 %v4159, %v4158
      %v4281 = vpack.c.b16 %v4161, %v4160
      %v4282 = vpack.c.b16 %v4163, %v4162
      %v4283 = vpack.c.b16 %v4165, %v4164
      %v4284 = vpack.c.b16 %v4167, %v4166
      %v4285 = vpack.c.b16 %v4169, %v4168
      %v4286 = vpack.c.b16 %v4171, %v4170
      %v4287 = vpack.c.b16 %v4173, %v4172
      %v4288 = vpack.c.b16 %v4175, %v4174
      %v4289 = vpack.c.b16 %v4177, %v4176
      %v4290 = vpack.c.b16 %v4179, %v4178
      %v4291 = vpack.c.b16 %v4181, %v4180
      %v4292 = vpack.c.b16 %v4183, %v4182
      %v4293 = vpack.c.b16 %v4185, %v4184
      %v4294 = vpack.c.b16 %v4187, %v4186
      %v4295 = vpack.c.b16 %v4189, %v4188
      %v4296 = vpack.c.b16 %v4191, %v4190
      %v4297 = vpack.c.b16 %v4193, %v4192
      %v4298 = vpack.c.b16 %v4195, %v4194
      %v4299 = vpack.c.b16 %v4197, %v4196
      %v4300 = vpack.c.b16 %v4199, %v4198
      %v4301 = vpack.c.b16 %v4201, %v4200
      %v4302 = vpack.c.b16 %v4203, %v4202
      %v4303 = vpack.c.b16 %v4205, %v4204
      %v4304 = vpack.c.b16 %v4207, %v4206
      %v4305 = vpack.c.b16 %v4209, %v4208
      %v4306 = vpack.c.b16 %v4211, %v4210
      %v4307 = vpack.c.b16 %v4213, %v4212
      %v4308 = vpack.c.b16 %v4215, %v4214
      %v4309 = vpack.c.b16 %v4217, %v4216
      %v4310 = vpack.c.b16 %v4219, %v4218
      %v4311 = vpack.c.b16 %v4221, %v4220
      %v4312 = vpack.c.b16 %v4223, %v4222
      %v4313 = vpack.c.b16 %v4225, %v4224
      %v4314 = vpack.c.b16 %v4227, %v4226
      %v4315 = vpack.c.b16 %v4229, %v4228
      %v4316 = vpack.c.b16 %v4231, %v4230
      %v4317 = vpack.c.b16 %v4233, %v4232
      %v4318 = vpack.c.b16 %v4235, %v4234
      %v4319 = vpack.c.b16 %v4237, %v4236
      %v4320 = vpack.c.b16 %v4239, %v4238
      %v4321 = vpack.c.b16 %v4241, %v4240
      %v4322 = vpack.c.b16 %v4243, %v4242
      %v4323 = vpack.c.b16 %v4245, %v4244
      %v4324 = vpack.c.b16 %v4247, %v4246
      %v4325 = vpack.c.b16 %v4249, %v4248
      %v4326 = vpack.c.b16 %v4251, %v4250
      %v4327 = vpack.c.b16 %v4253, %v4252
      %v4328 = vpack.c.b16 %v4255, %v4254
      %v4329 = vpack.c.b16 %v4257, %v4256
      %v4330 = vpack.c.b16 %v4259, %v4258
      %v4331 = vpack.c.b16 %v4261, %v4260
      %v4332 = vpack.c.b16 %v4263, %v4262
      %v4333 = vpack.c.b16 %v4265, %v4264
      %v4334 = vpack.c.b16 %v4267, %v4266
      %v4335 = vpack.c.b16 %v4269, %v4268
      %v4336 = vpack.c.b16 %v4271, %v4270
      %v4337 = vpack.c.b16 %v4273, %v4272
      %4402 = vmatpush.bf16.msra.mxu0 %v4281
      %4403 = vmatpush.bf16.msra.mxu0 %v4280
      %4404 = vmatpush.bf16.msra.mxu0 %v4279
      %4405 = vmatpush.bf16.msra.mxu0 %v4278
      %4406 = vmatpush.bf16.msra.mxu0 %v4277
      %4407 = vmatpush.bf16.msra.mxu0 %v4276
      %4408 = vmatpush.bf16.msra.mxu0 %v4275
      %4409 = vmatpush.bf16.msra.mxu0 %v4274
      %4410 = vmatmul.bf16.gmra.mxu0 %v3882
      %v4411 = vpop.f32.mrf.mxu0
      %v4412 = vadd.f32 0.0, %v4411
      %v4413 = vpop.f32.mrf.mxu0
      %v4414 = vadd.f32 0.0, %v4413
      %4415 = vdwg.mxu0
      %4416 = vmatpush.bf16.msra.mxu0 %v4289
      %4417 = vmatpush.bf16.msra.mxu0 %v4288
      %4418 = vmatpush.bf16.msra.mxu0 %v4287
      %4419 = vmatpush.bf16.msra.mxu0 %v4286
      %4420 = vmatpush.bf16.msra.mxu0 %v4285
      %4421 = vmatpush.bf16.msra.mxu0 %v4284
      %4422 = vmatpush.bf16.msra.mxu0 %v4283
      %4423 = vmatpush.bf16.msra.mxu0 %v4282
      %4424 = vmatmul.bf16.gmra.mxu0 %v3883
      %v4425 = vpop.f32.mrf.mxu0
      %v4426 = vadd.f32 %v4412, %v4425
      %v4427 = vpop.f32.mrf.mxu0
      %v4428 = vadd.f32 %v4414, %v4427
      %4429 = vdwg.mxu0
      %4430 = vmatpush.bf16.msra.mxu0 %v4297
      %4431 = vmatpush.bf16.msra.mxu0 %v4296
      %4432 = vmatpush.bf16.msra.mxu0 %v4295
      %4433 = vmatpush.bf16.msra.mxu0 %v4294
      %4434 = vmatpush.bf16.msra.mxu0 %v4293
      %4435 = vmatpush.bf16.msra.mxu0 %v4292
      %4436 = vmatpush.bf16.msra.mxu0 %v4291
      %4437 = vmatpush.bf16.msra.mxu0 %v4290
      %4438 = vmatmul.bf16.gmra.mxu0 %v3884
      %v4439 = vpop.f32.mrf.mxu0
      %v4440 = vadd.f32 %v4426, %v4439
      %v4441 = vpop.f32.mrf.mxu0
      %v4442 = vadd.f32 %v4428, %v4441
      %4443 = vdwg.mxu0
      %4444 = vmatpush.bf16.msra.mxu0 %v4305
      %4445 = vmatpush.bf16.msra.mxu0 %v4304
      %4446 = vmatpush.bf16.msra.mxu0 %v4303
      %4447 = vmatpush.bf16.msra.mxu0 %v4302
      %4448 = vmatpush.bf16.msra.mxu0 %v4301
      %4449 = vmatpush.bf16.msra.mxu0 %v4300
      %4450 = vmatpush.bf16.msra.mxu0 %v4299
      %4451 = vmatpush.bf16.msra.mxu0 %v4298
      %4452 = vmatmul.bf16.gmra.mxu0 %v3885
      %v4453 = vpop.f32.mrf.mxu0
      %v4454 = vadd.f32 %v4440, %v4453
      %v4455 = vpop.f32.mrf.mxu0
      %v4456 = vadd.f32 %v4442, %v4455
      %4457 = vdwg.mxu0
      %4458 = vmatpush.bf16.msra.mxu0 %v4313
      %4459 = vmatpush.bf16.msra.mxu0 %v4312
      %4460 = vmatpush.bf16.msra.mxu0 %v4311
      %4461 = vmatpush.bf16.msra.mxu0 %v4310
      %4462 = vmatpush.bf16.msra.mxu0 %v4309
      %4463 = vmatpush.bf16.msra.mxu0 %v4308
      %4464 = vmatpush.bf16.msra.mxu0 %v4307
      %4465 = vmatpush.bf16.msra.mxu0 %v4306
      %4466 = vmatmul.bf16.gmra.mxu0 %v3886
      %v4467 = vpop.f32.mrf.mxu0
      %v4468 = vadd.f32 %v4454, %v4467
      %v4469 = vpop.f32.mrf.mxu0
      %v4470 = vadd.f32 %v4456, %v4469
      %4471 = vdwg.mxu0
      %4472 = vmatpush.bf16.msra.mxu0 %v4321
      %4473 = vmatpush.bf16.msra.mxu0 %v4320
      %4474 = vmatpush.bf16.msra.mxu0 %v4319
      %4475 = vmatpush.bf16.msra.mxu0 %v4318
      %4476 = vmatpush.bf16.msra.mxu0 %v4317
      %4477 = vmatpush.bf16.msra.mxu0 %v4316
      %4478 = vmatpush.bf16.msra.mxu0 %v4315
      %4479 = vmatpush.bf16.msra.mxu0 %v4314
      %4480 = vmatmul.bf16.gmra.mxu0 %v3887
      %v4481 = vpop.f32.mrf.mxu0
      %v4482 = vadd.f32 %v4468, %v4481
      %v4483 = vpop.f32.mrf.mxu0
      %v4484 = vadd.f32 %v4470, %v4483
      %4485 = vdwg.mxu0
      %4486 = vmatpush.bf16.msra.mxu0 %v4329
      %4487 = vmatpush.bf16.msra.mxu0 %v4328
      %4488 = vmatpush.bf16.msra.mxu0 %v4327
      %4489 = vmatpush.bf16.msra.mxu0 %v4326
      %4490 = vmatpush.bf16.msra.mxu0 %v4325
      %4491 = vmatpush.bf16.msra.mxu0 %v4324
      %4492 = vmatpush.bf16.msra.mxu0 %v4323
      %4493 = vmatpush.bf16.msra.mxu0 %v4322
      %4494 = vmatmul.bf16.gmra.mxu0 %v3888
      %v4495 = vpop.f32.mrf.mxu0
      %v4496 = vadd.f32 %v4482, %v4495
      %v4497 = vpop.f32.mrf.mxu0
      %v4498 = vadd.f32 %v4484, %v4497
      %4499 = vdwg.mxu0
      %4500 = vmatpush.bf16.msra.mxu0 %v4337
      %4501 = vmatpush.bf16.msra.mxu0 %v4336
      %4502 = vmatpush.bf16.msra.mxu0 %v4335
      %4503 = vmatpush.bf16.msra.mxu0 %v4334
      %4504 = vmatpush.bf16.msra.mxu0 %v4333
      %4505 = vmatpush.bf16.msra.mxu0 %v4332
      %4506 = vmatpush.bf16.msra.mxu0 %v4331
      %4507 = vmatpush.bf16.msra.mxu0 %v4330
      %4508 = vmatmul.bf16.gmra.mxu0 %v3889
      %v4509 = vpop.f32.mrf.mxu0
      %v4510 = vadd.f32 %v4496, %v4509
      %v4511 = vpop.f32.mrf.mxu0
      %v4512 = vadd.f32 %v4498, %v4511
      %4513 = vdwg.mxu0
      %vm4514 = vcmask 7168
      %4515 = vst.msk [vmem:[%s278] sm:$0xff] %vm4514, %v4510
      %vm4516 = vcmask 0
      %4517 = vst.msk [vmem:[%s278 + $0x8] sm:$0x1] %vm4516, %v4512
      %p4518 = scmp.lt.s32.totalorder %s18, 1
      %s4519 = scalar_select %p4518, %s18, 1
      %s4520 = smul.addr %s4519, 2
      %s4521 = smul.addr %s4520, 8
      %s4522 = scalar_lea.vmem %s7, %s4521
      // Predicated region
      $region49: #{discriminator_forward.7} parent=47 // pred_check
        %p4523 = pneg %p188
      $region50: #{discriminator_forward.7} parent=47 // pred_check_branch
        %4525 = sbr.rel (%p4523) target = $region52
      $region51: #{discriminator_forward.7} parent=47 // pred_region
        _
      $region52: #{discriminator_forward.7} parent=47 // pred_fallthru
        _
    $region48: #{discriminator_forward.7} parent=5 // pred_fallthru
      _
    %p4526 = scmp.le.s32.totalorder 2, %s13
    // Predicated region
    $region53: #{discriminator_forward.7} parent=5 // pred_check
      %p4527 = pneg %p4526
    $region54: #{discriminator_forward.7} parent=5 // pred_check_branch
      %4529 = sbr.rel (%p4527) target = $region56
    $region55: #{discriminator_forward.7} parent=5 // pred_region
      %s4530 = ssub.s32 %s13, 2
      // Predicated region
      $region57: #{discriminator_forward.7} parent=55 // pred_check
        %p4531 = pneg %p194
      $region58: #{discriminator_forward.7} parent=55 // pred_check_branch
        %4533 = sbr.rel (%p4531) target = $region60
      $region59: #{discriminator_forward.7} parent=55 // pred_region
        %p4534 = scmp.lt.s32.totalorder %s19, 1
        %s4535 = scalar_select %p4534, %s19, 1
        %s4536 = smul.addr %s4535, 2
        %s4537 = smul.addr %s4536, 8
        %s4538 = scalar_lea.vmem %s7, %s4537
      $region60: #{discriminator_forward.7} parent=55 // pred_fallthru
        _
    $region56: #{discriminator_forward.7} parent=5 // pred_fallthru
      _
  $region6: #{discriminator_forward.7} parent=0 // loop_footer
    %s17 = sadd.s32 1, %s13
  $region7: #{discriminator_forward.7} parent=0 // loop_footer_branch
    %12 = sbr.rel target = $region3
  $region8: #{discriminator_forward.7} parent=0 // loop_exit
    _

</llo_original>
